<compile_context>
chip_gen: v6e
topology: v6e:2x2x1
jax: 0.10.0
libtpu: 0.0.40
codegen_flags: <defaults>
</compile_context>

<pallas_src>
import numpy as np
import jax
import jax.numpy as jnp
from jax.experimental import pallas as pl
from jax.experimental.pallas import tpu as pltpu


# ------------------------------ fused Pallas kernel -------------------------------

def _fedavg_cnn_kernel(x_ref, c1w_ref, c1b_ref, c2w_ref, c2b_ref,
                       fcw_ref, fcb_ref, linw_ref, linb_ref, o_ref, y1_scr):
    """One grid step == one sample; all weights VMEM-resident.

    x_ref   : (28, 28)      bf16  input image (rows = H, lanes = W)
    c1w_ref : (5, 28, 768)  bf16  conv1 band: [row-tap i, w_in, (dw, pw, c)]
    c1b_ref : (1, 384)      f32   conv1 bias tiled over pw      (lanes = (pw, c))
    c2w_ref : (5, 384, 512) bf16  conv2 band: [row-tap i, (pw, c), (dw, qw, d)]
    c2b_ref : (1, 256)      f32   conv2 bias tiled over qw      (lanes = (qw, d))
    fcw_ref : (4, 256, 512) bf16  fc weight:  [pooled row qh, (qw, d), hidden]
    fcb_ref : (1, 512)      f32
    linw_ref: (512, 128)    bf16  final linear, 10 cols zero-padded to 128
    linb_ref: (1, 128)      f32
    o_ref   : (1, 128)      f32   padded logits for this sample
    y1_scr  : (12, 384)     f32   pooled conv1 activations (rows = ph, lanes = (pw, c))
    """
    x = x_ref[...]                                              # (28, 28) bf16

    # ---- conv1: 5 banded MXU matmuls over the kernel row taps -> (24 = oh, 768)
    acc = jnp.dot(x[0:24, :], c1w_ref[0], preferred_element_type=jnp.float32)
    for i in range(1, 5):
        acc = acc + jnp.dot(x[i:i + 24, :], c1w_ref[i],
                            preferred_element_type=jnp.float32)
    # width maxpool: lanes are (dw, pw, c) -> max of the two 384-lane halves
    a = jnp.maximum(acc[:, 0:384], acc[:, 384:768])             # (24, 384)
    # height maxpool + bias + relu (bias is window-constant, relu is monotone)
    for p in range(12):
        row = jnp.maximum(a[2 * p:2 * p + 1, :], a[2 * p + 1:2 * p + 2, :])
        y1_scr[pl.ds(p, 1), :] = jnp.maximum(row + c1b_ref[...], 0.0)

    # ---- conv2: 5 banded MXU matmuls -> (8 = qh, 512 lanes = (dw, qw, d))
    acc2 = jnp.dot(y1_scr[pl.ds(0, 8), :].astype(jnp.bfloat16), c2w_ref[0],
                   preferred_element_type=jnp.float32)
    for i in range(1, 5):
        acc2 = acc2 + jnp.dot(y1_scr[pl.ds(i, 8), :].astype(jnp.bfloat16),
                              c2w_ref[i], preferred_element_type=jnp.float32)
    b = jnp.maximum(acc2[:, 0:256], acc2[:, 256:512])           # width pool -> (8, 256)
    b = jnp.maximum(b + c2b_ref[...], 0.0)                      # bias + relu

    # ---- conv2 height pool fused into fc:
    #      h = b_fc + sum_q max(row 2q, row 2q+1) @ W_fc[q]   (no in-kernel flatten)
    h = fcb_ref[...]                                            # (1, 512) f32
    for q in range(4):
        m = jnp.maximum(b[2 * q:2 * q + 1, :], b[2 * q + 1:2 * q + 2, :])   # (1, 256)
        h = h + jnp.dot(m.astype(jnp.bfloat16), fcw_ref[q],
                        preferred_element_type=jnp.float32)
    h = jnp.maximum(h, 0.0)                                     # relu
    # TODO(synk): nn.Dropout(0.5) (training-mode torch RNG) has no exact Pallas
    #             equivalent; treated as identity (inference mode).
    # softmax over the 512 hidden features (torch nn.Softmax() -> dim=1 on 2-D input).
    # NOTE: softmax-before-the-final-linear is exactly what the reference forward does.
    mx = jnp.max(h, axis=-1, keepdims=True)
    e = jnp.exp(h - mx)
    probs = e / jnp.sum(e, axis=-1, keepdims=True)              # exact normalization
    # final linear (lane-dense: 10 logits zero-padded to 128 columns)
    out = jnp.dot(probs.astype(jnp.bfloat16), linw_ref[...],
                  preferred_element_type=jnp.float32) + linb_ref[...]
    o_ref[...] = out


# ----------------------------------- wrapper ---------------------------------------

def fedavg_cnn_forward(x_nchw, prep):
    n, c, hh, ww = x_nchw.shape
    assert (c, hh, ww) == (1, 28, 28), "fc(1024, 512) forces a 1x28x28 input"
    x = x_nchw.reshape(n, 28, 28).astype(jnp.bfloat16)

    out = pl.pallas_call(
        _fedavg_cnn_kernel,
        out_shape=jax.ShapeDtypeStruct((n, 1, 128), jnp.float32),
        grid=(n,),
        in_specs=[
            pl.BlockSpec((None, 28, 28), lambda i: (i, 0, 0)),   # per-sample image
            pl.BlockSpec((5, 28, 768), lambda i: (0, 0, 0)),     # conv1 band (resident)
            pl.BlockSpec((1, 384), lambda i: (0, 0)),            # conv1 bias
            pl.BlockSpec((5, 384, 512), lambda i: (0, 0, 0)),    # conv2 band (resident)
            pl.BlockSpec((1, 256), lambda i: (0, 0)),            # conv2 bias
            pl.BlockSpec((4, 256, 512), lambda i: (0, 0, 0)),    # fc weight (resident)
            pl.BlockSpec((1, 512), lambda i: (0, 0)),            # fc bias
            pl.BlockSpec((512, 128), lambda i: (0, 0)),          # linear weight (padded)
            pl.BlockSpec((1, 128), lambda i: (0, 0)),            # linear bias (padded)
        ],
        out_specs=pl.BlockSpec((None, 1, 128), lambda i: (i, 0, 0)),
        scratch_shapes=[pltpu.VMEM((12, 384), jnp.float32)],
        compiler_params=pltpu.CompilerParams(dimension_semantics=("parallel",)),
    )(x, prep["conv1_band"], prep["conv1_bias"],
      prep["conv2_band"], prep["conv2_bias"],
      prep["fc_w"], prep["fc_b"], prep["lin_w"], prep["lin_b"])

    return out.reshape(n, 128)[:, :10]


# --------------------------------- parameters --------------------------------------

def _kaiming_normal(key, shape, fan_in):
    return jax.random.normal(key, shape, dtype=jnp.float32) * jnp.sqrt(2.0 / fan_in)


def init_params(seed=0):
    """PyTorch-layout parameters (as FedAvgCNN.init_params would produce)."""
    key = jax.random.PRNGKey(seed)
    k1, k2, k3, k4 = jax.random.split(key, 4)
    return {
        "conv1_w": _kaiming_normal(k1, (32, 1, 5, 5), 1 * 5 * 5),
        "conv1_b": jnp.zeros((32,), jnp.float32),
        "conv2_w": _kaiming_normal(k2, (64, 32, 5, 5), 32 * 5 * 5),
        "conv2_b": jnp.zeros((64,), jnp.float32),
        "fc_w": _kaiming_normal(k3, (512, 1024), 1024),   # torch layout (out, in)
        "fc_b": jnp.zeros((512,), jnp.float32),
        "lin_w": _kaiming_normal(k4, (10, 512), 512),      # torch layout (out, in)
        "lin_b": jnp.zeros((10,), jnp.float32),
    }


def prepare_params(params):
    """One-time repack of the torch-layout weights into the kernel's banded layouts.

    band1[i, w_in, (dw, pw, c)] = w1[c, 0, i, w_in - (2*pw + dw)]   (0 <= . < 5)
    band2[i, (pw, c), (dw, qw, d)] = w2[d, c, i, pw - (2*qw + dw)]  (0 <= . < 5)
    fcw[qh, (qw, d), o] = fc_w[o, d*16 + qh*4 + qw]   (torch NCHW flatten folded in)
    The band matrices trade a small static weight blow-up (~2 MiB, fetched once and
    VMEM-resident) for conv+pool layers that are pure matmuls with no im2col traffic.
    """
    w1 = np.asarray(params["conv1_w"], dtype=np.float32)    # (32, 1, 5, 5)
    w2 = np.asarray(params["conv2_w"], dtype=np.float32)    # (64, 32, 5, 5)
    fc_w = np.asarray(params["fc_w"], dtype=np.float32)     # (512, 1024)
    lin_w = np.asarray(params["lin_w"], dtype=np.float32)   # (10, 512)
    b1 = np.asarray(params["conv1_b"], dtype=np.float32)
    b2 = np.asarray(params["conv2_b"], dtype=np.float32)
    fc_b = np.asarray(params["fc_b"], dtype=np.float32)
    lin_b = np.asarray(params["lin_b"], dtype=np.float32)

    band1 = np.zeros((5, 28, 2, 12, 32), np.float32)
    for i in range(5):
        for dw in range(2):
            for pw in range(12):
                ow = 2 * pw + dw
                for j in range(5):
                    band1[i, ow + j, dw, pw, :] = w1[:, 0, i, j]
    band1 = band1.reshape(5, 28, 768)

    band2 = np.zeros((5, 12, 32, 2, 4, 64), np.float32)
    for i in range(5):
        for dw in range(2):
            for qw in range(4):
                ow = 2 * qw + dw
                for j in range(5):
                    band2[i, ow + j, :, dw, qw, :] = w2[:, :, i, j].T   # (c, d)
    band2 = band2.reshape(5, 384, 512)

    # fc: torch flat index = d*16 + qh*4 + qw  ->  per pooled row qh, lanes (qw, d)
    fcw = fc_w.reshape(512, 64, 4, 4).transpose(2, 3, 1, 0).reshape(4, 256, 512)

    # final linear: pad the 10 output columns to 128 for lane-dense stores
    linw = np.zeros((512, 128), np.float32)
    linw[:, :10] = lin_w.T
    linb = np.zeros((1, 128), np.float32)
    linb[0, :10] = lin_b

    return {
        "conv1_band": jnp.asarray(band1, dtype=jnp.bfloat16),
        "conv1_bias": jnp.asarray(np.tile(b1, 12)[None, :], dtype=jnp.float32),  # (1, 384)
        "conv2_band": jnp.asarray(band2, dtype=jnp.bfloat16),
        "conv2_bias": jnp.asarray(np.tile(b2, 4)[None, :], dtype=jnp.float32),   # (1, 256)
        "fc_w": jnp.asarray(fcw, dtype=jnp.bfloat16),
        "fc_b": jnp.asarray(fc_b[None, :], dtype=jnp.float32),
        "lin_w": jnp.asarray(linw, dtype=jnp.bfloat16),
        "lin_b": jnp.asarray(linb, dtype=jnp.float32),
    }


# ------------------------------------- main -----------------------------------------

if __name__ == "__main__":
    params = init_params(seed=0)
    prep = prepare_params(params)

    # Input size is forced to 1x28x28 by fc(1024, 512): 28->24->12->8->4, 64*4*4=1024.
    x = jax.random.normal(jax.random.PRNGKey(0), (2, 1, 28, 28), dtype=jnp.float32)

    fwd = jax.jit(fedavg_cnn_forward)
    out = jax.block_until_ready(fwd(x, prep))

    assert out.shape == (2, 10) and out.dtype == jnp.float32
    assert bool(jnp.all(jnp.isfinite(out)))
    print("KERNEL_OK")
</pallas_src>

<mosaic_0001>
module attributes {stable_mosaic.version = 11 : i64} {
  func.func @_fedavg_cnn_kernel(%arg0: i32, %arg1: memref<1x28x28xbf16, #tpu.memory_space<vmem>>, %arg2: memref<5x28x768xbf16, #tpu.memory_space<vmem>>, %arg3: memref<1x384xf32, #tpu.memory_space<vmem>>, %arg4: memref<5x384x512xbf16, #tpu.memory_space<vmem>>, %arg5: memref<1x256xf32, #tpu.memory_space<vmem>>, %arg6: memref<4x256x512xbf16, #tpu.memory_space<vmem>>, %arg7: memref<1x512xf32, #tpu.memory_space<vmem>>, %arg8: memref<512x128xbf16, #tpu.memory_space<vmem>>, %arg9: memref<1x128xf32, #tpu.memory_space<vmem>>, %arg10: memref<1x1x128xf32, #tpu.memory_space<vmem>>, %arg11: memref<12x384xf32, #tpu.memory_space<vmem>>) attributes {dimension_semantics = [#tpu.dimension_semantics<parallel>], iteration_bounds = array<i64: 2>, scalar_prefetch = 0 : i64, scratch_operands = 1 : i64, tpu.core_type = #tpu.core_type<tc>, window_params = [{transform_indices = @transform_0, window_bounds = array<i64: 1, 28, 28>}, {pipeline_mode = #tpu.pipeline_mode<synchronous>, transform_indices = @transform_1, window_bounds = array<i64: 5, 28, 768>}, {pipeline_mode = #tpu.pipeline_mode<synchronous>, transform_indices = @transform_2, window_bounds = array<i64: 1, 384>}, {pipeline_mode = #tpu.pipeline_mode<synchronous>, transform_indices = @transform_3, window_bounds = array<i64: 5, 384, 512>}, {pipeline_mode = #tpu.pipeline_mode<synchronous>, transform_indices = @transform_4, window_bounds = array<i64: 1, 256>}, {pipeline_mode = #tpu.pipeline_mode<synchronous>, transform_indices = @transform_5, window_bounds = array<i64: 4, 256, 512>}, {pipeline_mode = #tpu.pipeline_mode<synchronous>, transform_indices = @transform_6, window_bounds = array<i64: 1, 512>}, {pipeline_mode = #tpu.pipeline_mode<synchronous>, transform_indices = @transform_7, window_bounds = array<i64: 512, 128>}, {pipeline_mode = #tpu.pipeline_mode<synchronous>, transform_indices = @transform_8, window_bounds = array<i64: 1, 128>}, {transform_indices = @transform_9, window_bounds = array<i64: 1, 1, 128>}]} {
    %c0 = arith.constant 0 : index
    %c0_0 = arith.constant 0 : index
    %c0_1 = arith.constant 0 : index
    %0 = vector.load %arg1[%c0, %c0_0, %c0_1] : memref<1x28x28xbf16, #tpu.memory_space<vmem>>, vector<1x28x28xbf16>
    %1 = vector.shape_cast %0 : vector<1x28x28xbf16> to vector<28x28xbf16>
    %2 = vector.extract_strided_slice %1 {offsets = [0, 0], sizes = [24, 28], strides = [1, 1]} : vector<28x28xbf16> to vector<24x28xbf16>
    %c0_2 = arith.constant 0 : index
    %c0_3 = arith.constant 0 : index
    %c0_4 = arith.constant 0 : index
    %3 = vector.load %arg2[%c0_2, %c0_3, %c0_4] : memref<5x28x768xbf16, #tpu.memory_space<vmem>>, vector<1x28x768xbf16>
    %4 = vector.shape_cast %3 : vector<1x28x768xbf16> to vector<28x768xbf16>
    %cst = arith.constant dense<0.000000e+00> : vector<24x768xf32>
    %5 = tpu.matmul %2, %4, %cst {dimension_numbers = #tpu.dot_dimension_numbers<[1], [0], [0], [1], [0, 0, 1, 1], [], []>} : vector<24x28xbf16>, vector<28x768xbf16>, vector<24x768xf32> -> vector<24x768xf32>
    %6 = vector.extract_strided_slice %1 {offsets = [1, 0], sizes = [24, 28], strides = [1, 1]} : vector<28x28xbf16> to vector<24x28xbf16>
    %c1 = arith.constant 1 : index
    %c0_5 = arith.constant 0 : index
    %c0_6 = arith.constant 0 : index
    %7 = vector.load %arg2[%c1, %c0_5, %c0_6] : memref<5x28x768xbf16, #tpu.memory_space<vmem>>, vector<1x28x768xbf16>
    %8 = vector.shape_cast %7 : vector<1x28x768xbf16> to vector<28x768xbf16>
    %cst_7 = arith.constant dense<0.000000e+00> : vector<24x768xf32>
    %9 = tpu.matmul %6, %8, %cst_7 {dimension_numbers = #tpu.dot_dimension_numbers<[1], [0], [0], [1], [0, 0, 1, 1], [], []>} : vector<24x28xbf16>, vector<28x768xbf16>, vector<24x768xf32> -> vector<24x768xf32>
    %10 = arith.addf %5, %9 : vector<24x768xf32>
    %11 = vector.extract_strided_slice %1 {offsets = [2, 0], sizes = [24, 28], strides = [1, 1]} : vector<28x28xbf16> to vector<24x28xbf16>
    %c2 = arith.constant 2 : index
    %c0_8 = arith.constant 0 : index
    %c0_9 = arith.constant 0 : index
    %12 = vector.load %arg2[%c2, %c0_8, %c0_9] : memref<5x28x768xbf16, #tpu.memory_space<vmem>>, vector<1x28x768xbf16>
    %13 = vector.shape_cast %12 : vector<1x28x768xbf16> to vector<28x768xbf16>
    %cst_10 = arith.constant dense<0.000000e+00> : vector<24x768xf32>
    %14 = tpu.matmul %11, %13, %cst_10 {dimension_numbers = #tpu.dot_dimension_numbers<[1], [0], [0], [1], [0, 0, 1, 1], [], []>} : vector<24x28xbf16>, vector<28x768xbf16>, vector<24x768xf32> -> vector<24x768xf32>
    %15 = arith.addf %10, %14 : vector<24x768xf32>
    %16 = vector.extract_strided_slice %1 {offsets = [3, 0], sizes = [24, 28], strides = [1, 1]} : vector<28x28xbf16> to vector<24x28xbf16>
    %c3 = arith.constant 3 : index
    %c0_11 = arith.constant 0 : index
    %c0_12 = arith.constant 0 : index
    %17 = vector.load %arg2[%c3, %c0_11, %c0_12] : memref<5x28x768xbf16, #tpu.memory_space<vmem>>, vector<1x28x768xbf16>
    %18 = vector.shape_cast %17 : vector<1x28x768xbf16> to vector<28x768xbf16>
    %cst_13 = arith.constant dense<0.000000e+00> : vector<24x768xf32>
    %19 = tpu.matmul %16, %18, %cst_13 {dimension_numbers = #tpu.dot_dimension_numbers<[1], [0], [0], [1], [0, 0, 1, 1], [], []>} : vector<24x28xbf16>, vector<28x768xbf16>, vector<24x768xf32> -> vector<24x768xf32>
    %20 = arith.addf %15, %19 : vector<24x768xf32>
    %21 = vector.extract_strided_slice %1 {offsets = [4, 0], sizes = [24, 28], strides = [1, 1]} : vector<28x28xbf16> to vector<24x28xbf16>
    %c4 = arith.constant 4 : index
    %c0_14 = arith.constant 0 : index
    %c0_15 = arith.constant 0 : index
    %22 = vector.load %arg2[%c4, %c0_14, %c0_15] : memref<5x28x768xbf16, #tpu.memory_space<vmem>>, vector<1x28x768xbf16>
    %23 = vector.shape_cast %22 : vector<1x28x768xbf16> to vector<28x768xbf16>
    %cst_16 = arith.constant dense<0.000000e+00> : vector<24x768xf32>
    %24 = tpu.matmul %21, %23, %cst_16 {dimension_numbers = #tpu.dot_dimension_numbers<[1], [0], [0], [1], [0, 0, 1, 1], [], []>} : vector<24x28xbf16>, vector<28x768xbf16>, vector<24x768xf32> -> vector<24x768xf32>
    %25 = arith.addf %20, %24 : vector<24x768xf32>
    %26 = vector.extract_strided_slice %25 {offsets = [0, 0], sizes = [24, 384], strides = [1, 1]} : vector<24x768xf32> to vector<24x384xf32>
    %27 = vector.extract_strided_slice %25 {offsets = [0, 384], sizes = [24, 384], strides = [1, 1]} : vector<24x768xf32> to vector<24x384xf32>
    %28 = arith.maximumf %26, %27 : vector<24x384xf32>
    %29 = vector.extract_strided_slice %28 {offsets = [0, 0], sizes = [1, 384], strides = [1, 1]} : vector<24x384xf32> to vector<1x384xf32>
    %30 = vector.extract_strided_slice %28 {offsets = [1, 0], sizes = [1, 384], strides = [1, 1]} : vector<24x384xf32> to vector<1x384xf32>
    %31 = arith.maximumf %29, %30 : vector<1x384xf32>
    %c0_17 = arith.constant 0 : index
    %c0_18 = arith.constant 0 : index
    %32 = vector.load %arg3[%c0_17, %c0_18] : memref<1x384xf32, #tpu.memory_space<vmem>>, vector<1x384xf32>
    %33 = arith.addf %31, %32 : vector<1x384xf32>
    %cst_19 = arith.constant 0.000000e+00 : f32
    %34 = vector.broadcast %cst_19 : f32 to vector<1x384xf32>
    %35 = arith.maximumf %33, %34 : vector<1x384xf32>
    %c0_20 = arith.constant 0 : index
    %c0_21 = arith.constant 0 : index
    %36 = vector.load %arg11[%c0_20, %c0_21] : memref<12x384xf32, #tpu.memory_space<vmem>>, vector<1x384xf32>
    tpu.vector_store %arg11[%c0_20, %c0_21], %35 {strides = array<i32>} : memref<12x384xf32, #tpu.memory_space<vmem>>, vector<1x384xf32>,
    %37 = vector.extract_strided_slice %28 {offsets = [2, 0], sizes = [1, 384], strides = [1, 1]} : vector<24x384xf32> to vector<1x384xf32>
    %38 = vector.extract_strided_slice %28 {offsets = [3, 0], sizes = [1, 384], strides = [1, 1]} : vector<24x384xf32> to vector<1x384xf32>
    %39 = arith.maximumf %37, %38 : vector<1x384xf32>
    %c0_22 = arith.constant 0 : index
    %c0_23 = arith.constant 0 : index
    %40 = vector.load %arg3[%c0_22, %c0_23] : memref<1x384xf32, #tpu.memory_space<vmem>>, vector<1x384xf32>
    %41 = arith.addf %39, %40 : vector<1x384xf32>
    %cst_24 = arith.constant 0.000000e+00 : f32
    %42 = vector.broadcast %cst_24 : f32 to vector<1x384xf32>
    %43 = arith.maximumf %41, %42 : vector<1x384xf32>
    %c1_25 = arith.constant 1 : index
    %c0_26 = arith.constant 0 : index
    %44 = vector.load %arg11[%c1_25, %c0_26] : memref<12x384xf32, #tpu.memory_space<vmem>>, vector<1x384xf32>
    tpu.vector_store %arg11[%c1_25, %c0_26], %43 {strides = array<i32>} : memref<12x384xf32, #tpu.memory_space<vmem>>, vector<1x384xf32>,
    %45 = vector.extract_strided_slice %28 {offsets = [4, 0], sizes = [1, 384], strides = [1, 1]} : vector<24x384xf32> to vector<1x384xf32>
    %46 = vector.extract_strided_slice %28 {offsets = [5, 0], sizes = [1, 384], strides = [1, 1]} : vector<24x384xf32> to vector<1x384xf32>
    %47 = arith.maximumf %45, %46 : vector<1x384xf32>
    %c0_27 = arith.constant 0 : index
    %c0_28 = arith.constant 0 : index
    %48 = vector.load %arg3[%c0_27, %c0_28] : memref<1x384xf32, #tpu.memory_space<vmem>>, vector<1x384xf32>
    %49 = arith.addf %47, %48 : vector<1x384xf32>
    %cst_29 = arith.constant 0.000000e+00 : f32
    %50 = vector.broadcast %cst_29 : f32 to vector<1x384xf32>
    %51 = arith.maximumf %49, %50 : vector<1x384xf32>
    %c2_30 = arith.constant 2 : index
    %c0_31 = arith.constant 0 : index
    %52 = vector.load %arg11[%c2_30, %c0_31] : memref<12x384xf32, #tpu.memory_space<vmem>>, vector<1x384xf32>
    tpu.vector_store %arg11[%c2_30, %c0_31], %51 {strides = array<i32>} : memref<12x384xf32, #tpu.memory_space<vmem>>, vector<1x384xf32>,
    %53 = vector.extract_strided_slice %28 {offsets = [6, 0], sizes = [1, 384], strides = [1, 1]} : vector<24x384xf32> to vector<1x384xf32>
    %54 = vector.extract_strided_slice %28 {offsets = [7, 0], sizes = [1, 384], strides = [1, 1]} : vector<24x384xf32> to vector<1x384xf32>
    %55 = arith.maximumf %53, %54 : vector<1x384xf32>
    %c0_32 = arith.constant 0 : index
    %c0_33 = arith.constant 0 : index
    %56 = vector.load %arg3[%c0_32, %c0_33] : memref<1x384xf32, #tpu.memory_space<vmem>>, vector<1x384xf32>
    %57 = arith.addf %55, %56 : vector<1x384xf32>
    %cst_34 = arith.constant 0.000000e+00 : f32
    %58 = vector.broadcast %cst_34 : f32 to vector<1x384xf32>
    %59 = arith.maximumf %57, %58 : vector<1x384xf32>
    %c3_35 = arith.constant 3 : index
    %c0_36 = arith.constant 0 : index
    %60 = vector.load %arg11[%c3_35, %c0_36] : memref<12x384xf32, #tpu.memory_space<vmem>>, vector<1x384xf32>
    tpu.vector_store %arg11[%c3_35, %c0_36], %59 {strides = array<i32>} : memref<12x384xf32, #tpu.memory_space<vmem>>, vector<1x384xf32>,
    %61 = vector.extract_strided_slice %28 {offsets = [8, 0], sizes = [1, 384], strides = [1, 1]} : vector<24x384xf32> to vector<1x384xf32>
    %62 = vector.extract_strided_slice %28 {offsets = [9, 0], sizes = [1, 384], strides = [1, 1]} : vector<24x384xf32> to vector<1x384xf32>
    %63 = arith.maximumf %61, %62 : vector<1x384xf32>
    %c0_37 = arith.constant 0 : index
    %c0_38 = arith.constant 0 : index
    %64 = vector.load %arg3[%c0_37, %c0_38] : memref<1x384xf32, #tpu.memory_space<vmem>>, vector<1x384xf32>
    %65 = arith.addf %63, %64 : vector<1x384xf32>
    %cst_39 = arith.constant 0.000000e+00 : f32
    %66 = vector.broadcast %cst_39 : f32 to vector<1x384xf32>
    %67 = arith.maximumf %65, %66 : vector<1x384xf32>
    %c4_40 = arith.constant 4 : index
    %c0_41 = arith.constant 0 : index
    %68 = vector.load %arg11[%c4_40, %c0_41] : memref<12x384xf32, #tpu.memory_space<vmem>>, vector<1x384xf32>
    tpu.vector_store %arg11[%c4_40, %c0_41], %67 {strides = array<i32>} : memref<12x384xf32, #tpu.memory_space<vmem>>, vector<1x384xf32>,
    %69 = vector.extract_strided_slice %28 {offsets = [10, 0], sizes = [1, 384], strides = [1, 1]} : vector<24x384xf32> to vector<1x384xf32>
    %70 = vector.extract_strided_slice %28 {offsets = [11, 0], sizes = [1, 384], strides = [1, 1]} : vector<24x384xf32> to vector<1x384xf32>
    %71 = arith.maximumf %69, %70 : vector<1x384xf32>
    %c0_42 = arith.constant 0 : index
    %c0_43 = arith.constant 0 : index
    %72 = vector.load %arg3[%c0_42, %c0_43] : memref<1x384xf32, #tpu.memory_space<vmem>>, vector<1x384xf32>
    %73 = arith.addf %71, %72 : vector<1x384xf32>
    %cst_44 = arith.constant 0.000000e+00 : f32
    %74 = vector.broadcast %cst_44 : f32 to vector<1x384xf32>
    %75 = arith.maximumf %73, %74 : vector<1x384xf32>
    %c5 = arith.constant 5 : index
    %c0_45 = arith.constant 0 : index
    %76 = vector.load %arg11[%c5, %c0_45] : memref<12x384xf32, #tpu.memory_space<vmem>>, vector<1x384xf32>
    tpu.vector_store %arg11[%c5, %c0_45], %75 {strides = array<i32>} : memref<12x384xf32, #tpu.memory_space<vmem>>, vector<1x384xf32>,
    %77 = vector.extract_strided_slice %28 {offsets = [12, 0], sizes = [1, 384], strides = [1, 1]} : vector<24x384xf32> to vector<1x384xf32>
    %78 = vector.extract_strided_slice %28 {offsets = [13, 0], sizes = [1, 384], strides = [1, 1]} : vector<24x384xf32> to vector<1x384xf32>
    %79 = arith.maximumf %77, %78 : vector<1x384xf32>
    %c0_46 = arith.constant 0 : index
    %c0_47 = arith.constant 0 : index
    %80 = vector.load %arg3[%c0_46, %c0_47] : memref<1x384xf32, #tpu.memory_space<vmem>>, vector<1x384xf32>
    %81 = arith.addf %79, %80 : vector<1x384xf32>
    %cst_48 = arith.constant 0.000000e+00 : f32
    %82 = vector.broadcast %cst_48 : f32 to vector<1x384xf32>
    %83 = arith.maximumf %81, %82 : vector<1x384xf32>
    %c6 = arith.constant 6 : index
    %c0_49 = arith.constant 0 : index
    %84 = vector.load %arg11[%c6, %c0_49] : memref<12x384xf32, #tpu.memory_space<vmem>>, vector<1x384xf32>
    tpu.vector_store %arg11[%c6, %c0_49], %83 {strides = array<i32>} : memref<12x384xf32, #tpu.memory_space<vmem>>, vector<1x384xf32>,
    %85 = vector.extract_strided_slice %28 {offsets = [14, 0], sizes = [1, 384], strides = [1, 1]} : vector<24x384xf32> to vector<1x384xf32>
    %86 = vector.extract_strided_slice %28 {offsets = [15, 0], sizes = [1, 384], strides = [1, 1]} : vector<24x384xf32> to vector<1x384xf32>
    %87 = arith.maximumf %85, %86 : vector<1x384xf32>
    %c0_50 = arith.constant 0 : index
    %c0_51 = arith.constant 0 : index
    %88 = vector.load %arg3[%c0_50, %c0_51] : memref<1x384xf32, #tpu.memory_space<vmem>>, vector<1x384xf32>
    %89 = arith.addf %87, %88 : vector<1x384xf32>
    %cst_52 = arith.constant 0.000000e+00 : f32
    %90 = vector.broadcast %cst_52 : f32 to vector<1x384xf32>
    %91 = arith.maximumf %89, %90 : vector<1x384xf32>
    %c7 = arith.constant 7 : index
    %c0_53 = arith.constant 0 : index
    %92 = vector.load %arg11[%c7, %c0_53] : memref<12x384xf32, #tpu.memory_space<vmem>>, vector<1x384xf32>
    tpu.vector_store %arg11[%c7, %c0_53], %91 {strides = array<i32>} : memref<12x384xf32, #tpu.memory_space<vmem>>, vector<1x384xf32>,
    %93 = vector.extract_strided_slice %28 {offsets = [16, 0], sizes = [1, 384], strides = [1, 1]} : vector<24x384xf32> to vector<1x384xf32>
    %94 = vector.extract_strided_slice %28 {offsets = [17, 0], sizes = [1, 384], strides = [1, 1]} : vector<24x384xf32> to vector<1x384xf32>
    %95 = arith.maximumf %93, %94 : vector<1x384xf32>
    %c0_54 = arith.constant 0 : index
    %c0_55 = arith.constant 0 : index
    %96 = vector.load %arg3[%c0_54, %c0_55] : memref<1x384xf32, #tpu.memory_space<vmem>>, vector<1x384xf32>
    %97 = arith.addf %95, %96 : vector<1x384xf32>
    %cst_56 = arith.constant 0.000000e+00 : f32
    %98 = vector.broadcast %cst_56 : f32 to vector<1x384xf32>
    %99 = arith.maximumf %97, %98 : vector<1x384xf32>
    %c8 = arith.constant 8 : index
    %c0_57 = arith.constant 0 : index
    %100 = vector.load %arg11[%c8, %c0_57] : memref<12x384xf32, #tpu.memory_space<vmem>>, vector<1x384xf32>
    tpu.vector_store %arg11[%c8, %c0_57], %99 {strides = array<i32>} : memref<12x384xf32, #tpu.memory_space<vmem>>, vector<1x384xf32>,
    %101 = vector.extract_strided_slice %28 {offsets = [18, 0], sizes = [1, 384], strides = [1, 1]} : vector<24x384xf32> to vector<1x384xf32>
    %102 = vector.extract_strided_slice %28 {offsets = [19, 0], sizes = [1, 384], strides = [1, 1]} : vector<24x384xf32> to vector<1x384xf32>
    %103 = arith.maximumf %101, %102 : vector<1x384xf32>
    %c0_58 = arith.constant 0 : index
    %c0_59 = arith.constant 0 : index
    %104 = vector.load %arg3[%c0_58, %c0_59] : memref<1x384xf32, #tpu.memory_space<vmem>>, vector<1x384xf32>
    %105 = arith.addf %103, %104 : vector<1x384xf32>
    %cst_60 = arith.constant 0.000000e+00 : f32
    %106 = vector.broadcast %cst_60 : f32 to vector<1x384xf32>
    %107 = arith.maximumf %105, %106 : vector<1x384xf32>
    %c9 = arith.constant 9 : index
    %c0_61 = arith.constant 0 : index
    %108 = vector.load %arg11[%c9, %c0_61] : memref<12x384xf32, #tpu.memory_space<vmem>>, vector<1x384xf32>
    tpu.vector_store %arg11[%c9, %c0_61], %107 {strides = array<i32>} : memref<12x384xf32, #tpu.memory_space<vmem>>, vector<1x384xf32>,
    %109 = vector.extract_strided_slice %28 {offsets = [20, 0], sizes = [1, 384], strides = [1, 1]} : vector<24x384xf32> to vector<1x384xf32>
    %110 = vector.extract_strided_slice %28 {offsets = [21, 0], sizes = [1, 384], strides = [1, 1]} : vector<24x384xf32> to vector<1x384xf32>
    %111 = arith.maximumf %109, %110 : vector<1x384xf32>
    %c0_62 = arith.constant 0 : index
    %c0_63 = arith.constant 0 : index
    %112 = vector.load %arg3[%c0_62, %c0_63] : memref<1x384xf32, #tpu.memory_space<vmem>>, vector<1x384xf32>
    %113 = arith.addf %111, %112 : vector<1x384xf32>
    %cst_64 = arith.constant 0.000000e+00 : f32
    %114 = vector.broadcast %cst_64 : f32 to vector<1x384xf32>
    %115 = arith.maximumf %113, %114 : vector<1x384xf32>
    %c10 = arith.constant 10 : index
    %c0_65 = arith.constant 0 : index
    %116 = vector.load %arg11[%c10, %c0_65] : memref<12x384xf32, #tpu.memory_space<vmem>>, vector<1x384xf32>
    tpu.vector_store %arg11[%c10, %c0_65], %115 {strides = array<i32>} : memref<12x384xf32, #tpu.memory_space<vmem>>, vector<1x384xf32>,
    %117 = vector.extract_strided_slice %28 {offsets = [22, 0], sizes = [1, 384], strides = [1, 1]} : vector<24x384xf32> to vector<1x384xf32>
    %118 = vector.extract_strided_slice %28 {offsets = [23, 0], sizes = [1, 384], strides = [1, 1]} : vector<24x384xf32> to vector<1x384xf32>
    %119 = arith.maximumf %117, %118 : vector<1x384xf32>
    %c0_66 = arith.constant 0 : index
    %c0_67 = arith.constant 0 : index
    %120 = vector.load %arg3[%c0_66, %c0_67] : memref<1x384xf32, #tpu.memory_space<vmem>>, vector<1x384xf32>
    %121 = arith.addf %119, %120 : vector<1x384xf32>
    %cst_68 = arith.constant 0.000000e+00 : f32
    %122 = vector.broadcast %cst_68 : f32 to vector<1x384xf32>
    %123 = arith.maximumf %121, %122 : vector<1x384xf32>
    %c11 = arith.constant 11 : index
    %c0_69 = arith.constant 0 : index
    %124 = vector.load %arg11[%c11, %c0_69] : memref<12x384xf32, #tpu.memory_space<vmem>>, vector<1x384xf32>
    tpu.vector_store %arg11[%c11, %c0_69], %123 {strides = array<i32>} : memref<12x384xf32, #tpu.memory_space<vmem>>, vector<1x384xf32>,
    %c0_70 = arith.constant 0 : index
    %c0_71 = arith.constant 0 : index
    %125 = vector.load %arg11[%c0_70, %c0_71] : memref<12x384xf32, #tpu.memory_space<vmem>>, vector<8x384xf32>
    %126 = arith.truncf %125 : vector<8x384xf32> to vector<8x384xbf16>
    %c0_72 = arith.constant 0 : index
    %c0_73 = arith.constant 0 : index
    %c0_74 = arith.constant 0 : index
    %127 = vector.load %arg4[%c0_72, %c0_73, %c0_74] : memref<5x384x512xbf16, #tpu.memory_space<vmem>>, vector<1x384x512xbf16>
    %128 = vector.shape_cast %127 : vector<1x384x512xbf16> to vector<384x512xbf16>
    %cst_75 = arith.constant dense<0.000000e+00> : vector<8x512xf32>
    %129 = tpu.matmul %126, %128, %cst_75 {dimension_numbers = #tpu.dot_dimension_numbers<[1], [0], [0], [1], [0, 0, 1, 1], [], []>} : vector<8x384xbf16>, vector<384x512xbf16>, vector<8x512xf32> -> vector<8x512xf32>
    %c1_76 = arith.constant 1 : index
    %c0_77 = arith.constant 0 : index
    %130 = vector.load %arg11[%c1_76, %c0_77] : memref<12x384xf32, #tpu.memory_space<vmem>>, vector<8x384xf32>
    %131 = arith.truncf %130 : vector<8x384xf32> to vector<8x384xbf16>
    %c1_78 = arith.constant 1 : index
    %c0_79 = arith.constant 0 : index
    %c0_80 = arith.constant 0 : index
    %132 = vector.load %arg4[%c1_78, %c0_79, %c0_80] : memref<5x384x512xbf16, #tpu.memory_space<vmem>>, vector<1x384x512xbf16>
    %133 = vector.shape_cast %132 : vector<1x384x512xbf16> to vector<384x512xbf16>
    %cst_81 = arith.constant dense<0.000000e+00> : vector<8x512xf32>
    %134 = tpu.matmul %131, %133, %cst_81 {dimension_numbers = #tpu.dot_dimension_numbers<[1], [0], [0], [1], [0, 0, 1, 1], [], []>} : vector<8x384xbf16>, vector<384x512xbf16>, vector<8x512xf32> -> vector<8x512xf32>
    %135 = arith.addf %129, %134 : vector<8x512xf32>
    %c2_82 = arith.constant 2 : index
    %c0_83 = arith.constant 0 : index
    %136 = vector.load %arg11[%c2_82, %c0_83] : memref<12x384xf32, #tpu.memory_space<vmem>>, vector<8x384xf32>
    %137 = arith.truncf %136 : vector<8x384xf32> to vector<8x384xbf16>
    %c2_84 = arith.constant 2 : index
    %c0_85 = arith.constant 0 : index
    %c0_86 = arith.constant 0 : index
    %138 = vector.load %arg4[%c2_84, %c0_85, %c0_86] : memref<5x384x512xbf16, #tpu.memory_space<vmem>>, vector<1x384x512xbf16>
    %139 = vector.shape_cast %138 : vector<1x384x512xbf16> to vector<384x512xbf16>
    %cst_87 = arith.constant dense<0.000000e+00> : vector<8x512xf32>
    %140 = tpu.matmul %137, %139, %cst_87 {dimension_numbers = #tpu.dot_dimension_numbers<[1], [0], [0], [1], [0, 0, 1, 1], [], []>} : vector<8x384xbf16>, vector<384x512xbf16>, vector<8x512xf32> -> vector<8x512xf32>
    %141 = arith.addf %135, %140 : vector<8x512xf32>
    %c3_88 = arith.constant 3 : index
    %c0_89 = arith.constant 0 : index
    %142 = vector.load %arg11[%c3_88, %c0_89] : memref<12x384xf32, #tpu.memory_space<vmem>>, vector<8x384xf32>
    %143 = arith.truncf %142 : vector<8x384xf32> to vector<8x384xbf16>
    %c3_90 = arith.constant 3 : index
    %c0_91 = arith.constant 0 : index
    %c0_92 = arith.constant 0 : index
    %144 = vector.load %arg4[%c3_90, %c0_91, %c0_92] : memref<5x384x512xbf16, #tpu.memory_space<vmem>>, vector<1x384x512xbf16>
    %145 = vector.shape_cast %144 : vector<1x384x512xbf16> to vector<384x512xbf16>
    %cst_93 = arith.constant dense<0.000000e+00> : vector<8x512xf32>
    %146 = tpu.matmul %143, %145, %cst_93 {dimension_numbers = #tpu.dot_dimension_numbers<[1], [0], [0], [1], [0, 0, 1, 1], [], []>} : vector<8x384xbf16>, vector<384x512xbf16>, vector<8x512xf32> -> vector<8x512xf32>
    %147 = arith.addf %141, %146 : vector<8x512xf32>
    %c4_94 = arith.constant 4 : index
    %c0_95 = arith.constant 0 : index
    %148 = vector.load %arg11[%c4_94, %c0_95] : memref<12x384xf32, #tpu.memory_space<vmem>>, vector<8x384xf32>
    %149 = arith.truncf %148 : vector<8x384xf32> to vector<8x384xbf16>
    %c4_96 = arith.constant 4 : index
    %c0_97 = arith.constant 0 : index
    %c0_98 = arith.constant 0 : index
    %150 = vector.load %arg4[%c4_96, %c0_97, %c0_98] : memref<5x384x512xbf16, #tpu.memory_space<vmem>>, vector<1x384x512xbf16>
    %151 = vector.shape_cast %150 : vector<1x384x512xbf16> to vector<384x512xbf16>
    %cst_99 = arith.constant dense<0.000000e+00> : vector<8x512xf32>
    %152 = tpu.matmul %149, %151, %cst_99 {dimension_numbers = #tpu.dot_dimension_numbers<[1], [0], [0], [1], [0, 0, 1, 1], [], []>} : vector<8x384xbf16>, vector<384x512xbf16>, vector<8x512xf32> -> vector<8x512xf32>
    %153 = arith.addf %147, %152 : vector<8x512xf32>
    %154 = vector.extract_strided_slice %153 {offsets = [0, 0], sizes = [8, 256], strides = [1, 1]} : vector<8x512xf32> to vector<8x256xf32>
    %155 = vector.extract_strided_slice %153 {offsets = [0, 256], sizes = [8, 256], strides = [1, 1]} : vector<8x512xf32> to vector<8x256xf32>
    %156 = arith.maximumf %154, %155 : vector<8x256xf32>
    %c0_100 = arith.constant 0 : index
    %c0_101 = arith.constant 0 : index
    %157 = vector.load %arg5[%c0_100, %c0_101] : memref<1x256xf32, #tpu.memory_space<vmem>>, vector<1x256xf32>
    %158 = vector.broadcast %157 : vector<1x256xf32> to vector<8x256xf32>
    %159 = arith.addf %156, %158 : vector<8x256xf32>
    %cst_102 = arith.constant 0.000000e+00 : f32
    %160 = vector.broadcast %cst_102 : f32 to vector<8x256xf32>
    %161 = arith.maximumf %159, %160 : vector<8x256xf32>
    %c0_103 = arith.constant 0 : index
    %c0_104 = arith.constant 0 : index
    %162 = vector.load %arg7[%c0_103, %c0_104] : memref<1x512xf32, #tpu.memory_space<vmem>>, vector<1x512xf32>
    %163 = vector.extract_strided_slice %161 {offsets = [0, 0], sizes = [1, 256], strides = [1, 1]} : vector<8x256xf32> to vector<1x256xf32>
    %164 = vector.extract_strided_slice %161 {offsets = [1, 0], sizes = [1, 256], strides = [1, 1]} : vector<8x256xf32> to vector<1x256xf32>
    %165 = arith.maximumf %163, %164 : vector<1x256xf32>
    %166 = arith.truncf %165 : vector<1x256xf32> to vector<1x256xbf16>
    %c0_105 = arith.constant 0 : index
    %c0_106 = arith.constant 0 : index
    %c0_107 = arith.constant 0 : index
    %167 = vector.load %arg6[%c0_105, %c0_106, %c0_107] : memref<4x256x512xbf16, #tpu.memory_space<vmem>>, vector<1x256x512xbf16>
    %168 = vector.shape_cast %167 : vector<1x256x512xbf16> to vector<256x512xbf16>
    %cst_108 = arith.constant dense<0.000000e+00> : vector<1x512xf32>
    %169 = tpu.matmul %166, %168, %cst_108 {dimension_numbers = #tpu.dot_dimension_numbers<[1], [0], [0], [1], [0, 0, 1, 1], [], []>} : vector<1x256xbf16>, vector<256x512xbf16>, vector<1x512xf32> -> vector<1x512xf32>
    %170 = arith.addf %162, %169 : vector<1x512xf32>
    %171 = vector.extract_strided_slice %161 {offsets = [2, 0], sizes = [1, 256], strides = [1, 1]} : vector<8x256xf32> to vector<1x256xf32>
    %172 = vector.extract_strided_slice %161 {offsets = [3, 0], sizes = [1, 256], strides = [1, 1]} : vector<8x256xf32> to vector<1x256xf32>
    %173 = arith.maximumf %171, %172 : vector<1x256xf32>
    %174 = arith.truncf %173 : vector<1x256xf32> to vector<1x256xbf16>
    %c1_109 = arith.constant 1 : index
    %c0_110 = arith.constant 0 : index
    %c0_111 = arith.constant 0 : index
    %175 = vector.load %arg6[%c1_109, %c0_110, %c0_111] : memref<4x256x512xbf16, #tpu.memory_space<vmem>>, vector<1x256x512xbf16>
    %176 = vector.shape_cast %175 : vector<1x256x512xbf16> to vector<256x512xbf16>
    %cst_112 = arith.constant dense<0.000000e+00> : vector<1x512xf32>
    %177 = tpu.matmul %174, %176, %cst_112 {dimension_numbers = #tpu.dot_dimension_numbers<[1], [0], [0], [1], [0, 0, 1, 1], [], []>} : vector<1x256xbf16>, vector<256x512xbf16>, vector<1x512xf32> -> vector<1x512xf32>
    %178 = arith.addf %170, %177 : vector<1x512xf32>
    %179 = vector.extract_strided_slice %161 {offsets = [4, 0], sizes = [1, 256], strides = [1, 1]} : vector<8x256xf32> to vector<1x256xf32>
    %180 = vector.extract_strided_slice %161 {offsets = [5, 0], sizes = [1, 256], strides = [1, 1]} : vector<8x256xf32> to vector<1x256xf32>
    %181 = arith.maximumf %179, %180 : vector<1x256xf32>
    %182 = arith.truncf %181 : vector<1x256xf32> to vector<1x256xbf16>
    %c2_113 = arith.constant 2 : index
    %c0_114 = arith.constant 0 : index
    %c0_115 = arith.constant 0 : index
    %183 = vector.load %arg6[%c2_113, %c0_114, %c0_115] : memref<4x256x512xbf16, #tpu.memory_space<vmem>>, vector<1x256x512xbf16>
    %184 = vector.shape_cast %183 : vector<1x256x512xbf16> to vector<256x512xbf16>
    %cst_116 = arith.constant dense<0.000000e+00> : vector<1x512xf32>
    %185 = tpu.matmul %182, %184, %cst_116 {dimension_numbers = #tpu.dot_dimension_numbers<[1], [0], [0], [1], [0, 0, 1, 1], [], []>} : vector<1x256xbf16>, vector<256x512xbf16>, vector<1x512xf32> -> vector<1x512xf32>
    %186 = arith.addf %178, %185 : vector<1x512xf32>
    %187 = vector.extract_strided_slice %161 {offsets = [6, 0], sizes = [1, 256], strides = [1, 1]} : vector<8x256xf32> to vector<1x256xf32>
    %188 = vector.extract_strided_slice %161 {offsets = [7, 0], sizes = [1, 256], strides = [1, 1]} : vector<8x256xf32> to vector<1x256xf32>
    %189 = arith.maximumf %187, %188 : vector<1x256xf32>
    %190 = arith.truncf %189 : vector<1x256xf32> to vector<1x256xbf16>
    %c3_117 = arith.constant 3 : index
    %c0_118 = arith.constant 0 : index
    %c0_119 = arith.constant 0 : index
    %191 = vector.load %arg6[%c3_117, %c0_118, %c0_119] : memref<4x256x512xbf16, #tpu.memory_space<vmem>>, vector<1x256x512xbf16>
    %192 = vector.shape_cast %191 : vector<1x256x512xbf16> to vector<256x512xbf16>
    %cst_120 = arith.constant dense<0.000000e+00> : vector<1x512xf32>
    %193 = tpu.matmul %190, %192, %cst_120 {dimension_numbers = #tpu.dot_dimension_numbers<[1], [0], [0], [1], [0, 0, 1, 1], [], []>} : vector<1x256xbf16>, vector<256x512xbf16>, vector<1x512xf32> -> vector<1x512xf32>
    %194 = arith.addf %186, %193 : vector<1x512xf32>
    %cst_121 = arith.constant 0.000000e+00 : f32
    %195 = vector.broadcast %cst_121 : f32 to vector<1x512xf32>
    %196 = arith.maximumf %194, %195 : vector<1x512xf32>
    %cst_122 = arith.constant dense<0xFF800000> : vector<1xf32>
    %197 = vector.multi_reduction <maximumf>, %196, %cst_122 [1] : vector<1x512xf32> to vector<1xf32>
    %198 = vector.shape_cast %197 : vector<1xf32> to vector<1x1xf32>
    %199 = vector.broadcast %198 : vector<1x1xf32> to vector<1x512xf32>
    %200 = arith.subf %196, %199 : vector<1x512xf32>
    %201 = math.exp %200 : vector<1x512xf32>
    %cst_123 = arith.constant dense<0.000000e+00> : vector<1xf32>
    %202 = vector.multi_reduction <add>, %201, %cst_123 [1] : vector<1x512xf32> to vector<1xf32>
    %203 = vector.shape_cast %202 : vector<1xf32> to vector<1x1xf32>
    %204 = vector.broadcast %203 : vector<1x1xf32> to vector<1x512xf32>
    %205 = arith.divf %201, %204 : vector<1x512xf32>
    %206 = arith.truncf %205 : vector<1x512xf32> to vector<1x512xbf16>
    %c0_124 = arith.constant 0 : index
    %c0_125 = arith.constant 0 : index
    %207 = vector.load %arg8[%c0_124, %c0_125] : memref<512x128xbf16, #tpu.memory_space<vmem>>, vector<512x128xbf16>
    %cst_126 = arith.constant dense<0.000000e+00> : vector<1x128xf32>
    %208 = tpu.matmul %206, %207, %cst_126 {dimension_numbers = #tpu.dot_dimension_numbers<[1], [0], [0], [1], [0, 0, 1, 1], [], []>} : vector<1x512xbf16>, vector<512x128xbf16>, vector<1x128xf32> -> vector<1x128xf32>
    %c0_127 = arith.constant 0 : index
    %c0_128 = arith.constant 0 : index
    %209 = vector.load %arg9[%c0_127, %c0_128] : memref<1x128xf32, #tpu.memory_space<vmem>>, vector<1x128xf32>
    %210 = arith.addf %208, %209 : vector<1x128xf32>
    %c0_129 = arith.constant 0 : index
    %c0_130 = arith.constant 0 : index
    %c0_131 = arith.constant 0 : index
    %211 = vector.load %arg10[%c0_129, %c0_130, %c0_131] : memref<1x1x128xf32, #tpu.memory_space<vmem>>, vector<1x1x128xf32>
    %212 = vector.shape_cast %211 : vector<1x1x128xf32> to vector<1x128xf32>
    %213 = vector.shape_cast %210 : vector<1x128xf32> to vector<1x1x128xf32>
    tpu.vector_store %arg10[%c0_129, %c0_130, %c0_131], %213 {strides = array<i32>} : memref<1x1x128xf32, #tpu.memory_space<vmem>>, vector<1x1x128xf32>,
    return
  }
  func.func @transform_0(%arg0: i32) -> (i32, i32, i32) {
    %c0_i32 = arith.constant 0 : i32
    %c0_i32_0 = arith.constant 0 : i32
    %c0_i32_1 = arith.constant 0 : i32
    return %arg0, %c0_i32, %c0_i32_0 : i32, i32, i32
  }
  func.func @transform_1(%arg0: i32) -> (i32, i32, i32) {
    %c0_i32 = arith.constant 0 : i32
    %c0_i32_0 = arith.constant 0 : i32
    %c0_i32_1 = arith.constant 0 : i32
    %c0_i32_2 = arith.constant 0 : i32
    return %c0_i32, %c0_i32_0, %c0_i32_1 : i32, i32, i32
  }
  func.func @transform_2(%arg0: i32) -> (i32, i32) {
    %c0_i32 = arith.constant 0 : i32
    %c0_i32_0 = arith.constant 0 : i32
    %c0_i32_1 = arith.constant 0 : i32
    return %c0_i32, %c0_i32_0 : i32, i32
  }
  func.func @transform_3(%arg0: i32) -> (i32, i32, i32) {
    %c0_i32 = arith.constant 0 : i32
    %c0_i32_0 = arith.constant 0 : i32
    %c0_i32_1 = arith.constant 0 : i32
    %c0_i32_2 = arith.constant 0 : i32
    return %c0_i32, %c0_i32_0, %c0_i32_1 : i32, i32, i32
  }
  func.func @transform_4(%arg0: i32) -> (i32, i32) {
    %c0_i32 = arith.constant 0 : i32
    %c0_i32_0 = arith.constant 0 : i32
    %c0_i32_1 = arith.constant 0 : i32
    return %c0_i32, %c0_i32_0 : i32, i32
  }
  func.func @transform_5(%arg0: i32) -> (i32, i32, i32) {
    %c0_i32 = arith.constant 0 : i32
    %c0_i32_0 = arith.constant 0 : i32
    %c0_i32_1 = arith.constant 0 : i32
    %c0_i32_2 = arith.constant 0 : i32
    return %c0_i32, %c0_i32_0, %c0_i32_1 : i32, i32, i32
  }
  func.func @transform_6(%arg0: i32) -> (i32, i32) {
    %c0_i32 = arith.constant 0 : i32
    %c0_i32_0 = arith.constant 0 : i32
    %c0_i32_1 = arith.constant 0 : i32
    return %c0_i32, %c0_i32_0 : i32, i32
  }
  func.func @transform_7(%arg0: i32) -> (i32, i32) {
    %c0_i32 = arith.constant 0 : i32
    %c0_i32_0 = arith.constant 0 : i32
    %c0_i32_1 = arith.constant 0 : i32
    return %c0_i32, %c0_i32_0 : i32, i32
  }
  func.func @transform_8(%arg0: i32) -> (i32, i32) {
    %c0_i32 = arith.constant 0 : i32
    %c0_i32_0 = arith.constant 0 : i32
    %c0_i32_1 = arith.constant 0 : i32
    return %c0_i32, %c0_i32_0 : i32, i32
  }
  func.func @transform_9(%arg0: i32) -> (i32, i32, i32) {
    %c0_i32 = arith.constant 0 : i32
    %c0_i32_0 = arith.constant 0 : i32
    %c0_i32_1 = arith.constant 0 : i32
    return %arg0, %c0_i32, %c0_i32_0 : i32, i32, i32
  }
}

</mosaic_0001>

<llo_original>
// kernel: fedavg_cnn_forward.1
$region0: #{fedavg_cnn_forward.1}
  #allocation0 [shape = 'u32[]', space=smem, size = 0x4, offset = 0x4, fixed_abs, tag = 'smem constant byte address 0x4 - core index']
  #allocation1 [shape = 'u32[144,128]{1,0:T(1,128)}', space=vmem, size = 0x12000, scoped, tag = 'internal scratch']
  #allocation2 [shape = 'f32[12,384]{1,0:T(8,128)}', space=vmem, size = 0x6000, scoped, tag = 'scratch operand']
  %s0 = inlined_call_operand.vmem [shape: bf16[2,28,28], index: 0, kind: input, shape index: {}]
  %s1 = inlined_call_operand.hbm [shape: bf16[5,28,768], index: 1, kind: input, shape index: {}]
  %s2 = inlined_call_operand.hbm [shape: f32[1,384], index: 2, kind: input, shape index: {}]
  %s3 = inlined_call_operand.hbm [shape: bf16[5,384,512], index: 3, kind: input, shape index: {}]
  %s4 = inlined_call_operand.hbm [shape: f32[1,256], index: 4, kind: input, shape index: {}]
  %s5 = inlined_call_operand.hbm [shape: bf16[4,256,512], index: 5, kind: input, shape index: {}]
  %s6 = inlined_call_operand.hbm [shape: f32[1,512], index: 6, kind: input, shape index: {}]
  %s7 = inlined_call_operand.hbm [shape: bf16[512,128], index: 7, kind: input, shape index: {}]
  %s8 = inlined_call_operand.hbm [shape: f32[1,128], index: 8, kind: input, shape index: {}]
  %s9 = inlined_call_operand.hbm [shape: f32[2,1,128], index: 9, kind: output, shape index: {}]
  %s10 = sld [smem:[#allocation0]]
  $region101: #{fedavg_cnn_forward.1} parent=0
    _
  %s12 = ssub.s32 1, %s10
  %s13 = scalar_select 0, %s12, %s10
  $region1: #{fedavg_cnn_forward.1} parent=0
    #allocation3 [shape = 'u8[245760]{0}', space=vmem, size = 0x3c000, scoped, tag = 'input window, operand 1, single buffered']
    #allocation4 [shape = 's32[2]{0}', space=sflag, size = 0x8, scoped, tag = 'scoped memory for fedavg_cnn_forward.1']
    #allocation5 [shape = 's32[2]{0}', space=sflag, size = 0x8, scoped, tag = 'scoped memory for fedavg_cnn_forward.1']
    #allocation6 [shape = 'u8[1536]{0}', space=vmem, size = 0x800, scoped, tag = 'input window, operand 2, single buffered']
    #allocation7 [shape = 's32[1]{0}', space=sflag, size = 0x4, scoped, tag = 'scoped memory for fedavg_cnn_forward.1']
    #allocation8 [shape = 'u8[1966080]{0}', space=vmem, size = 0x1e0000, scoped, tag = 'input window, operand 3, single buffered']
    #allocation9 [shape = 'u8[1024]{0}', space=vmem, size = 0x400, scoped, tag = 'input window, operand 4, single buffered']
    #allocation10 [shape = 's32[1]{0}', space=sflag, size = 0x4, scoped, tag = 'scoped memory for fedavg_cnn_forward.1']
    #allocation11 [shape = 'u8[1048576]{0}', space=vmem, size = 0x100000, scoped, tag = 'input window, operand 5, single buffered']
    #allocation12 [shape = 'u8[2048]{0}', space=vmem, size = 0x800, scoped, tag = 'input window, operand 6, single buffered']
    #allocation13 [shape = 's32[1]{0}', space=sflag, size = 0x4, scoped, tag = 'scoped memory for fedavg_cnn_forward.1']
    #allocation14 [shape = 'u8[131072]{0}', space=vmem, size = 0x20000, scoped, tag = 'input window, operand 7, single buffered']
    #allocation15 [shape = 'u8[512]{0}', space=vmem, size = 0x400, scoped, tag = 'input window, operand 8, single buffered']
    #allocation16 [shape = 's32[1]{0}', space=sflag, size = 0x4, scoped, tag = 'scoped memory for fedavg_cnn_forward.1']
    #allocation17 [shape = 'u8[1024]{0}', space=vmem, size = 0x400, scoped, tag = 'output window, operand 0']
    %14 = vsyncpa [#allocation4], 0
    %15 = vsyncpa [#allocation7], 0
    %16 = vsyncpa [#allocation10], 0
    %17 = vsyncpa [#allocation13], 0
    %18 = vsyncpa [#allocation16], 0
    %19 = vsyncpa [#allocation5], 0
    %s20 = scalar_lea.sflag [#allocation5], 1
    %21 = vsyncpa %s20, 0
    loop: start=0, step=1, limit=4
    $region2: #{fedavg_cnn_forward.1} parent=1 // loop_pre_header
      _
    $region3: #{fedavg_cnn_forward.1} parent=1 // loop_header
      %s23 = sphi 0, %s27
      %p24 = scmp.ge.s32.totalorder %s23, 4
      %s33 = sphi 0, %s35
      %s36 = sphi 0, %s33
      %s37 = sphi 0, %s36
      %s53 = sphi 0, %s37
      %s57 = sphi 0, %s57
      %s59 = sphi 0, %s57
      %s60 = sphi 0, %s59
      %s74 = sphi 0, %s60
      %s78 = sphi 0, %s78
      %s80 = sphi 0, %s78
      %s81 = sphi 0, %s80
      %s95 = sphi 0, %s81
      %s99 = sphi 0, %s99
      %s101 = sphi 0, %s99
      %s102 = sphi 0, %s101
      %s116 = sphi 0, %s102
      %s120 = sphi 0, %s120
      %s122 = sphi 0, %s120
      %s123 = sphi 0, %s122
      %s137 = sphi 0, %s123
      %s141 = sphi 0, %s141
      %s143 = sphi 0, %s141
      %s144 = sphi 0, %s143
      %s158 = sphi 0, %s144
      %s162 = sphi 0, %s162
      %s164 = sphi 0, %s162
      %s165 = sphi 0, %s164
      %s179 = sphi 0, %s165
      %s183 = sphi 0, %s183
      %s185 = sphi 0, %s183
      %s186 = sphi 0, %s185
      %s200 = sphi 0, %s186
      %s204 = sphi 0, %s204
      %s206 = sphi 0, %s204
      %s207 = sphi 0, %s206
      %s221 = sphi 0, %s207
      %s227 = sphi 0, %s229
      %s230 = sphi 0, %s227
      %s231 = sphi 0, %s230
      %s247 = sphi 0, %s231
    $region4: #{fedavg_cnn_forward.1} parent=1 // loop_header_branch
      %26 = sbr.rel (%p24) target = $region8
    $region5: #{fedavg_cnn_forward.1} parent=1 // loop_body
      %s28 = ssub.s32 %s23, 1
      %s29 = ssub.s32 %s23, 2
      %s30 = sadd.s32 %s23, 1
      %s31 = ssub.s32 %s23, %s30
      %p32 = scmp.eq.s32.totalorder %s31, 0
      %s34 = sadd.s32 %s33, 1
      %s35 = scalar_select %p32, %s33, %s34
      %p38 = pneg %p32
      %p39 = scmp.eq.s32.totalorder %s23, 1
      %p40 = por %p38, %p39
      %p41 = scmp.ne.s32.totalorder %s33, %s36
      %p42 = scmp.eq.s32.totalorder %s23, 0
      %p43 = por %p41, %p42
      %p44 = scmp.ne.s32.totalorder %s33, %s36
      %p45 = scmp.eq.s32.totalorder %s28, 1
      %p46 = por %p44, %p45
      %p47 = scmp.ne.s32.totalorder %s36, %s37
      %p48 = scmp.eq.s32.totalorder %s28, 0
      %p49 = por %p47, %p48
      %p50 = scmp.ne.s32.totalorder %s36, %s37
      %p51 = scmp.eq.s32.totalorder %s29, 1
      %p52 = por %p50, %p51
      %p54 = scmp.ne.s32.totalorder %s37, %s53
      %p55 = scmp.eq.s32.totalorder %s29, 0
      %p56 = por %p54, %p55
      %s58 = sadd.s32 %s57, 1
      %p61 = scmp.eq.s32.totalorder %s23, 1
      %p62 = scmp.ne.s32.totalorder %s57, %s59
      %p63 = scmp.eq.s32.totalorder %s23, 0
      %p64 = por %p62, %p63
      %p65 = scmp.ne.s32.totalorder %s57, %s59
      %p66 = scmp.eq.s32.totalorder %s28, 1
      %p67 = por %p65, %p66
      %p68 = scmp.ne.s32.totalorder %s59, %s60
      %p69 = scmp.eq.s32.totalorder %s28, 0
      %p70 = por %p68, %p69
      %p71 = scmp.ne.s32.totalorder %s59, %s60
      %p72 = scmp.eq.s32.totalorder %s29, 1
      %p73 = por %p71, %p72
      %p75 = scmp.ne.s32.totalorder %s60, %s74
      %p76 = scmp.eq.s32.totalorder %s29, 0
      %p77 = por %p75, %p76
      %s79 = sadd.s32 %s78, 1
      %p82 = scmp.eq.s32.totalorder %s23, 1
      %p83 = scmp.ne.s32.totalorder %s78, %s80
      %p84 = scmp.eq.s32.totalorder %s23, 0
      %p85 = por %p83, %p84
      %p86 = scmp.ne.s32.totalorder %s78, %s80
      %p87 = scmp.eq.s32.totalorder %s28, 1
      %p88 = por %p86, %p87
      %p89 = scmp.ne.s32.totalorder %s80, %s81
      %p90 = scmp.eq.s32.totalorder %s28, 0
      %p91 = por %p89, %p90
      %p92 = scmp.ne.s32.totalorder %s80, %s81
      %p93 = scmp.eq.s32.totalorder %s29, 1
      %p94 = por %p92, %p93
      %p96 = scmp.ne.s32.totalorder %s81, %s95
      %p97 = scmp.eq.s32.totalorder %s29, 0
      %p98 = por %p96, %p97
      %s100 = sadd.s32 %s99, 1
      %p103 = scmp.eq.s32.totalorder %s23, 1
      %p104 = scmp.ne.s32.totalorder %s99, %s101
      %p105 = scmp.eq.s32.totalorder %s23, 0
      %p106 = por %p104, %p105
      %p107 = scmp.ne.s32.totalorder %s99, %s101
      %p108 = scmp.eq.s32.totalorder %s28, 1
      %p109 = por %p107, %p108
      %p110 = scmp.ne.s32.totalorder %s101, %s102
      %p111 = scmp.eq.s32.totalorder %s28, 0
      %p112 = por %p110, %p111
      %p113 = scmp.ne.s32.totalorder %s101, %s102
      %p114 = scmp.eq.s32.totalorder %s29, 1
      %p115 = por %p113, %p114
      %p117 = scmp.ne.s32.totalorder %s102, %s116
      %p118 = scmp.eq.s32.totalorder %s29, 0
      %p119 = por %p117, %p118
      %s121 = sadd.s32 %s120, 1
      %p124 = scmp.eq.s32.totalorder %s23, 1
      %p125 = scmp.ne.s32.totalorder %s120, %s122
      %p126 = scmp.eq.s32.totalorder %s23, 0
      %p127 = por %p125, %p126
      %p128 = scmp.ne.s32.totalorder %s120, %s122
      %p129 = scmp.eq.s32.totalorder %s28, 1
      %p130 = por %p128, %p129
      %p131 = scmp.ne.s32.totalorder %s122, %s123
      %p132 = scmp.eq.s32.totalorder %s28, 0
      %p133 = por %p131, %p132
      %p134 = scmp.ne.s32.totalorder %s122, %s123
      %p135 = scmp.eq.s32.totalorder %s29, 1
      %p136 = por %p134, %p135
      %p138 = scmp.ne.s32.totalorder %s123, %s137
      %p139 = scmp.eq.s32.totalorder %s29, 0
      %p140 = por %p138, %p139
      %s142 = sadd.s32 %s141, 1
      %p145 = scmp.eq.s32.totalorder %s23, 1
      %p146 = scmp.ne.s32.totalorder %s141, %s143
      %p147 = scmp.eq.s32.totalorder %s23, 0
      %p148 = por %p146, %p147
      %p149 = scmp.ne.s32.totalorder %s141, %s143
      %p150 = scmp.eq.s32.totalorder %s28, 1
      %p151 = por %p149, %p150
      %p152 = scmp.ne.s32.totalorder %s143, %s144
      %p153 = scmp.eq.s32.totalorder %s28, 0
      %p154 = por %p152, %p153
      %p155 = scmp.ne.s32.totalorder %s143, %s144
      %p156 = scmp.eq.s32.totalorder %s29, 1
      %p157 = por %p155, %p156
      %p159 = scmp.ne.s32.totalorder %s144, %s158
      %p160 = scmp.eq.s32.totalorder %s29, 0
      %p161 = por %p159, %p160
      %s163 = sadd.s32 %s162, 1
      %p166 = scmp.eq.s32.totalorder %s23, 1
      %p167 = scmp.ne.s32.totalorder %s162, %s164
      %p168 = scmp.eq.s32.totalorder %s23, 0
      %p169 = por %p167, %p168
      %p170 = scmp.ne.s32.totalorder %s162, %s164
      %p171 = scmp.eq.s32.totalorder %s28, 1
      %p172 = por %p170, %p171
      %p173 = scmp.ne.s32.totalorder %s164, %s165
      %p174 = scmp.eq.s32.totalorder %s28, 0
      %p175 = por %p173, %p174
      %p176 = scmp.ne.s32.totalorder %s164, %s165
      %p177 = scmp.eq.s32.totalorder %s29, 1
      %p178 = por %p176, %p177
      %p180 = scmp.ne.s32.totalorder %s165, %s179
      %p181 = scmp.eq.s32.totalorder %s29, 0
      %p182 = por %p180, %p181
      %s184 = sadd.s32 %s183, 1
      %p187 = scmp.eq.s32.totalorder %s23, 1
      %p188 = scmp.ne.s32.totalorder %s183, %s185
      %p189 = scmp.eq.s32.totalorder %s23, 0
      %p190 = por %p188, %p189
      %p191 = scmp.ne.s32.totalorder %s183, %s185
      %p192 = scmp.eq.s32.totalorder %s28, 1
      %p193 = por %p191, %p192
      %p194 = scmp.ne.s32.totalorder %s185, %s186
      %p195 = scmp.eq.s32.totalorder %s28, 0
      %p196 = por %p194, %p195
      %p197 = scmp.ne.s32.totalorder %s185, %s186
      %p198 = scmp.eq.s32.totalorder %s29, 1
      %p199 = por %p197, %p198
      %p201 = scmp.ne.s32.totalorder %s186, %s200
      %p202 = scmp.eq.s32.totalorder %s29, 0
      %p203 = por %p201, %p202
      %s205 = sadd.s32 %s204, 1
      %p208 = scmp.eq.s32.totalorder %s23, 1
      %p209 = scmp.ne.s32.totalorder %s204, %s206
      %p210 = scmp.eq.s32.totalorder %s23, 0
      %p211 = por %p209, %p210
      %p212 = scmp.ne.s32.totalorder %s204, %s206
      %p213 = scmp.eq.s32.totalorder %s28, 1
      %p214 = por %p212, %p213
      %p215 = scmp.ne.s32.totalorder %s206, %s207
      %p216 = scmp.eq.s32.totalorder %s28, 0
      %p217 = por %p215, %p216
      %p218 = scmp.ne.s32.totalorder %s206, %s207
      %p219 = scmp.eq.s32.totalorder %s29, 1
      %p220 = por %p218, %p219
      %p222 = scmp.ne.s32.totalorder %s207, %s221
      %p223 = scmp.eq.s32.totalorder %s29, 0
      %p224 = por %p222, %p223
      %s225 = ssub.s32 %s23, %s30
      %p226 = scmp.eq.s32.totalorder %s225, 0
      %s228 = sadd.s32 %s227, 1
      %s229 = scalar_select %p226, %s227, %s228
      %p232 = pneg %p226
      %p233 = scmp.eq.s32.totalorder %s23, 1
      %p234 = por %p232, %p233
      %p235 = scmp.ne.s32.totalorder %s227, %s230
      %p236 = scmp.eq.s32.totalorder %s23, 0
      %p237 = por %p235, %p236
      %p238 = scmp.ne.s32.totalorder %s227, %s230
      %p239 = scmp.eq.s32.totalorder %s28, 1
      %p240 = por %p238, %p239
      %p241 = scmp.ne.s32.totalorder %s230, %s231
      %p242 = scmp.eq.s32.totalorder %s28, 0
      %p243 = por %p241, %p242
      %p244 = scmp.ne.s32.totalorder %s230, %s231
      %p245 = scmp.eq.s32.totalorder %s29, 1
      %p246 = por %p244, %p245
      %p248 = scmp.ne.s32.totalorder %s231, %s247
      %p249 = scmp.eq.s32.totalorder %s29, 0
      %p250 = por %p248, %p249
      %p251 = scmp.le.s32.totalorder 1, %s23
      %p252 = scmp.lt.s32.totalorder %s23, 3
      %p253 = pnand %p251, %p252
      %p254 = pneg %p253
      // Predicated region
      $region9: #{fedavg_cnn_forward.1} parent=5 // pred_check
        _
      $region10: #{fedavg_cnn_forward.1} parent=5 // pred_check_branch
        %256 = sbr.rel (%p253) target = $region12
      $region11: #{fedavg_cnn_forward.1} parent=5 // pred_region
        %s257 = ssub.s32 %s23, 1
        // Predicated region
        $region13: #{fedavg_cnn_forward.1} parent=11 // pred_check
          %p258 = pneg %p70
        $region14: #{fedavg_cnn_forward.1} parent=11 // pred_check_branch
          %260 = sbr.rel (%p258) target = $region16
        $region15: #{fedavg_cnn_forward.1} parent=11 // pred_region
          %s262 = ssub.s32 7680, 7680
          %263 = vsyncadd [#allocation4], %s262
          %s264 = sshll.u32 [#allocation3], 4
          %s265 = int_to_ptr.vmem [resolvable:$true] %s264
          %270 = dma.hbm_to_vmem [thread:$0]  %s1, 7680, %s265, [#allocation4], 384, 384, 24
        $region16: #{fedavg_cnn_forward.1} parent=11 // pred_fallthru
          _
        // Predicated region
        $region17: #{fedavg_cnn_forward.1} parent=11 // pred_check
          %p271 = pneg %p91
        $region18: #{fedavg_cnn_forward.1} parent=11 // pred_check_branch
          %273 = sbr.rel (%p271) target = $region20
        $region19: #{fedavg_cnn_forward.1} parent=11 // pred_region
          %s275 = ssub.s32 48, 48
          %276 = vsyncadd [#allocation7], %s275
          %s278 = sshll.u32 [#allocation6], 4
          %s279 = int_to_ptr.vmem [resolvable:$true] %s278
          %281 = dma.hbm_to_vmem [thread:$0]  %s2, 48, %s279, [#allocation7]
        $region20: #{fedavg_cnn_forward.1} parent=11 // pred_fallthru
          _
        // Predicated region
        $region21: #{fedavg_cnn_forward.1} parent=11 // pred_check
          %p282 = pneg %p112
        $region22: #{fedavg_cnn_forward.1} parent=11 // pred_check_branch
          %284 = sbr.rel (%p282) target = $region24
        $region23: #{fedavg_cnn_forward.1} parent=11 // pred_region
          %s286 = ssub.s32 61440, 61440
          %287 = vsyncadd [#allocation7], %s286
          %s288 = sshll.u32 [#allocation8], 4
          %s289 = int_to_ptr.vmem [resolvable:$true] %s288
          %294 = dma.hbm_to_vmem [thread:$0]  %s3, 61440, %s289, [#allocation7], 256, 256, 16
        $region24: #{fedavg_cnn_forward.1} parent=11 // pred_fallthru
          _
        // Predicated region
        $region25: #{fedavg_cnn_forward.1} parent=11 // pred_check
          %p295 = pneg %p133
        $region26: #{fedavg_cnn_forward.1} parent=11 // pred_check_branch
          %297 = sbr.rel (%p295) target = $region28
        $region27: #{fedavg_cnn_forward.1} parent=11 // pred_region
          %s299 = ssub.s32 32, 32
          %300 = vsyncadd [#allocation10], %s299
          %s302 = sshll.u32 [#allocation9], 4
          %s303 = int_to_ptr.vmem [resolvable:$true] %s302
          %305 = dma.hbm_to_vmem [thread:$0]  %s4, 32, %s303, [#allocation10]
        $region28: #{fedavg_cnn_forward.1} parent=11 // pred_fallthru
          _
        // Predicated region
        $region29: #{fedavg_cnn_forward.1} parent=11 // pred_check
          %p306 = pneg %p154
        $region30: #{fedavg_cnn_forward.1} parent=11 // pred_check_branch
          %308 = sbr.rel (%p306) target = $region32
        $region31: #{fedavg_cnn_forward.1} parent=11 // pred_region
          %s310 = ssub.s32 32768, 32768
          %311 = vsyncadd [#allocation10], %s310
          %s312 = sshll.u32 [#allocation11], 4
          %s313 = int_to_ptr.vmem [resolvable:$true] %s312
          %318 = dma.hbm_to_vmem [thread:$0]  %s5, 32768, %s313, [#allocation10], 256, 256, 16
        $region32: #{fedavg_cnn_forward.1} parent=11 // pred_fallthru
          _
        // Predicated region
        $region33: #{fedavg_cnn_forward.1} parent=11 // pred_check
          %p319 = pneg %p175
        $region34: #{fedavg_cnn_forward.1} parent=11 // pred_check_branch
          %321 = sbr.rel (%p319) target = $region36
        $region35: #{fedavg_cnn_forward.1} parent=11 // pred_region
          %s323 = ssub.s32 64, 64
          %324 = vsyncadd [#allocation13], %s323
          %s326 = sshll.u32 [#allocation12], 4
          %s327 = int_to_ptr.vmem [resolvable:$true] %s326
          %329 = dma.hbm_to_vmem [thread:$0]  %s6, 64, %s327, [#allocation13]
        $region36: #{fedavg_cnn_forward.1} parent=11 // pred_fallthru
          _
        // Predicated region
        $region37: #{fedavg_cnn_forward.1} parent=11 // pred_check
          %p330 = pneg %p196
        $region38: #{fedavg_cnn_forward.1} parent=11 // pred_check_branch
          %332 = sbr.rel (%p330) target = $region40
        $region39: #{fedavg_cnn_forward.1} parent=11 // pred_region
          %s334 = ssub.s32 4096, 4096
          %335 = vsyncadd [#allocation13], %s334
          %s336 = sshll.u32 [#allocation14], 4
          %s337 = int_to_ptr.vmem [resolvable:$true] %s336
          %342 = dma.hbm_to_vmem [thread:$0]  %s7, 4096, %s337, [#allocation13], 64, 64, 4
        $region40: #{fedavg_cnn_forward.1} parent=11 // pred_fallthru
          _
        // Predicated region
        $region41: #{fedavg_cnn_forward.1} parent=11 // pred_check
          %p343 = pneg %p217
        $region42: #{fedavg_cnn_forward.1} parent=11 // pred_check_branch
          %345 = sbr.rel (%p343) target = $region44
        $region43: #{fedavg_cnn_forward.1} parent=11 // pred_region
          %s347 = ssub.s32 16, 16
          %348 = vsyncadd [#allocation16], %s347
          %s350 = sshll.u32 [#allocation15], 4
          %s351 = int_to_ptr.vmem [resolvable:$true] %s350
          %353 = dma.hbm_to_vmem [thread:$0]  %s8, 16, %s351, [#allocation16]
        $region44: #{fedavg_cnn_forward.1} parent=11 // pred_fallthru
          _
      $region12: #{fedavg_cnn_forward.1} parent=5 // pred_fallthru
        _
      %p354 = scmp.lt.s32.totalorder %s23, 2
      // Predicated region
      $region45: #{fedavg_cnn_forward.1} parent=5 // pred_check
        %p355 = pneg %p354
      $region46: #{fedavg_cnn_forward.1} parent=5 // pred_check_branch
        %357 = sbr.rel (%p355) target = $region48
      $region47: #{fedavg_cnn_forward.1} parent=5 // pred_region
        // Predicated region
        $region49: #{fedavg_cnn_forward.1} parent=47 // pred_check
          %p358 = pneg %p43
        $region50: #{fedavg_cnn_forward.1} parent=47 // pred_check_branch
          %360 = sbr.rel (%p358) target = $region52
        $region51: #{fedavg_cnn_forward.1} parent=47 // pred_region
          %p361 = scmp.lt.s32.totalorder %s23, 1
          %s362 = scalar_select %p361, %s23, 1
          %s363 = smul.addr %s362, 4
          %s364 = smul.addr %s363, 4
          %s365 = scalar_lea.vmem %s0, %s364
        $region52: #{fedavg_cnn_forward.1} parent=47 // pred_fallthru
          _
      $region48: #{fedavg_cnn_forward.1} parent=5 // pred_fallthru
        _
      %p366 = scmp.le.s32.totalorder 1, %s23
      %p367 = scmp.lt.s32.totalorder %s23, 3
      %p368 = pnand %p366, %p367
      %p369 = pneg %p368
      // Predicated region
      $region53: #{fedavg_cnn_forward.1} parent=5 // pred_check
        _
      $region54: #{fedavg_cnn_forward.1} parent=5 // pred_check_branch
        %371 = sbr.rel (%p368) target = $region56
      $region55: #{fedavg_cnn_forward.1} parent=5 // pred_region
        %s372 = ssub.s32 %s23, 1
        // Predicated region
        $region57: #{fedavg_cnn_forward.1} parent=55 // pred_check
          %p373 = pneg %p70
        $region58: #{fedavg_cnn_forward.1} parent=55 // pred_check_branch
          %375 = sbr.rel (%p373) target = $region60
        $region59: #{fedavg_cnn_forward.1} parent=55 // pred_region
          %376 = dma.done [#allocation4], 7680
        $region60: #{fedavg_cnn_forward.1} parent=55 // pred_fallthru
          _
        // Predicated region
        $region61: #{fedavg_cnn_forward.1} parent=55 // pred_check
          %p377 = pneg %p91
        $region62: #{fedavg_cnn_forward.1} parent=55 // pred_check_branch
          %379 = sbr.rel (%p377) target = $region64
        $region63: #{fedavg_cnn_forward.1} parent=55 // pred_region
          %380 = dma.done [#allocation7], 48
        $region64: #{fedavg_cnn_forward.1} parent=55 // pred_fallthru
          _
        // Predicated region
        $region65: #{fedavg_cnn_forward.1} parent=55 // pred_check
          %p381 = pneg %p112
        $region66: #{fedavg_cnn_forward.1} parent=55 // pred_check_branch
          %383 = sbr.rel (%p381) target = $region68
        $region67: #{fedavg_cnn_forward.1} parent=55 // pred_region
          %384 = dma.done [#allocation7], 61440
        $region68: #{fedavg_cnn_forward.1} parent=55 // pred_fallthru
          _
        // Predicated region
        $region69: #{fedavg_cnn_forward.1} parent=55 // pred_check
          %p385 = pneg %p133
        $region70: #{fedavg_cnn_forward.1} parent=55 // pred_check_branch
          %387 = sbr.rel (%p385) target = $region72
        $region71: #{fedavg_cnn_forward.1} parent=55 // pred_region
          %388 = dma.done [#allocation10], 32
        $region72: #{fedavg_cnn_forward.1} parent=55 // pred_fallthru
          _
        // Predicated region
        $region73: #{fedavg_cnn_forward.1} parent=55 // pred_check
          %p389 = pneg %p154
        $region74: #{fedavg_cnn_forward.1} parent=55 // pred_check_branch
          %391 = sbr.rel (%p389) target = $region76
        $region75: #{fedavg_cnn_forward.1} parent=55 // pred_region
          %392 = dma.done [#allocation10], 32768
        $region76: #{fedavg_cnn_forward.1} parent=55 // pred_fallthru
          _
        // Predicated region
        $region77: #{fedavg_cnn_forward.1} parent=55 // pred_check
          %p393 = pneg %p175
        $region78: #{fedavg_cnn_forward.1} parent=55 // pred_check_branch
          %395 = sbr.rel (%p393) target = $region80
        $region79: #{fedavg_cnn_forward.1} parent=55 // pred_region
          %396 = dma.done [#allocation13], 64
        $region80: #{fedavg_cnn_forward.1} parent=55 // pred_fallthru
          _
        // Predicated region
        $region81: #{fedavg_cnn_forward.1} parent=55 // pred_check
          %p397 = pneg %p196
        $region82: #{fedavg_cnn_forward.1} parent=55 // pred_check_branch
          %399 = sbr.rel (%p397) target = $region84
        $region83: #{fedavg_cnn_forward.1} parent=55 // pred_region
          %400 = dma.done [#allocation13], 4096
        $region84: #{fedavg_cnn_forward.1} parent=55 // pred_fallthru
          _
        // Predicated region
        $region85: #{fedavg_cnn_forward.1} parent=55 // pred_check
          %p401 = pneg %p217
        $region86: #{fedavg_cnn_forward.1} parent=55 // pred_check_branch
          %403 = sbr.rel (%p401) target = $region88
        $region87: #{fedavg_cnn_forward.1} parent=55 // pred_region
          %404 = dma.done [#allocation16], 16
        $region88: #{fedavg_cnn_forward.1} parent=55 // pred_fallthru
          _
        %p405 = scmp.lt.s32.totalorder %s28, 1
        %s406 = scalar_select %p405, %s28, 1
        %s407 = smul.addr %s406, 4
        %s408 = smul.addr %s407, 4
        %s409 = scalar_lea.vmem %s0, %s408
        %p410 = pneg %p49
        %p411 = pneg %p46
        %p412 = pneg %p70
        %p413 = pneg %p67
        %p414 = pneg %p91
        %p415 = pneg %p88
        %p416 = pneg %p112
        %p417 = pneg %p109
        %p418 = pneg %p133
        %p419 = pneg %p130
        %p420 = pneg %p154
        %p421 = pneg %p151
        %p422 = pneg %p175
        %p423 = pneg %p172
        %p424 = pneg %p196
        %p425 = pneg %p193
        %p426 = pneg %p217
        %p427 = pneg %p214
        %p428 = pneg %p243
        %p429 = pneg %p240
        %s430 = sand.u32 %s230, 1
        %s431 = scalar_lea.sflag [#allocation5], %s430
        %s432 = sand.u32 %s230, 1
        %s433 = scalar_lea.vmem [#allocation17], %s432
        %p434 = scmp.lt.s32.totalorder %s28, 1
        %s435 = scalar_select %p434, %s28, 1
        %s436 = smul.addr %s435, 4
        %s437 = smul.addr %s436, 4
        %s438 = scalar_lea.vmem %s0, %s437
        %v440 = vld [vmem:[%s438] sm:$0xf]
        %v441 = vld [vmem:[%s438 + $0x4] sm:$0xf]
        %v442 = vld [vmem:[%s438 + $0x8] sm:$0xf]
        %v443 = vld [vmem:[%s438 + $0xc] sm:$0x3]
        %v444 = vld [vmem:[#allocation3] sm:$0xff]
        %v445 = vld [vmem:[#allocation3 + $0x8] sm:$0xff]
        %v446 = vld [vmem:[#allocation3 + $0x10] sm:$0xff]
        %v447 = vld [vmem:[#allocation3 + $0x18] sm:$0xff]
        %v448 = vld [vmem:[#allocation3 + $0x20] sm:$0xff]
        %v449 = vld [vmem:[#allocation3 + $0x28] sm:$0xff]
        %v450 = vld [vmem:[#allocation3 + $0x30] sm:$0xff]
        %v451 = vld [vmem:[#allocation3 + $0x38] sm:$0xff]
        %v452 = vld [vmem:[#allocation3 + $0x40] sm:$0xff]
        %v453 = vld [vmem:[#allocation3 + $0x48] sm:$0x33]
        %v454 = vld [vmem:[#allocation3 + $0x50] sm:$0x33]
        %v455 = vld [vmem:[#allocation3 + $0x58] sm:$0x33]
        %s456 = scalar_lea.vmem [#allocation3], 96
        %v457 = vld [vmem:[%s456] sm:$0xff]
        %v458 = vld [vmem:[%s456 + $0x8] sm:$0xff]
        %v459 = vld [vmem:[%s456 + $0x10] sm:$0xff]
        %v460 = vld [vmem:[%s456 + $0x18] sm:$0xff]
        %v461 = vld [vmem:[%s456 + $0x20] sm:$0xff]
        %v462 = vld [vmem:[%s456 + $0x28] sm:$0xff]
        %v463 = vld [vmem:[%s456 + $0x30] sm:$0xff]
        %v464 = vld [vmem:[%s456 + $0x38] sm:$0xff]
        %v465 = vld [vmem:[%s456 + $0x40] sm:$0xff]
        %v466 = vld [vmem:[%s456 + $0x48] sm:$0x33]
        %v467 = vld [vmem:[%s456 + $0x50] sm:$0x33]
        %v468 = vld [vmem:[%s456 + $0x58] sm:$0x33]
        %v473 = vunpack.c.l.b16 %v440
        %v474 = vunpack.c.l.b16 %v441
        %v475 = vunpack.c.l.b16 %v442
        %v476 = vunpack.c.l.b16 %v443
        %v477 = vpack.c.b16 %v474, %v473
        %v478 = vpack.c.b16 %v476, %v475
        %vm479 = vsmask.f32 7424
        %v481 = vshrl.u32 %v477, 16
        %v483 = vshll.u32 %v477, 16
        %v485 = vrot.slane %v483, 1
        %v486 = vor.u32 %v481, %v485
        %v488 = vshll.u32 %v478, 16
        %v490 = vrot.slane %v488, 1
        %v491 = vsel %vm479, %v486, %v490
        %v492 = vshrl.u32 %v478, 16
        %v494 = vor.u32 %v492, %v490
        %v507 = vunpack.c.l.b16 %v457
        %v508 = vunpack.c.h.b16 %v457
        %v509 = vunpack.c.l.b16 %v458
        %v510 = vunpack.c.h.b16 %v458
        %v511 = vunpack.c.l.b16 %v459
        %v512 = vunpack.c.h.b16 %v459
        %v513 = vunpack.c.l.b16 %v460
        %v514 = vunpack.c.h.b16 %v460
        %v515 = vunpack.c.l.b16 %v461
        %v516 = vunpack.c.h.b16 %v461
        %v517 = vunpack.c.l.b16 %v462
        %v518 = vunpack.c.h.b16 %v462
        %v519 = vunpack.c.l.b16 %v463
        %v520 = vunpack.c.h.b16 %v463
        %v521 = vunpack.c.l.b16 %v464
        %v522 = vunpack.c.h.b16 %v464
        %v523 = vunpack.c.l.b16 %v465
        %v524 = vunpack.c.h.b16 %v465
        %v525 = vunpack.c.l.b16 %v466
        %v526 = vunpack.c.h.b16 %v466
        %v527 = vunpack.c.l.b16 %v467
        %v528 = vunpack.c.h.b16 %v467
        %v529 = vunpack.c.l.b16 %v468
        %v530 = vunpack.c.h.b16 %v468
        %v531 = vpack.c.b16 %v513, %v507
        %v532 = vpack.c.b16 %v514, %v508
        %v533 = vpack.c.b16 %v515, %v509
        %v534 = vpack.c.b16 %v516, %v510
        %v535 = vpack.c.b16 %v517, %v511
        %v536 = vpack.c.b16 %v518, %v512
        %v537 = vpack.c.b16 %v525, %v519
        %v538 = vpack.c.b16 %v526, %v520
        %v539 = vpack.c.b16 %v527, %v521
        %v540 = vpack.c.b16 %v528, %v522
        %v541 = vpack.c.b16 %v529, %v523
        %v542 = vpack.c.b16 %v530, %v524
        %vm549 = vcmask 228352
        %v551 = vsel %vm549, %v491, 0
        %v554 = vsel %vm549, %v494, 0
        %vm556 = vcmask 1045504
        %v558 = vsel %vm556, %v537, 0
        %v561 = vsel %vm556, %v538, 0
        %v564 = vsel %vm556, %v539, 0
        %v567 = vsel %vm556, %v540, 0
        %v570 = vsel %vm556, %v541, 0
        %v573 = vsel %vm556, %v542, 0
        %575 = vmatprep.subr.bf16.mxu0 0
        %576 = vmatpush1.bf16.msra.mxu0 0
        %577 = vmatprep.subr.bf16.mxu0 0
        %578 = vmatpush1.bf16.msra.mxu0 0
        %579 = vmatprep.subr.bf16.mxu0 0
        %580 = vmatpush1.bf16.msra.mxu0 0
        %581 = vmatprep.subr.bf16.mxu0 0
        %582 = vmatpush1.bf16.msra.mxu0 0
        %583 = vmatprep.subr.bf16.mxu0 0
        %584 = vmatpush1.bf16.msra.mxu0 0
        %585 = vmatprep.subr.bf16.mxu0 0
        %586 = vmatpush1.bf16.msra.mxu0 0
        %587 = vmatprep.subr.bf16.mxu0 %v561
        %588 = vmatpush1.bf16.msra.mxu0 %v558
        %589 = vmatprep.subr.bf16.mxu0 %v532
        %590 = vmatpush1.bf16.msra.mxu0 %v531
        %591 = vmatprep.subr.bf16.mxu0 0
        %592 = vmatpush2.bf16.msra.mxu0 0
        %593 = vmatprep.subr.bf16.mxu0 0
        %594 = vmatpush2.bf16.msra.mxu0 0
        %595 = vmatprep.subr.bf16.mxu0 0
        %596 = vmatpush2.bf16.msra.mxu0 0
        %597 = vmatprep.subr.bf16.mxu0 0
        %598 = vmatpush2.bf16.msra.mxu0 0
        %599 = vmatprep.subr.bf16.mxu0 0
        %600 = vmatpush2.bf16.msra.mxu0 0
        %601 = vmatprep.subr.bf16.mxu0 0
        %602 = vmatpush2.bf16.msra.mxu0 0
        %603 = vmatprep.subr.bf16.mxu0 0
        %604 = vmatpush2.bf16.msra.mxu0 0
        %605 = vmatprep.subr.bf16.mxu0 0
        %606 = vmatpush2.bf16.msra.mxu0 0
        %607 = vmatprep.mubr.bf16.mxu0 0
        %608 = vmatmul.mubr.bf16.gmra.mxu0 %v551
        %v609 = vpop.f32.mrf.mxu0
        %v610 = vadd.f32 0.0, %v609
        %v611 = vpop.f32.mrf.mxu0
        %v612 = vadd.f32 0.0, %v611
        %v613 = vpop.f32.mrf.mxu0
        %v614 = vadd.f32 0.0, %v613
        %v615 = vpop.f32.mrf.mxu0
        %v616 = vadd.f32 0.0, %v615
        %617 = vmatprep.mubr.bf16.mxu0 0
        %618 = vmatmul.mubr.bf16.gmra.mxu0 %v554
        %v619 = vpop.f32.mrf.mxu0
        %v620 = vadd.f32 0.0, %v619
        %v621 = vpop.f32.mrf.mxu0
        %v622 = vadd.f32 0.0, %v621
        %v623 = vpop.f32.mrf.mxu0
        %v624 = vpop.f32.mrf.mxu0
        %625 = vdwg.mxu0
        %626 = vmatprep.subr.bf16.mxu0 0
        %627 = vmatpush1.bf16.msra.mxu0 0
        %628 = vmatprep.subr.bf16.mxu0 0
        %629 = vmatpush1.bf16.msra.mxu0 0
        %630 = vmatprep.subr.bf16.mxu0 0
        %631 = vmatpush1.bf16.msra.mxu0 0
        %632 = vmatprep.subr.bf16.mxu0 0
        %633 = vmatpush1.bf16.msra.mxu0 0
        %634 = vmatprep.subr.bf16.mxu0 0
        %635 = vmatpush1.bf16.msra.mxu0 0
        %636 = vmatprep.subr.bf16.mxu0 0
        %637 = vmatpush1.bf16.msra.mxu0 0
        %638 = vmatprep.subr.bf16.mxu0 %v567
        %639 = vmatpush1.bf16.msra.mxu0 %v564
        %640 = vmatprep.subr.bf16.mxu0 %v534
        %641 = vmatpush1.bf16.msra.mxu0 %v533
        %642 = vmatprep.subr.bf16.mxu0 0
        %643 = vmatpush2.bf16.msra.mxu0 0
        %644 = vmatprep.subr.bf16.mxu0 0
        %645 = vmatpush2.bf16.msra.mxu0 0
        %646 = vmatprep.subr.bf16.mxu0 0
        %647 = vmatpush2.bf16.msra.mxu0 0
        %648 = vmatprep.subr.bf16.mxu0 0
        %649 = vmatpush2.bf16.msra.mxu0 0
        %650 = vmatprep.subr.bf16.mxu0 0
        %651 = vmatpush2.bf16.msra.mxu0 0
        %652 = vmatprep.subr.bf16.mxu0 0
        %653 = vmatpush2.bf16.msra.mxu0 0
        %654 = vmatprep.subr.bf16.mxu0 0
        %655 = vmatpush2.bf16.msra.mxu0 0
        %656 = vmatprep.subr.bf16.mxu0 0
        %657 = vmatpush2.bf16.msra.mxu0 0
        %658 = vmatprep.mubr.bf16.mxu0 0
        %659 = vmatmul.mubr.bf16.gmra.mxu0 %v551
        %v660 = vpop.f32.mrf.mxu0
        %v661 = vadd.f32 0.0, %v660
        %v662 = vpop.f32.mrf.mxu0
        %v663 = vadd.f32 0.0, %v662
        %v664 = vpop.f32.mrf.mxu0
        %v665 = vadd.f32 0.0, %v664
        %v666 = vpop.f32.mrf.mxu0
        %v667 = vadd.f32 0.0, %v666
        %668 = vmatprep.mubr.bf16.mxu0 0
        %669 = vmatmul.mubr.bf16.gmra.mxu0 %v554
        %v670 = vpop.f32.mrf.mxu0
        %v671 = vadd.f32 0.0, %v670
        %v672 = vpop.f32.mrf.mxu0
        %v673 = vadd.f32 0.0, %v672
        %v674 = vpop.f32.mrf.mxu0
        %v675 = vpop.f32.mrf.mxu0
        %676 = vdwg.mxu0
        %677 = vmatprep.subr.bf16.mxu0 0
        %678 = vmatpush1.bf16.msra.mxu0 0
        %679 = vmatprep.subr.bf16.mxu0 0
        %680 = vmatpush1.bf16.msra.mxu0 0
        %681 = vmatprep.subr.bf16.mxu0 0
        %682 = vmatpush1.bf16.msra.mxu0 0
        %683 = vmatprep.subr.bf16.mxu0 0
        %684 = vmatpush1.bf16.msra.mxu0 0
        %685 = vmatprep.subr.bf16.mxu0 0
        %686 = vmatpush1.bf16.msra.mxu0 0
        %687 = vmatprep.subr.bf16.mxu0 0
        %688 = vmatpush1.bf16.msra.mxu0 0
        %689 = vmatprep.subr.bf16.mxu0 %v573
        %690 = vmatpush1.bf16.msra.mxu0 %v570
        %691 = vmatprep.subr.bf16.mxu0 %v536
        %692 = vmatpush1.bf16.msra.mxu0 %v535
        %693 = vmatprep.subr.bf16.mxu0 0
        %694 = vmatpush2.bf16.msra.mxu0 0
        %695 = vmatprep.subr.bf16.mxu0 0
        %696 = vmatpush2.bf16.msra.mxu0 0
        %697 = vmatprep.subr.bf16.mxu0 0
        %698 = vmatpush2.bf16.msra.mxu0 0
        %699 = vmatprep.subr.bf16.mxu0 0
        %700 = vmatpush2.bf16.msra.mxu0 0
        %701 = vmatprep.subr.bf16.mxu0 0
        %702 = vmatpush2.bf16.msra.mxu0 0
        %703 = vmatprep.subr.bf16.mxu0 0
        %704 = vmatpush2.bf16.msra.mxu0 0
        %705 = vmatprep.subr.bf16.mxu0 0
        %706 = vmatpush2.bf16.msra.mxu0 0
        %707 = vmatprep.subr.bf16.mxu0 0
        %708 = vmatpush2.bf16.msra.mxu0 0
        %709 = vmatprep.mubr.bf16.mxu0 0
        %710 = vmatmul.mubr.bf16.gmra.mxu0 %v551
        %v711 = vpop.f32.mrf.mxu0
        %v712 = vadd.f32 0.0, %v711
        %v713 = vpop.f32.mrf.mxu0
        %v714 = vadd.f32 0.0, %v713
        %v715 = vpop.f32.mrf.mxu0
        %v716 = vadd.f32 0.0, %v715
        %v717 = vpop.f32.mrf.mxu0
        %v718 = vadd.f32 0.0, %v717
        %719 = vmatprep.mubr.bf16.mxu0 0
        %720 = vmatmul.mubr.bf16.gmra.mxu0 %v554
        %v721 = vpop.f32.mrf.mxu0
        %v722 = vadd.f32 0.0, %v721
        %v723 = vpop.f32.mrf.mxu0
        %v724 = vadd.f32 0.0, %v723
        %v725 = vpop.f32.mrf.mxu0
        %v726 = vpop.f32.mrf.mxu0
        %727 = vdwg.mxu0
        %v728 = vpack.c.b16 %v475, %v475
        %v741 = vunpack.c.l.b16 %v444
        %v742 = vunpack.c.h.b16 %v444
        %v743 = vunpack.c.l.b16 %v445
        %v744 = vunpack.c.h.b16 %v445
        %v745 = vunpack.c.l.b16 %v446
        %v746 = vunpack.c.h.b16 %v446
        %v747 = vunpack.c.l.b16 %v447
        %v748 = vunpack.c.h.b16 %v447
        %v749 = vunpack.c.l.b16 %v448
        %v750 = vunpack.c.h.b16 %v448
        %v751 = vunpack.c.l.b16 %v449
        %v752 = vunpack.c.h.b16 %v449
        %v753 = vunpack.c.l.b16 %v450
        %v754 = vunpack.c.h.b16 %v450
        %v755 = vunpack.c.l.b16 %v451
        %v756 = vunpack.c.h.b16 %v451
        %v757 = vunpack.c.l.b16 %v452
        %v758 = vunpack.c.h.b16 %v452
        %v759 = vunpack.c.l.b16 %v453
        %v760 = vunpack.c.h.b16 %v453
        %v761 = vunpack.c.l.b16 %v454
        %v762 = vunpack.c.h.b16 %v454
        %v763 = vunpack.c.l.b16 %v455
        %v764 = vunpack.c.h.b16 %v455
        %v765 = vpack.c.b16 %v747, %v741
        %v766 = vpack.c.b16 %v748, %v742
        %v767 = vpack.c.b16 %v749, %v743
        %v768 = vpack.c.b16 %v750, %v744
        %v769 = vpack.c.b16 %v751, %v745
        %v770 = vpack.c.b16 %v752, %v746
        %v771 = vpack.c.b16 %v759, %v753
        %v772 = vpack.c.b16 %v760, %v754
        %v773 = vpack.c.b16 %v761, %v755
        %v774 = vpack.c.b16 %v762, %v756
        %v775 = vpack.c.b16 %v763, %v757
        %v776 = vpack.c.b16 %v764, %v758
        %v783 = vsel %vm549, %v477, 0
        %v786 = vsel %vm549, %v728, 0
        %v789 = vsel %vm556, %v771, 0
        %v792 = vsel %vm556, %v772, 0
        %v795 = vsel %vm556, %v773, 0
        %v798 = vsel %vm556, %v774, 0
        %v801 = vsel %vm556, %v775, 0
        %v804 = vsel %vm556, %v776, 0
        %806 = vmatprep.subr.bf16.mxu0 0
        %807 = vmatpush1.bf16.msra.mxu0 0
        %808 = vmatprep.subr.bf16.mxu0 0
        %809 = vmatpush1.bf16.msra.mxu0 0
        %810 = vmatprep.subr.bf16.mxu0 0
        %811 = vmatpush1.bf16.msra.mxu0 0
        %812 = vmatprep.subr.bf16.mxu0 0
        %813 = vmatpush1.bf16.msra.mxu0 0
        %814 = vmatprep.subr.bf16.mxu0 0
        %815 = vmatpush1.bf16.msra.mxu0 0
        %816 = vmatprep.subr.bf16.mxu0 0
        %817 = vmatpush1.bf16.msra.mxu0 0
        %818 = vmatprep.subr.bf16.mxu0 %v792
        %819 = vmatpush1.bf16.msra.mxu0 %v789
        %820 = vmatprep.subr.bf16.mxu0 %v766
        %821 = vmatpush1.bf16.msra.mxu0 %v765
        %822 = vmatprep.subr.bf16.mxu0 0
        %823 = vmatpush2.bf16.msra.mxu0 0
        %824 = vmatprep.subr.bf16.mxu0 0
        %825 = vmatpush2.bf16.msra.mxu0 0
        %826 = vmatprep.subr.bf16.mxu0 0
        %827 = vmatpush2.bf16.msra.mxu0 0
        %828 = vmatprep.subr.bf16.mxu0 0
        %829 = vmatpush2.bf16.msra.mxu0 0
        %830 = vmatprep.subr.bf16.mxu0 0
        %831 = vmatpush2.bf16.msra.mxu0 0
        %832 = vmatprep.subr.bf16.mxu0 0
        %833 = vmatpush2.bf16.msra.mxu0 0
        %834 = vmatprep.subr.bf16.mxu0 0
        %835 = vmatpush2.bf16.msra.mxu0 0
        %836 = vmatprep.subr.bf16.mxu0 0
        %837 = vmatpush2.bf16.msra.mxu0 0
        %838 = vmatprep.mubr.bf16.mxu0 0
        %839 = vmatmul.mubr.bf16.gmra.mxu0 %v783
        %v840 = vpop.f32.mrf.mxu0
        %v841 = vadd.f32 %v610, %v840
        %v842 = vpop.f32.mrf.mxu0
        %v843 = vadd.f32 %v612, %v842
        %v844 = vpop.f32.mrf.mxu0
        %v845 = vadd.f32 %v614, %v844
        %v846 = vpop.f32.mrf.mxu0
        %v847 = vadd.f32 %v616, %v846
        %848 = vmatprep.mubr.bf16.mxu0 0
        %849 = vmatmul.mubr.bf16.gmra.mxu0 %v786
        %v850 = vpop.f32.mrf.mxu0
        %v851 = vadd.f32 %v620, %v850
        %v852 = vpop.f32.mrf.mxu0
        %v853 = vadd.f32 %v622, %v852
        %v854 = vpop.f32.mrf.mxu0
        %v855 = vpop.f32.mrf.mxu0
        %856 = vdwg.mxu0
        %857 = vmatprep.subr.bf16.mxu0 0
        %858 = vmatpush1.bf16.msra.mxu0 0
        %859 = vmatprep.subr.bf16.mxu0 0
        %860 = vmatpush1.bf16.msra.mxu0 0
        %861 = vmatprep.subr.bf16.mxu0 0
        %862 = vmatpush1.bf16.msra.mxu0 0
        %863 = vmatprep.subr.bf16.mxu0 0
        %864 = vmatpush1.bf16.msra.mxu0 0
        %865 = vmatprep.subr.bf16.mxu0 0
        %866 = vmatpush1.bf16.msra.mxu0 0
        %867 = vmatprep.subr.bf16.mxu0 0
        %868 = vmatpush1.bf16.msra.mxu0 0
        %869 = vmatprep.subr.bf16.mxu0 %v798
        %870 = vmatpush1.bf16.msra.mxu0 %v795
        %871 = vmatprep.subr.bf16.mxu0 %v768
        %872 = vmatpush1.bf16.msra.mxu0 %v767
        %873 = vmatprep.subr.bf16.mxu0 0
        %874 = vmatpush2.bf16.msra.mxu0 0
        %875 = vmatprep.subr.bf16.mxu0 0
        %876 = vmatpush2.bf16.msra.mxu0 0
        %877 = vmatprep.subr.bf16.mxu0 0
        %878 = vmatpush2.bf16.msra.mxu0 0
        %879 = vmatprep.subr.bf16.mxu0 0
        %880 = vmatpush2.bf16.msra.mxu0 0
        %881 = vmatprep.subr.bf16.mxu0 0
        %882 = vmatpush2.bf16.msra.mxu0 0
        %883 = vmatprep.subr.bf16.mxu0 0
        %884 = vmatpush2.bf16.msra.mxu0 0
        %885 = vmatprep.subr.bf16.mxu0 0
        %886 = vmatpush2.bf16.msra.mxu0 0
        %887 = vmatprep.subr.bf16.mxu0 0
        %888 = vmatpush2.bf16.msra.mxu0 0
        %889 = vmatprep.mubr.bf16.mxu0 0
        %890 = vmatmul.mubr.bf16.gmra.mxu0 %v783
        %v891 = vpop.f32.mrf.mxu0
        %v892 = vadd.f32 %v661, %v891
        %v893 = vpop.f32.mrf.mxu0
        %v894 = vadd.f32 %v663, %v893
        %v895 = vpop.f32.mrf.mxu0
        %v896 = vadd.f32 %v665, %v895
        %v897 = vpop.f32.mrf.mxu0
        %v898 = vadd.f32 %v667, %v897
        %899 = vmatprep.mubr.bf16.mxu0 0
        %900 = vmatmul.mubr.bf16.gmra.mxu0 %v786
        %v901 = vpop.f32.mrf.mxu0
        %v902 = vadd.f32 %v671, %v901
        %v903 = vpop.f32.mrf.mxu0
        %v904 = vadd.f32 %v673, %v903
        %v905 = vpop.f32.mrf.mxu0
        %v906 = vpop.f32.mrf.mxu0
        %907 = vdwg.mxu0
        %908 = vmatprep.subr.bf16.mxu0 0
        %909 = vmatpush1.bf16.msra.mxu0 0
        %910 = vmatprep.subr.bf16.mxu0 0
        %911 = vmatpush1.bf16.msra.mxu0 0
        %912 = vmatprep.subr.bf16.mxu0 0
        %913 = vmatpush1.bf16.msra.mxu0 0
        %914 = vmatprep.subr.bf16.mxu0 0
        %915 = vmatpush1.bf16.msra.mxu0 0
        %916 = vmatprep.subr.bf16.mxu0 0
        %917 = vmatpush1.bf16.msra.mxu0 0
        %918 = vmatprep.subr.bf16.mxu0 0
        %919 = vmatpush1.bf16.msra.mxu0 0
        %920 = vmatprep.subr.bf16.mxu0 %v804
        %921 = vmatpush1.bf16.msra.mxu0 %v801
        %922 = vmatprep.subr.bf16.mxu0 %v770
        %923 = vmatpush1.bf16.msra.mxu0 %v769
        %924 = vmatprep.subr.bf16.mxu0 0
        %925 = vmatpush2.bf16.msra.mxu0 0
        %926 = vmatprep.subr.bf16.mxu0 0
        %927 = vmatpush2.bf16.msra.mxu0 0
        %928 = vmatprep.subr.bf16.mxu0 0
        %929 = vmatpush2.bf16.msra.mxu0 0
        %930 = vmatprep.subr.bf16.mxu0 0
        %931 = vmatpush2.bf16.msra.mxu0 0
        %932 = vmatprep.subr.bf16.mxu0 0
        %933 = vmatpush2.bf16.msra.mxu0 0
        %934 = vmatprep.subr.bf16.mxu0 0
        %935 = vmatpush2.bf16.msra.mxu0 0
        %936 = vmatprep.subr.bf16.mxu0 0
        %937 = vmatpush2.bf16.msra.mxu0 0
        %938 = vmatprep.subr.bf16.mxu0 0
        %939 = vmatpush2.bf16.msra.mxu0 0
        %940 = vmatprep.mubr.bf16.mxu0 0
        %941 = vmatmul.mubr.bf16.gmra.mxu0 %v783
        %v942 = vpop.f32.mrf.mxu0
        %v943 = vadd.f32 %v712, %v942
        %v944 = vpop.f32.mrf.mxu0
        %v945 = vadd.f32 %v714, %v944
        %v946 = vpop.f32.mrf.mxu0
        %v947 = vadd.f32 %v716, %v946
        %v948 = vpop.f32.mrf.mxu0
        %v949 = vadd.f32 %v718, %v948
        %950 = vmatprep.mubr.bf16.mxu0 0
        %951 = vmatmul.mubr.bf16.gmra.mxu0 %v786
        %v952 = vpop.f32.mrf.mxu0
        %v953 = vadd.f32 %v722, %v952
        %v954 = vpop.f32.mrf.mxu0
        %v955 = vadd.f32 %v724, %v954
        %v956 = vpop.f32.mrf.mxu0
        %v957 = vpop.f32.mrf.mxu0
        %958 = vdwg.mxu0
        %s959 = scalar_lea.vmem [#allocation3], 192
        %v960 = vld [vmem:[%s959] sm:$0xff]
        %v961 = vld [vmem:[%s959 + $0x8] sm:$0xff]
        %v962 = vld [vmem:[%s959 + $0x10] sm:$0xff]
        %v963 = vld [vmem:[%s959 + $0x18] sm:$0xff]
        %v964 = vld [vmem:[%s959 + $0x20] sm:$0xff]
        %v965 = vld [vmem:[%s959 + $0x28] sm:$0xff]
        %v966 = vld [vmem:[%s959 + $0x30] sm:$0xff]
        %v967 = vld [vmem:[%s959 + $0x38] sm:$0xff]
        %v968 = vld [vmem:[%s959 + $0x40] sm:$0xff]
        %v969 = vld [vmem:[%s959 + $0x48] sm:$0x33]
        %v970 = vld [vmem:[%s959 + $0x50] sm:$0x33]
        %v971 = vld [vmem:[%s959 + $0x58] sm:$0x33]
        %vm972 = vcmask 1046528
        %v973 = vrot.slane %v477, 1
        %v974 = vrot.slane %v478, 1
        %v975 = vsel %vm972, %v973, %v974
        %v988 = vunpack.c.l.b16 %v960
        %v989 = vunpack.c.h.b16 %v960
        %v990 = vunpack.c.l.b16 %v961
        %v991 = vunpack.c.h.b16 %v961
        %v992 = vunpack.c.l.b16 %v962
        %v993 = vunpack.c.h.b16 %v962
        %v994 = vunpack.c.l.b16 %v963
        %v995 = vunpack.c.h.b16 %v963
        %v996 = vunpack.c.l.b16 %v964
        %v997 = vunpack.c.h.b16 %v964
        %v998 = vunpack.c.l.b16 %v965
        %v999 = vunpack.c.h.b16 %v965
        %v1000 = vunpack.c.l.b16 %v966
        %v1001 = vunpack.c.h.b16 %v966
        %v1002 = vunpack.c.l.b16 %v967
        %v1003 = vunpack.c.h.b16 %v967
        %v1004 = vunpack.c.l.b16 %v968
        %v1005 = vunpack.c.h.b16 %v968
        %v1006 = vunpack.c.l.b16 %v969
        %v1007 = vunpack.c.h.b16 %v969
        %v1008 = vunpack.c.l.b16 %v970
        %v1009 = vunpack.c.h.b16 %v970
        %v1010 = vunpack.c.l.b16 %v971
        %v1011 = vunpack.c.h.b16 %v971
        %v1012 = vpack.c.b16 %v994, %v988
        %v1013 = vpack.c.b16 %v995, %v989
        %v1014 = vpack.c.b16 %v996, %v990
        %v1015 = vpack.c.b16 %v997, %v991
        %v1016 = vpack.c.b16 %v998, %v992
        %v1017 = vpack.c.b16 %v999, %v993
        %v1018 = vpack.c.b16 %v1006, %v1000
        %v1019 = vpack.c.b16 %v1007, %v1001
        %v1020 = vpack.c.b16 %v1008, %v1002
        %v1021 = vpack.c.b16 %v1009, %v1003
        %v1022 = vpack.c.b16 %v1010, %v1004
        %v1023 = vpack.c.b16 %v1011, %v1005
        %v1031 = vsel %vm549, %v975, 0
        %v1034 = vsel %vm549, %v974, 0
        %v1037 = vsel %vm556, %v1018, 0
        %v1040 = vsel %vm556, %v1019, 0
        %v1043 = vsel %vm556, %v1020, 0
        %v1046 = vsel %vm556, %v1021, 0
        %v1049 = vsel %vm556, %v1022, 0
        %v1052 = vsel %vm556, %v1023, 0
        %1054 = vmatprep.subr.bf16.mxu0 0
        %1055 = vmatpush1.bf16.msra.mxu0 0
        %1056 = vmatprep.subr.bf16.mxu0 0
        %1057 = vmatpush1.bf16.msra.mxu0 0
        %1058 = vmatprep.subr.bf16.mxu0 0
        %1059 = vmatpush1.bf16.msra.mxu0 0
        %1060 = vmatprep.subr.bf16.mxu0 0
        %1061 = vmatpush1.bf16.msra.mxu0 0
        %1062 = vmatprep.subr.bf16.mxu0 0
        %1063 = vmatpush1.bf16.msra.mxu0 0
        %1064 = vmatprep.subr.bf16.mxu0 0
        %1065 = vmatpush1.bf16.msra.mxu0 0
        %1066 = vmatprep.subr.bf16.mxu0 %v1040
        %1067 = vmatpush1.bf16.msra.mxu0 %v1037
        %1068 = vmatprep.subr.bf16.mxu0 %v1013
        %1069 = vmatpush1.bf16.msra.mxu0 %v1012
        %1070 = vmatprep.subr.bf16.mxu0 0
        %1071 = vmatpush2.bf16.msra.mxu0 0
        %1072 = vmatprep.subr.bf16.mxu0 0
        %1073 = vmatpush2.bf16.msra.mxu0 0
        %1074 = vmatprep.subr.bf16.mxu0 0
        %1075 = vmatpush2.bf16.msra.mxu0 0
        %1076 = vmatprep.subr.bf16.mxu0 0
        %1077 = vmatpush2.bf16.msra.mxu0 0
        %1078 = vmatprep.subr.bf16.mxu0 0
        %1079 = vmatpush2.bf16.msra.mxu0 0
        %1080 = vmatprep.subr.bf16.mxu0 0
        %1081 = vmatpush2.bf16.msra.mxu0 0
        %1082 = vmatprep.subr.bf16.mxu0 0
        %1083 = vmatpush2.bf16.msra.mxu0 0
        %1084 = vmatprep.subr.bf16.mxu0 0
        %1085 = vmatpush2.bf16.msra.mxu0 0
        %1086 = vmatprep.mubr.bf16.mxu0 0
        %1087 = vmatmul.mubr.bf16.gmra.mxu0 %v1031
        %v1088 = vpop.f32.mrf.mxu0
        %v1089 = vadd.f32 0.0, %v1088
        %v1090 = vpop.f32.mrf.mxu0
        %v1091 = vadd.f32 0.0, %v1090
        %v1092 = vpop.f32.mrf.mxu0
        %v1093 = vadd.f32 0.0, %v1092
        %v1094 = vpop.f32.mrf.mxu0
        %v1095 = vadd.f32 0.0, %v1094
        %1096 = vmatprep.mubr.bf16.mxu0 0
        %1097 = vmatmul.mubr.bf16.gmra.mxu0 %v1034
        %v1098 = vpop.f32.mrf.mxu0
        %v1099 = vadd.f32 0.0, %v1098
        %v1100 = vpop.f32.mrf.mxu0
        %v1101 = vadd.f32 0.0, %v1100
        %v1102 = vpop.f32.mrf.mxu0
        %v1103 = vpop.f32.mrf.mxu0
        %1104 = vdwg.mxu0
        %1105 = vmatprep.subr.bf16.mxu0 0
        %1106 = vmatpush1.bf16.msra.mxu0 0
        %1107 = vmatprep.subr.bf16.mxu0 0
        %1108 = vmatpush1.bf16.msra.mxu0 0
        %1109 = vmatprep.subr.bf16.mxu0 0
        %1110 = vmatpush1.bf16.msra.mxu0 0
        %1111 = vmatprep.subr.bf16.mxu0 0
        %1112 = vmatpush1.bf16.msra.mxu0 0
        %1113 = vmatprep.subr.bf16.mxu0 0
        %1114 = vmatpush1.bf16.msra.mxu0 0
        %1115 = vmatprep.subr.bf16.mxu0 0
        %1116 = vmatpush1.bf16.msra.mxu0 0
        %1117 = vmatprep.subr.bf16.mxu0 %v1046
        %1118 = vmatpush1.bf16.msra.mxu0 %v1043
        %1119 = vmatprep.subr.bf16.mxu0 %v1015
        %1120 = vmatpush1.bf16.msra.mxu0 %v1014
        %1121 = vmatprep.subr.bf16.mxu0 0
        %1122 = vmatpush2.bf16.msra.mxu0 0
        %1123 = vmatprep.subr.bf16.mxu0 0
        %1124 = vmatpush2.bf16.msra.mxu0 0
        %1125 = vmatprep.subr.bf16.mxu0 0
        %1126 = vmatpush2.bf16.msra.mxu0 0
        %1127 = vmatprep.subr.bf16.mxu0 0
        %1128 = vmatpush2.bf16.msra.mxu0 0
        %1129 = vmatprep.subr.bf16.mxu0 0
        %1130 = vmatpush2.bf16.msra.mxu0 0
        %1131 = vmatprep.subr.bf16.mxu0 0
        %1132 = vmatpush2.bf16.msra.mxu0 0
        %1133 = vmatprep.subr.bf16.mxu0 0
        %1134 = vmatpush2.bf16.msra.mxu0 0
        %1135 = vmatprep.subr.bf16.mxu0 0
        %1136 = vmatpush2.bf16.msra.mxu0 0
        %1137 = vmatprep.mubr.bf16.mxu0 0
        %1138 = vmatmul.mubr.bf16.gmra.mxu0 %v1031
        %v1139 = vpop.f32.mrf.mxu0
        %v1140 = vadd.f32 0.0, %v1139
        %v1141 = vpop.f32.mrf.mxu0
        %v1142 = vadd.f32 0.0, %v1141
        %v1143 = vpop.f32.mrf.mxu0
        %v1144 = vadd.f32 0.0, %v1143
        %v1145 = vpop.f32.mrf.mxu0
        %v1146 = vadd.f32 0.0, %v1145
        %1147 = vmatprep.mubr.bf16.mxu0 0
        %1148 = vmatmul.mubr.bf16.gmra.mxu0 %v1034
        %v1149 = vpop.f32.mrf.mxu0
        %v1150 = vadd.f32 0.0, %v1149
        %v1151 = vpop.f32.mrf.mxu0
        %v1152 = vadd.f32 0.0, %v1151
        %v1153 = vpop.f32.mrf.mxu0
        %v1154 = vpop.f32.mrf.mxu0
        %1155 = vdwg.mxu0
        %1156 = vmatprep.subr.bf16.mxu0 0
        %1157 = vmatpush1.bf16.msra.mxu0 0
        %1158 = vmatprep.subr.bf16.mxu0 0
        %1159 = vmatpush1.bf16.msra.mxu0 0
        %1160 = vmatprep.subr.bf16.mxu0 0
        %1161 = vmatpush1.bf16.msra.mxu0 0
        %1162 = vmatprep.subr.bf16.mxu0 0
        %1163 = vmatpush1.bf16.msra.mxu0 0
        %1164 = vmatprep.subr.bf16.mxu0 0
        %1165 = vmatpush1.bf16.msra.mxu0 0
        %1166 = vmatprep.subr.bf16.mxu0 0
        %1167 = vmatpush1.bf16.msra.mxu0 0
        %1168 = vmatprep.subr.bf16.mxu0 %v1052
        %1169 = vmatpush1.bf16.msra.mxu0 %v1049
        %1170 = vmatprep.subr.bf16.mxu0 %v1017
        %1171 = vmatpush1.bf16.msra.mxu0 %v1016
        %1172 = vmatprep.subr.bf16.mxu0 0
        %1173 = vmatpush2.bf16.msra.mxu0 0
        %1174 = vmatprep.subr.bf16.mxu0 0
        %1175 = vmatpush2.bf16.msra.mxu0 0
        %1176 = vmatprep.subr.bf16.mxu0 0
        %1177 = vmatpush2.bf16.msra.mxu0 0
        %1178 = vmatprep.subr.bf16.mxu0 0
        %1179 = vmatpush2.bf16.msra.mxu0 0
        %1180 = vmatprep.subr.bf16.mxu0 0
        %1181 = vmatpush2.bf16.msra.mxu0 0
        %1182 = vmatprep.subr.bf16.mxu0 0
        %1183 = vmatpush2.bf16.msra.mxu0 0
        %1184 = vmatprep.subr.bf16.mxu0 0
        %1185 = vmatpush2.bf16.msra.mxu0 0
        %1186 = vmatprep.subr.bf16.mxu0 0
        %1187 = vmatpush2.bf16.msra.mxu0 0
        %1188 = vmatprep.mubr.bf16.mxu0 0
        %1189 = vmatmul.mubr.bf16.gmra.mxu0 %v1031
        %v1190 = vpop.f32.mrf.mxu0
        %v1191 = vadd.f32 0.0, %v1190
        %v1192 = vpop.f32.mrf.mxu0
        %v1193 = vadd.f32 0.0, %v1192
        %v1194 = vpop.f32.mrf.mxu0
        %v1195 = vadd.f32 0.0, %v1194
        %v1196 = vpop.f32.mrf.mxu0
        %v1197 = vadd.f32 0.0, %v1196
        %1198 = vmatprep.mubr.bf16.mxu0 0
        %1199 = vmatmul.mubr.bf16.gmra.mxu0 %v1034
        %v1200 = vpop.f32.mrf.mxu0
        %v1201 = vadd.f32 0.0, %v1200
        %v1202 = vpop.f32.mrf.mxu0
        %v1203 = vadd.f32 0.0, %v1202
        %v1204 = vpop.f32.mrf.mxu0
        %v1205 = vpop.f32.mrf.mxu0
        %1206 = vdwg.mxu0
        %v1207 = vadd.f32 %v841, %v1089
        %v1208 = vadd.f32 %v843, %v1091
        %v1209 = vadd.f32 %v892, %v1140
        %v1210 = vadd.f32 %v894, %v1142
        %v1211 = vadd.f32 %v943, %v1191
        %v1212 = vadd.f32 %v945, %v1193
        %v1213 = vadd.f32 %v845, %v1093
        %v1214 = vadd.f32 %v847, %v1095
        %v1215 = vadd.f32 %v896, %v1144
        %v1216 = vadd.f32 %v898, %v1146
        %v1217 = vadd.f32 %v947, %v1195
        %v1218 = vadd.f32 %v949, %v1197
        %v1219 = vadd.f32 %v851, %v1099
        %v1220 = vadd.f32 %v853, %v1101
        %v1221 = vadd.f32 %v902, %v1150
        %v1222 = vadd.f32 %v904, %v1152
        %v1223 = vadd.f32 %v953, %v1201
        %v1224 = vadd.f32 %v955, %v1203
        %s1225 = scalar_lea.vmem [#allocation3], 288
        %v1226 = vld [vmem:[%s1225] sm:$0xff]
        %v1227 = vld [vmem:[%s1225 + $0x8] sm:$0xff]
        %v1228 = vld [vmem:[%s1225 + $0x10] sm:$0xff]
        %v1229 = vld [vmem:[%s1225 + $0x18] sm:$0xff]
        %v1230 = vld [vmem:[%s1225 + $0x20] sm:$0xff]
        %v1231 = vld [vmem:[%s1225 + $0x28] sm:$0xff]
        %v1232 = vld [vmem:[%s1225 + $0x30] sm:$0xff]
        %v1233 = vld [vmem:[%s1225 + $0x38] sm:$0xff]
        %v1234 = vld [vmem:[%s1225 + $0x40] sm:$0xff]
        %v1235 = vld [vmem:[%s1225 + $0x48] sm:$0x33]
        %v1236 = vld [vmem:[%s1225 + $0x50] sm:$0x33]
        %v1237 = vld [vmem:[%s1225 + $0x58] sm:$0x33]
        %vm1238 = vsmask.f32 6400
        %v1239 = vrot.slane %v481, 1
        %v1240 = vrot.slane %v483, 2
        %v1241 = vor.u32 %v1239, %v1240
        %v1242 = vrot.slane %v492, 1
        %v1243 = vrot.slane %v488, 2
        %v1244 = vor.u32 %v1242, %v1243
        %v1245 = vsel %vm1238, %v1241, %v1244
        %v1258 = vunpack.c.l.b16 %v1226
        %v1259 = vunpack.c.h.b16 %v1226
        %v1260 = vunpack.c.l.b16 %v1227
        %v1261 = vunpack.c.h.b16 %v1227
        %v1262 = vunpack.c.l.b16 %v1228
        %v1263 = vunpack.c.h.b16 %v1228
        %v1264 = vunpack.c.l.b16 %v1229
        %v1265 = vunpack.c.h.b16 %v1229
        %v1266 = vunpack.c.l.b16 %v1230
        %v1267 = vunpack.c.h.b16 %v1230
        %v1268 = vunpack.c.l.b16 %v1231
        %v1269 = vunpack.c.h.b16 %v1231
        %v1270 = vunpack.c.l.b16 %v1232
        %v1271 = vunpack.c.h.b16 %v1232
        %v1272 = vunpack.c.l.b16 %v1233
        %v1273 = vunpack.c.h.b16 %v1233
        %v1274 = vunpack.c.l.b16 %v1234
        %v1275 = vunpack.c.h.b16 %v1234
        %v1276 = vunpack.c.l.b16 %v1235
        %v1277 = vunpack.c.h.b16 %v1235
        %v1278 = vunpack.c.l.b16 %v1236
        %v1279 = vunpack.c.h.b16 %v1236
        %v1280 = vunpack.c.l.b16 %v1237
        %v1281 = vunpack.c.h.b16 %v1237
        %v1282 = vpack.c.b16 %v1264, %v1258
        %v1283 = vpack.c.b16 %v1265, %v1259
        %v1284 = vpack.c.b16 %v1266, %v1260
        %v1285 = vpack.c.b16 %v1267, %v1261
        %v1286 = vpack.c.b16 %v1268, %v1262
        %v1287 = vpack.c.b16 %v1269, %v1263
        %v1288 = vpack.c.b16 %v1276, %v1270
        %v1289 = vpack.c.b16 %v1277, %v1271
        %v1290 = vpack.c.b16 %v1278, %v1272
        %v1291 = vpack.c.b16 %v1279, %v1273
        %v1292 = vpack.c.b16 %v1280, %v1274
        %v1293 = vpack.c.b16 %v1281, %v1275
        %v1301 = vsel %vm549, %v1245, 0
        %v1304 = vsel %vm549, %v1244, 0
        %v1307 = vsel %vm556, %v1288, 0
        %v1310 = vsel %vm556, %v1289, 0
        %v1313 = vsel %vm556, %v1290, 0
        %v1316 = vsel %vm556, %v1291, 0
        %v1319 = vsel %vm556, %v1292, 0
        %v1322 = vsel %vm556, %v1293, 0
        %1324 = vmatprep.subr.bf16.mxu0 0
        %1325 = vmatpush1.bf16.msra.mxu0 0
        %1326 = vmatprep.subr.bf16.mxu0 0
        %1327 = vmatpush1.bf16.msra.mxu0 0
        %1328 = vmatprep.subr.bf16.mxu0 0
        %1329 = vmatpush1.bf16.msra.mxu0 0
        %1330 = vmatprep.subr.bf16.mxu0 0
        %1331 = vmatpush1.bf16.msra.mxu0 0
        %1332 = vmatprep.subr.bf16.mxu0 0
        %1333 = vmatpush1.bf16.msra.mxu0 0
        %1334 = vmatprep.subr.bf16.mxu0 0
        %1335 = vmatpush1.bf16.msra.mxu0 0
        %1336 = vmatprep.subr.bf16.mxu0 %v1310
        %1337 = vmatpush1.bf16.msra.mxu0 %v1307
        %1338 = vmatprep.subr.bf16.mxu0 %v1283
        %1339 = vmatpush1.bf16.msra.mxu0 %v1282
        %1340 = vmatprep.subr.bf16.mxu0 0
        %1341 = vmatpush2.bf16.msra.mxu0 0
        %1342 = vmatprep.subr.bf16.mxu0 0
        %1343 = vmatpush2.bf16.msra.mxu0 0
        %1344 = vmatprep.subr.bf16.mxu0 0
        %1345 = vmatpush2.bf16.msra.mxu0 0
        %1346 = vmatprep.subr.bf16.mxu0 0
        %1347 = vmatpush2.bf16.msra.mxu0 0
        %1348 = vmatprep.subr.bf16.mxu0 0
        %1349 = vmatpush2.bf16.msra.mxu0 0
        %1350 = vmatprep.subr.bf16.mxu0 0
        %1351 = vmatpush2.bf16.msra.mxu0 0
        %1352 = vmatprep.subr.bf16.mxu0 0
        %1353 = vmatpush2.bf16.msra.mxu0 0
        %1354 = vmatprep.subr.bf16.mxu0 0
        %1355 = vmatpush2.bf16.msra.mxu0 0
        %1356 = vmatprep.mubr.bf16.mxu0 0
        %1357 = vmatmul.mubr.bf16.gmra.mxu0 %v1301
        %v1358 = vpop.f32.mrf.mxu0
        %v1359 = vadd.f32 0.0, %v1358
        %v1360 = vpop.f32.mrf.mxu0
        %v1361 = vadd.f32 0.0, %v1360
        %v1362 = vpop.f32.mrf.mxu0
        %v1363 = vadd.f32 0.0, %v1362
        %v1364 = vpop.f32.mrf.mxu0
        %v1365 = vadd.f32 0.0, %v1364
        %1366 = vmatprep.mubr.bf16.mxu0 0
        %1367 = vmatmul.mubr.bf16.gmra.mxu0 %v1304
        %v1368 = vpop.f32.mrf.mxu0
        %v1369 = vadd.f32 0.0, %v1368
        %v1370 = vpop.f32.mrf.mxu0
        %v1371 = vadd.f32 0.0, %v1370
        %v1372 = vpop.f32.mrf.mxu0
        %v1373 = vpop.f32.mrf.mxu0
        %1374 = vdwg.mxu0
        %1375 = vmatprep.subr.bf16.mxu0 0
        %1376 = vmatpush1.bf16.msra.mxu0 0
        %1377 = vmatprep.subr.bf16.mxu0 0
        %1378 = vmatpush1.bf16.msra.mxu0 0
        %1379 = vmatprep.subr.bf16.mxu0 0
        %1380 = vmatpush1.bf16.msra.mxu0 0
        %1381 = vmatprep.subr.bf16.mxu0 0
        %1382 = vmatpush1.bf16.msra.mxu0 0
        %1383 = vmatprep.subr.bf16.mxu0 0
        %1384 = vmatpush1.bf16.msra.mxu0 0
        %1385 = vmatprep.subr.bf16.mxu0 0
        %1386 = vmatpush1.bf16.msra.mxu0 0
        %1387 = vmatprep.subr.bf16.mxu0 %v1316
        %1388 = vmatpush1.bf16.msra.mxu0 %v1313
        %1389 = vmatprep.subr.bf16.mxu0 %v1285
        %1390 = vmatpush1.bf16.msra.mxu0 %v1284
        %1391 = vmatprep.subr.bf16.mxu0 0
        %1392 = vmatpush2.bf16.msra.mxu0 0
        %1393 = vmatprep.subr.bf16.mxu0 0
        %1394 = vmatpush2.bf16.msra.mxu0 0
        %1395 = vmatprep.subr.bf16.mxu0 0
        %1396 = vmatpush2.bf16.msra.mxu0 0
        %1397 = vmatprep.subr.bf16.mxu0 0
        %1398 = vmatpush2.bf16.msra.mxu0 0
        %1399 = vmatprep.subr.bf16.mxu0 0
        %1400 = vmatpush2.bf16.msra.mxu0 0
        %1401 = vmatprep.subr.bf16.mxu0 0
        %1402 = vmatpush2.bf16.msra.mxu0 0
        %1403 = vmatprep.subr.bf16.mxu0 0
        %1404 = vmatpush2.bf16.msra.mxu0 0
        %1405 = vmatprep.subr.bf16.mxu0 0
        %1406 = vmatpush2.bf16.msra.mxu0 0
        %1407 = vmatprep.mubr.bf16.mxu0 0
        %1408 = vmatmul.mubr.bf16.gmra.mxu0 %v1301
        %v1409 = vpop.f32.mrf.mxu0
        %v1410 = vadd.f32 0.0, %v1409
        %v1411 = vpop.f32.mrf.mxu0
        %v1412 = vadd.f32 0.0, %v1411
        %v1413 = vpop.f32.mrf.mxu0
        %v1414 = vadd.f32 0.0, %v1413
        %v1415 = vpop.f32.mrf.mxu0
        %v1416 = vadd.f32 0.0, %v1415
        %1417 = vmatprep.mubr.bf16.mxu0 0
        %1418 = vmatmul.mubr.bf16.gmra.mxu0 %v1304
        %v1419 = vpop.f32.mrf.mxu0
        %v1420 = vadd.f32 0.0, %v1419
        %v1421 = vpop.f32.mrf.mxu0
        %v1422 = vadd.f32 0.0, %v1421
        %v1423 = vpop.f32.mrf.mxu0
        %v1424 = vpop.f32.mrf.mxu0
        %1425 = vdwg.mxu0
        %1426 = vmatprep.subr.bf16.mxu0 0
        %1427 = vmatpush1.bf16.msra.mxu0 0
        %1428 = vmatprep.subr.bf16.mxu0 0
        %1429 = vmatpush1.bf16.msra.mxu0 0
        %1430 = vmatprep.subr.bf16.mxu0 0
        %1431 = vmatpush1.bf16.msra.mxu0 0
        %1432 = vmatprep.subr.bf16.mxu0 0
        %1433 = vmatpush1.bf16.msra.mxu0 0
        %1434 = vmatprep.subr.bf16.mxu0 0
        %1435 = vmatpush1.bf16.msra.mxu0 0
        %1436 = vmatprep.subr.bf16.mxu0 0
        %1437 = vmatpush1.bf16.msra.mxu0 0
        %1438 = vmatprep.subr.bf16.mxu0 %v1322
        %1439 = vmatpush1.bf16.msra.mxu0 %v1319
        %1440 = vmatprep.subr.bf16.mxu0 %v1287
        %1441 = vmatpush1.bf16.msra.mxu0 %v1286
        %1442 = vmatprep.subr.bf16.mxu0 0
        %1443 = vmatpush2.bf16.msra.mxu0 0
        %1444 = vmatprep.subr.bf16.mxu0 0
        %1445 = vmatpush2.bf16.msra.mxu0 0
        %1446 = vmatprep.subr.bf16.mxu0 0
        %1447 = vmatpush2.bf16.msra.mxu0 0
        %1448 = vmatprep.subr.bf16.mxu0 0
        %1449 = vmatpush2.bf16.msra.mxu0 0
        %1450 = vmatprep.subr.bf16.mxu0 0
        %1451 = vmatpush2.bf16.msra.mxu0 0
        %1452 = vmatprep.subr.bf16.mxu0 0
        %1453 = vmatpush2.bf16.msra.mxu0 0
        %1454 = vmatprep.subr.bf16.mxu0 0
        %1455 = vmatpush2.bf16.msra.mxu0 0
        %1456 = vmatprep.subr.bf16.mxu0 0
        %1457 = vmatpush2.bf16.msra.mxu0 0
        %1458 = vmatprep.mubr.bf16.mxu0 0
        %1459 = vmatmul.mubr.bf16.gmra.mxu0 %v1301
        %v1460 = vpop.f32.mrf.mxu0
        %v1461 = vadd.f32 0.0, %v1460
        %v1462 = vpop.f32.mrf.mxu0
        %v1463 = vadd.f32 0.0, %v1462
        %v1464 = vpop.f32.mrf.mxu0
        %v1465 = vadd.f32 0.0, %v1464
        %v1466 = vpop.f32.mrf.mxu0
        %v1467 = vadd.f32 0.0, %v1466
        %1468 = vmatprep.mubr.bf16.mxu0 0
        %1469 = vmatmul.mubr.bf16.gmra.mxu0 %v1304
        %v1470 = vpop.f32.mrf.mxu0
        %v1471 = vadd.f32 0.0, %v1470
        %v1472 = vpop.f32.mrf.mxu0
        %v1473 = vadd.f32 0.0, %v1472
        %v1474 = vpop.f32.mrf.mxu0
        %v1475 = vpop.f32.mrf.mxu0
        %1476 = vdwg.mxu0
        %v1477 = vadd.f32 %v1207, %v1359
        %v1478 = vadd.f32 %v1208, %v1361
        %v1479 = vadd.f32 %v1209, %v1410
        %v1480 = vadd.f32 %v1210, %v1412
        %v1481 = vadd.f32 %v1211, %v1461
        %v1482 = vadd.f32 %v1212, %v1463
        %v1483 = vadd.f32 %v1213, %v1363
        %v1484 = vadd.f32 %v1214, %v1365
        %v1485 = vadd.f32 %v1215, %v1414
        %v1486 = vadd.f32 %v1216, %v1416
        %v1487 = vadd.f32 %v1217, %v1465
        %v1488 = vadd.f32 %v1218, %v1467
        %v1489 = vadd.f32 %v1219, %v1369
        %v1490 = vadd.f32 %v1220, %v1371
        %v1491 = vadd.f32 %v1221, %v1420
        %v1492 = vadd.f32 %v1222, %v1422
        %v1493 = vadd.f32 %v1223, %v1471
        %v1494 = vadd.f32 %v1224, %v1473
        %s1495 = scalar_lea.vmem [#allocation3], 384
        %v1496 = vld [vmem:[%s1495] sm:$0xff]
        %v1497 = vld [vmem:[%s1495 + $0x8] sm:$0xff]
        %v1498 = vld [vmem:[%s1495 + $0x10] sm:$0xff]
        %v1499 = vld [vmem:[%s1495 + $0x18] sm:$0xff]
        %v1500 = vld [vmem:[%s1495 + $0x20] sm:$0xff]
        %v1501 = vld [vmem:[%s1495 + $0x28] sm:$0xff]
        %v1502 = vld [vmem:[%s1495 + $0x30] sm:$0xff]
        %v1503 = vld [vmem:[%s1495 + $0x38] sm:$0xff]
        %v1504 = vld [vmem:[%s1495 + $0x40] sm:$0xff]
        %v1505 = vld [vmem:[%s1495 + $0x48] sm:$0x33]
        %v1506 = vld [vmem:[%s1495 + $0x50] sm:$0x33]
        %v1507 = vld [vmem:[%s1495 + $0x58] sm:$0x33]
        %vm1508 = vcmask 1045504
        %v1509 = vrot.slane %v477, 2
        %v1510 = vrot.slane %v478, 2
        %v1511 = vsel %vm1508, %v1509, %v1510
        %v1524 = vunpack.c.l.b16 %v1496
        %v1525 = vunpack.c.h.b16 %v1496
        %v1526 = vunpack.c.l.b16 %v1497
        %v1527 = vunpack.c.h.b16 %v1497
        %v1528 = vunpack.c.l.b16 %v1498
        %v1529 = vunpack.c.h.b16 %v1498
        %v1530 = vunpack.c.l.b16 %v1499
        %v1531 = vunpack.c.h.b16 %v1499
        %v1532 = vunpack.c.l.b16 %v1500
        %v1533 = vunpack.c.h.b16 %v1500
        %v1534 = vunpack.c.l.b16 %v1501
        %v1535 = vunpack.c.h.b16 %v1501
        %v1536 = vunpack.c.l.b16 %v1502
        %v1537 = vunpack.c.h.b16 %v1502
        %v1538 = vunpack.c.l.b16 %v1503
        %v1539 = vunpack.c.h.b16 %v1503
        %v1540 = vunpack.c.l.b16 %v1504
        %v1541 = vunpack.c.h.b16 %v1504
        %v1542 = vunpack.c.l.b16 %v1505
        %v1543 = vunpack.c.h.b16 %v1505
        %v1544 = vunpack.c.l.b16 %v1506
        %v1545 = vunpack.c.h.b16 %v1506
        %v1546 = vunpack.c.l.b16 %v1507
        %v1547 = vunpack.c.h.b16 %v1507
        %v1548 = vpack.c.b16 %v1530, %v1524
        %v1549 = vpack.c.b16 %v1531, %v1525
        %v1550 = vpack.c.b16 %v1532, %v1526
        %v1551 = vpack.c.b16 %v1533, %v1527
        %v1552 = vpack.c.b16 %v1534, %v1528
        %v1553 = vpack.c.b16 %v1535, %v1529
        %v1554 = vpack.c.b16 %v1542, %v1536
        %v1555 = vpack.c.b16 %v1543, %v1537
        %v1556 = vpack.c.b16 %v1544, %v1538
        %v1557 = vpack.c.b16 %v1545, %v1539
        %v1558 = vpack.c.b16 %v1546, %v1540
        %v1559 = vpack.c.b16 %v1547, %v1541
        %v1567 = vsel %vm549, %v1511, 0
        %v1570 = vsel %vm549, %v1510, 0
        %v1573 = vsel %vm556, %v1554, 0
        %v1576 = vsel %vm556, %v1555, 0
        %v1579 = vsel %vm556, %v1556, 0
        %v1582 = vsel %vm556, %v1557, 0
        %v1585 = vsel %vm556, %v1558, 0
        %v1588 = vsel %vm556, %v1559, 0
        %1590 = vmatprep.subr.bf16.mxu0 0
        %1591 = vmatpush1.bf16.msra.mxu0 0
        %1592 = vmatprep.subr.bf16.mxu0 0
        %1593 = vmatpush1.bf16.msra.mxu0 0
        %1594 = vmatprep.subr.bf16.mxu0 0
        %1595 = vmatpush1.bf16.msra.mxu0 0
        %1596 = vmatprep.subr.bf16.mxu0 0
        %1597 = vmatpush1.bf16.msra.mxu0 0
        %1598 = vmatprep.subr.bf16.mxu0 0
        %1599 = vmatpush1.bf16.msra.mxu0 0
        %1600 = vmatprep.subr.bf16.mxu0 0
        %1601 = vmatpush1.bf16.msra.mxu0 0
        %1602 = vmatprep.subr.bf16.mxu0 %v1576
        %1603 = vmatpush1.bf16.msra.mxu0 %v1573
        %1604 = vmatprep.subr.bf16.mxu0 %v1549
        %1605 = vmatpush1.bf16.msra.mxu0 %v1548
        %1606 = vmatprep.subr.bf16.mxu0 0
        %1607 = vmatpush2.bf16.msra.mxu0 0
        %1608 = vmatprep.subr.bf16.mxu0 0
        %1609 = vmatpush2.bf16.msra.mxu0 0
        %1610 = vmatprep.subr.bf16.mxu0 0
        %1611 = vmatpush2.bf16.msra.mxu0 0
        %1612 = vmatprep.subr.bf16.mxu0 0
        %1613 = vmatpush2.bf16.msra.mxu0 0
        %1614 = vmatprep.subr.bf16.mxu0 0
        %1615 = vmatpush2.bf16.msra.mxu0 0
        %1616 = vmatprep.subr.bf16.mxu0 0
        %1617 = vmatpush2.bf16.msra.mxu0 0
        %1618 = vmatprep.subr.bf16.mxu0 0
        %1619 = vmatpush2.bf16.msra.mxu0 0
        %1620 = vmatprep.subr.bf16.mxu0 0
        %1621 = vmatpush2.bf16.msra.mxu0 0
        %1622 = vmatprep.mubr.bf16.mxu0 0
        %1623 = vmatmul.mubr.bf16.gmra.mxu0 %v1567
        %v1624 = vpop.f32.mrf.mxu0
        %v1625 = vadd.f32 0.0, %v1624
        %v1626 = vpop.f32.mrf.mxu0
        %v1627 = vadd.f32 0.0, %v1626
        %v1628 = vpop.f32.mrf.mxu0
        %v1629 = vadd.f32 0.0, %v1628
        %v1630 = vpop.f32.mrf.mxu0
        %v1631 = vadd.f32 0.0, %v1630
        %1632 = vmatprep.mubr.bf16.mxu0 0
        %1633 = vmatmul.mubr.bf16.gmra.mxu0 %v1570
        %v1634 = vpop.f32.mrf.mxu0
        %v1635 = vadd.f32 0.0, %v1634
        %v1636 = vpop.f32.mrf.mxu0
        %v1637 = vadd.f32 0.0, %v1636
        %v1638 = vpop.f32.mrf.mxu0
        %v1639 = vpop.f32.mrf.mxu0
        %1640 = vdwg.mxu0
        %1641 = vmatprep.subr.bf16.mxu0 0
        %1642 = vmatpush1.bf16.msra.mxu0 0
        %1643 = vmatprep.subr.bf16.mxu0 0
        %1644 = vmatpush1.bf16.msra.mxu0 0
        %1645 = vmatprep.subr.bf16.mxu0 0
        %1646 = vmatpush1.bf16.msra.mxu0 0
        %1647 = vmatprep.subr.bf16.mxu0 0
        %1648 = vmatpush1.bf16.msra.mxu0 0
        %1649 = vmatprep.subr.bf16.mxu0 0
        %1650 = vmatpush1.bf16.msra.mxu0 0
        %1651 = vmatprep.subr.bf16.mxu0 0
        %1652 = vmatpush1.bf16.msra.mxu0 0
        %1653 = vmatprep.subr.bf16.mxu0 %v1582
        %1654 = vmatpush1.bf16.msra.mxu0 %v1579
        %1655 = vmatprep.subr.bf16.mxu0 %v1551
        %1656 = vmatpush1.bf16.msra.mxu0 %v1550
        %1657 = vmatprep.subr.bf16.mxu0 0
        %1658 = vmatpush2.bf16.msra.mxu0 0
        %1659 = vmatprep.subr.bf16.mxu0 0
        %1660 = vmatpush2.bf16.msra.mxu0 0
        %1661 = vmatprep.subr.bf16.mxu0 0
        %1662 = vmatpush2.bf16.msra.mxu0 0
        %1663 = vmatprep.subr.bf16.mxu0 0
        %1664 = vmatpush2.bf16.msra.mxu0 0
        %1665 = vmatprep.subr.bf16.mxu0 0
        %1666 = vmatpush2.bf16.msra.mxu0 0
        %1667 = vmatprep.subr.bf16.mxu0 0
        %1668 = vmatpush2.bf16.msra.mxu0 0
        %1669 = vmatprep.subr.bf16.mxu0 0
        %1670 = vmatpush2.bf16.msra.mxu0 0
        %1671 = vmatprep.subr.bf16.mxu0 0
        %1672 = vmatpush2.bf16.msra.mxu0 0
        %1673 = vmatprep.mubr.bf16.mxu0 0
        %1674 = vmatmul.mubr.bf16.gmra.mxu0 %v1567
        %v1675 = vpop.f32.mrf.mxu0
        %v1676 = vadd.f32 0.0, %v1675
        %v1677 = vpop.f32.mrf.mxu0
        %v1678 = vadd.f32 0.0, %v1677
        %v1679 = vpop.f32.mrf.mxu0
        %v1680 = vadd.f32 0.0, %v1679
        %v1681 = vpop.f32.mrf.mxu0
        %v1682 = vadd.f32 0.0, %v1681
        %1683 = vmatprep.mubr.bf16.mxu0 0
        %1684 = vmatmul.mubr.bf16.gmra.mxu0 %v1570
        %v1685 = vpop.f32.mrf.mxu0
        %v1686 = vadd.f32 0.0, %v1685
        %v1687 = vpop.f32.mrf.mxu0
        %v1688 = vadd.f32 0.0, %v1687
        %v1689 = vpop.f32.mrf.mxu0
        %v1690 = vpop.f32.mrf.mxu0
        %1691 = vdwg.mxu0
        %1692 = vmatprep.subr.bf16.mxu0 0
        %1693 = vmatpush1.bf16.msra.mxu0 0
        %1694 = vmatprep.subr.bf16.mxu0 0
        %1695 = vmatpush1.bf16.msra.mxu0 0
        %1696 = vmatprep.subr.bf16.mxu0 0
        %1697 = vmatpush1.bf16.msra.mxu0 0
        %1698 = vmatprep.subr.bf16.mxu0 0
        %1699 = vmatpush1.bf16.msra.mxu0 0
        %1700 = vmatprep.subr.bf16.mxu0 0
        %1701 = vmatpush1.bf16.msra.mxu0 0
        %1702 = vmatprep.subr.bf16.mxu0 0
        %1703 = vmatpush1.bf16.msra.mxu0 0
        %1704 = vmatprep.subr.bf16.mxu0 %v1588
        %1705 = vmatpush1.bf16.msra.mxu0 %v1585
        %1706 = vmatprep.subr.bf16.mxu0 %v1553
        %1707 = vmatpush1.bf16.msra.mxu0 %v1552
        %1708 = vmatprep.subr.bf16.mxu0 0
        %1709 = vmatpush2.bf16.msra.mxu0 0
        %1710 = vmatprep.subr.bf16.mxu0 0
        %1711 = vmatpush2.bf16.msra.mxu0 0
        %1712 = vmatprep.subr.bf16.mxu0 0
        %1713 = vmatpush2.bf16.msra.mxu0 0
        %1714 = vmatprep.subr.bf16.mxu0 0
        %1715 = vmatpush2.bf16.msra.mxu0 0
        %1716 = vmatprep.subr.bf16.mxu0 0
        %1717 = vmatpush2.bf16.msra.mxu0 0
        %1718 = vmatprep.subr.bf16.mxu0 0
        %1719 = vmatpush2.bf16.msra.mxu0 0
        %1720 = vmatprep.subr.bf16.mxu0 0
        %1721 = vmatpush2.bf16.msra.mxu0 0
        %1722 = vmatprep.subr.bf16.mxu0 0
        %1723 = vmatpush2.bf16.msra.mxu0 0
        %1724 = vmatprep.mubr.bf16.mxu0 0
        %1725 = vmatmul.mubr.bf16.gmra.mxu0 %v1567
        %v1726 = vpop.f32.mrf.mxu0
        %v1727 = vadd.f32 0.0, %v1726
        %v1728 = vpop.f32.mrf.mxu0
        %v1729 = vadd.f32 0.0, %v1728
        %v1730 = vpop.f32.mrf.mxu0
        %v1731 = vadd.f32 0.0, %v1730
        %v1732 = vpop.f32.mrf.mxu0
        %v1733 = vadd.f32 0.0, %v1732
        %1734 = vmatprep.mubr.bf16.mxu0 0
        %1735 = vmatmul.mubr.bf16.gmra.mxu0 %v1570
        %v1736 = vpop.f32.mrf.mxu0
        %v1737 = vadd.f32 0.0, %v1736
        %v1738 = vpop.f32.mrf.mxu0
        %v1739 = vadd.f32 0.0, %v1738
        %v1740 = vpop.f32.mrf.mxu0
        %v1741 = vpop.f32.mrf.mxu0
        %1742 = vdwg.mxu0
        %v1743 = vadd.f32 %v1477, %v1625
        %v1744 = vadd.f32 %v1478, %v1627
        %v1745 = vadd.f32 %v1479, %v1676
        %v1746 = vadd.f32 %v1480, %v1678
        %v1747 = vadd.f32 %v1481, %v1727
        %v1748 = vadd.f32 %v1482, %v1729
        %v1749 = vadd.f32 %v1483, %v1629
        %v1750 = vadd.f32 %v1484, %v1631
        %v1751 = vadd.f32 %v1485, %v1680
        %v1752 = vadd.f32 %v1486, %v1682
        %v1753 = vadd.f32 %v1487, %v1731
        %v1754 = vadd.f32 %v1488, %v1733
        %v1755 = vadd.f32 %v1489, %v1635
        %v1756 = vadd.f32 %v1490, %v1637
        %v1757 = vadd.f32 %v1491, %v1686
        %v1758 = vadd.f32 %v1492, %v1688
        %v1759 = vadd.f32 %v1493, %v1737
        %v1760 = vadd.f32 %v1494, %v1739
        %v1761 = vmax.f32 %v1743, %v1746
        %v1762 = vmax.f32 %v1744, %v1747
        %v1763 = vmax.f32 %v1745, %v1748
        %v1764 = vmax.f32 %v1749, %v1752
        %v1765 = vmax.f32 %v1750, %v1753
        %v1766 = vmax.f32 %v1751, %v1754
        %v1767 = vmax.f32 %v1755, %v1758
        %v1768 = vmax.f32 %v1756, %v1759
        %v1769 = vmax.f32 %v1757, %v1760
        %v1773 = vrot.slane %v1761, 1
        %v1774 = vrot.slane %v1762, 1
        %v1775 = vrot.slane %v1763, 1
        %v1779 = vmax.f32 %v1761, %v1773
        %v1780 = vmax.f32 %v1762, %v1774
        %v1781 = vmax.f32 %v1763, %v1775
        %v1782 = vld [vmem:[#allocation6] sm:$0x7]
        %v1784 = vlaneseq
        %v1785 = vshrl.u32 %v1784, 7
        %v1786 = vsub.s32 0, %v1785
        %v1787 = vrot.slane %v1782, %v1786
        %v1788 = vlaneseq
        %v1789 = vshrl.u32 %v1788, 7
        %v1790 = vsub.s32 1, %v1789
        %v1791 = vrot.slane %v1782, %v1790
        %v1792 = vlaneseq
        %v1793 = vshrl.u32 %v1792, 7
        %v1794 = vsub.s32 2, %v1793
        %v1795 = vrot.slane %v1782, %v1794
        %v1799 = vadd.f32 %v1779, %v1787
        %v1800 = vadd.f32 %v1780, %v1791
        %v1801 = vadd.f32 %v1781, %v1795
        %v1802 = vmax.f32 %v1799, 0.0
        %v1803 = vmax.f32 %v1800, 0.0
        %v1804 = vmax.f32 %v1801, 0.0
        %v1808 = vcombine.low %v1802, %v1803
        %v1810 = vunpack.c.l.s4 1966171168
        %v1811 = vunpack.c.0.s8 %v1810
        %v1812 = vlaneseq
        %v1813 = vshrl.u32 %v1812, 7
        %v1814 = vsub.s32 %v1811, %v1813
        %v1815 = vrot.slane %v1808, %v1814
        %v1817 = vunpack.c.l.s4 1966171168
        %v1818 = vunpack.c.0.s8 %v1817
        %v1819 = vlaneseq
        %v1820 = vshrl.u32 %v1819, 7
        %v1821 = vsub.s32 %v1818, %v1820
        %v1822 = vrot.slane %v1804, %v1821
        %v1823 = vcombine.low %v1815, %v1822
        %v1825 = vunpack.c.l.s4 1966171168
        %v1826 = vunpack.c.0.s8 %v1825
        %v1827 = vlaneseq
        %v1828 = vshrl.u32 %v1827, 7
        %v1829 = vsub.s32 %v1826, %v1828
        %v1830 = vrot.slane %v1823, %v1829
        %v1832 = vlaneseq
        %vm1833 = vcmp.ge.s32.totalorder %v1832, 0
        %vm1834 = vcmp.lt.s32.totalorder %v1832, 384
        %vm1835 = vmand %vm1833, %vm1834
        %1836 = vst.msk [vmem:[#allocation2] ss:$8 sm:$0x7] %vm1835, %v1830
        %1837 = vst.msk [vmem:[#allocation2] ss:$8 sm:$0x0] %vm1835, %v1830
        %v1838 = vld [vmem:[#allocation6] sm:$0x7]
        %v1840 = vlaneseq
        %v1841 = vshrl.u32 %v1840, 7
        %v1842 = vsub.s32 0, %v1841
        %v1843 = vrot.slane %v1838, %v1842
        %v1844 = vlaneseq
        %v1845 = vshrl.u32 %v1844, 7
        %v1846 = vsub.s32 1, %v1845
        %v1847 = vrot.slane %v1838, %v1846
        %v1848 = vlaneseq
        %v1849 = vshrl.u32 %v1848, 7
        %v1850 = vsub.s32 2, %v1849
        %v1851 = vrot.slane %v1838, %v1850
        %v1855 = vadd.f32 %v1779, %v1843
        %v1856 = vadd.f32 %v1780, %v1847
        %v1857 = vadd.f32 %v1781, %v1851
        %v1858 = vmax.f32 %v1855, 0.0
        %v1859 = vmax.f32 %v1856, 0.0
        %v1860 = vmax.f32 %v1857, 0.0
        %v1864 = vcombine.low %v1858, %v1859
        %v1866 = vunpack.c.l.s4 1966171168
        %v1867 = vunpack.c.0.s8 %v1866
        %v1868 = vlaneseq
        %v1869 = vshrl.u32 %v1868, 7
        %v1870 = vsub.s32 %v1867, %v1869
        %v1871 = vrot.slane %v1864, %v1870
        %v1873 = vunpack.c.l.s4 1966171168
        %v1874 = vunpack.c.0.s8 %v1873
        %v1875 = vlaneseq
        %v1876 = vshrl.u32 %v1875, 7
        %v1877 = vsub.s32 %v1874, %v1876
        %v1878 = vrot.slane %v1860, %v1877
        %v1879 = vcombine.low %v1871, %v1878
        %v1881 = vunpack.c.l.s4 1966171168
        %v1882 = vunpack.c.0.s8 %v1881
        %v1883 = vlaneseq
        %v1884 = vshrl.u32 %v1883, 7
        %v1885 = vsub.s32 %v1882, %v1884
        %v1886 = vrot.slane %v1879, %v1885
        %v1887 = vcombine.high %v1886, %v1886
        %s1889 = scalar_lea.vmem [#allocation2], 1
        %1890 = vst.msk [vmem:[%s1889] ss:$8 sm:$0x7] %vm1835, %v1887
        %1891 = vst.msk [vmem:[%s1889] ss:$8 sm:$0x0] %vm1835, %v1887
        %v1892 = vld [vmem:[#allocation6] sm:$0x7]
        %v1894 = vlaneseq
        %v1895 = vshrl.u32 %v1894, 7
        %v1896 = vsub.s32 0, %v1895
        %v1897 = vrot.slane %v1892, %v1896
        %v1898 = vlaneseq
        %v1899 = vshrl.u32 %v1898, 7
        %v1900 = vsub.s32 1, %v1899
        %v1901 = vrot.slane %v1892, %v1900
        %v1902 = vlaneseq
        %v1903 = vshrl.u32 %v1902, 7
        %v1904 = vsub.s32 2, %v1903
        %v1905 = vrot.slane %v1892, %v1904
        %v1909 = vadd.f32 %v1779, %v1897
        %v1910 = vadd.f32 %v1780, %v1901
        %v1911 = vadd.f32 %v1781, %v1905
        %v1912 = vmax.f32 %v1909, 0.0
        %v1913 = vmax.f32 %v1910, 0.0
        %v1914 = vmax.f32 %v1911, 0.0
        %v1918 = vcombine.high %v1912, %v1913
        %v1919 = vcombine.high %v1914, %v1914
        %v1921 = vunpack.c.l.s4 1966171168
        %v1922 = vunpack.c.0.s8 %v1921
        %v1923 = vlaneseq
        %v1924 = vshrl.u32 %v1923, 7
        %v1925 = vsub.s32 %v1922, %v1924
        %v1926 = vrot.slane %v1918, %v1925
        %v1928 = vunpack.c.l.s4 1966171168
        %v1929 = vunpack.c.0.s8 %v1928
        %v1930 = vlaneseq
        %v1931 = vshrl.u32 %v1930, 7
        %v1932 = vsub.s32 %v1929, %v1931
        %v1933 = vrot.slane %v1919, %v1932
        %v1934 = vcombine.low %v1926, %v1933
        %v1936 = vunpack.c.l.s4 1966171168
        %v1937 = vunpack.c.0.s8 %v1936
        %v1938 = vlaneseq
        %v1939 = vshrl.u32 %v1938, 7
        %v1940 = vsub.s32 %v1937, %v1939
        %v1941 = vrot.slane %v1934, %v1940
        %s1943 = scalar_lea.vmem [#allocation2], 2
        %1944 = vst.msk [vmem:[%s1943] ss:$8 sm:$0x7] %vm1835, %v1941
        %1945 = vst.msk [vmem:[%s1943] ss:$8 sm:$0x0] %vm1835, %v1941
        %v1946 = vld [vmem:[#allocation6] sm:$0x7]
        %v1948 = vlaneseq
        %v1949 = vshrl.u32 %v1948, 7
        %v1950 = vsub.s32 0, %v1949
        %v1951 = vrot.slane %v1946, %v1950
        %v1952 = vlaneseq
        %v1953 = vshrl.u32 %v1952, 7
        %v1954 = vsub.s32 1, %v1953
        %v1955 = vrot.slane %v1946, %v1954
        %v1956 = vlaneseq
        %v1957 = vshrl.u32 %v1956, 7
        %v1958 = vsub.s32 2, %v1957
        %v1959 = vrot.slane %v1946, %v1958
        %v1963 = vadd.f32 %v1779, %v1951
        %v1964 = vadd.f32 %v1780, %v1955
        %v1965 = vadd.f32 %v1781, %v1959
        %v1966 = vmax.f32 %v1963, 0.0
        %v1967 = vmax.f32 %v1964, 0.0
        %v1968 = vmax.f32 %v1965, 0.0
        %v1972 = vcombine.high %v1966, %v1967
        %v1973 = vcombine.high %v1968, %v1968
        %v1975 = vunpack.c.l.s4 1966171168
        %v1976 = vunpack.c.0.s8 %v1975
        %v1977 = vlaneseq
        %v1978 = vshrl.u32 %v1977, 7
        %v1979 = vsub.s32 %v1976, %v1978
        %v1980 = vrot.slane %v1972, %v1979
        %v1982 = vunpack.c.l.s4 1966171168
        %v1983 = vunpack.c.0.s8 %v1982
        %v1984 = vlaneseq
        %v1985 = vshrl.u32 %v1984, 7
        %v1986 = vsub.s32 %v1983, %v1985
        %v1987 = vrot.slane %v1973, %v1986
        %v1988 = vcombine.low %v1980, %v1987
        %v1990 = vunpack.c.l.s4 1966171168
        %v1991 = vunpack.c.0.s8 %v1990
        %v1992 = vlaneseq
        %v1993 = vshrl.u32 %v1992, 7
        %v1994 = vsub.s32 %v1991, %v1993
        %v1995 = vrot.slane %v1988, %v1994
        %v1996 = vcombine.high %v1995, %v1995
        %s1998 = scalar_lea.vmem [#allocation2], 3
        %1999 = vst.msk [vmem:[%s1998] ss:$8 sm:$0x7] %vm1835, %v1996
        %2000 = vst.msk [vmem:[%s1998] ss:$8 sm:$0x0] %vm1835, %v1996
        %v2004 = vrot.slane %v1764, 1
        %v2005 = vrot.slane %v1765, 1
        %v2006 = vrot.slane %v1766, 1
        %v2010 = vmax.f32 %v1764, %v2004
        %v2011 = vmax.f32 %v1765, %v2005
        %v2012 = vmax.f32 %v1766, %v2006
        %v2013 = vld [vmem:[#allocation6] sm:$0x7]
        %v2015 = vlaneseq
        %v2016 = vshrl.u32 %v2015, 7
        %v2017 = vsub.s32 0, %v2016
        %v2018 = vrot.slane %v2013, %v2017
        %v2019 = vlaneseq
        %v2020 = vshrl.u32 %v2019, 7
        %v2021 = vsub.s32 1, %v2020
        %v2022 = vrot.slane %v2013, %v2021
        %v2023 = vlaneseq
        %v2024 = vshrl.u32 %v2023, 7
        %v2025 = vsub.s32 2, %v2024
        %v2026 = vrot.slane %v2013, %v2025
        %v2030 = vadd.f32 %v2010, %v2018
        %v2031 = vadd.f32 %v2011, %v2022
        %v2032 = vadd.f32 %v2012, %v2026
        %v2033 = vmax.f32 %v2030, 0.0
        %v2034 = vmax.f32 %v2031, 0.0
        %v2035 = vmax.f32 %v2032, 0.0
        %v2039 = vcombine.low %v2033, %v2034
        %v2041 = vunpack.c.l.s4 1966171168
        %v2042 = vunpack.c.0.s8 %v2041
        %v2043 = vlaneseq
        %v2044 = vshrl.u32 %v2043, 7
        %v2045 = vsub.s32 %v2042, %v2044
        %v2046 = vrot.slane %v2039, %v2045
        %v2048 = vunpack.c.l.s4 1966171168
        %v2049 = vunpack.c.0.s8 %v2048
        %v2050 = vlaneseq
        %v2051 = vshrl.u32 %v2050, 7
        %v2052 = vsub.s32 %v2049, %v2051
        %v2053 = vrot.slane %v2035, %v2052
        %v2054 = vcombine.low %v2046, %v2053
        %v2056 = vunpack.c.l.s4 1966171168
        %v2057 = vunpack.c.0.s8 %v2056
        %v2058 = vlaneseq
        %v2059 = vshrl.u32 %v2058, 7
        %v2060 = vsub.s32 %v2057, %v2059
        %v2061 = vrot.slane %v2054, %v2060
        %s2063 = scalar_lea.vmem [#allocation2], 4
        %2064 = vst.msk [vmem:[%s2063] ss:$8 sm:$0x7] %vm1835, %v2061
        %2065 = vst.msk [vmem:[%s2063] ss:$8 sm:$0x0] %vm1835, %v2061
        %v2066 = vld [vmem:[#allocation6] sm:$0x7]
        %v2068 = vlaneseq
        %v2069 = vshrl.u32 %v2068, 7
        %v2070 = vsub.s32 0, %v2069
        %v2071 = vrot.slane %v2066, %v2070
        %v2072 = vlaneseq
        %v2073 = vshrl.u32 %v2072, 7
        %v2074 = vsub.s32 1, %v2073
        %v2075 = vrot.slane %v2066, %v2074
        %v2076 = vlaneseq
        %v2077 = vshrl.u32 %v2076, 7
        %v2078 = vsub.s32 2, %v2077
        %v2079 = vrot.slane %v2066, %v2078
        %v2083 = vadd.f32 %v2010, %v2071
        %v2084 = vadd.f32 %v2011, %v2075
        %v2085 = vadd.f32 %v2012, %v2079
        %v2086 = vmax.f32 %v2083, 0.0
        %v2087 = vmax.f32 %v2084, 0.0
        %v2088 = vmax.f32 %v2085, 0.0
        %v2092 = vcombine.low %v2086, %v2087
        %v2094 = vunpack.c.l.s4 1966171168
        %v2095 = vunpack.c.0.s8 %v2094
        %v2096 = vlaneseq
        %v2097 = vshrl.u32 %v2096, 7
        %v2098 = vsub.s32 %v2095, %v2097
        %v2099 = vrot.slane %v2092, %v2098
        %v2101 = vunpack.c.l.s4 1966171168
        %v2102 = vunpack.c.0.s8 %v2101
        %v2103 = vlaneseq
        %v2104 = vshrl.u32 %v2103, 7
        %v2105 = vsub.s32 %v2102, %v2104
        %v2106 = vrot.slane %v2088, %v2105
        %v2107 = vcombine.low %v2099, %v2106
        %v2109 = vunpack.c.l.s4 1966171168
        %v2110 = vunpack.c.0.s8 %v2109
        %v2111 = vlaneseq
        %v2112 = vshrl.u32 %v2111, 7
        %v2113 = vsub.s32 %v2110, %v2112
        %v2114 = vrot.slane %v2107, %v2113
        %v2115 = vcombine.high %v2114, %v2114
        %s2117 = scalar_lea.vmem [#allocation2], 5
        %2118 = vst.msk [vmem:[%s2117] ss:$8 sm:$0x7] %vm1835, %v2115
        %2119 = vst.msk [vmem:[%s2117] ss:$8 sm:$0x0] %vm1835, %v2115
        %v2120 = vld [vmem:[#allocation6] sm:$0x7]
        %v2122 = vlaneseq
        %v2123 = vshrl.u32 %v2122, 7
        %v2124 = vsub.s32 0, %v2123
        %v2125 = vrot.slane %v2120, %v2124
        %v2126 = vlaneseq
        %v2127 = vshrl.u32 %v2126, 7
        %v2128 = vsub.s32 1, %v2127
        %v2129 = vrot.slane %v2120, %v2128
        %v2130 = vlaneseq
        %v2131 = vshrl.u32 %v2130, 7
        %v2132 = vsub.s32 2, %v2131
        %v2133 = vrot.slane %v2120, %v2132
        %v2137 = vadd.f32 %v2010, %v2125
        %v2138 = vadd.f32 %v2011, %v2129
        %v2139 = vadd.f32 %v2012, %v2133
        %v2140 = vmax.f32 %v2137, 0.0
        %v2141 = vmax.f32 %v2138, 0.0
        %v2142 = vmax.f32 %v2139, 0.0
        %v2146 = vcombine.high %v2140, %v2141
        %v2147 = vcombine.high %v2142, %v2142
        %v2149 = vunpack.c.l.s4 1966171168
        %v2150 = vunpack.c.0.s8 %v2149
        %v2151 = vlaneseq
        %v2152 = vshrl.u32 %v2151, 7
        %v2153 = vsub.s32 %v2150, %v2152
        %v2154 = vrot.slane %v2146, %v2153
        %v2156 = vunpack.c.l.s4 1966171168
        %v2157 = vunpack.c.0.s8 %v2156
        %v2158 = vlaneseq
        %v2159 = vshrl.u32 %v2158, 7
        %v2160 = vsub.s32 %v2157, %v2159
        %v2161 = vrot.slane %v2147, %v2160
        %v2162 = vcombine.low %v2154, %v2161
        %v2164 = vunpack.c.l.s4 1966171168
        %v2165 = vunpack.c.0.s8 %v2164
        %v2166 = vlaneseq
        %v2167 = vshrl.u32 %v2166, 7
        %v2168 = vsub.s32 %v2165, %v2167
        %v2169 = vrot.slane %v2162, %v2168
        %s2171 = scalar_lea.vmem [#allocation2], 6
        %2172 = vst.msk [vmem:[%s2171] ss:$8 sm:$0x7] %vm1835, %v2169
        %2173 = vst.msk [vmem:[%s2171] ss:$8 sm:$0x0] %vm1835, %v2169
        %v2174 = vld [vmem:[#allocation6] sm:$0x7]
        %v2176 = vlaneseq
        %v2177 = vshrl.u32 %v2176, 7
        %v2178 = vsub.s32 0, %v2177
        %v2179 = vrot.slane %v2174, %v2178
        %v2180 = vlaneseq
        %v2181 = vshrl.u32 %v2180, 7
        %v2182 = vsub.s32 1, %v2181
        %v2183 = vrot.slane %v2174, %v2182
        %v2184 = vlaneseq
        %v2185 = vshrl.u32 %v2184, 7
        %v2186 = vsub.s32 2, %v2185
        %v2187 = vrot.slane %v2174, %v2186
        %v2191 = vadd.f32 %v2010, %v2179
        %v2192 = vadd.f32 %v2011, %v2183
        %v2193 = vadd.f32 %v2012, %v2187
        %v2194 = vmax.f32 %v2191, 0.0
        %v2195 = vmax.f32 %v2192, 0.0
        %v2196 = vmax.f32 %v2193, 0.0
        %v2200 = vcombine.high %v2194, %v2195
        %v2201 = vcombine.high %v2196, %v2196
        %v2203 = vunpack.c.l.s4 1966171168
        %v2204 = vunpack.c.0.s8 %v2203
        %v2205 = vlaneseq
        %v2206 = vshrl.u32 %v2205, 7
        %v2207 = vsub.s32 %v2204, %v2206
        %v2208 = vrot.slane %v2200, %v2207
        %v2210 = vunpack.c.l.s4 1966171168
        %v2211 = vunpack.c.0.s8 %v2210
        %v2212 = vlaneseq
        %v2213 = vshrl.u32 %v2212, 7
        %v2214 = vsub.s32 %v2211, %v2213
        %v2215 = vrot.slane %v2201, %v2214
        %v2216 = vcombine.low %v2208, %v2215
        %v2218 = vunpack.c.l.s4 1966171168
        %v2219 = vunpack.c.0.s8 %v2218
        %v2220 = vlaneseq
        %v2221 = vshrl.u32 %v2220, 7
        %v2222 = vsub.s32 %v2219, %v2221
        %v2223 = vrot.slane %v2216, %v2222
        %v2224 = vcombine.high %v2223, %v2223
        %s2226 = scalar_lea.vmem [#allocation2], 7
        %2227 = vst.msk [vmem:[%s2226] ss:$8 sm:$0x7] %vm1835, %v2224
        %2228 = vst.msk [vmem:[%s2226] ss:$8 sm:$0x0] %vm1835, %v2224
        %v2232 = vrot.slane %v1767, 1
        %v2233 = vrot.slane %v1768, 1
        %v2234 = vrot.slane %v1769, 1
        %v2238 = vmax.f32 %v1767, %v2232
        %v2239 = vmax.f32 %v1768, %v2233
        %v2240 = vmax.f32 %v1769, %v2234
        %v2241 = vld [vmem:[#allocation6] sm:$0x7]
        %v2243 = vlaneseq
        %v2244 = vshrl.u32 %v2243, 7
        %v2245 = vsub.s32 0, %v2244
        %v2246 = vrot.slane %v2241, %v2245
        %v2247 = vlaneseq
        %v2248 = vshrl.u32 %v2247, 7
        %v2249 = vsub.s32 1, %v2248
        %v2250 = vrot.slane %v2241, %v2249
        %v2251 = vlaneseq
        %v2252 = vshrl.u32 %v2251, 7
        %v2253 = vsub.s32 2, %v2252
        %v2254 = vrot.slane %v2241, %v2253
        %v2258 = vadd.f32 %v2238, %v2246
        %v2259 = vadd.f32 %v2239, %v2250
        %v2260 = vadd.f32 %v2240, %v2254
        %v2261 = vmax.f32 %v2258, 0.0
        %v2262 = vmax.f32 %v2259, 0.0
        %v2263 = vmax.f32 %v2260, 0.0
        %v2267 = vcombine.low %v2261, %v2262
        %v2269 = vunpack.c.l.s4 1966171168
        %v2270 = vunpack.c.0.s8 %v2269
        %v2271 = vlaneseq
        %v2272 = vshrl.u32 %v2271, 7
        %v2273 = vsub.s32 %v2270, %v2272
        %v2274 = vrot.slane %v2267, %v2273
        %v2276 = vunpack.c.l.s4 1966171168
        %v2277 = vunpack.c.0.s8 %v2276
        %v2278 = vlaneseq
        %v2279 = vshrl.u32 %v2278, 7
        %v2280 = vsub.s32 %v2277, %v2279
        %v2281 = vrot.slane %v2263, %v2280
        %v2282 = vcombine.low %v2274, %v2281
        %v2284 = vunpack.c.l.s4 1966171168
        %v2285 = vunpack.c.0.s8 %v2284
        %v2286 = vlaneseq
        %v2287 = vshrl.u32 %v2286, 7
        %v2288 = vsub.s32 %v2285, %v2287
        %v2289 = vrot.slane %v2282, %v2288
        %s2291 = scalar_lea.vmem [#allocation2], 24
        %2292 = vst.msk [vmem:[%s2291] ss:$8 sm:$0x7] %vm1835, %v2289
        %2293 = vst.msk [vmem:[%s2291] ss:$8 sm:$0x0] %vm1835, %v2289
        %v2294 = vld [vmem:[#allocation6] sm:$0x7]
        %v2296 = vlaneseq
        %v2297 = vshrl.u32 %v2296, 7
        %v2298 = vsub.s32 0, %v2297
        %v2299 = vrot.slane %v2294, %v2298
        %v2300 = vlaneseq
        %v2301 = vshrl.u32 %v2300, 7
        %v2302 = vsub.s32 1, %v2301
        %v2303 = vrot.slane %v2294, %v2302
        %v2304 = vlaneseq
        %v2305 = vshrl.u32 %v2304, 7
        %v2306 = vsub.s32 2, %v2305
        %v2307 = vrot.slane %v2294, %v2306
        %v2311 = vadd.f32 %v2238, %v2299
        %v2312 = vadd.f32 %v2239, %v2303
        %v2313 = vadd.f32 %v2240, %v2307
        %v2314 = vmax.f32 %v2311, 0.0
        %v2315 = vmax.f32 %v2312, 0.0
        %v2316 = vmax.f32 %v2313, 0.0
        %v2320 = vcombine.low %v2314, %v2315
        %v2322 = vunpack.c.l.s4 1966171168
        %v2323 = vunpack.c.0.s8 %v2322
        %v2324 = vlaneseq
        %v2325 = vshrl.u32 %v2324, 7
        %v2326 = vsub.s32 %v2323, %v2325
        %v2327 = vrot.slane %v2320, %v2326
        %v2329 = vunpack.c.l.s4 1966171168
        %v2330 = vunpack.c.0.s8 %v2329
        %v2331 = vlaneseq
        %v2332 = vshrl.u32 %v2331, 7
        %v2333 = vsub.s32 %v2330, %v2332
        %v2334 = vrot.slane %v2316, %v2333
        %v2335 = vcombine.low %v2327, %v2334
        %v2337 = vunpack.c.l.s4 1966171168
        %v2338 = vunpack.c.0.s8 %v2337
        %v2339 = vlaneseq
        %v2340 = vshrl.u32 %v2339, 7
        %v2341 = vsub.s32 %v2338, %v2340
        %v2342 = vrot.slane %v2335, %v2341
        %v2343 = vcombine.high %v2342, %v2342
        %s2345 = scalar_lea.vmem [#allocation2], 25
        %2346 = vst.msk [vmem:[%s2345] ss:$8 sm:$0x7] %vm1835, %v2343
        %2347 = vst.msk [vmem:[%s2345] ss:$8 sm:$0x0] %vm1835, %v2343
        %v2348 = vld [vmem:[#allocation6] sm:$0x7]
        %v2350 = vlaneseq
        %v2351 = vshrl.u32 %v2350, 7
        %v2352 = vsub.s32 0, %v2351
        %v2353 = vrot.slane %v2348, %v2352
        %v2354 = vlaneseq
        %v2355 = vshrl.u32 %v2354, 7
        %v2356 = vsub.s32 1, %v2355
        %v2357 = vrot.slane %v2348, %v2356
        %v2358 = vlaneseq
        %v2359 = vshrl.u32 %v2358, 7
        %v2360 = vsub.s32 2, %v2359
        %v2361 = vrot.slane %v2348, %v2360
        %v2365 = vadd.f32 %v2238, %v2353
        %v2366 = vadd.f32 %v2239, %v2357
        %v2367 = vadd.f32 %v2240, %v2361
        %v2368 = vmax.f32 %v2365, 0.0
        %v2369 = vmax.f32 %v2366, 0.0
        %v2370 = vmax.f32 %v2367, 0.0
        %v2374 = vcombine.high %v2368, %v2369
        %v2375 = vcombine.high %v2370, %v2370
        %v2377 = vunpack.c.l.s4 1966171168
        %v2378 = vunpack.c.0.s8 %v2377
        %v2379 = vlaneseq
        %v2380 = vshrl.u32 %v2379, 7
        %v2381 = vsub.s32 %v2378, %v2380
        %v2382 = vrot.slane %v2374, %v2381
        %v2384 = vunpack.c.l.s4 1966171168
        %v2385 = vunpack.c.0.s8 %v2384
        %v2386 = vlaneseq
        %v2387 = vshrl.u32 %v2386, 7
        %v2388 = vsub.s32 %v2385, %v2387
        %v2389 = vrot.slane %v2375, %v2388
        %v2390 = vcombine.low %v2382, %v2389
        %v2392 = vunpack.c.l.s4 1966171168
        %v2393 = vunpack.c.0.s8 %v2392
        %v2394 = vlaneseq
        %v2395 = vshrl.u32 %v2394, 7
        %v2396 = vsub.s32 %v2393, %v2395
        %v2397 = vrot.slane %v2390, %v2396
        %s2399 = scalar_lea.vmem [#allocation2], 26
        %2400 = vst.msk [vmem:[%s2399] ss:$8 sm:$0x7] %vm1835, %v2397
        %2401 = vst.msk [vmem:[%s2399] ss:$8 sm:$0x0] %vm1835, %v2397
        %v2402 = vld [vmem:[#allocation6] sm:$0x7]
        %v2404 = vlaneseq
        %v2405 = vshrl.u32 %v2404, 7
        %v2406 = vsub.s32 0, %v2405
        %v2407 = vrot.slane %v2402, %v2406
        %v2408 = vlaneseq
        %v2409 = vshrl.u32 %v2408, 7
        %v2410 = vsub.s32 1, %v2409
        %v2411 = vrot.slane %v2402, %v2410
        %v2412 = vlaneseq
        %v2413 = vshrl.u32 %v2412, 7
        %v2414 = vsub.s32 2, %v2413
        %v2415 = vrot.slane %v2402, %v2414
        %v2419 = vadd.f32 %v2238, %v2407
        %v2420 = vadd.f32 %v2239, %v2411
        %v2421 = vadd.f32 %v2240, %v2415
        %v2422 = vmax.f32 %v2419, 0.0
        %v2423 = vmax.f32 %v2420, 0.0
        %v2424 = vmax.f32 %v2421, 0.0
        %v2428 = vcombine.high %v2422, %v2423
        %v2429 = vcombine.high %v2424, %v2424
        %v2431 = vunpack.c.l.s4 1966171168
        %v2432 = vunpack.c.0.s8 %v2431
        %v2433 = vlaneseq
        %v2434 = vshrl.u32 %v2433, 7
        %v2435 = vsub.s32 %v2432, %v2434
        %v2436 = vrot.slane %v2428, %v2435
        %v2438 = vunpack.c.l.s4 1966171168
        %v2439 = vunpack.c.0.s8 %v2438
        %v2440 = vlaneseq
        %v2441 = vshrl.u32 %v2440, 7
        %v2442 = vsub.s32 %v2439, %v2441
        %v2443 = vrot.slane %v2429, %v2442
        %v2444 = vcombine.low %v2436, %v2443
        %v2446 = vunpack.c.l.s4 1966171168
        %v2447 = vunpack.c.0.s8 %v2446
        %v2448 = vlaneseq
        %v2449 = vshrl.u32 %v2448, 7
        %v2450 = vsub.s32 %v2447, %v2449
        %v2451 = vrot.slane %v2444, %v2450
        %v2452 = vcombine.high %v2451, %v2451
        %s2454 = scalar_lea.vmem [#allocation2], 27
        %2455 = vst.msk [vmem:[%s2454] ss:$8 sm:$0x7] %vm1835, %v2452
        %2456 = vst.msk [vmem:[%s2454] ss:$8 sm:$0x0] %vm1835, %v2452
        %v2457 = vld [vmem:[#allocation2] sm:$0xff]
        %v2458 = vld [vmem:[#allocation2 + $0x8] sm:$0xff]
        %v2459 = vld [vmem:[#allocation2 + $0x10] sm:$0xff]
        %v2460 = vpack.c.bf16 %v2457, %v2457
        %v2461 = vpack.c.bf16 %v2458, %v2458
        %v2462 = vpack.c.bf16 %v2459, %v2459
        %v2463 = vld [vmem:[#allocation8] sm:$0xff]
        %v2464 = vld [vmem:[#allocation8 + $0x8] sm:$0xff]
        %v2465 = vld [vmem:[#allocation8 + $0x10] sm:$0xff]
        %v2466 = vld [vmem:[#allocation8 + $0x18] sm:$0xff]
        %v2467 = vld [vmem:[#allocation8 + $0x20] sm:$0xff]
        %v2468 = vld [vmem:[#allocation8 + $0x28] sm:$0xff]
        %v2469 = vld [vmem:[#allocation8 + $0x30] sm:$0xff]
        %v2470 = vld [vmem:[#allocation8 + $0x38] sm:$0xff]
        %v2471 = vld [vmem:[#allocation8 + $0x40] sm:$0xff]
        %v2472 = vld [vmem:[#allocation8 + $0x48] sm:$0xff]
        %v2473 = vld [vmem:[#allocation8 + $0x50] sm:$0xff]
        %v2474 = vld [vmem:[#allocation8 + $0x58] sm:$0xff]
        %v2475 = vld [vmem:[#allocation8 + $0x60] sm:$0xff]
        %v2476 = vld [vmem:[#allocation8 + $0x68] sm:$0xff]
        %v2477 = vld [vmem:[#allocation8 + $0x70] sm:$0xff]
        %v2478 = vld [vmem:[#allocation8 + $0x78] sm:$0xff]
        %v2479 = vld [vmem:[#allocation8 + $0x80] sm:$0xff]
        %v2480 = vld [vmem:[#allocation8 + $0x88] sm:$0xff]
        %v2481 = vld [vmem:[#allocation8 + $0x90] sm:$0xff]
        %v2482 = vld [vmem:[#allocation8 + $0x98] sm:$0xff]
        %v2483 = vld [vmem:[#allocation8 + $0xa0] sm:$0xff]
        %v2484 = vld [vmem:[#allocation8 + $0xa8] sm:$0xff]
        %v2485 = vld [vmem:[#allocation8 + $0xb0] sm:$0xff]
        %v2486 = vld [vmem:[#allocation8 + $0xb8] sm:$0xff]
        %v2487 = vld [vmem:[#allocation8 + $0xc0] sm:$0xff]
        %v2488 = vld [vmem:[#allocation8 + $0xc8] sm:$0xff]
        %v2489 = vld [vmem:[#allocation8 + $0xd0] sm:$0xff]
        %v2490 = vld [vmem:[#allocation8 + $0xd8] sm:$0xff]
        %v2491 = vld [vmem:[#allocation8 + $0xe0] sm:$0xff]
        %v2492 = vld [vmem:[#allocation8 + $0xe8] sm:$0xff]
        %v2493 = vld [vmem:[#allocation8 + $0xf0] sm:$0xff]
        %v2494 = vld [vmem:[#allocation8 + $0xf8] sm:$0xff]
        %v2495 = vld [vmem:[#allocation8 + $0x100] sm:$0xff]
        %v2496 = vld [vmem:[#allocation8 + $0x108] sm:$0xff]
        %v2497 = vld [vmem:[#allocation8 + $0x110] sm:$0xff]
        %v2498 = vld [vmem:[#allocation8 + $0x118] sm:$0xff]
        %v2499 = vld [vmem:[#allocation8 + $0x120] sm:$0xff]
        %v2500 = vld [vmem:[#allocation8 + $0x128] sm:$0xff]
        %v2501 = vld [vmem:[#allocation8 + $0x130] sm:$0xff]
        %v2502 = vld [vmem:[#allocation8 + $0x138] sm:$0xff]
        %v2503 = vld [vmem:[#allocation8 + $0x140] sm:$0xff]
        %v2504 = vld [vmem:[#allocation8 + $0x148] sm:$0xff]
        %v2505 = vld [vmem:[#allocation8 + $0x150] sm:$0xff]
        %v2506 = vld [vmem:[#allocation8 + $0x158] sm:$0xff]
        %v2507 = vld [vmem:[#allocation8 + $0x160] sm:$0xff]
        %v2508 = vld [vmem:[#allocation8 + $0x168] sm:$0xff]
        %v2509 = vld [vmem:[#allocation8 + $0x170] sm:$0xff]
        %v2510 = vld [vmem:[#allocation8 + $0x178] sm:$0xff]
        %v2511 = vld [vmem:[#allocation8 + $0x180] sm:$0xff]
        %v2512 = vld [vmem:[#allocation8 + $0x188] sm:$0xff]
        %v2513 = vld [vmem:[#allocation8 + $0x190] sm:$0xff]
        %v2514 = vld [vmem:[#allocation8 + $0x198] sm:$0xff]
        %v2515 = vld [vmem:[#allocation8 + $0x1a0] sm:$0xff]
        %v2516 = vld [vmem:[#allocation8 + $0x1a8] sm:$0xff]
        %v2517 = vld [vmem:[#allocation8 + $0x1b0] sm:$0xff]
        %v2518 = vld [vmem:[#allocation8 + $0x1b8] sm:$0xff]
        %v2519 = vld [vmem:[#allocation8 + $0x1c0] sm:$0xff]
        %v2520 = vld [vmem:[#allocation8 + $0x1c8] sm:$0xff]
        %v2521 = vld [vmem:[#allocation8 + $0x1d0] sm:$0xff]
        %v2522 = vld [vmem:[#allocation8 + $0x1d8] sm:$0xff]
        %v2523 = vld [vmem:[#allocation8 + $0x1e0] sm:$0xff]
        %v2524 = vld [vmem:[#allocation8 + $0x1e8] sm:$0xff]
        %v2525 = vld [vmem:[#allocation8 + $0x1f0] sm:$0xff]
        %v2526 = vld [vmem:[#allocation8 + $0x1f8] sm:$0xff]
        %v2527 = vld [vmem:[#allocation8 + $0x200] sm:$0xff]
        %v2528 = vld [vmem:[#allocation8 + $0x208] sm:$0xff]
        %v2529 = vld [vmem:[#allocation8 + $0x210] sm:$0xff]
        %v2530 = vld [vmem:[#allocation8 + $0x218] sm:$0xff]
        %v2531 = vld [vmem:[#allocation8 + $0x220] sm:$0xff]
        %v2532 = vld [vmem:[#allocation8 + $0x228] sm:$0xff]
        %v2533 = vld [vmem:[#allocation8 + $0x230] sm:$0xff]
        %v2534 = vld [vmem:[#allocation8 + $0x238] sm:$0xff]
        %v2535 = vld [vmem:[#allocation8 + $0x240] sm:$0xff]
        %v2536 = vld [vmem:[#allocation8 + $0x248] sm:$0xff]
        %v2537 = vld [vmem:[#allocation8 + $0x250] sm:$0xff]
        %v2538 = vld [vmem:[#allocation8 + $0x258] sm:$0xff]
        %v2539 = vld [vmem:[#allocation8 + $0x260] sm:$0xff]
        %v2540 = vld [vmem:[#allocation8 + $0x268] sm:$0xff]
        %v2541 = vld [vmem:[#allocation8 + $0x270] sm:$0xff]
        %v2542 = vld [vmem:[#allocation8 + $0x278] sm:$0xff]
        %v2543 = vld [vmem:[#allocation8 + $0x280] sm:$0xff]
        %v2544 = vld [vmem:[#allocation8 + $0x288] sm:$0xff]
        %v2545 = vld [vmem:[#allocation8 + $0x290] sm:$0xff]
        %v2546 = vld [vmem:[#allocation8 + $0x298] sm:$0xff]
        %v2547 = vld [vmem:[#allocation8 + $0x2a0] sm:$0xff]
        %v2548 = vld [vmem:[#allocation8 + $0x2a8] sm:$0xff]
        %v2549 = vld [vmem:[#allocation8 + $0x2b0] sm:$0xff]
        %v2550 = vld [vmem:[#allocation8 + $0x2b8] sm:$0xff]
        %v2551 = vld [vmem:[#allocation8 + $0x2c0] sm:$0xff]
        %v2552 = vld [vmem:[#allocation8 + $0x2c8] sm:$0xff]
        %v2553 = vld [vmem:[#allocation8 + $0x2d0] sm:$0xff]
        %v2554 = vld [vmem:[#allocation8 + $0x2d8] sm:$0xff]
        %v2555 = vld [vmem:[#allocation8 + $0x2e0] sm:$0xff]
        %v2556 = vld [vmem:[#allocation8 + $0x2e8] sm:$0xff]
        %v2557 = vld [vmem:[#allocation8 + $0x2f0] sm:$0xff]
        %v2558 = vld [vmem:[#allocation8 + $0x2f8] sm:$0xff]
        %v2559 = vld [vmem:[#allocation2] sm:$0xfe]
        %v2560 = vld [vmem:[#allocation2 + $0x8] sm:$0xfe]
        %v2561 = vld [vmem:[#allocation2 + $0x10] sm:$0xfe]
        %v2562 = vld [vmem:[#allocation2 + $0x18] sm:$0x1]
        %v2563 = vld [vmem:[#allocation2 + $0x20] sm:$0x1]
        %v2564 = vld [vmem:[#allocation2 + $0x28] sm:$0x1]
        %v2565 = vpack.c.bf16 %v2562, %v2559
        %v2566 = vpack.c.bf16 %v2563, %v2560
        %v2567 = vpack.c.bf16 %v2564, %v2561
        %s2568 = scalar_lea.vmem [#allocation8], 768
        %v2569 = vld [vmem:[%s2568] sm:$0xff]
        %v2570 = vld [vmem:[%s2568 + $0x8] sm:$0xff]
        %v2571 = vld [vmem:[%s2568 + $0x10] sm:$0xff]
        %v2572 = vld [vmem:[%s2568 + $0x18] sm:$0xff]
        %v2573 = vld [vmem:[%s2568 + $0x20] sm:$0xff]
        %v2574 = vld [vmem:[%s2568 + $0x28] sm:$0xff]
        %v2575 = vld [vmem:[%s2568 + $0x30] sm:$0xff]
        %v2576 = vld [vmem:[%s2568 + $0x38] sm:$0xff]
        %v2577 = vld [vmem:[%s2568 + $0x40] sm:$0xff]
        %v2578 = vld [vmem:[%s2568 + $0x48] sm:$0xff]
        %v2579 = vld [vmem:[%s2568 + $0x50] sm:$0xff]
        %v2580 = vld [vmem:[%s2568 + $0x58] sm:$0xff]
        %v2581 = vld [vmem:[%s2568 + $0x60] sm:$0xff]
        %v2582 = vld [vmem:[%s2568 + $0x68] sm:$0xff]
        %v2583 = vld [vmem:[%s2568 + $0x70] sm:$0xff]
        %v2584 = vld [vmem:[%s2568 + $0x78] sm:$0xff]
        %v2585 = vld [vmem:[%s2568 + $0x80] sm:$0xff]
        %v2586 = vld [vmem:[%s2568 + $0x88] sm:$0xff]
        %v2587 = vld [vmem:[%s2568 + $0x90] sm:$0xff]
        %v2588 = vld [vmem:[%s2568 + $0x98] sm:$0xff]
        %v2589 = vld [vmem:[%s2568 + $0xa0] sm:$0xff]
        %v2590 = vld [vmem:[%s2568 + $0xa8] sm:$0xff]
        %v2591 = vld [vmem:[%s2568 + $0xb0] sm:$0xff]
        %v2592 = vld [vmem:[%s2568 + $0xb8] sm:$0xff]
        %v2593 = vld [vmem:[%s2568 + $0xc0] sm:$0xff]
        %v2594 = vld [vmem:[%s2568 + $0xc8] sm:$0xff]
        %v2595 = vld [vmem:[%s2568 + $0xd0] sm:$0xff]
        %v2596 = vld [vmem:[%s2568 + $0xd8] sm:$0xff]
        %v2597 = vld [vmem:[%s2568 + $0xe0] sm:$0xff]
        %v2598 = vld [vmem:[%s2568 + $0xe8] sm:$0xff]
        %v2599 = vld [vmem:[%s2568 + $0xf0] sm:$0xff]
        %v2600 = vld [vmem:[%s2568 + $0xf8] sm:$0xff]
        %v2601 = vld [vmem:[%s2568 + $0x100] sm:$0xff]
        %v2602 = vld [vmem:[%s2568 + $0x108] sm:$0xff]
        %v2603 = vld [vmem:[%s2568 + $0x110] sm:$0xff]
        %v2604 = vld [vmem:[%s2568 + $0x118] sm:$0xff]
        %v2605 = vld [vmem:[%s2568 + $0x120] sm:$0xff]
        %v2606 = vld [vmem:[%s2568 + $0x128] sm:$0xff]
        %v2607 = vld [vmem:[%s2568 + $0x130] sm:$0xff]
        %v2608 = vld [vmem:[%s2568 + $0x138] sm:$0xff]
        %v2609 = vld [vmem:[%s2568 + $0x140] sm:$0xff]
        %v2610 = vld [vmem:[%s2568 + $0x148] sm:$0xff]
        %v2611 = vld [vmem:[%s2568 + $0x150] sm:$0xff]
        %v2612 = vld [vmem:[%s2568 + $0x158] sm:$0xff]
        %v2613 = vld [vmem:[%s2568 + $0x160] sm:$0xff]
        %v2614 = vld [vmem:[%s2568 + $0x168] sm:$0xff]
        %v2615 = vld [vmem:[%s2568 + $0x170] sm:$0xff]
        %v2616 = vld [vmem:[%s2568 + $0x178] sm:$0xff]
        %v2617 = vld [vmem:[%s2568 + $0x180] sm:$0xff]
        %v2618 = vld [vmem:[%s2568 + $0x188] sm:$0xff]
        %v2619 = vld [vmem:[%s2568 + $0x190] sm:$0xff]
        %v2620 = vld [vmem:[%s2568 + $0x198] sm:$0xff]
        %v2621 = vld [vmem:[%s2568 + $0x1a0] sm:$0xff]
        %v2622 = vld [vmem:[%s2568 + $0x1a8] sm:$0xff]
        %v2623 = vld [vmem:[%s2568 + $0x1b0] sm:$0xff]
        %v2624 = vld [vmem:[%s2568 + $0x1b8] sm:$0xff]
        %v2625 = vld [vmem:[%s2568 + $0x1c0] sm:$0xff]
        %v2626 = vld [vmem:[%s2568 + $0x1c8] sm:$0xff]
        %v2627 = vld [vmem:[%s2568 + $0x1d0] sm:$0xff]
        %v2628 = vld [vmem:[%s2568 + $0x1d8] sm:$0xff]
        %v2629 = vld [vmem:[%s2568 + $0x1e0] sm:$0xff]
        %v2630 = vld [vmem:[%s2568 + $0x1e8] sm:$0xff]
        %v2631 = vld [vmem:[%s2568 + $0x1f0] sm:$0xff]
        %v2632 = vld [vmem:[%s2568 + $0x1f8] sm:$0xff]
        %v2633 = vld [vmem:[%s2568 + $0x200] sm:$0xff]
        %v2634 = vld [vmem:[%s2568 + $0x208] sm:$0xff]
        %v2635 = vld [vmem:[%s2568 + $0x210] sm:$0xff]
        %v2636 = vld [vmem:[%s2568 + $0x218] sm:$0xff]
        %v2637 = vld [vmem:[%s2568 + $0x220] sm:$0xff]
        %v2638 = vld [vmem:[%s2568 + $0x228] sm:$0xff]
        %v2639 = vld [vmem:[%s2568 + $0x230] sm:$0xff]
        %v2640 = vld [vmem:[%s2568 + $0x238] sm:$0xff]
        %v2641 = vld [vmem:[%s2568 + $0x240] sm:$0xff]
        %v2642 = vld [vmem:[%s2568 + $0x248] sm:$0xff]
        %v2643 = vld [vmem:[%s2568 + $0x250] sm:$0xff]
        %v2644 = vld [vmem:[%s2568 + $0x258] sm:$0xff]
        %v2645 = vld [vmem:[%s2568 + $0x260] sm:$0xff]
        %v2646 = vld [vmem:[%s2568 + $0x268] sm:$0xff]
        %v2647 = vld [vmem:[%s2568 + $0x270] sm:$0xff]
        %v2648 = vld [vmem:[%s2568 + $0x278] sm:$0xff]
        %v2649 = vld [vmem:[%s2568 + $0x280] sm:$0xff]
        %v2650 = vld [vmem:[%s2568 + $0x288] sm:$0xff]
        %v2651 = vld [vmem:[%s2568 + $0x290] sm:$0xff]
        %v2652 = vld [vmem:[%s2568 + $0x298] sm:$0xff]
        %v2653 = vld [vmem:[%s2568 + $0x2a0] sm:$0xff]
        %v2654 = vld [vmem:[%s2568 + $0x2a8] sm:$0xff]
        %v2655 = vld [vmem:[%s2568 + $0x2b0] sm:$0xff]
        %v2656 = vld [vmem:[%s2568 + $0x2b8] sm:$0xff]
        %v2657 = vld [vmem:[%s2568 + $0x2c0] sm:$0xff]
        %v2658 = vld [vmem:[%s2568 + $0x2c8] sm:$0xff]
        %v2659 = vld [vmem:[%s2568 + $0x2d0] sm:$0xff]
        %v2660 = vld [vmem:[%s2568 + $0x2d8] sm:$0xff]
        %v2661 = vld [vmem:[%s2568 + $0x2e0] sm:$0xff]
        %v2662 = vld [vmem:[%s2568 + $0x2e8] sm:$0xff]
        %v2663 = vld [vmem:[%s2568 + $0x2f0] sm:$0xff]
        %v2664 = vld [vmem:[%s2568 + $0x2f8] sm:$0xff]
        %v2666 = vshrl.u32 %v2565, 16
        %v2668 = vshll.u32 %v2565, 16
        %v2670 = vrot.slane %v2668, 1
        %v2671 = vor.u32 %v2666, %v2670
        %v2673 = vshrl.u32 %v2566, 16
        %v2675 = vshll.u32 %v2566, 16
        %v2677 = vrot.slane %v2675, 1
        %v2678 = vor.u32 %v2673, %v2677
        %v2680 = vshrl.u32 %v2567, 16
        %v2682 = vshll.u32 %v2567, 16
        %v2684 = vrot.slane %v2682, 1
        %v2685 = vor.u32 %v2680, %v2684
        %v2785 = vunpack.c.l.b16 %v2569
        %v2786 = vunpack.c.h.b16 %v2569
        %v2787 = vunpack.c.l.b16 %v2570
        %v2788 = vunpack.c.h.b16 %v2570
        %v2789 = vunpack.c.l.b16 %v2571
        %v2790 = vunpack.c.h.b16 %v2571
        %v2791 = vunpack.c.l.b16 %v2572
        %v2792 = vunpack.c.h.b16 %v2572
        %v2793 = vunpack.c.l.b16 %v2573
        %v2794 = vunpack.c.h.b16 %v2573
        %v2795 = vunpack.c.l.b16 %v2574
        %v2796 = vunpack.c.h.b16 %v2574
        %v2797 = vunpack.c.l.b16 %v2575
        %v2798 = vunpack.c.h.b16 %v2575
        %v2799 = vunpack.c.l.b16 %v2576
        %v2800 = vunpack.c.h.b16 %v2576
        %v2801 = vunpack.c.l.b16 %v2577
        %v2802 = vunpack.c.h.b16 %v2577
        %v2803 = vunpack.c.l.b16 %v2578
        %v2804 = vunpack.c.h.b16 %v2578
        %v2805 = vunpack.c.l.b16 %v2579
        %v2806 = vunpack.c.h.b16 %v2579
        %v2807 = vunpack.c.l.b16 %v2580
        %v2808 = vunpack.c.h.b16 %v2580
        %v2809 = vunpack.c.l.b16 %v2581
        %v2810 = vunpack.c.h.b16 %v2581
        %v2811 = vunpack.c.l.b16 %v2582
        %v2812 = vunpack.c.h.b16 %v2582
        %v2813 = vunpack.c.l.b16 %v2583
        %v2814 = vunpack.c.h.b16 %v2583
        %v2815 = vunpack.c.l.b16 %v2584
        %v2816 = vunpack.c.h.b16 %v2584
        %v2817 = vunpack.c.l.b16 %v2585
        %v2818 = vunpack.c.h.b16 %v2585
        %v2819 = vunpack.c.l.b16 %v2586
        %v2820 = vunpack.c.h.b16 %v2586
        %v2821 = vunpack.c.l.b16 %v2587
        %v2822 = vunpack.c.h.b16 %v2587
        %v2823 = vunpack.c.l.b16 %v2588
        %v2824 = vunpack.c.h.b16 %v2588
        %v2825 = vunpack.c.l.b16 %v2589
        %v2826 = vunpack.c.h.b16 %v2589
        %v2827 = vunpack.c.l.b16 %v2590
        %v2828 = vunpack.c.h.b16 %v2590
        %v2829 = vunpack.c.l.b16 %v2591
        %v2830 = vunpack.c.h.b16 %v2591
        %v2831 = vunpack.c.l.b16 %v2592
        %v2832 = vunpack.c.h.b16 %v2592
        %v2833 = vunpack.c.l.b16 %v2593
        %v2834 = vunpack.c.h.b16 %v2593
        %v2835 = vunpack.c.l.b16 %v2594
        %v2836 = vunpack.c.h.b16 %v2594
        %v2837 = vunpack.c.l.b16 %v2595
        %v2838 = vunpack.c.h.b16 %v2595
        %v2839 = vunpack.c.l.b16 %v2596
        %v2840 = vunpack.c.h.b16 %v2596
        %v2841 = vunpack.c.l.b16 %v2597
        %v2842 = vunpack.c.h.b16 %v2597
        %v2843 = vunpack.c.l.b16 %v2598
        %v2844 = vunpack.c.h.b16 %v2598
        %v2845 = vunpack.c.l.b16 %v2599
        %v2846 = vunpack.c.h.b16 %v2599
        %v2847 = vunpack.c.l.b16 %v2600
        %v2848 = vunpack.c.h.b16 %v2600
        %v2849 = vunpack.c.l.b16 %v2601
        %v2850 = vunpack.c.h.b16 %v2601
        %v2851 = vunpack.c.l.b16 %v2602
        %v2852 = vunpack.c.h.b16 %v2602
        %v2853 = vunpack.c.l.b16 %v2603
        %v2854 = vunpack.c.h.b16 %v2603
        %v2855 = vunpack.c.l.b16 %v2604
        %v2856 = vunpack.c.h.b16 %v2604
        %v2857 = vunpack.c.l.b16 %v2605
        %v2858 = vunpack.c.h.b16 %v2605
        %v2859 = vunpack.c.l.b16 %v2606
        %v2860 = vunpack.c.h.b16 %v2606
        %v2861 = vunpack.c.l.b16 %v2607
        %v2862 = vunpack.c.h.b16 %v2607
        %v2863 = vunpack.c.l.b16 %v2608
        %v2864 = vunpack.c.h.b16 %v2608
        %v2865 = vunpack.c.l.b16 %v2609
        %v2866 = vunpack.c.h.b16 %v2609
        %v2867 = vunpack.c.l.b16 %v2610
        %v2868 = vunpack.c.h.b16 %v2610
        %v2869 = vunpack.c.l.b16 %v2611
        %v2870 = vunpack.c.h.b16 %v2611
        %v2871 = vunpack.c.l.b16 %v2612
        %v2872 = vunpack.c.h.b16 %v2612
        %v2873 = vunpack.c.l.b16 %v2613
        %v2874 = vunpack.c.h.b16 %v2613
        %v2875 = vunpack.c.l.b16 %v2614
        %v2876 = vunpack.c.h.b16 %v2614
        %v2877 = vunpack.c.l.b16 %v2615
        %v2878 = vunpack.c.h.b16 %v2615
        %v2879 = vunpack.c.l.b16 %v2616
        %v2880 = vunpack.c.h.b16 %v2616
        %v2881 = vunpack.c.l.b16 %v2617
        %v2882 = vunpack.c.h.b16 %v2617
        %v2883 = vunpack.c.l.b16 %v2618
        %v2884 = vunpack.c.h.b16 %v2618
        %v2885 = vunpack.c.l.b16 %v2619
        %v2886 = vunpack.c.h.b16 %v2619
        %v2887 = vunpack.c.l.b16 %v2620
        %v2888 = vunpack.c.h.b16 %v2620
        %v2889 = vunpack.c.l.b16 %v2621
        %v2890 = vunpack.c.h.b16 %v2621
        %v2891 = vunpack.c.l.b16 %v2622
        %v2892 = vunpack.c.h.b16 %v2622
        %v2893 = vunpack.c.l.b16 %v2623
        %v2894 = vunpack.c.h.b16 %v2623
        %v2895 = vunpack.c.l.b16 %v2624
        %v2896 = vunpack.c.h.b16 %v2624
        %v2897 = vunpack.c.l.b16 %v2625
        %v2898 = vunpack.c.h.b16 %v2625
        %v2899 = vunpack.c.l.b16 %v2626
        %v2900 = vunpack.c.h.b16 %v2626
        %v2901 = vunpack.c.l.b16 %v2627
        %v2902 = vunpack.c.h.b16 %v2627
        %v2903 = vunpack.c.l.b16 %v2628
        %v2904 = vunpack.c.h.b16 %v2628
        %v2905 = vunpack.c.l.b16 %v2629
        %v2906 = vunpack.c.h.b16 %v2629
        %v2907 = vunpack.c.l.b16 %v2630
        %v2908 = vunpack.c.h.b16 %v2630
        %v2909 = vunpack.c.l.b16 %v2631
        %v2910 = vunpack.c.h.b16 %v2631
        %v2911 = vunpack.c.l.b16 %v2632
        %v2912 = vunpack.c.h.b16 %v2632
        %v2913 = vunpack.c.l.b16 %v2633
        %v2914 = vunpack.c.h.b16 %v2633
        %v2915 = vunpack.c.l.b16 %v2634
        %v2916 = vunpack.c.h.b16 %v2634
        %v2917 = vunpack.c.l.b16 %v2635
        %v2918 = vunpack.c.h.b16 %v2635
        %v2919 = vunpack.c.l.b16 %v2636
        %v2920 = vunpack.c.h.b16 %v2636
        %v2921 = vunpack.c.l.b16 %v2637
        %v2922 = vunpack.c.h.b16 %v2637
        %v2923 = vunpack.c.l.b16 %v2638
        %v2924 = vunpack.c.h.b16 %v2638
        %v2925 = vunpack.c.l.b16 %v2639
        %v2926 = vunpack.c.h.b16 %v2639
        %v2927 = vunpack.c.l.b16 %v2640
        %v2928 = vunpack.c.h.b16 %v2640
        %v2929 = vunpack.c.l.b16 %v2641
        %v2930 = vunpack.c.h.b16 %v2641
        %v2931 = vunpack.c.l.b16 %v2642
        %v2932 = vunpack.c.h.b16 %v2642
        %v2933 = vunpack.c.l.b16 %v2643
        %v2934 = vunpack.c.h.b16 %v2643
        %v2935 = vunpack.c.l.b16 %v2644
        %v2936 = vunpack.c.h.b16 %v2644
        %v2937 = vunpack.c.l.b16 %v2645
        %v2938 = vunpack.c.h.b16 %v2645
        %v2939 = vunpack.c.l.b16 %v2646
        %v2940 = vunpack.c.h.b16 %v2646
        %v2941 = vunpack.c.l.b16 %v2647
        %v2942 = vunpack.c.h.b16 %v2647
        %v2943 = vunpack.c.l.b16 %v2648
        %v2944 = vunpack.c.h.b16 %v2648
        %v2945 = vunpack.c.l.b16 %v2649
        %v2946 = vunpack.c.h.b16 %v2649
        %v2947 = vunpack.c.l.b16 %v2650
        %v2948 = vunpack.c.h.b16 %v2650
        %v2949 = vunpack.c.l.b16 %v2651
        %v2950 = vunpack.c.h.b16 %v2651
        %v2951 = vunpack.c.l.b16 %v2652
        %v2952 = vunpack.c.h.b16 %v2652
        %v2953 = vunpack.c.l.b16 %v2653
        %v2954 = vunpack.c.h.b16 %v2653
        %v2955 = vunpack.c.l.b16 %v2654
        %v2956 = vunpack.c.h.b16 %v2654
        %v2957 = vunpack.c.l.b16 %v2655
        %v2958 = vunpack.c.h.b16 %v2655
        %v2959 = vunpack.c.l.b16 %v2656
        %v2960 = vunpack.c.h.b16 %v2656
        %v2961 = vunpack.c.l.b16 %v2657
        %v2962 = vunpack.c.h.b16 %v2657
        %v2963 = vunpack.c.l.b16 %v2658
        %v2964 = vunpack.c.h.b16 %v2658
        %v2965 = vunpack.c.l.b16 %v2659
        %v2966 = vunpack.c.h.b16 %v2659
        %v2967 = vunpack.c.l.b16 %v2660
        %v2968 = vunpack.c.h.b16 %v2660
        %v2969 = vunpack.c.l.b16 %v2661
        %v2970 = vunpack.c.h.b16 %v2661
        %v2971 = vunpack.c.l.b16 %v2662
        %v2972 = vunpack.c.h.b16 %v2662
        %v2973 = vunpack.c.l.b16 %v2663
        %v2974 = vunpack.c.h.b16 %v2663
        %v2975 = vunpack.c.l.b16 %v2664
        %v2976 = vunpack.c.h.b16 %v2664
        %v2977 = vpack.c.b16 %v2789, %v2785
        %v2978 = vpack.c.b16 %v2790, %v2786
        %v2979 = vpack.c.b16 %v2791, %v2787
        %v2980 = vpack.c.b16 %v2792, %v2788
        %v2981 = vpack.c.b16 %v2797, %v2793
        %v2982 = vpack.c.b16 %v2798, %v2794
        %v2983 = vpack.c.b16 %v2799, %v2795
        %v2984 = vpack.c.b16 %v2800, %v2796
        %v2985 = vpack.c.b16 %v2805, %v2801
        %v2986 = vpack.c.b16 %v2806, %v2802
        %v2987 = vpack.c.b16 %v2807, %v2803
        %v2988 = vpack.c.b16 %v2808, %v2804
        %v2989 = vpack.c.b16 %v2813, %v2809
        %v2990 = vpack.c.b16 %v2814, %v2810
        %v2991 = vpack.c.b16 %v2815, %v2811
        %v2992 = vpack.c.b16 %v2816, %v2812
        %v2993 = vpack.c.b16 %v2821, %v2817
        %v2994 = vpack.c.b16 %v2822, %v2818
        %v2995 = vpack.c.b16 %v2823, %v2819
        %v2996 = vpack.c.b16 %v2824, %v2820
        %v2997 = vpack.c.b16 %v2829, %v2825
        %v2998 = vpack.c.b16 %v2830, %v2826
        %v2999 = vpack.c.b16 %v2831, %v2827
        %v3000 = vpack.c.b16 %v2832, %v2828
        %v3001 = vpack.c.b16 %v2837, %v2833
        %v3002 = vpack.c.b16 %v2838, %v2834
        %v3003 = vpack.c.b16 %v2839, %v2835
        %v3004 = vpack.c.b16 %v2840, %v2836
        %v3005 = vpack.c.b16 %v2845, %v2841
        %v3006 = vpack.c.b16 %v2846, %v2842
        %v3007 = vpack.c.b16 %v2847, %v2843
        %v3008 = vpack.c.b16 %v2848, %v2844
        %v3009 = vpack.c.b16 %v2853, %v2849
        %v3010 = vpack.c.b16 %v2854, %v2850
        %v3011 = vpack.c.b16 %v2855, %v2851
        %v3012 = vpack.c.b16 %v2856, %v2852
        %v3013 = vpack.c.b16 %v2861, %v2857
        %v3014 = vpack.c.b16 %v2862, %v2858
        %v3015 = vpack.c.b16 %v2863, %v2859
        %v3016 = vpack.c.b16 %v2864, %v2860
        %v3017 = vpack.c.b16 %v2869, %v2865
        %v3018 = vpack.c.b16 %v2870, %v2866
        %v3019 = vpack.c.b16 %v2871, %v2867
        %v3020 = vpack.c.b16 %v2872, %v2868
        %v3021 = vpack.c.b16 %v2877, %v2873
        %v3022 = vpack.c.b16 %v2878, %v2874
        %v3023 = vpack.c.b16 %v2879, %v2875
        %v3024 = vpack.c.b16 %v2880, %v2876
        %v3025 = vpack.c.b16 %v2885, %v2881
        %v3026 = vpack.c.b16 %v2886, %v2882
        %v3027 = vpack.c.b16 %v2887, %v2883
        %v3028 = vpack.c.b16 %v2888, %v2884
        %v3029 = vpack.c.b16 %v2893, %v2889
        %v3030 = vpack.c.b16 %v2894, %v2890
        %v3031 = vpack.c.b16 %v2895, %v2891
        %v3032 = vpack.c.b16 %v2896, %v2892
        %v3033 = vpack.c.b16 %v2901, %v2897
        %v3034 = vpack.c.b16 %v2902, %v2898
        %v3035 = vpack.c.b16 %v2903, %v2899
        %v3036 = vpack.c.b16 %v2904, %v2900
        %v3037 = vpack.c.b16 %v2909, %v2905
        %v3038 = vpack.c.b16 %v2910, %v2906
        %v3039 = vpack.c.b16 %v2911, %v2907
        %v3040 = vpack.c.b16 %v2912, %v2908
        %v3041 = vpack.c.b16 %v2917, %v2913
        %v3042 = vpack.c.b16 %v2918, %v2914
        %v3043 = vpack.c.b16 %v2919, %v2915
        %v3044 = vpack.c.b16 %v2920, %v2916
        %v3045 = vpack.c.b16 %v2925, %v2921
        %v3046 = vpack.c.b16 %v2926, %v2922
        %v3047 = vpack.c.b16 %v2927, %v2923
        %v3048 = vpack.c.b16 %v2928, %v2924
        %v3049 = vpack.c.b16 %v2933, %v2929
        %v3050 = vpack.c.b16 %v2934, %v2930
        %v3051 = vpack.c.b16 %v2935, %v2931
        %v3052 = vpack.c.b16 %v2936, %v2932
        %v3053 = vpack.c.b16 %v2941, %v2937
        %v3054 = vpack.c.b16 %v2942, %v2938
        %v3055 = vpack.c.b16 %v2943, %v2939
        %v3056 = vpack.c.b16 %v2944, %v2940
        %v3057 = vpack.c.b16 %v2949, %v2945
        %v3058 = vpack.c.b16 %v2950, %v2946
        %v3059 = vpack.c.b16 %v2951, %v2947
        %v3060 = vpack.c.b16 %v2952, %v2948
        %v3061 = vpack.c.b16 %v2957, %v2953
        %v3062 = vpack.c.b16 %v2958, %v2954
        %v3063 = vpack.c.b16 %v2959, %v2955
        %v3064 = vpack.c.b16 %v2960, %v2956
        %v3065 = vpack.c.b16 %v2965, %v2961
        %v3066 = vpack.c.b16 %v2966, %v2962
        %v3067 = vpack.c.b16 %v2967, %v2963
        %v3068 = vpack.c.b16 %v2968, %v2964
        %v3069 = vpack.c.b16 %v2973, %v2969
        %v3070 = vpack.c.b16 %v2974, %v2970
        %v3071 = vpack.c.b16 %v2975, %v2971
        %v3072 = vpack.c.b16 %v2976, %v2972
        %3169 = vmatprep.subr.bf16.mxu0 %v3006
        %3170 = vmatpush1.bf16.msra.mxu0 %v3005
        %3171 = vmatprep.subr.bf16.mxu0 %v3002
        %3172 = vmatpush1.bf16.msra.mxu0 %v3001
        %3173 = vmatprep.subr.bf16.mxu0 %v2998
        %3174 = vmatpush1.bf16.msra.mxu0 %v2997
        %3175 = vmatprep.subr.bf16.mxu0 %v2994
        %3176 = vmatpush1.bf16.msra.mxu0 %v2993
        %3177 = vmatprep.subr.bf16.mxu0 %v2990
        %3178 = vmatpush1.bf16.msra.mxu0 %v2989
        %3179 = vmatprep.subr.bf16.mxu0 %v2986
        %3180 = vmatpush1.bf16.msra.mxu0 %v2985
        %3181 = vmatprep.subr.bf16.mxu0 %v2982
        %3182 = vmatpush1.bf16.msra.mxu0 %v2981
        %3183 = vmatprep.subr.bf16.mxu0 %v2978
        %3184 = vmatpush1.bf16.msra.mxu0 %v2977
        %3185 = vmatprep.subr.bf16.mxu0 %v3038
        %3186 = vmatpush2.bf16.msra.mxu0 %v3037
        %3187 = vmatprep.subr.bf16.mxu0 %v3034
        %3188 = vmatpush2.bf16.msra.mxu0 %v3033
        %3189 = vmatprep.subr.bf16.mxu0 %v3030
        %3190 = vmatpush2.bf16.msra.mxu0 %v3029
        %3191 = vmatprep.subr.bf16.mxu0 %v3026
        %3192 = vmatpush2.bf16.msra.mxu0 %v3025
        %3193 = vmatprep.subr.bf16.mxu0 %v3022
        %3194 = vmatpush2.bf16.msra.mxu0 %v3021
        %3195 = vmatprep.subr.bf16.mxu0 %v3018
        %3196 = vmatpush2.bf16.msra.mxu0 %v3017
        %3197 = vmatprep.subr.bf16.mxu0 %v3014
        %3198 = vmatpush2.bf16.msra.mxu0 %v3013
        %3199 = vmatprep.subr.bf16.mxu0 %v3010
        %3200 = vmatpush2.bf16.msra.mxu0 %v3009
        %3201 = vmatprep.mubr.bf16.mxu0 %v2678
        %3202 = vmatmul.mubr.bf16.gmra.mxu0 %v2671
        %v3203 = vpop.f32.mrf.mxu0
        %v3204 = vadd.f32 0.0, %v3203
        %v3205 = vpop.f32.mrf.mxu0
        %v3206 = vadd.f32 0.0, %v3205
        %v3207 = vpop.f32.mrf.mxu0
        %v3208 = vpop.f32.mrf.mxu0
        %3209 = vdwg.mxu0
        %3210 = vmatprep.subr.bf16.mxu0 %v3070
        %3211 = vmatpush1.bf16.msra.mxu0 %v3069
        %3212 = vmatprep.subr.bf16.mxu0 %v3066
        %3213 = vmatpush1.bf16.msra.mxu0 %v3065
        %3214 = vmatprep.subr.bf16.mxu0 %v3062
        %3215 = vmatpush1.bf16.msra.mxu0 %v3061
        %3216 = vmatprep.subr.bf16.mxu0 %v3058
        %3217 = vmatpush1.bf16.msra.mxu0 %v3057
        %3218 = vmatprep.subr.bf16.mxu0 %v3054
        %3219 = vmatpush1.bf16.msra.mxu0 %v3053
        %3220 = vmatprep.subr.bf16.mxu0 %v3050
        %3221 = vmatpush1.bf16.msra.mxu0 %v3049
        %3222 = vmatprep.subr.bf16.mxu0 %v3046
        %3223 = vmatpush1.bf16.msra.mxu0 %v3045
        %3224 = vmatprep.subr.bf16.mxu0 %v3042
        %3225 = vmatpush1.bf16.msra.mxu0 %v3041
        %3226 = vmatprep.subr.bf16.mxu0 0
        %3227 = vmatpush2.bf16.msra.mxu0 0
        %3228 = vmatprep.subr.bf16.mxu0 0
        %3229 = vmatpush2.bf16.msra.mxu0 0
        %3230 = vmatprep.subr.bf16.mxu0 0
        %3231 = vmatpush2.bf16.msra.mxu0 0
        %3232 = vmatprep.subr.bf16.mxu0 0
        %3233 = vmatpush2.bf16.msra.mxu0 0
        %3234 = vmatprep.subr.bf16.mxu0 0
        %3235 = vmatpush2.bf16.msra.mxu0 0
        %3236 = vmatprep.subr.bf16.mxu0 0
        %3237 = vmatpush2.bf16.msra.mxu0 0
        %3238 = vmatprep.subr.bf16.mxu0 0
        %3239 = vmatpush2.bf16.msra.mxu0 0
        %3240 = vmatprep.subr.bf16.mxu0 0
        %3241 = vmatpush2.bf16.msra.mxu0 0
        %3242 = vmatprep.mubr.bf16.mxu0 0
        %3243 = vmatmul.mubr.bf16.gmra.mxu0 %v2685
        %v3244 = vpop.f32.mrf.mxu0
        %v3245 = vadd.f32 %v3204, %v3244
        %v3246 = vpop.f32.mrf.mxu0
        %v3247 = vadd.f32 %v3206, %v3246
        %v3248 = vpop.f32.mrf.mxu0
        %v3249 = vpop.f32.mrf.mxu0
        %3250 = vdwg.mxu0
        %3251 = vmatprep.subr.bf16.mxu0 %v3008
        %3252 = vmatpush1.bf16.msra.mxu0 %v3007
        %3253 = vmatprep.subr.bf16.mxu0 %v3004
        %3254 = vmatpush1.bf16.msra.mxu0 %v3003
        %3255 = vmatprep.subr.bf16.mxu0 %v3000
        %3256 = vmatpush1.bf16.msra.mxu0 %v2999
        %3257 = vmatprep.subr.bf16.mxu0 %v2996
        %3258 = vmatpush1.bf16.msra.mxu0 %v2995
        %3259 = vmatprep.subr.bf16.mxu0 %v2992
        %3260 = vmatpush1.bf16.msra.mxu0 %v2991
        %3261 = vmatprep.subr.bf16.mxu0 %v2988
        %3262 = vmatpush1.bf16.msra.mxu0 %v2987
        %3263 = vmatprep.subr.bf16.mxu0 %v2984
        %3264 = vmatpush1.bf16.msra.mxu0 %v2983
        %3265 = vmatprep.subr.bf16.mxu0 %v2980
        %3266 = vmatpush1.bf16.msra.mxu0 %v2979
        %3267 = vmatprep.subr.bf16.mxu0 %v3040
        %3268 = vmatpush2.bf16.msra.mxu0 %v3039
        %3269 = vmatprep.subr.bf16.mxu0 %v3036
        %3270 = vmatpush2.bf16.msra.mxu0 %v3035
        %3271 = vmatprep.subr.bf16.mxu0 %v3032
        %3272 = vmatpush2.bf16.msra.mxu0 %v3031
        %3273 = vmatprep.subr.bf16.mxu0 %v3028
        %3274 = vmatpush2.bf16.msra.mxu0 %v3027
        %3275 = vmatprep.subr.bf16.mxu0 %v3024
        %3276 = vmatpush2.bf16.msra.mxu0 %v3023
        %3277 = vmatprep.subr.bf16.mxu0 %v3020
        %3278 = vmatpush2.bf16.msra.mxu0 %v3019
        %3279 = vmatprep.subr.bf16.mxu0 %v3016
        %3280 = vmatpush2.bf16.msra.mxu0 %v3015
        %3281 = vmatprep.subr.bf16.mxu0 %v3012
        %3282 = vmatpush2.bf16.msra.mxu0 %v3011
        %3283 = vmatprep.mubr.bf16.mxu0 %v2678
        %3284 = vmatmul.mubr.bf16.gmra.mxu0 %v2671
        %v3285 = vpop.f32.mrf.mxu0
        %v3286 = vadd.f32 0.0, %v3285
        %v3287 = vpop.f32.mrf.mxu0
        %v3288 = vadd.f32 0.0, %v3287
        %v3289 = vpop.f32.mrf.mxu0
        %v3290 = vpop.f32.mrf.mxu0
        %3291 = vdwg.mxu0
        %3292 = vmatprep.subr.bf16.mxu0 %v3072
        %3293 = vmatpush1.bf16.msra.mxu0 %v3071
        %3294 = vmatprep.subr.bf16.mxu0 %v3068
        %3295 = vmatpush1.bf16.msra.mxu0 %v3067
        %3296 = vmatprep.subr.bf16.mxu0 %v3064
        %3297 = vmatpush1.bf16.msra.mxu0 %v3063
        %3298 = vmatprep.subr.bf16.mxu0 %v3060
        %3299 = vmatpush1.bf16.msra.mxu0 %v3059
        %3300 = vmatprep.subr.bf16.mxu0 %v3056
        %3301 = vmatpush1.bf16.msra.mxu0 %v3055
        %3302 = vmatprep.subr.bf16.mxu0 %v3052
        %3303 = vmatpush1.bf16.msra.mxu0 %v3051
        %3304 = vmatprep.subr.bf16.mxu0 %v3048
        %3305 = vmatpush1.bf16.msra.mxu0 %v3047
        %3306 = vmatprep.subr.bf16.mxu0 %v3044
        %3307 = vmatpush1.bf16.msra.mxu0 %v3043
        %3308 = vmatprep.subr.bf16.mxu0 0
        %3309 = vmatpush2.bf16.msra.mxu0 0
        %3310 = vmatprep.subr.bf16.mxu0 0
        %3311 = vmatpush2.bf16.msra.mxu0 0
        %3312 = vmatprep.subr.bf16.mxu0 0
        %3313 = vmatpush2.bf16.msra.mxu0 0
        %3314 = vmatprep.subr.bf16.mxu0 0
        %3315 = vmatpush2.bf16.msra.mxu0 0
        %3316 = vmatprep.subr.bf16.mxu0 0
        %3317 = vmatpush2.bf16.msra.mxu0 0
        %3318 = vmatprep.subr.bf16.mxu0 0
        %3319 = vmatpush2.bf16.msra.mxu0 0
        %3320 = vmatprep.subr.bf16.mxu0 0
        %3321 = vmatpush2.bf16.msra.mxu0 0
        %3322 = vmatprep.subr.bf16.mxu0 0
        %3323 = vmatpush2.bf16.msra.mxu0 0
        %3324 = vmatprep.mubr.bf16.mxu0 0
        %3325 = vmatmul.mubr.bf16.gmra.mxu0 %v2685
        %v3326 = vpop.f32.mrf.mxu0
        %v3327 = vadd.f32 %v3286, %v3326
        %v3328 = vpop.f32.mrf.mxu0
        %v3329 = vadd.f32 %v3288, %v3328
        %v3330 = vpop.f32.mrf.mxu0
        %v3331 = vpop.f32.mrf.mxu0
        %3332 = vdwg.mxu0
        %v3429 = vunpack.c.l.b16 %v2463
        %v3430 = vunpack.c.h.b16 %v2463
        %v3431 = vunpack.c.l.b16 %v2464
        %v3432 = vunpack.c.h.b16 %v2464
        %v3433 = vunpack.c.l.b16 %v2465
        %v3434 = vunpack.c.h.b16 %v2465
        %v3435 = vunpack.c.l.b16 %v2466
        %v3436 = vunpack.c.h.b16 %v2466
        %v3437 = vunpack.c.l.b16 %v2467
        %v3438 = vunpack.c.h.b16 %v2467
        %v3439 = vunpack.c.l.b16 %v2468
        %v3440 = vunpack.c.h.b16 %v2468
        %v3441 = vunpack.c.l.b16 %v2469
        %v3442 = vunpack.c.h.b16 %v2469
        %v3443 = vunpack.c.l.b16 %v2470
        %v3444 = vunpack.c.h.b16 %v2470
        %v3445 = vunpack.c.l.b16 %v2471
        %v3446 = vunpack.c.h.b16 %v2471
        %v3447 = vunpack.c.l.b16 %v2472
        %v3448 = vunpack.c.h.b16 %v2472
        %v3449 = vunpack.c.l.b16 %v2473
        %v3450 = vunpack.c.h.b16 %v2473
        %v3451 = vunpack.c.l.b16 %v2474
        %v3452 = vunpack.c.h.b16 %v2474
        %v3453 = vunpack.c.l.b16 %v2475
        %v3454 = vunpack.c.h.b16 %v2475
        %v3455 = vunpack.c.l.b16 %v2476
        %v3456 = vunpack.c.h.b16 %v2476
        %v3457 = vunpack.c.l.b16 %v2477
        %v3458 = vunpack.c.h.b16 %v2477
        %v3459 = vunpack.c.l.b16 %v2478
        %v3460 = vunpack.c.h.b16 %v2478
        %v3461 = vunpack.c.l.b16 %v2479
        %v3462 = vunpack.c.h.b16 %v2479
        %v3463 = vunpack.c.l.b16 %v2480
        %v3464 = vunpack.c.h.b16 %v2480
        %v3465 = vunpack.c.l.b16 %v2481
        %v3466 = vunpack.c.h.b16 %v2481
        %v3467 = vunpack.c.l.b16 %v2482
        %v3468 = vunpack.c.h.b16 %v2482
        %v3469 = vunpack.c.l.b16 %v2483
        %v3470 = vunpack.c.h.b16 %v2483
        %v3471 = vunpack.c.l.b16 %v2484
        %v3472 = vunpack.c.h.b16 %v2484
        %v3473 = vunpack.c.l.b16 %v2485
        %v3474 = vunpack.c.h.b16 %v2485
        %v3475 = vunpack.c.l.b16 %v2486
        %v3476 = vunpack.c.h.b16 %v2486
        %v3477 = vunpack.c.l.b16 %v2487
        %v3478 = vunpack.c.h.b16 %v2487
        %v3479 = vunpack.c.l.b16 %v2488
        %v3480 = vunpack.c.h.b16 %v2488
        %v3481 = vunpack.c.l.b16 %v2489
        %v3482 = vunpack.c.h.b16 %v2489
        %v3483 = vunpack.c.l.b16 %v2490
        %v3484 = vunpack.c.h.b16 %v2490
        %v3485 = vunpack.c.l.b16 %v2491
        %v3486 = vunpack.c.h.b16 %v2491
        %v3487 = vunpack.c.l.b16 %v2492
        %v3488 = vunpack.c.h.b16 %v2492
        %v3489 = vunpack.c.l.b16 %v2493
        %v3490 = vunpack.c.h.b16 %v2493
        %v3491 = vunpack.c.l.b16 %v2494
        %v3492 = vunpack.c.h.b16 %v2494
        %v3493 = vunpack.c.l.b16 %v2495
        %v3494 = vunpack.c.h.b16 %v2495
        %v3495 = vunpack.c.l.b16 %v2496
        %v3496 = vunpack.c.h.b16 %v2496
        %v3497 = vunpack.c.l.b16 %v2497
        %v3498 = vunpack.c.h.b16 %v2497
        %v3499 = vunpack.c.l.b16 %v2498
        %v3500 = vunpack.c.h.b16 %v2498
        %v3501 = vunpack.c.l.b16 %v2499
        %v3502 = vunpack.c.h.b16 %v2499
        %v3503 = vunpack.c.l.b16 %v2500
        %v3504 = vunpack.c.h.b16 %v2500
        %v3505 = vunpack.c.l.b16 %v2501
        %v3506 = vunpack.c.h.b16 %v2501
        %v3507 = vunpack.c.l.b16 %v2502
        %v3508 = vunpack.c.h.b16 %v2502
        %v3509 = vunpack.c.l.b16 %v2503
        %v3510 = vunpack.c.h.b16 %v2503
        %v3511 = vunpack.c.l.b16 %v2504
        %v3512 = vunpack.c.h.b16 %v2504
        %v3513 = vunpack.c.l.b16 %v2505
        %v3514 = vunpack.c.h.b16 %v2505
        %v3515 = vunpack.c.l.b16 %v2506
        %v3516 = vunpack.c.h.b16 %v2506
        %v3517 = vunpack.c.l.b16 %v2507
        %v3518 = vunpack.c.h.b16 %v2507
        %v3519 = vunpack.c.l.b16 %v2508
        %v3520 = vunpack.c.h.b16 %v2508
        %v3521 = vunpack.c.l.b16 %v2509
        %v3522 = vunpack.c.h.b16 %v2509
        %v3523 = vunpack.c.l.b16 %v2510
        %v3524 = vunpack.c.h.b16 %v2510
        %v3525 = vunpack.c.l.b16 %v2511
        %v3526 = vunpack.c.h.b16 %v2511
        %v3527 = vunpack.c.l.b16 %v2512
        %v3528 = vunpack.c.h.b16 %v2512
        %v3529 = vunpack.c.l.b16 %v2513
        %v3530 = vunpack.c.h.b16 %v2513
        %v3531 = vunpack.c.l.b16 %v2514
        %v3532 = vunpack.c.h.b16 %v2514
        %v3533 = vunpack.c.l.b16 %v2515
        %v3534 = vunpack.c.h.b16 %v2515
        %v3535 = vunpack.c.l.b16 %v2516
        %v3536 = vunpack.c.h.b16 %v2516
        %v3537 = vunpack.c.l.b16 %v2517
        %v3538 = vunpack.c.h.b16 %v2517
        %v3539 = vunpack.c.l.b16 %v2518
        %v3540 = vunpack.c.h.b16 %v2518
        %v3541 = vunpack.c.l.b16 %v2519
        %v3542 = vunpack.c.h.b16 %v2519
        %v3543 = vunpack.c.l.b16 %v2520
        %v3544 = vunpack.c.h.b16 %v2520
        %v3545 = vunpack.c.l.b16 %v2521
        %v3546 = vunpack.c.h.b16 %v2521
        %v3547 = vunpack.c.l.b16 %v2522
        %v3548 = vunpack.c.h.b16 %v2522
        %v3549 = vunpack.c.l.b16 %v2523
        %v3550 = vunpack.c.h.b16 %v2523
        %v3551 = vunpack.c.l.b16 %v2524
        %v3552 = vunpack.c.h.b16 %v2524
        %v3553 = vunpack.c.l.b16 %v2525
        %v3554 = vunpack.c.h.b16 %v2525
        %v3555 = vunpack.c.l.b16 %v2526
        %v3556 = vunpack.c.h.b16 %v2526
        %v3557 = vunpack.c.l.b16 %v2527
        %v3558 = vunpack.c.h.b16 %v2527
        %v3559 = vunpack.c.l.b16 %v2528
        %v3560 = vunpack.c.h.b16 %v2528
        %v3561 = vunpack.c.l.b16 %v2529
        %v3562 = vunpack.c.h.b16 %v2529
        %v3563 = vunpack.c.l.b16 %v2530
        %v3564 = vunpack.c.h.b16 %v2530
        %v3565 = vunpack.c.l.b16 %v2531
        %v3566 = vunpack.c.h.b16 %v2531
        %v3567 = vunpack.c.l.b16 %v2532
        %v3568 = vunpack.c.h.b16 %v2532
        %v3569 = vunpack.c.l.b16 %v2533
        %v3570 = vunpack.c.h.b16 %v2533
        %v3571 = vunpack.c.l.b16 %v2534
        %v3572 = vunpack.c.h.b16 %v2534
        %v3573 = vunpack.c.l.b16 %v2535
        %v3574 = vunpack.c.h.b16 %v2535
        %v3575 = vunpack.c.l.b16 %v2536
        %v3576 = vunpack.c.h.b16 %v2536
        %v3577 = vunpack.c.l.b16 %v2537
        %v3578 = vunpack.c.h.b16 %v2537
        %v3579 = vunpack.c.l.b16 %v2538
        %v3580 = vunpack.c.h.b16 %v2538
        %v3581 = vunpack.c.l.b16 %v2539
        %v3582 = vunpack.c.h.b16 %v2539
        %v3583 = vunpack.c.l.b16 %v2540
        %v3584 = vunpack.c.h.b16 %v2540
        %v3585 = vunpack.c.l.b16 %v2541
        %v3586 = vunpack.c.h.b16 %v2541
        %v3587 = vunpack.c.l.b16 %v2542
        %v3588 = vunpack.c.h.b16 %v2542
        %v3589 = vunpack.c.l.b16 %v2543
        %v3590 = vunpack.c.h.b16 %v2543
        %v3591 = vunpack.c.l.b16 %v2544
        %v3592 = vunpack.c.h.b16 %v2544
        %v3593 = vunpack.c.l.b16 %v2545
        %v3594 = vunpack.c.h.b16 %v2545
        %v3595 = vunpack.c.l.b16 %v2546
        %v3596 = vunpack.c.h.b16 %v2546
        %v3597 = vunpack.c.l.b16 %v2547
        %v3598 = vunpack.c.h.b16 %v2547
        %v3599 = vunpack.c.l.b16 %v2548
        %v3600 = vunpack.c.h.b16 %v2548
        %v3601 = vunpack.c.l.b16 %v2549
        %v3602 = vunpack.c.h.b16 %v2549
        %v3603 = vunpack.c.l.b16 %v2550
        %v3604 = vunpack.c.h.b16 %v2550
        %v3605 = vunpack.c.l.b16 %v2551
        %v3606 = vunpack.c.h.b16 %v2551
        %v3607 = vunpack.c.l.b16 %v2552
        %v3608 = vunpack.c.h.b16 %v2552
        %v3609 = vunpack.c.l.b16 %v2553
        %v3610 = vunpack.c.h.b16 %v2553
        %v3611 = vunpack.c.l.b16 %v2554
        %v3612 = vunpack.c.h.b16 %v2554
        %v3613 = vunpack.c.l.b16 %v2555
        %v3614 = vunpack.c.h.b16 %v2555
        %v3615 = vunpack.c.l.b16 %v2556
        %v3616 = vunpack.c.h.b16 %v2556
        %v3617 = vunpack.c.l.b16 %v2557
        %v3618 = vunpack.c.h.b16 %v2557
        %v3619 = vunpack.c.l.b16 %v2558
        %v3620 = vunpack.c.h.b16 %v2558
        %v3621 = vpack.c.b16 %v3433, %v3429
        %v3622 = vpack.c.b16 %v3434, %v3430
        %v3623 = vpack.c.b16 %v3435, %v3431
        %v3624 = vpack.c.b16 %v3436, %v3432
        %v3625 = vpack.c.b16 %v3441, %v3437
        %v3626 = vpack.c.b16 %v3442, %v3438
        %v3627 = vpack.c.b16 %v3443, %v3439
        %v3628 = vpack.c.b16 %v3444, %v3440
        %v3629 = vpack.c.b16 %v3449, %v3445
        %v3630 = vpack.c.b16 %v3450, %v3446
        %v3631 = vpack.c.b16 %v3451, %v3447
        %v3632 = vpack.c.b16 %v3452, %v3448
        %v3633 = vpack.c.b16 %v3457, %v3453
        %v3634 = vpack.c.b16 %v3458, %v3454
        %v3635 = vpack.c.b16 %v3459, %v3455
        %v3636 = vpack.c.b16 %v3460, %v3456
        %v3637 = vpack.c.b16 %v3465, %v3461
        %v3638 = vpack.c.b16 %v3466, %v3462
        %v3639 = vpack.c.b16 %v3467, %v3463
        %v3640 = vpack.c.b16 %v3468, %v3464
        %v3641 = vpack.c.b16 %v3473, %v3469
        %v3642 = vpack.c.b16 %v3474, %v3470
        %v3643 = vpack.c.b16 %v3475, %v3471
        %v3644 = vpack.c.b16 %v3476, %v3472
        %v3645 = vpack.c.b16 %v3481, %v3477
        %v3646 = vpack.c.b16 %v3482, %v3478
        %v3647 = vpack.c.b16 %v3483, %v3479
        %v3648 = vpack.c.b16 %v3484, %v3480
        %v3649 = vpack.c.b16 %v3489, %v3485
        %v3650 = vpack.c.b16 %v3490, %v3486
        %v3651 = vpack.c.b16 %v3491, %v3487
        %v3652 = vpack.c.b16 %v3492, %v3488
        %v3653 = vpack.c.b16 %v3497, %v3493
        %v3654 = vpack.c.b16 %v3498, %v3494
        %v3655 = vpack.c.b16 %v3499, %v3495
        %v3656 = vpack.c.b16 %v3500, %v3496
        %v3657 = vpack.c.b16 %v3505, %v3501
        %v3658 = vpack.c.b16 %v3506, %v3502
        %v3659 = vpack.c.b16 %v3507, %v3503
        %v3660 = vpack.c.b16 %v3508, %v3504
        %v3661 = vpack.c.b16 %v3513, %v3509
        %v3662 = vpack.c.b16 %v3514, %v3510
        %v3663 = vpack.c.b16 %v3515, %v3511
        %v3664 = vpack.c.b16 %v3516, %v3512
        %v3665 = vpack.c.b16 %v3521, %v3517
        %v3666 = vpack.c.b16 %v3522, %v3518
        %v3667 = vpack.c.b16 %v3523, %v3519
        %v3668 = vpack.c.b16 %v3524, %v3520
        %v3669 = vpack.c.b16 %v3529, %v3525
        %v3670 = vpack.c.b16 %v3530, %v3526
        %v3671 = vpack.c.b16 %v3531, %v3527
        %v3672 = vpack.c.b16 %v3532, %v3528
        %v3673 = vpack.c.b16 %v3537, %v3533
        %v3674 = vpack.c.b16 %v3538, %v3534
        %v3675 = vpack.c.b16 %v3539, %v3535
        %v3676 = vpack.c.b16 %v3540, %v3536
        %v3677 = vpack.c.b16 %v3545, %v3541
        %v3678 = vpack.c.b16 %v3546, %v3542
        %v3679 = vpack.c.b16 %v3547, %v3543
        %v3680 = vpack.c.b16 %v3548, %v3544
        %v3681 = vpack.c.b16 %v3553, %v3549
        %v3682 = vpack.c.b16 %v3554, %v3550
        %v3683 = vpack.c.b16 %v3555, %v3551
        %v3684 = vpack.c.b16 %v3556, %v3552
        %v3685 = vpack.c.b16 %v3561, %v3557
        %v3686 = vpack.c.b16 %v3562, %v3558
        %v3687 = vpack.c.b16 %v3563, %v3559
        %v3688 = vpack.c.b16 %v3564, %v3560
        %v3689 = vpack.c.b16 %v3569, %v3565
        %v3690 = vpack.c.b16 %v3570, %v3566
        %v3691 = vpack.c.b16 %v3571, %v3567
        %v3692 = vpack.c.b16 %v3572, %v3568
        %v3693 = vpack.c.b16 %v3577, %v3573
        %v3694 = vpack.c.b16 %v3578, %v3574
        %v3695 = vpack.c.b16 %v3579, %v3575
        %v3696 = vpack.c.b16 %v3580, %v3576
        %v3697 = vpack.c.b16 %v3585, %v3581
        %v3698 = vpack.c.b16 %v3586, %v3582
        %v3699 = vpack.c.b16 %v3587, %v3583
        %v3700 = vpack.c.b16 %v3588, %v3584
        %v3701 = vpack.c.b16 %v3593, %v3589
        %v3702 = vpack.c.b16 %v3594, %v3590
        %v3703 = vpack.c.b16 %v3595, %v3591
        %v3704 = vpack.c.b16 %v3596, %v3592
        %v3705 = vpack.c.b16 %v3601, %v3597
        %v3706 = vpack.c.b16 %v3602, %v3598
        %v3707 = vpack.c.b16 %v3603, %v3599
        %v3708 = vpack.c.b16 %v3604, %v3600
        %v3709 = vpack.c.b16 %v3609, %v3605
        %v3710 = vpack.c.b16 %v3610, %v3606
        %v3711 = vpack.c.b16 %v3611, %v3607
        %v3712 = vpack.c.b16 %v3612, %v3608
        %v3713 = vpack.c.b16 %v3617, %v3613
        %v3714 = vpack.c.b16 %v3618, %v3614
        %v3715 = vpack.c.b16 %v3619, %v3615
        %v3716 = vpack.c.b16 %v3620, %v3616
        %3813 = vmatprep.subr.bf16.mxu0 %v3650
        %3814 = vmatpush1.bf16.msra.mxu0 %v3649
        %3815 = vmatprep.subr.bf16.mxu0 %v3646
        %3816 = vmatpush1.bf16.msra.mxu0 %v3645
        %3817 = vmatprep.subr.bf16.mxu0 %v3642
        %3818 = vmatpush1.bf16.msra.mxu0 %v3641
        %3819 = vmatprep.subr.bf16.mxu0 %v3638
        %3820 = vmatpush1.bf16.msra.mxu0 %v3637
        %3821 = vmatprep.subr.bf16.mxu0 %v3634
        %3822 = vmatpush1.bf16.msra.mxu0 %v3633
        %3823 = vmatprep.subr.bf16.mxu0 %v3630
        %3824 = vmatpush1.bf16.msra.mxu0 %v3629
        %3825 = vmatprep.subr.bf16.mxu0 %v3626
        %3826 = vmatpush1.bf16.msra.mxu0 %v3625
        %3827 = vmatprep.subr.bf16.mxu0 %v3622
        %3828 = vmatpush1.bf16.msra.mxu0 %v3621
        %3829 = vmatprep.subr.bf16.mxu0 %v3682
        %3830 = vmatpush2.bf16.msra.mxu0 %v3681
        %3831 = vmatprep.subr.bf16.mxu0 %v3678
        %3832 = vmatpush2.bf16.msra.mxu0 %v3677
        %3833 = vmatprep.subr.bf16.mxu0 %v3674
        %3834 = vmatpush2.bf16.msra.mxu0 %v3673
        %3835 = vmatprep.subr.bf16.mxu0 %v3670
        %3836 = vmatpush2.bf16.msra.mxu0 %v3669
        %3837 = vmatprep.subr.bf16.mxu0 %v3666
        %3838 = vmatpush2.bf16.msra.mxu0 %v3665
        %3839 = vmatprep.subr.bf16.mxu0 %v3662
        %3840 = vmatpush2.bf16.msra.mxu0 %v3661
        %3841 = vmatprep.subr.bf16.mxu0 %v3658
        %3842 = vmatpush2.bf16.msra.mxu0 %v3657
        %3843 = vmatprep.subr.bf16.mxu0 %v3654
        %3844 = vmatpush2.bf16.msra.mxu0 %v3653
        %3845 = vmatprep.mubr.bf16.mxu0 %v2461
        %3846 = vmatmul.mubr.bf16.gmra.mxu0 %v2460
        %v3847 = vpop.f32.mrf.mxu0
        %v3848 = vadd.f32 %v3245, %v3847
        %v3849 = vpop.f32.mrf.mxu0
        %v3850 = vadd.f32 %v3247, %v3849
        %v3851 = vpop.f32.mrf.mxu0
        %v3852 = vpop.f32.mrf.mxu0
        %3853 = vdwg.mxu0
        %3854 = vmatprep.subr.bf16.mxu0 %v3714
        %3855 = vmatpush1.bf16.msra.mxu0 %v3713
        %3856 = vmatprep.subr.bf16.mxu0 %v3710
        %3857 = vmatpush1.bf16.msra.mxu0 %v3709
        %3858 = vmatprep.subr.bf16.mxu0 %v3706
        %3859 = vmatpush1.bf16.msra.mxu0 %v3705
        %3860 = vmatprep.subr.bf16.mxu0 %v3702
        %3861 = vmatpush1.bf16.msra.mxu0 %v3701
        %3862 = vmatprep.subr.bf16.mxu0 %v3698
        %3863 = vmatpush1.bf16.msra.mxu0 %v3697
        %3864 = vmatprep.subr.bf16.mxu0 %v3694
        %3865 = vmatpush1.bf16.msra.mxu0 %v3693
        %3866 = vmatprep.subr.bf16.mxu0 %v3690
        %3867 = vmatpush1.bf16.msra.mxu0 %v3689
        %3868 = vmatprep.subr.bf16.mxu0 %v3686
        %3869 = vmatpush1.bf16.msra.mxu0 %v3685
        %3870 = vmatprep.subr.bf16.mxu0 0
        %3871 = vmatpush2.bf16.msra.mxu0 0
        %3872 = vmatprep.subr.bf16.mxu0 0
        %3873 = vmatpush2.bf16.msra.mxu0 0
        %3874 = vmatprep.subr.bf16.mxu0 0
        %3875 = vmatpush2.bf16.msra.mxu0 0
        %3876 = vmatprep.subr.bf16.mxu0 0
        %3877 = vmatpush2.bf16.msra.mxu0 0
        %3878 = vmatprep.subr.bf16.mxu0 0
        %3879 = vmatpush2.bf16.msra.mxu0 0
        %3880 = vmatprep.subr.bf16.mxu0 0
        %3881 = vmatpush2.bf16.msra.mxu0 0
        %3882 = vmatprep.subr.bf16.mxu0 0
        %3883 = vmatpush2.bf16.msra.mxu0 0
        %3884 = vmatprep.subr.bf16.mxu0 0
        %3885 = vmatpush2.bf16.msra.mxu0 0
        %3886 = vmatprep.mubr.bf16.mxu0 0
        %3887 = vmatmul.mubr.bf16.gmra.mxu0 %v2462
        %v3888 = vpop.f32.mrf.mxu0
        %v3889 = vadd.f32 %v3848, %v3888
        %v3890 = vpop.f32.mrf.mxu0
        %v3891 = vadd.f32 %v3850, %v3890
        %v3892 = vpop.f32.mrf.mxu0
        %v3893 = vpop.f32.mrf.mxu0
        %3894 = vdwg.mxu0
        %3895 = vmatprep.subr.bf16.mxu0 %v3652
        %3896 = vmatpush1.bf16.msra.mxu0 %v3651
        %3897 = vmatprep.subr.bf16.mxu0 %v3648
        %3898 = vmatpush1.bf16.msra.mxu0 %v3647
        %3899 = vmatprep.subr.bf16.mxu0 %v3644
        %3900 = vmatpush1.bf16.msra.mxu0 %v3643
        %3901 = vmatprep.subr.bf16.mxu0 %v3640
        %3902 = vmatpush1.bf16.msra.mxu0 %v3639
        %3903 = vmatprep.subr.bf16.mxu0 %v3636
        %3904 = vmatpush1.bf16.msra.mxu0 %v3635
        %3905 = vmatprep.subr.bf16.mxu0 %v3632
        %3906 = vmatpush1.bf16.msra.mxu0 %v3631
        %3907 = vmatprep.subr.bf16.mxu0 %v3628
        %3908 = vmatpush1.bf16.msra.mxu0 %v3627
        %3909 = vmatprep.subr.bf16.mxu0 %v3624
        %3910 = vmatpush1.bf16.msra.mxu0 %v3623
        %3911 = vmatprep.subr.bf16.mxu0 %v3684
        %3912 = vmatpush2.bf16.msra.mxu0 %v3683
        %3913 = vmatprep.subr.bf16.mxu0 %v3680
        %3914 = vmatpush2.bf16.msra.mxu0 %v3679
        %3915 = vmatprep.subr.bf16.mxu0 %v3676
        %3916 = vmatpush2.bf16.msra.mxu0 %v3675
        %3917 = vmatprep.subr.bf16.mxu0 %v3672
        %3918 = vmatpush2.bf16.msra.mxu0 %v3671
        %3919 = vmatprep.subr.bf16.mxu0 %v3668
        %3920 = vmatpush2.bf16.msra.mxu0 %v3667
        %3921 = vmatprep.subr.bf16.mxu0 %v3664
        %3922 = vmatpush2.bf16.msra.mxu0 %v3663
        %3923 = vmatprep.subr.bf16.mxu0 %v3660
        %3924 = vmatpush2.bf16.msra.mxu0 %v3659
        %3925 = vmatprep.subr.bf16.mxu0 %v3656
        %3926 = vmatpush2.bf16.msra.mxu0 %v3655
        %3927 = vmatprep.mubr.bf16.mxu0 %v2461
        %3928 = vmatmul.mubr.bf16.gmra.mxu0 %v2460
        %v3929 = vpop.f32.mrf.mxu0
        %v3930 = vadd.f32 %v3327, %v3929
        %v3931 = vpop.f32.mrf.mxu0
        %v3932 = vadd.f32 %v3329, %v3931
        %v3933 = vpop.f32.mrf.mxu0
        %v3934 = vpop.f32.mrf.mxu0
        %3935 = vdwg.mxu0
        %3936 = vmatprep.subr.bf16.mxu0 %v3716
        %3937 = vmatpush1.bf16.msra.mxu0 %v3715
        %3938 = vmatprep.subr.bf16.mxu0 %v3712
        %3939 = vmatpush1.bf16.msra.mxu0 %v3711
        %3940 = vmatprep.subr.bf16.mxu0 %v3708
        %3941 = vmatpush1.bf16.msra.mxu0 %v3707
        %3942 = vmatprep.subr.bf16.mxu0 %v3704
        %3943 = vmatpush1.bf16.msra.mxu0 %v3703
        %3944 = vmatprep.subr.bf16.mxu0 %v3700
        %3945 = vmatpush1.bf16.msra.mxu0 %v3699
        %3946 = vmatprep.subr.bf16.mxu0 %v3696
        %3947 = vmatpush1.bf16.msra.mxu0 %v3695
        %3948 = vmatprep.subr.bf16.mxu0 %v3692
        %3949 = vmatpush1.bf16.msra.mxu0 %v3691
        %3950 = vmatprep.subr.bf16.mxu0 %v3688
        %3951 = vmatpush1.bf16.msra.mxu0 %v3687
        %3952 = vmatprep.subr.bf16.mxu0 0
        %3953 = vmatpush2.bf16.msra.mxu0 0
        %3954 = vmatprep.subr.bf16.mxu0 0
        %3955 = vmatpush2.bf16.msra.mxu0 0
        %3956 = vmatprep.subr.bf16.mxu0 0
        %3957 = vmatpush2.bf16.msra.mxu0 0
        %3958 = vmatprep.subr.bf16.mxu0 0
        %3959 = vmatpush2.bf16.msra.mxu0 0
        %3960 = vmatprep.subr.bf16.mxu0 0
        %3961 = vmatpush2.bf16.msra.mxu0 0
        %3962 = vmatprep.subr.bf16.mxu0 0
        %3963 = vmatpush2.bf16.msra.mxu0 0
        %3964 = vmatprep.subr.bf16.mxu0 0
        %3965 = vmatpush2.bf16.msra.mxu0 0
        %3966 = vmatprep.subr.bf16.mxu0 0
        %3967 = vmatpush2.bf16.msra.mxu0 0
        %3968 = vmatprep.mubr.bf16.mxu0 0
        %3969 = vmatmul.mubr.bf16.gmra.mxu0 %v2462
        %v3970 = vpop.f32.mrf.mxu0
        %v3971 = vadd.f32 %v3930, %v3970
        %v3972 = vpop.f32.mrf.mxu0
        %v3973 = vadd.f32 %v3932, %v3972
        %v3974 = vpop.f32.mrf.mxu0
        %v3975 = vpop.f32.mrf.mxu0
        %3976 = vdwg.mxu0
        %v3977 = vld [vmem:[#allocation2] sm:$0xfc]
        %v3978 = vld [vmem:[#allocation2 + $0x8] sm:$0xfc]
        %v3979 = vld [vmem:[#allocation2 + $0x10] sm:$0xfc]
        %v3980 = vld [vmem:[#allocation2 + $0x18] sm:$0x3]
        %v3981 = vld [vmem:[#allocation2 + $0x20] sm:$0x3]
        %v3982 = vld [vmem:[#allocation2 + $0x28] sm:$0x3]
        %v3983 = vpack.c.bf16 %v3980, %v3977
        %v3984 = vpack.c.bf16 %v3981, %v3978
        %v3985 = vpack.c.bf16 %v3982, %v3979
        %s3986 = scalar_lea.vmem [#allocation8], 1536
        %v3987 = vld [vmem:[%s3986] sm:$0xff]
        %v3988 = vld [vmem:[%s3986 + $0x8] sm:$0xff]
        %v3989 = vld [vmem:[%s3986 + $0x10] sm:$0xff]
        %v3990 = vld [vmem:[%s3986 + $0x18] sm:$0xff]
        %v3991 = vld [vmem:[%s3986 + $0x20] sm:$0xff]
        %v3992 = vld [vmem:[%s3986 + $0x28] sm:$0xff]
        %v3993 = vld [vmem:[%s3986 + $0x30] sm:$0xff]
        %v3994 = vld [vmem:[%s3986 + $0x38] sm:$0xff]
        %v3995 = vld [vmem:[%s3986 + $0x40] sm:$0xff]
        %v3996 = vld [vmem:[%s3986 + $0x48] sm:$0xff]
        %v3997 = vld [vmem:[%s3986 + $0x50] sm:$0xff]
        %v3998 = vld [vmem:[%s3986 + $0x58] sm:$0xff]
        %v3999 = vld [vmem:[%s3986 + $0x60] sm:$0xff]
        %v4000 = vld [vmem:[%s3986 + $0x68] sm:$0xff]
        %v4001 = vld [vmem:[%s3986 + $0x70] sm:$0xff]
        %v4002 = vld [vmem:[%s3986 + $0x78] sm:$0xff]
        %v4003 = vld [vmem:[%s3986 + $0x80] sm:$0xff]
        %v4004 = vld [vmem:[%s3986 + $0x88] sm:$0xff]
        %v4005 = vld [vmem:[%s3986 + $0x90] sm:$0xff]
        %v4006 = vld [vmem:[%s3986 + $0x98] sm:$0xff]
        %v4007 = vld [vmem:[%s3986 + $0xa0] sm:$0xff]
        %v4008 = vld [vmem:[%s3986 + $0xa8] sm:$0xff]
        %v4009 = vld [vmem:[%s3986 + $0xb0] sm:$0xff]
        %v4010 = vld [vmem:[%s3986 + $0xb8] sm:$0xff]
        %v4011 = vld [vmem:[%s3986 + $0xc0] sm:$0xff]
        %v4012 = vld [vmem:[%s3986 + $0xc8] sm:$0xff]
        %v4013 = vld [vmem:[%s3986 + $0xd0] sm:$0xff]
        %v4014 = vld [vmem:[%s3986 + $0xd8] sm:$0xff]
        %v4015 = vld [vmem:[%s3986 + $0xe0] sm:$0xff]
        %v4016 = vld [vmem:[%s3986 + $0xe8] sm:$0xff]
        %v4017 = vld [vmem:[%s3986 + $0xf0] sm:$0xff]
        %v4018 = vld [vmem:[%s3986 + $0xf8] sm:$0xff]
        %v4019 = vld [vmem:[%s3986 + $0x100] sm:$0xff]
        %v4020 = vld [vmem:[%s3986 + $0x108] sm:$0xff]
        %v4021 = vld [vmem:[%s3986 + $0x110] sm:$0xff]
        %v4022 = vld [vmem:[%s3986 + $0x118] sm:$0xff]
        %v4023 = vld [vmem:[%s3986 + $0x120] sm:$0xff]
        %v4024 = vld [vmem:[%s3986 + $0x128] sm:$0xff]
        %v4025 = vld [vmem:[%s3986 + $0x130] sm:$0xff]
        %v4026 = vld [vmem:[%s3986 + $0x138] sm:$0xff]
        %v4027 = vld [vmem:[%s3986 + $0x140] sm:$0xff]
        %v4028 = vld [vmem:[%s3986 + $0x148] sm:$0xff]
        %v4029 = vld [vmem:[%s3986 + $0x150] sm:$0xff]
        %v4030 = vld [vmem:[%s3986 + $0x158] sm:$0xff]
        %v4031 = vld [vmem:[%s3986 + $0x160] sm:$0xff]
        %v4032 = vld [vmem:[%s3986 + $0x168] sm:$0xff]
        %v4033 = vld [vmem:[%s3986 + $0x170] sm:$0xff]
        %v4034 = vld [vmem:[%s3986 + $0x178] sm:$0xff]
        %v4035 = vld [vmem:[%s3986 + $0x180] sm:$0xff]
        %v4036 = vld [vmem:[%s3986 + $0x188] sm:$0xff]
        %v4037 = vld [vmem:[%s3986 + $0x190] sm:$0xff]
        %v4038 = vld [vmem:[%s3986 + $0x198] sm:$0xff]
        %v4039 = vld [vmem:[%s3986 + $0x1a0] sm:$0xff]
        %v4040 = vld [vmem:[%s3986 + $0x1a8] sm:$0xff]
        %v4041 = vld [vmem:[%s3986 + $0x1b0] sm:$0xff]
        %v4042 = vld [vmem:[%s3986 + $0x1b8] sm:$0xff]
        %v4043 = vld [vmem:[%s3986 + $0x1c0] sm:$0xff]
        %v4044 = vld [vmem:[%s3986 + $0x1c8] sm:$0xff]
        %v4045 = vld [vmem:[%s3986 + $0x1d0] sm:$0xff]
        %v4046 = vld [vmem:[%s3986 + $0x1d8] sm:$0xff]
        %v4047 = vld [vmem:[%s3986 + $0x1e0] sm:$0xff]
        %v4048 = vld [vmem:[%s3986 + $0x1e8] sm:$0xff]
        %v4049 = vld [vmem:[%s3986 + $0x1f0] sm:$0xff]
        %v4050 = vld [vmem:[%s3986 + $0x1f8] sm:$0xff]
        %v4051 = vld [vmem:[%s3986 + $0x200] sm:$0xff]
        %v4052 = vld [vmem:[%s3986 + $0x208] sm:$0xff]
        %v4053 = vld [vmem:[%s3986 + $0x210] sm:$0xff]
        %v4054 = vld [vmem:[%s3986 + $0x218] sm:$0xff]
        %v4055 = vld [vmem:[%s3986 + $0x220] sm:$0xff]
        %v4056 = vld [vmem:[%s3986 + $0x228] sm:$0xff]
        %v4057 = vld [vmem:[%s3986 + $0x230] sm:$0xff]
        %v4058 = vld [vmem:[%s3986 + $0x238] sm:$0xff]
        %v4059 = vld [vmem:[%s3986 + $0x240] sm:$0xff]
        %v4060 = vld [vmem:[%s3986 + $0x248] sm:$0xff]
        %v4061 = vld [vmem:[%s3986 + $0x250] sm:$0xff]
        %v4062 = vld [vmem:[%s3986 + $0x258] sm:$0xff]
        %v4063 = vld [vmem:[%s3986 + $0x260] sm:$0xff]
        %v4064 = vld [vmem:[%s3986 + $0x268] sm:$0xff]
        %v4065 = vld [vmem:[%s3986 + $0x270] sm:$0xff]
        %v4066 = vld [vmem:[%s3986 + $0x278] sm:$0xff]
        %v4067 = vld [vmem:[%s3986 + $0x280] sm:$0xff]
        %v4068 = vld [vmem:[%s3986 + $0x288] sm:$0xff]
        %v4069 = vld [vmem:[%s3986 + $0x290] sm:$0xff]
        %v4070 = vld [vmem:[%s3986 + $0x298] sm:$0xff]
        %v4071 = vld [vmem:[%s3986 + $0x2a0] sm:$0xff]
        %v4072 = vld [vmem:[%s3986 + $0x2a8] sm:$0xff]
        %v4073 = vld [vmem:[%s3986 + $0x2b0] sm:$0xff]
        %v4074 = vld [vmem:[%s3986 + $0x2b8] sm:$0xff]
        %v4075 = vld [vmem:[%s3986 + $0x2c0] sm:$0xff]
        %v4076 = vld [vmem:[%s3986 + $0x2c8] sm:$0xff]
        %v4077 = vld [vmem:[%s3986 + $0x2d0] sm:$0xff]
        %v4078 = vld [vmem:[%s3986 + $0x2d8] sm:$0xff]
        %v4079 = vld [vmem:[%s3986 + $0x2e0] sm:$0xff]
        %v4080 = vld [vmem:[%s3986 + $0x2e8] sm:$0xff]
        %v4081 = vld [vmem:[%s3986 + $0x2f0] sm:$0xff]
        %v4082 = vld [vmem:[%s3986 + $0x2f8] sm:$0xff]
        %v4086 = vrot.slane %v3983, 1
        %v4087 = vrot.slane %v3984, 1
        %v4088 = vrot.slane %v3985, 1
        %v4188 = vunpack.c.l.b16 %v3987
        %v4189 = vunpack.c.h.b16 %v3987
        %v4190 = vunpack.c.l.b16 %v3988
        %v4191 = vunpack.c.h.b16 %v3988
        %v4192 = vunpack.c.l.b16 %v3989
        %v4193 = vunpack.c.h.b16 %v3989
        %v4194 = vunpack.c.l.b16 %v3990
        %v4195 = vunpack.c.h.b16 %v3990
        %v4196 = vunpack.c.l.b16 %v3991
        %v4197 = vunpack.c.h.b16 %v3991
        %v4198 = vunpack.c.l.b16 %v3992
        %v4199 = vunpack.c.h.b16 %v3992
        %v4200 = vunpack.c.l.b16 %v3993
        %v4201 = vunpack.c.h.b16 %v3993
        %v4202 = vunpack.c.l.b16 %v3994
        %v4203 = vunpack.c.h.b16 %v3994
        %v4204 = vunpack.c.l.b16 %v3995
        %v4205 = vunpack.c.h.b16 %v3995
        %v4206 = vunpack.c.l.b16 %v3996
        %v4207 = vunpack.c.h.b16 %v3996
        %v4208 = vunpack.c.l.b16 %v3997
        %v4209 = vunpack.c.h.b16 %v3997
        %v4210 = vunpack.c.l.b16 %v3998
        %v4211 = vunpack.c.h.b16 %v3998
        %v4212 = vunpack.c.l.b16 %v3999
        %v4213 = vunpack.c.h.b16 %v3999
        %v4214 = vunpack.c.l.b16 %v4000
        %v4215 = vunpack.c.h.b16 %v4000
        %v4216 = vunpack.c.l.b16 %v4001
        %v4217 = vunpack.c.h.b16 %v4001
        %v4218 = vunpack.c.l.b16 %v4002
        %v4219 = vunpack.c.h.b16 %v4002
        %v4220 = vunpack.c.l.b16 %v4003
        %v4221 = vunpack.c.h.b16 %v4003
        %v4222 = vunpack.c.l.b16 %v4004
        %v4223 = vunpack.c.h.b16 %v4004
        %v4224 = vunpack.c.l.b16 %v4005
        %v4225 = vunpack.c.h.b16 %v4005
        %v4226 = vunpack.c.l.b16 %v4006
        %v4227 = vunpack.c.h.b16 %v4006
        %v4228 = vunpack.c.l.b16 %v4007
        %v4229 = vunpack.c.h.b16 %v4007
        %v4230 = vunpack.c.l.b16 %v4008
        %v4231 = vunpack.c.h.b16 %v4008
        %v4232 = vunpack.c.l.b16 %v4009
        %v4233 = vunpack.c.h.b16 %v4009
        %v4234 = vunpack.c.l.b16 %v4010
        %v4235 = vunpack.c.h.b16 %v4010
        %v4236 = vunpack.c.l.b16 %v4011
        %v4237 = vunpack.c.h.b16 %v4011
        %v4238 = vunpack.c.l.b16 %v4012
        %v4239 = vunpack.c.h.b16 %v4012
        %v4240 = vunpack.c.l.b16 %v4013
        %v4241 = vunpack.c.h.b16 %v4013
        %v4242 = vunpack.c.l.b16 %v4014
        %v4243 = vunpack.c.h.b16 %v4014
        %v4244 = vunpack.c.l.b16 %v4015
        %v4245 = vunpack.c.h.b16 %v4015
        %v4246 = vunpack.c.l.b16 %v4016
        %v4247 = vunpack.c.h.b16 %v4016
        %v4248 = vunpack.c.l.b16 %v4017
        %v4249 = vunpack.c.h.b16 %v4017
        %v4250 = vunpack.c.l.b16 %v4018
        %v4251 = vunpack.c.h.b16 %v4018
        %v4252 = vunpack.c.l.b16 %v4019
        %v4253 = vunpack.c.h.b16 %v4019
        %v4254 = vunpack.c.l.b16 %v4020
        %v4255 = vunpack.c.h.b16 %v4020
        %v4256 = vunpack.c.l.b16 %v4021
        %v4257 = vunpack.c.h.b16 %v4021
        %v4258 = vunpack.c.l.b16 %v4022
        %v4259 = vunpack.c.h.b16 %v4022
        %v4260 = vunpack.c.l.b16 %v4023
        %v4261 = vunpack.c.h.b16 %v4023
        %v4262 = vunpack.c.l.b16 %v4024
        %v4263 = vunpack.c.h.b16 %v4024
        %v4264 = vunpack.c.l.b16 %v4025
        %v4265 = vunpack.c.h.b16 %v4025
        %v4266 = vunpack.c.l.b16 %v4026
        %v4267 = vunpack.c.h.b16 %v4026
        %v4268 = vunpack.c.l.b16 %v4027
        %v4269 = vunpack.c.h.b16 %v4027
        %v4270 = vunpack.c.l.b16 %v4028
        %v4271 = vunpack.c.h.b16 %v4028
        %v4272 = vunpack.c.l.b16 %v4029
        %v4273 = vunpack.c.h.b16 %v4029
        %v4274 = vunpack.c.l.b16 %v4030
        %v4275 = vunpack.c.h.b16 %v4030
        %v4276 = vunpack.c.l.b16 %v4031
        %v4277 = vunpack.c.h.b16 %v4031
        %v4278 = vunpack.c.l.b16 %v4032
        %v4279 = vunpack.c.h.b16 %v4032
        %v4280 = vunpack.c.l.b16 %v4033
        %v4281 = vunpack.c.h.b16 %v4033
        %v4282 = vunpack.c.l.b16 %v4034
        %v4283 = vunpack.c.h.b16 %v4034
        %v4284 = vunpack.c.l.b16 %v4035
        %v4285 = vunpack.c.h.b16 %v4035
        %v4286 = vunpack.c.l.b16 %v4036
        %v4287 = vunpack.c.h.b16 %v4036
        %v4288 = vunpack.c.l.b16 %v4037
        %v4289 = vunpack.c.h.b16 %v4037
        %v4290 = vunpack.c.l.b16 %v4038
        %v4291 = vunpack.c.h.b16 %v4038
        %v4292 = vunpack.c.l.b16 %v4039
        %v4293 = vunpack.c.h.b16 %v4039
        %v4294 = vunpack.c.l.b16 %v4040
        %v4295 = vunpack.c.h.b16 %v4040
        %v4296 = vunpack.c.l.b16 %v4041
        %v4297 = vunpack.c.h.b16 %v4041
        %v4298 = vunpack.c.l.b16 %v4042
        %v4299 = vunpack.c.h.b16 %v4042
        %v4300 = vunpack.c.l.b16 %v4043
        %v4301 = vunpack.c.h.b16 %v4043
        %v4302 = vunpack.c.l.b16 %v4044
        %v4303 = vunpack.c.h.b16 %v4044
        %v4304 = vunpack.c.l.b16 %v4045
        %v4305 = vunpack.c.h.b16 %v4045
        %v4306 = vunpack.c.l.b16 %v4046
        %v4307 = vunpack.c.h.b16 %v4046
        %v4308 = vunpack.c.l.b16 %v4047
        %v4309 = vunpack.c.h.b16 %v4047
        %v4310 = vunpack.c.l.b16 %v4048
        %v4311 = vunpack.c.h.b16 %v4048
        %v4312 = vunpack.c.l.b16 %v4049
        %v4313 = vunpack.c.h.b16 %v4049
        %v4314 = vunpack.c.l.b16 %v4050
        %v4315 = vunpack.c.h.b16 %v4050
        %v4316 = vunpack.c.l.b16 %v4051
        %v4317 = vunpack.c.h.b16 %v4051
        %v4318 = vunpack.c.l.b16 %v4052
        %v4319 = vunpack.c.h.b16 %v4052
        %v4320 = vunpack.c.l.b16 %v4053
        %v4321 = vunpack.c.h.b16 %v4053
        %v4322 = vunpack.c.l.b16 %v4054
        %v4323 = vunpack.c.h.b16 %v4054
        %v4324 = vunpack.c.l.b16 %v4055
        %v4325 = vunpack.c.h.b16 %v4055
        %v4326 = vunpack.c.l.b16 %v4056
        %v4327 = vunpack.c.h.b16 %v4056
        %v4328 = vunpack.c.l.b16 %v4057
        %v4329 = vunpack.c.h.b16 %v4057
        %v4330 = vunpack.c.l.b16 %v4058
        %v4331 = vunpack.c.h.b16 %v4058
        %v4332 = vunpack.c.l.b16 %v4059
        %v4333 = vunpack.c.h.b16 %v4059
        %v4334 = vunpack.c.l.b16 %v4060
        %v4335 = vunpack.c.h.b16 %v4060
        %v4336 = vunpack.c.l.b16 %v4061
        %v4337 = vunpack.c.h.b16 %v4061
        %v4338 = vunpack.c.l.b16 %v4062
        %v4339 = vunpack.c.h.b16 %v4062
        %v4340 = vunpack.c.l.b16 %v4063
        %v4341 = vunpack.c.h.b16 %v4063
        %v4342 = vunpack.c.l.b16 %v4064
        %v4343 = vunpack.c.h.b16 %v4064
        %v4344 = vunpack.c.l.b16 %v4065
        %v4345 = vunpack.c.h.b16 %v4065
        %v4346 = vunpack.c.l.b16 %v4066
        %v4347 = vunpack.c.h.b16 %v4066
        %v4348 = vunpack.c.l.b16 %v4067
        %v4349 = vunpack.c.h.b16 %v4067
        %v4350 = vunpack.c.l.b16 %v4068
        %v4351 = vunpack.c.h.b16 %v4068
        %v4352 = vunpack.c.l.b16 %v4069
        %v4353 = vunpack.c.h.b16 %v4069
        %v4354 = vunpack.c.l.b16 %v4070
        %v4355 = vunpack.c.h.b16 %v4070
        %v4356 = vunpack.c.l.b16 %v4071
        %v4357 = vunpack.c.h.b16 %v4071
        %v4358 = vunpack.c.l.b16 %v4072
        %v4359 = vunpack.c.h.b16 %v4072
        %v4360 = vunpack.c.l.b16 %v4073
        %v4361 = vunpack.c.h.b16 %v4073
        %v4362 = vunpack.c.l.b16 %v4074
        %v4363 = vunpack.c.h.b16 %v4074
        %v4364 = vunpack.c.l.b16 %v4075
        %v4365 = vunpack.c.h.b16 %v4075
        %v4366 = vunpack.c.l.b16 %v4076
        %v4367 = vunpack.c.h.b16 %v4076
        %v4368 = vunpack.c.l.b16 %v4077
        %v4369 = vunpack.c.h.b16 %v4077
        %v4370 = vunpack.c.l.b16 %v4078
        %v4371 = vunpack.c.h.b16 %v4078
        %v4372 = vunpack.c.l.b16 %v4079
        %v4373 = vunpack.c.h.b16 %v4079
        %v4374 = vunpack.c.l.b16 %v4080
        %v4375 = vunpack.c.h.b16 %v4080
        %v4376 = vunpack.c.l.b16 %v4081
        %v4377 = vunpack.c.h.b16 %v4081
        %v4378 = vunpack.c.l.b16 %v4082
        %v4379 = vunpack.c.h.b16 %v4082
        %v4380 = vpack.c.b16 %v4192, %v4188
        %v4381 = vpack.c.b16 %v4193, %v4189
        %v4382 = vpack.c.b16 %v4194, %v4190
        %v4383 = vpack.c.b16 %v4195, %v4191
        %v4384 = vpack.c.b16 %v4200, %v4196
        %v4385 = vpack.c.b16 %v4201, %v4197
        %v4386 = vpack.c.b16 %v4202, %v4198
        %v4387 = vpack.c.b16 %v4203, %v4199
        %v4388 = vpack.c.b16 %v4208, %v4204
        %v4389 = vpack.c.b16 %v4209, %v4205
        %v4390 = vpack.c.b16 %v4210, %v4206
        %v4391 = vpack.c.b16 %v4211, %v4207
        %v4392 = vpack.c.b16 %v4216, %v4212
        %v4393 = vpack.c.b16 %v4217, %v4213
        %v4394 = vpack.c.b16 %v4218, %v4214
        %v4395 = vpack.c.b16 %v4219, %v4215
        %v4396 = vpack.c.b16 %v4224, %v4220
        %v4397 = vpack.c.b16 %v4225, %v4221
        %v4398 = vpack.c.b16 %v4226, %v4222
        %v4399 = vpack.c.b16 %v4227, %v4223
        %v4400 = vpack.c.b16 %v4232, %v4228
        %v4401 = vpack.c.b16 %v4233, %v4229
        %v4402 = vpack.c.b16 %v4234, %v4230
        %v4403 = vpack.c.b16 %v4235, %v4231
        %v4404 = vpack.c.b16 %v4240, %v4236
        %v4405 = vpack.c.b16 %v4241, %v4237
        %v4406 = vpack.c.b16 %v4242, %v4238
        %v4407 = vpack.c.b16 %v4243, %v4239
        %v4408 = vpack.c.b16 %v4248, %v4244
        %v4409 = vpack.c.b16 %v4249, %v4245
        %v4410 = vpack.c.b16 %v4250, %v4246
        %v4411 = vpack.c.b16 %v4251, %v4247
        %v4412 = vpack.c.b16 %v4256, %v4252
        %v4413 = vpack.c.b16 %v4257, %v4253
        %v4414 = vpack.c.b16 %v4258, %v4254
        %v4415 = vpack.c.b16 %v4259, %v4255
        %v4416 = vpack.c.b16 %v4264, %v4260
        %v4417 = vpack.c.b16 %v4265, %v4261
        %v4418 = vpack.c.b16 %v4266, %v4262
        %v4419 = vpack.c.b16 %v4267, %v4263
        %v4420 = vpack.c.b16 %v4272, %v4268
        %v4421 = vpack.c.b16 %v4273, %v4269
        %v4422 = vpack.c.b16 %v4274, %v4270
        %v4423 = vpack.c.b16 %v4275, %v4271
        %v4424 = vpack.c.b16 %v4280, %v4276
        %v4425 = vpack.c.b16 %v4281, %v4277
        %v4426 = vpack.c.b16 %v4282, %v4278
        %v4427 = vpack.c.b16 %v4283, %v4279
        %v4428 = vpack.c.b16 %v4288, %v4284
        %v4429 = vpack.c.b16 %v4289, %v4285
        %v4430 = vpack.c.b16 %v4290, %v4286
        %v4431 = vpack.c.b16 %v4291, %v4287
        %v4432 = vpack.c.b16 %v4296, %v4292
        %v4433 = vpack.c.b16 %v4297, %v4293
        %v4434 = vpack.c.b16 %v4298, %v4294
        %v4435 = vpack.c.b16 %v4299, %v4295
        %v4436 = vpack.c.b16 %v4304, %v4300
        %v4437 = vpack.c.b16 %v4305, %v4301
        %v4438 = vpack.c.b16 %v4306, %v4302
        %v4439 = vpack.c.b16 %v4307, %v4303
        %v4440 = vpack.c.b16 %v4312, %v4308
        %v4441 = vpack.c.b16 %v4313, %v4309
        %v4442 = vpack.c.b16 %v4314, %v4310
        %v4443 = vpack.c.b16 %v4315, %v4311
        %v4444 = vpack.c.b16 %v4320, %v4316
        %v4445 = vpack.c.b16 %v4321, %v4317
        %v4446 = vpack.c.b16 %v4322, %v4318
        %v4447 = vpack.c.b16 %v4323, %v4319
        %v4448 = vpack.c.b16 %v4328, %v4324
        %v4449 = vpack.c.b16 %v4329, %v4325
        %v4450 = vpack.c.b16 %v4330, %v4326
        %v4451 = vpack.c.b16 %v4331, %v4327
        %v4452 = vpack.c.b16 %v4336, %v4332
        %v4453 = vpack.c.b16 %v4337, %v4333
        %v4454 = vpack.c.b16 %v4338, %v4334
        %v4455 = vpack.c.b16 %v4339, %v4335
        %v4456 = vpack.c.b16 %v4344, %v4340
        %v4457 = vpack.c.b16 %v4345, %v4341
        %v4458 = vpack.c.b16 %v4346, %v4342
        %v4459 = vpack.c.b16 %v4347, %v4343
        %v4460 = vpack.c.b16 %v4352, %v4348
        %v4461 = vpack.c.b16 %v4353, %v4349
        %v4462 = vpack.c.b16 %v4354, %v4350
        %v4463 = vpack.c.b16 %v4355, %v4351
        %v4464 = vpack.c.b16 %v4360, %v4356
        %v4465 = vpack.c.b16 %v4361, %v4357
        %v4466 = vpack.c.b16 %v4362, %v4358
        %v4467 = vpack.c.b16 %v4363, %v4359
        %v4468 = vpack.c.b16 %v4368, %v4364
        %v4469 = vpack.c.b16 %v4369, %v4365
        %v4470 = vpack.c.b16 %v4370, %v4366
        %v4471 = vpack.c.b16 %v4371, %v4367
        %v4472 = vpack.c.b16 %v4376, %v4372
        %v4473 = vpack.c.b16 %v4377, %v4373
        %v4474 = vpack.c.b16 %v4378, %v4374
        %v4475 = vpack.c.b16 %v4379, %v4375
        %4572 = vmatprep.subr.bf16.mxu0 %v4409
        %4573 = vmatpush1.bf16.msra.mxu0 %v4408
        %4574 = vmatprep.subr.bf16.mxu0 %v4405
        %4575 = vmatpush1.bf16.msra.mxu0 %v4404
        %4576 = vmatprep.subr.bf16.mxu0 %v4401
        %4577 = vmatpush1.bf16.msra.mxu0 %v4400
        %4578 = vmatprep.subr.bf16.mxu0 %v4397
        %4579 = vmatpush1.bf16.msra.mxu0 %v4396
        %4580 = vmatprep.subr.bf16.mxu0 %v4393
        %4581 = vmatpush1.bf16.msra.mxu0 %v4392
        %4582 = vmatprep.subr.bf16.mxu0 %v4389
        %4583 = vmatpush1.bf16.msra.mxu0 %v4388
        %4584 = vmatprep.subr.bf16.mxu0 %v4385
        %4585 = vmatpush1.bf16.msra.mxu0 %v4384
        %4586 = vmatprep.subr.bf16.mxu0 %v4381
        %4587 = vmatpush1.bf16.msra.mxu0 %v4380
        %4588 = vmatprep.subr.bf16.mxu0 %v4441
        %4589 = vmatpush2.bf16.msra.mxu0 %v4440
        %4590 = vmatprep.subr.bf16.mxu0 %v4437
        %4591 = vmatpush2.bf16.msra.mxu0 %v4436
        %4592 = vmatprep.subr.bf16.mxu0 %v4433
        %4593 = vmatpush2.bf16.msra.mxu0 %v4432
        %4594 = vmatprep.subr.bf16.mxu0 %v4429
        %4595 = vmatpush2.bf16.msra.mxu0 %v4428
        %4596 = vmatprep.subr.bf16.mxu0 %v4425
        %4597 = vmatpush2.bf16.msra.mxu0 %v4424
        %4598 = vmatprep.subr.bf16.mxu0 %v4421
        %4599 = vmatpush2.bf16.msra.mxu0 %v4420
        %4600 = vmatprep.subr.bf16.mxu0 %v4417
        %4601 = vmatpush2.bf16.msra.mxu0 %v4416
        %4602 = vmatprep.subr.bf16.mxu0 %v4413
        %4603 = vmatpush2.bf16.msra.mxu0 %v4412
        %4604 = vmatprep.mubr.bf16.mxu0 %v4087
        %4605 = vmatmul.mubr.bf16.gmra.mxu0 %v4086
        %v4606 = vpop.f32.mrf.mxu0
        %v4607 = vadd.f32 0.0, %v4606
        %v4608 = vpop.f32.mrf.mxu0
        %v4609 = vadd.f32 0.0, %v4608
        %v4610 = vpop.f32.mrf.mxu0
        %v4611 = vpop.f32.mrf.mxu0
        %4612 = vdwg.mxu0
        %4613 = vmatprep.subr.bf16.mxu0 %v4473
        %4614 = vmatpush1.bf16.msra.mxu0 %v4472
        %4615 = vmatprep.subr.bf16.mxu0 %v4469
        %4616 = vmatpush1.bf16.msra.mxu0 %v4468
        %4617 = vmatprep.subr.bf16.mxu0 %v4465
        %4618 = vmatpush1.bf16.msra.mxu0 %v4464
        %4619 = vmatprep.subr.bf16.mxu0 %v4461
        %4620 = vmatpush1.bf16.msra.mxu0 %v4460
        %4621 = vmatprep.subr.bf16.mxu0 %v4457
        %4622 = vmatpush1.bf16.msra.mxu0 %v4456
        %4623 = vmatprep.subr.bf16.mxu0 %v4453
        %4624 = vmatpush1.bf16.msra.mxu0 %v4452
        %4625 = vmatprep.subr.bf16.mxu0 %v4449
        %4626 = vmatpush1.bf16.msra.mxu0 %v4448
        %4627 = vmatprep.subr.bf16.mxu0 %v4445
        %4628 = vmatpush1.bf16.msra.mxu0 %v4444
        %4629 = vmatprep.subr.bf16.mxu0 0
        %4630 = vmatpush2.bf16.msra.mxu0 0
        %4631 = vmatprep.subr.bf16.mxu0 0
        %4632 = vmatpush2.bf16.msra.mxu0 0
        %4633 = vmatprep.subr.bf16.mxu0 0
        %4634 = vmatpush2.bf16.msra.mxu0 0
        %4635 = vmatprep.subr.bf16.mxu0 0
        %4636 = vmatpush2.bf16.msra.mxu0 0
        %4637 = vmatprep.subr.bf16.mxu0 0
        %4638 = vmatpush2.bf16.msra.mxu0 0
        %4639 = vmatprep.subr.bf16.mxu0 0
        %4640 = vmatpush2.bf16.msra.mxu0 0
        %4641 = vmatprep.subr.bf16.mxu0 0
        %4642 = vmatpush2.bf16.msra.mxu0 0
        %4643 = vmatprep.subr.bf16.mxu0 0
        %4644 = vmatpush2.bf16.msra.mxu0 0
        %4645 = vmatprep.mubr.bf16.mxu0 0
        %4646 = vmatmul.mubr.bf16.gmra.mxu0 %v4088
        %v4647 = vpop.f32.mrf.mxu0
        %v4648 = vadd.f32 %v4607, %v4647
        %v4649 = vpop.f32.mrf.mxu0
        %v4650 = vadd.f32 %v4609, %v4649
        %v4651 = vpop.f32.mrf.mxu0
        %v4652 = vpop.f32.mrf.mxu0
        %4653 = vdwg.mxu0
        %4654 = vmatprep.subr.bf16.mxu0 %v4411
        %4655 = vmatpush1.bf16.msra.mxu0 %v4410
        %4656 = vmatprep.subr.bf16.mxu0 %v4407
        %4657 = vmatpush1.bf16.msra.mxu0 %v4406
        %4658 = vmatprep.subr.bf16.mxu0 %v4403
        %4659 = vmatpush1.bf16.msra.mxu0 %v4402
        %4660 = vmatprep.subr.bf16.mxu0 %v4399
        %4661 = vmatpush1.bf16.msra.mxu0 %v4398
        %4662 = vmatprep.subr.bf16.mxu0 %v4395
        %4663 = vmatpush1.bf16.msra.mxu0 %v4394
        %4664 = vmatprep.subr.bf16.mxu0 %v4391
        %4665 = vmatpush1.bf16.msra.mxu0 %v4390
        %4666 = vmatprep.subr.bf16.mxu0 %v4387
        %4667 = vmatpush1.bf16.msra.mxu0 %v4386
        %4668 = vmatprep.subr.bf16.mxu0 %v4383
        %4669 = vmatpush1.bf16.msra.mxu0 %v4382
        %4670 = vmatprep.subr.bf16.mxu0 %v4443
        %4671 = vmatpush2.bf16.msra.mxu0 %v4442
        %4672 = vmatprep.subr.bf16.mxu0 %v4439
        %4673 = vmatpush2.bf16.msra.mxu0 %v4438
        %4674 = vmatprep.subr.bf16.mxu0 %v4435
        %4675 = vmatpush2.bf16.msra.mxu0 %v4434
        %4676 = vmatprep.subr.bf16.mxu0 %v4431
        %4677 = vmatpush2.bf16.msra.mxu0 %v4430
        %4678 = vmatprep.subr.bf16.mxu0 %v4427
        %4679 = vmatpush2.bf16.msra.mxu0 %v4426
        %4680 = vmatprep.subr.bf16.mxu0 %v4423
        %4681 = vmatpush2.bf16.msra.mxu0 %v4422
        %4682 = vmatprep.subr.bf16.mxu0 %v4419
        %4683 = vmatpush2.bf16.msra.mxu0 %v4418
        %4684 = vmatprep.subr.bf16.mxu0 %v4415
        %4685 = vmatpush2.bf16.msra.mxu0 %v4414
        %4686 = vmatprep.mubr.bf16.mxu0 %v4087
        %4687 = vmatmul.mubr.bf16.gmra.mxu0 %v4086
        %v4688 = vpop.f32.mrf.mxu0
        %v4689 = vadd.f32 0.0, %v4688
        %v4690 = vpop.f32.mrf.mxu0
        %v4691 = vadd.f32 0.0, %v4690
        %v4692 = vpop.f32.mrf.mxu0
        %v4693 = vpop.f32.mrf.mxu0
        %4694 = vdwg.mxu0
        %4695 = vmatprep.subr.bf16.mxu0 %v4475
        %4696 = vmatpush1.bf16.msra.mxu0 %v4474
        %4697 = vmatprep.subr.bf16.mxu0 %v4471
        %4698 = vmatpush1.bf16.msra.mxu0 %v4470
        %4699 = vmatprep.subr.bf16.mxu0 %v4467
        %4700 = vmatpush1.bf16.msra.mxu0 %v4466
        %4701 = vmatprep.subr.bf16.mxu0 %v4463
        %4702 = vmatpush1.bf16.msra.mxu0 %v4462
        %4703 = vmatprep.subr.bf16.mxu0 %v4459
        %4704 = vmatpush1.bf16.msra.mxu0 %v4458
        %4705 = vmatprep.subr.bf16.mxu0 %v4455
        %4706 = vmatpush1.bf16.msra.mxu0 %v4454
        %4707 = vmatprep.subr.bf16.mxu0 %v4451
        %4708 = vmatpush1.bf16.msra.mxu0 %v4450
        %4709 = vmatprep.subr.bf16.mxu0 %v4447
        %4710 = vmatpush1.bf16.msra.mxu0 %v4446
        %4711 = vmatprep.subr.bf16.mxu0 0
        %4712 = vmatpush2.bf16.msra.mxu0 0
        %4713 = vmatprep.subr.bf16.mxu0 0
        %4714 = vmatpush2.bf16.msra.mxu0 0
        %4715 = vmatprep.subr.bf16.mxu0 0
        %4716 = vmatpush2.bf16.msra.mxu0 0
        %4717 = vmatprep.subr.bf16.mxu0 0
        %4718 = vmatpush2.bf16.msra.mxu0 0
        %4719 = vmatprep.subr.bf16.mxu0 0
        %4720 = vmatpush2.bf16.msra.mxu0 0
        %4721 = vmatprep.subr.bf16.mxu0 0
        %4722 = vmatpush2.bf16.msra.mxu0 0
        %4723 = vmatprep.subr.bf16.mxu0 0
        %4724 = vmatpush2.bf16.msra.mxu0 0
        %4725 = vmatprep.subr.bf16.mxu0 0
        %4726 = vmatpush2.bf16.msra.mxu0 0
        %4727 = vmatprep.mubr.bf16.mxu0 0
        %4728 = vmatmul.mubr.bf16.gmra.mxu0 %v4088
        %v4729 = vpop.f32.mrf.mxu0
        %v4730 = vadd.f32 %v4689, %v4729
        %v4731 = vpop.f32.mrf.mxu0
        %v4732 = vadd.f32 %v4691, %v4731
        %v4733 = vpop.f32.mrf.mxu0
        %v4734 = vpop.f32.mrf.mxu0
        %4735 = vdwg.mxu0
        %v4736 = vadd.f32 %v3889, %v4648
        %v4737 = vadd.f32 %v3891, %v4650
        %v4738 = vadd.f32 %v3971, %v4730
        %v4739 = vadd.f32 %v3973, %v4732
        %v4740 = vld [vmem:[#allocation2] sm:$0xf8]
        %v4741 = vld [vmem:[#allocation2 + $0x8] sm:$0xf8]
        %v4742 = vld [vmem:[#allocation2 + $0x10] sm:$0xf8]
        %v4743 = vld [vmem:[#allocation2 + $0x18] sm:$0x7]
        %v4744 = vld [vmem:[#allocation2 + $0x20] sm:$0x7]
        %v4745 = vld [vmem:[#allocation2 + $0x28] sm:$0x7]
        %v4746 = vpack.c.bf16 %v4743, %v4740
        %v4747 = vpack.c.bf16 %v4744, %v4741
        %v4748 = vpack.c.bf16 %v4745, %v4742
        %s4749 = scalar_lea.vmem [#allocation8], 2304
        %v4750 = vld [vmem:[%s4749] sm:$0xff]
        %v4751 = vld [vmem:[%s4749 + $0x8] sm:$0xff]
        %v4752 = vld [vmem:[%s4749 + $0x10] sm:$0xff]
        %v4753 = vld [vmem:[%s4749 + $0x18] sm:$0xff]
        %v4754 = vld [vmem:[%s4749 + $0x20] sm:$0xff]
        %v4755 = vld [vmem:[%s4749 + $0x28] sm:$0xff]
        %v4756 = vld [vmem:[%s4749 + $0x30] sm:$0xff]
        %v4757 = vld [vmem:[%s4749 + $0x38] sm:$0xff]
        %v4758 = vld [vmem:[%s4749 + $0x40] sm:$0xff]
        %v4759 = vld [vmem:[%s4749 + $0x48] sm:$0xff]
        %v4760 = vld [vmem:[%s4749 + $0x50] sm:$0xff]
        %v4761 = vld [vmem:[%s4749 + $0x58] sm:$0xff]
        %v4762 = vld [vmem:[%s4749 + $0x60] sm:$0xff]
        %v4763 = vld [vmem:[%s4749 + $0x68] sm:$0xff]
        %v4764 = vld [vmem:[%s4749 + $0x70] sm:$0xff]
        %v4765 = vld [vmem:[%s4749 + $0x78] sm:$0xff]
        %v4766 = vld [vmem:[%s4749 + $0x80] sm:$0xff]
        %v4767 = vld [vmem:[%s4749 + $0x88] sm:$0xff]
        %v4768 = vld [vmem:[%s4749 + $0x90] sm:$0xff]
        %v4769 = vld [vmem:[%s4749 + $0x98] sm:$0xff]
        %v4770 = vld [vmem:[%s4749 + $0xa0] sm:$0xff]
        %v4771 = vld [vmem:[%s4749 + $0xa8] sm:$0xff]
        %v4772 = vld [vmem:[%s4749 + $0xb0] sm:$0xff]
        %v4773 = vld [vmem:[%s4749 + $0xb8] sm:$0xff]
        %v4774 = vld [vmem:[%s4749 + $0xc0] sm:$0xff]
        %v4775 = vld [vmem:[%s4749 + $0xc8] sm:$0xff]
        %v4776 = vld [vmem:[%s4749 + $0xd0] sm:$0xff]
        %v4777 = vld [vmem:[%s4749 + $0xd8] sm:$0xff]
        %v4778 = vld [vmem:[%s4749 + $0xe0] sm:$0xff]
        %v4779 = vld [vmem:[%s4749 + $0xe8] sm:$0xff]
        %v4780 = vld [vmem:[%s4749 + $0xf0] sm:$0xff]
        %v4781 = vld [vmem:[%s4749 + $0xf8] sm:$0xff]
        %v4782 = vld [vmem:[%s4749 + $0x100] sm:$0xff]
        %v4783 = vld [vmem:[%s4749 + $0x108] sm:$0xff]
        %v4784 = vld [vmem:[%s4749 + $0x110] sm:$0xff]
        %v4785 = vld [vmem:[%s4749 + $0x118] sm:$0xff]
        %v4786 = vld [vmem:[%s4749 + $0x120] sm:$0xff]
        %v4787 = vld [vmem:[%s4749 + $0x128] sm:$0xff]
        %v4788 = vld [vmem:[%s4749 + $0x130] sm:$0xff]
        %v4789 = vld [vmem:[%s4749 + $0x138] sm:$0xff]
        %v4790 = vld [vmem:[%s4749 + $0x140] sm:$0xff]
        %v4791 = vld [vmem:[%s4749 + $0x148] sm:$0xff]
        %v4792 = vld [vmem:[%s4749 + $0x150] sm:$0xff]
        %v4793 = vld [vmem:[%s4749 + $0x158] sm:$0xff]
        %v4794 = vld [vmem:[%s4749 + $0x160] sm:$0xff]
        %v4795 = vld [vmem:[%s4749 + $0x168] sm:$0xff]
        %v4796 = vld [vmem:[%s4749 + $0x170] sm:$0xff]
        %v4797 = vld [vmem:[%s4749 + $0x178] sm:$0xff]
        %v4798 = vld [vmem:[%s4749 + $0x180] sm:$0xff]
        %v4799 = vld [vmem:[%s4749 + $0x188] sm:$0xff]
        %v4800 = vld [vmem:[%s4749 + $0x190] sm:$0xff]
        %v4801 = vld [vmem:[%s4749 + $0x198] sm:$0xff]
        %v4802 = vld [vmem:[%s4749 + $0x1a0] sm:$0xff]
        %v4803 = vld [vmem:[%s4749 + $0x1a8] sm:$0xff]
        %v4804 = vld [vmem:[%s4749 + $0x1b0] sm:$0xff]
        %v4805 = vld [vmem:[%s4749 + $0x1b8] sm:$0xff]
        %v4806 = vld [vmem:[%s4749 + $0x1c0] sm:$0xff]
        %v4807 = vld [vmem:[%s4749 + $0x1c8] sm:$0xff]
        %v4808 = vld [vmem:[%s4749 + $0x1d0] sm:$0xff]
        %v4809 = vld [vmem:[%s4749 + $0x1d8] sm:$0xff]
        %v4810 = vld [vmem:[%s4749 + $0x1e0] sm:$0xff]
        %v4811 = vld [vmem:[%s4749 + $0x1e8] sm:$0xff]
        %v4812 = vld [vmem:[%s4749 + $0x1f0] sm:$0xff]
        %v4813 = vld [vmem:[%s4749 + $0x1f8] sm:$0xff]
        %v4814 = vld [vmem:[%s4749 + $0x200] sm:$0xff]
        %v4815 = vld [vmem:[%s4749 + $0x208] sm:$0xff]
        %v4816 = vld [vmem:[%s4749 + $0x210] sm:$0xff]
        %v4817 = vld [vmem:[%s4749 + $0x218] sm:$0xff]
        %v4818 = vld [vmem:[%s4749 + $0x220] sm:$0xff]
        %v4819 = vld [vmem:[%s4749 + $0x228] sm:$0xff]
        %v4820 = vld [vmem:[%s4749 + $0x230] sm:$0xff]
        %v4821 = vld [vmem:[%s4749 + $0x238] sm:$0xff]
        %v4822 = vld [vmem:[%s4749 + $0x240] sm:$0xff]
        %v4823 = vld [vmem:[%s4749 + $0x248] sm:$0xff]
        %v4824 = vld [vmem:[%s4749 + $0x250] sm:$0xff]
        %v4825 = vld [vmem:[%s4749 + $0x258] sm:$0xff]
        %v4826 = vld [vmem:[%s4749 + $0x260] sm:$0xff]
        %v4827 = vld [vmem:[%s4749 + $0x268] sm:$0xff]
        %v4828 = vld [vmem:[%s4749 + $0x270] sm:$0xff]
        %v4829 = vld [vmem:[%s4749 + $0x278] sm:$0xff]
        %v4830 = vld [vmem:[%s4749 + $0x280] sm:$0xff]
        %v4831 = vld [vmem:[%s4749 + $0x288] sm:$0xff]
        %v4832 = vld [vmem:[%s4749 + $0x290] sm:$0xff]
        %v4833 = vld [vmem:[%s4749 + $0x298] sm:$0xff]
        %v4834 = vld [vmem:[%s4749 + $0x2a0] sm:$0xff]
        %v4835 = vld [vmem:[%s4749 + $0x2a8] sm:$0xff]
        %v4836 = vld [vmem:[%s4749 + $0x2b0] sm:$0xff]
        %v4837 = vld [vmem:[%s4749 + $0x2b8] sm:$0xff]
        %v4838 = vld [vmem:[%s4749 + $0x2c0] sm:$0xff]
        %v4839 = vld [vmem:[%s4749 + $0x2c8] sm:$0xff]
        %v4840 = vld [vmem:[%s4749 + $0x2d0] sm:$0xff]
        %v4841 = vld [vmem:[%s4749 + $0x2d8] sm:$0xff]
        %v4842 = vld [vmem:[%s4749 + $0x2e0] sm:$0xff]
        %v4843 = vld [vmem:[%s4749 + $0x2e8] sm:$0xff]
        %v4844 = vld [vmem:[%s4749 + $0x2f0] sm:$0xff]
        %v4845 = vld [vmem:[%s4749 + $0x2f8] sm:$0xff]
        %v4847 = vshrl.u32 %v4746, 16
        %v4849 = vrot.slane %v4847, 1
        %v4850 = vshll.u32 %v4746, 16
        %v4852 = vrot.slane %v4850, 2
        %v4853 = vor.u32 %v4849, %v4852
        %v4855 = vshrl.u32 %v4747, 16
        %v4857 = vrot.slane %v4855, 1
        %v4858 = vshll.u32 %v4747, 16
        %v4860 = vrot.slane %v4858, 2
        %v4861 = vor.u32 %v4857, %v4860
        %v4863 = vshrl.u32 %v4748, 16
        %v4865 = vrot.slane %v4863, 1
        %v4866 = vshll.u32 %v4748, 16
        %v4868 = vrot.slane %v4866, 2
        %v4869 = vor.u32 %v4865, %v4868
        %v4969 = vunpack.c.l.b16 %v4750
        %v4970 = vunpack.c.h.b16 %v4750
        %v4971 = vunpack.c.l.b16 %v4751
        %v4972 = vunpack.c.h.b16 %v4751
        %v4973 = vunpack.c.l.b16 %v4752
        %v4974 = vunpack.c.h.b16 %v4752
        %v4975 = vunpack.c.l.b16 %v4753
        %v4976 = vunpack.c.h.b16 %v4753
        %v4977 = vunpack.c.l.b16 %v4754
        %v4978 = vunpack.c.h.b16 %v4754
        %v4979 = vunpack.c.l.b16 %v4755
        %v4980 = vunpack.c.h.b16 %v4755
        %v4981 = vunpack.c.l.b16 %v4756
        %v4982 = vunpack.c.h.b16 %v4756
        %v4983 = vunpack.c.l.b16 %v4757
        %v4984 = vunpack.c.h.b16 %v4757
        %v4985 = vunpack.c.l.b16 %v4758
        %v4986 = vunpack.c.h.b16 %v4758
        %v4987 = vunpack.c.l.b16 %v4759
        %v4988 = vunpack.c.h.b16 %v4759
        %v4989 = vunpack.c.l.b16 %v4760
        %v4990 = vunpack.c.h.b16 %v4760
        %v4991 = vunpack.c.l.b16 %v4761
        %v4992 = vunpack.c.h.b16 %v4761
        %v4993 = vunpack.c.l.b16 %v4762
        %v4994 = vunpack.c.h.b16 %v4762
        %v4995 = vunpack.c.l.b16 %v4763
        %v4996 = vunpack.c.h.b16 %v4763
        %v4997 = vunpack.c.l.b16 %v4764
        %v4998 = vunpack.c.h.b16 %v4764
        %v4999 = vunpack.c.l.b16 %v4765
        %v5000 = vunpack.c.h.b16 %v4765
        %v5001 = vunpack.c.l.b16 %v4766
        %v5002 = vunpack.c.h.b16 %v4766
        %v5003 = vunpack.c.l.b16 %v4767
        %v5004 = vunpack.c.h.b16 %v4767
        %v5005 = vunpack.c.l.b16 %v4768
        %v5006 = vunpack.c.h.b16 %v4768
        %v5007 = vunpack.c.l.b16 %v4769
        %v5008 = vunpack.c.h.b16 %v4769
        %v5009 = vunpack.c.l.b16 %v4770
        %v5010 = vunpack.c.h.b16 %v4770
        %v5011 = vunpack.c.l.b16 %v4771
        %v5012 = vunpack.c.h.b16 %v4771
        %v5013 = vunpack.c.l.b16 %v4772
        %v5014 = vunpack.c.h.b16 %v4772
        %v5015 = vunpack.c.l.b16 %v4773
        %v5016 = vunpack.c.h.b16 %v4773
        %v5017 = vunpack.c.l.b16 %v4774
        %v5018 = vunpack.c.h.b16 %v4774
        %v5019 = vunpack.c.l.b16 %v4775
        %v5020 = vunpack.c.h.b16 %v4775
        %v5021 = vunpack.c.l.b16 %v4776
        %v5022 = vunpack.c.h.b16 %v4776
        %v5023 = vunpack.c.l.b16 %v4777
        %v5024 = vunpack.c.h.b16 %v4777
        %v5025 = vunpack.c.l.b16 %v4778
        %v5026 = vunpack.c.h.b16 %v4778
        %v5027 = vunpack.c.l.b16 %v4779
        %v5028 = vunpack.c.h.b16 %v4779
        %v5029 = vunpack.c.l.b16 %v4780
        %v5030 = vunpack.c.h.b16 %v4780
        %v5031 = vunpack.c.l.b16 %v4781
        %v5032 = vunpack.c.h.b16 %v4781
        %v5033 = vunpack.c.l.b16 %v4782
        %v5034 = vunpack.c.h.b16 %v4782
        %v5035 = vunpack.c.l.b16 %v4783
        %v5036 = vunpack.c.h.b16 %v4783
        %v5037 = vunpack.c.l.b16 %v4784
        %v5038 = vunpack.c.h.b16 %v4784
        %v5039 = vunpack.c.l.b16 %v4785
        %v5040 = vunpack.c.h.b16 %v4785
        %v5041 = vunpack.c.l.b16 %v4786
        %v5042 = vunpack.c.h.b16 %v4786
        %v5043 = vunpack.c.l.b16 %v4787
        %v5044 = vunpack.c.h.b16 %v4787
        %v5045 = vunpack.c.l.b16 %v4788
        %v5046 = vunpack.c.h.b16 %v4788
        %v5047 = vunpack.c.l.b16 %v4789
        %v5048 = vunpack.c.h.b16 %v4789
        %v5049 = vunpack.c.l.b16 %v4790
        %v5050 = vunpack.c.h.b16 %v4790
        %v5051 = vunpack.c.l.b16 %v4791
        %v5052 = vunpack.c.h.b16 %v4791
        %v5053 = vunpack.c.l.b16 %v4792
        %v5054 = vunpack.c.h.b16 %v4792
        %v5055 = vunpack.c.l.b16 %v4793
        %v5056 = vunpack.c.h.b16 %v4793
        %v5057 = vunpack.c.l.b16 %v4794
        %v5058 = vunpack.c.h.b16 %v4794
        %v5059 = vunpack.c.l.b16 %v4795
        %v5060 = vunpack.c.h.b16 %v4795
        %v5061 = vunpack.c.l.b16 %v4796
        %v5062 = vunpack.c.h.b16 %v4796
        %v5063 = vunpack.c.l.b16 %v4797
        %v5064 = vunpack.c.h.b16 %v4797
        %v5065 = vunpack.c.l.b16 %v4798
        %v5066 = vunpack.c.h.b16 %v4798
        %v5067 = vunpack.c.l.b16 %v4799
        %v5068 = vunpack.c.h.b16 %v4799
        %v5069 = vunpack.c.l.b16 %v4800
        %v5070 = vunpack.c.h.b16 %v4800
        %v5071 = vunpack.c.l.b16 %v4801
        %v5072 = vunpack.c.h.b16 %v4801
        %v5073 = vunpack.c.l.b16 %v4802
        %v5074 = vunpack.c.h.b16 %v4802
        %v5075 = vunpack.c.l.b16 %v4803
        %v5076 = vunpack.c.h.b16 %v4803
        %v5077 = vunpack.c.l.b16 %v4804
        %v5078 = vunpack.c.h.b16 %v4804
        %v5079 = vunpack.c.l.b16 %v4805
        %v5080 = vunpack.c.h.b16 %v4805
        %v5081 = vunpack.c.l.b16 %v4806
        %v5082 = vunpack.c.h.b16 %v4806
        %v5083 = vunpack.c.l.b16 %v4807
        %v5084 = vunpack.c.h.b16 %v4807
        %v5085 = vunpack.c.l.b16 %v4808
        %v5086 = vunpack.c.h.b16 %v4808
        %v5087 = vunpack.c.l.b16 %v4809
        %v5088 = vunpack.c.h.b16 %v4809
        %v5089 = vunpack.c.l.b16 %v4810
        %v5090 = vunpack.c.h.b16 %v4810
        %v5091 = vunpack.c.l.b16 %v4811
        %v5092 = vunpack.c.h.b16 %v4811
        %v5093 = vunpack.c.l.b16 %v4812
        %v5094 = vunpack.c.h.b16 %v4812
        %v5095 = vunpack.c.l.b16 %v4813
        %v5096 = vunpack.c.h.b16 %v4813
        %v5097 = vunpack.c.l.b16 %v4814
        %v5098 = vunpack.c.h.b16 %v4814
        %v5099 = vunpack.c.l.b16 %v4815
        %v5100 = vunpack.c.h.b16 %v4815
        %v5101 = vunpack.c.l.b16 %v4816
        %v5102 = vunpack.c.h.b16 %v4816
        %v5103 = vunpack.c.l.b16 %v4817
        %v5104 = vunpack.c.h.b16 %v4817
        %v5105 = vunpack.c.l.b16 %v4818
        %v5106 = vunpack.c.h.b16 %v4818
        %v5107 = vunpack.c.l.b16 %v4819
        %v5108 = vunpack.c.h.b16 %v4819
        %v5109 = vunpack.c.l.b16 %v4820
        %v5110 = vunpack.c.h.b16 %v4820
        %v5111 = vunpack.c.l.b16 %v4821
        %v5112 = vunpack.c.h.b16 %v4821
        %v5113 = vunpack.c.l.b16 %v4822
        %v5114 = vunpack.c.h.b16 %v4822
        %v5115 = vunpack.c.l.b16 %v4823
        %v5116 = vunpack.c.h.b16 %v4823
        %v5117 = vunpack.c.l.b16 %v4824
        %v5118 = vunpack.c.h.b16 %v4824
        %v5119 = vunpack.c.l.b16 %v4825
        %v5120 = vunpack.c.h.b16 %v4825
        %v5121 = vunpack.c.l.b16 %v4826
        %v5122 = vunpack.c.h.b16 %v4826
        %v5123 = vunpack.c.l.b16 %v4827
        %v5124 = vunpack.c.h.b16 %v4827
        %v5125 = vunpack.c.l.b16 %v4828
        %v5126 = vunpack.c.h.b16 %v4828
        %v5127 = vunpack.c.l.b16 %v4829
        %v5128 = vunpack.c.h.b16 %v4829
        %v5129 = vunpack.c.l.b16 %v4830
        %v5130 = vunpack.c.h.b16 %v4830
        %v5131 = vunpack.c.l.b16 %v4831
        %v5132 = vunpack.c.h.b16 %v4831
        %v5133 = vunpack.c.l.b16 %v4832
        %v5134 = vunpack.c.h.b16 %v4832
        %v5135 = vunpack.c.l.b16 %v4833
        %v5136 = vunpack.c.h.b16 %v4833
        %v5137 = vunpack.c.l.b16 %v4834
        %v5138 = vunpack.c.h.b16 %v4834
        %v5139 = vunpack.c.l.b16 %v4835
        %v5140 = vunpack.c.h.b16 %v4835
        %v5141 = vunpack.c.l.b16 %v4836
        %v5142 = vunpack.c.h.b16 %v4836
        %v5143 = vunpack.c.l.b16 %v4837
        %v5144 = vunpack.c.h.b16 %v4837
        %v5145 = vunpack.c.l.b16 %v4838
        %v5146 = vunpack.c.h.b16 %v4838
        %v5147 = vunpack.c.l.b16 %v4839
        %v5148 = vunpack.c.h.b16 %v4839
        %v5149 = vunpack.c.l.b16 %v4840
        %v5150 = vunpack.c.h.b16 %v4840
        %v5151 = vunpack.c.l.b16 %v4841
        %v5152 = vunpack.c.h.b16 %v4841
        %v5153 = vunpack.c.l.b16 %v4842
        %v5154 = vunpack.c.h.b16 %v4842
        %v5155 = vunpack.c.l.b16 %v4843
        %v5156 = vunpack.c.h.b16 %v4843
        %v5157 = vunpack.c.l.b16 %v4844
        %v5158 = vunpack.c.h.b16 %v4844
        %v5159 = vunpack.c.l.b16 %v4845
        %v5160 = vunpack.c.h.b16 %v4845
        %v5161 = vpack.c.b16 %v4973, %v4969
        %v5162 = vpack.c.b16 %v4974, %v4970
        %v5163 = vpack.c.b16 %v4975, %v4971
        %v5164 = vpack.c.b16 %v4976, %v4972
        %v5165 = vpack.c.b16 %v4981, %v4977
        %v5166 = vpack.c.b16 %v4982, %v4978
        %v5167 = vpack.c.b16 %v4983, %v4979
        %v5168 = vpack.c.b16 %v4984, %v4980
        %v5169 = vpack.c.b16 %v4989, %v4985
        %v5170 = vpack.c.b16 %v4990, %v4986
        %v5171 = vpack.c.b16 %v4991, %v4987
        %v5172 = vpack.c.b16 %v4992, %v4988
        %v5173 = vpack.c.b16 %v4997, %v4993
        %v5174 = vpack.c.b16 %v4998, %v4994
        %v5175 = vpack.c.b16 %v4999, %v4995
        %v5176 = vpack.c.b16 %v5000, %v4996
        %v5177 = vpack.c.b16 %v5005, %v5001
        %v5178 = vpack.c.b16 %v5006, %v5002
        %v5179 = vpack.c.b16 %v5007, %v5003
        %v5180 = vpack.c.b16 %v5008, %v5004
        %v5181 = vpack.c.b16 %v5013, %v5009
        %v5182 = vpack.c.b16 %v5014, %v5010
        %v5183 = vpack.c.b16 %v5015, %v5011
        %v5184 = vpack.c.b16 %v5016, %v5012
        %v5185 = vpack.c.b16 %v5021, %v5017
        %v5186 = vpack.c.b16 %v5022, %v5018
        %v5187 = vpack.c.b16 %v5023, %v5019
        %v5188 = vpack.c.b16 %v5024, %v5020
        %v5189 = vpack.c.b16 %v5029, %v5025
        %v5190 = vpack.c.b16 %v5030, %v5026
        %v5191 = vpack.c.b16 %v5031, %v5027
        %v5192 = vpack.c.b16 %v5032, %v5028
        %v5193 = vpack.c.b16 %v5037, %v5033
        %v5194 = vpack.c.b16 %v5038, %v5034
        %v5195 = vpack.c.b16 %v5039, %v5035
        %v5196 = vpack.c.b16 %v5040, %v5036
        %v5197 = vpack.c.b16 %v5045, %v5041
        %v5198 = vpack.c.b16 %v5046, %v5042
        %v5199 = vpack.c.b16 %v5047, %v5043
        %v5200 = vpack.c.b16 %v5048, %v5044
        %v5201 = vpack.c.b16 %v5053, %v5049
        %v5202 = vpack.c.b16 %v5054, %v5050
        %v5203 = vpack.c.b16 %v5055, %v5051
        %v5204 = vpack.c.b16 %v5056, %v5052
        %v5205 = vpack.c.b16 %v5061, %v5057
        %v5206 = vpack.c.b16 %v5062, %v5058
        %v5207 = vpack.c.b16 %v5063, %v5059
        %v5208 = vpack.c.b16 %v5064, %v5060
        %v5209 = vpack.c.b16 %v5069, %v5065
        %v5210 = vpack.c.b16 %v5070, %v5066
        %v5211 = vpack.c.b16 %v5071, %v5067
        %v5212 = vpack.c.b16 %v5072, %v5068
        %v5213 = vpack.c.b16 %v5077, %v5073
        %v5214 = vpack.c.b16 %v5078, %v5074
        %v5215 = vpack.c.b16 %v5079, %v5075
        %v5216 = vpack.c.b16 %v5080, %v5076
        %v5217 = vpack.c.b16 %v5085, %v5081
        %v5218 = vpack.c.b16 %v5086, %v5082
        %v5219 = vpack.c.b16 %v5087, %v5083
        %v5220 = vpack.c.b16 %v5088, %v5084
        %v5221 = vpack.c.b16 %v5093, %v5089
        %v5222 = vpack.c.b16 %v5094, %v5090
        %v5223 = vpack.c.b16 %v5095, %v5091
        %v5224 = vpack.c.b16 %v5096, %v5092
        %v5225 = vpack.c.b16 %v5101, %v5097
        %v5226 = vpack.c.b16 %v5102, %v5098
        %v5227 = vpack.c.b16 %v5103, %v5099
        %v5228 = vpack.c.b16 %v5104, %v5100
        %v5229 = vpack.c.b16 %v5109, %v5105
        %v5230 = vpack.c.b16 %v5110, %v5106
        %v5231 = vpack.c.b16 %v5111, %v5107
        %v5232 = vpack.c.b16 %v5112, %v5108
        %v5233 = vpack.c.b16 %v5117, %v5113
        %v5234 = vpack.c.b16 %v5118, %v5114
        %v5235 = vpack.c.b16 %v5119, %v5115
        %v5236 = vpack.c.b16 %v5120, %v5116
        %v5237 = vpack.c.b16 %v5125, %v5121
        %v5238 = vpack.c.b16 %v5126, %v5122
        %v5239 = vpack.c.b16 %v5127, %v5123
        %v5240 = vpack.c.b16 %v5128, %v5124
        %v5241 = vpack.c.b16 %v5133, %v5129
        %v5242 = vpack.c.b16 %v5134, %v5130
        %v5243 = vpack.c.b16 %v5135, %v5131
        %v5244 = vpack.c.b16 %v5136, %v5132
        %v5245 = vpack.c.b16 %v5141, %v5137
        %v5246 = vpack.c.b16 %v5142, %v5138
        %v5247 = vpack.c.b16 %v5143, %v5139
        %v5248 = vpack.c.b16 %v5144, %v5140
        %v5249 = vpack.c.b16 %v5149, %v5145
        %v5250 = vpack.c.b16 %v5150, %v5146
        %v5251 = vpack.c.b16 %v5151, %v5147
        %v5252 = vpack.c.b16 %v5152, %v5148
        %v5253 = vpack.c.b16 %v5157, %v5153
        %v5254 = vpack.c.b16 %v5158, %v5154
        %v5255 = vpack.c.b16 %v5159, %v5155
        %v5256 = vpack.c.b16 %v5160, %v5156
        %5353 = vmatprep.subr.bf16.mxu0 %v5190
        %5354 = vmatpush1.bf16.msra.mxu0 %v5189
        %5355 = vmatprep.subr.bf16.mxu0 %v5186
        %5356 = vmatpush1.bf16.msra.mxu0 %v5185
        %5357 = vmatprep.subr.bf16.mxu0 %v5182
        %5358 = vmatpush1.bf16.msra.mxu0 %v5181
        %5359 = vmatprep.subr.bf16.mxu0 %v5178
        %5360 = vmatpush1.bf16.msra.mxu0 %v5177
        %5361 = vmatprep.subr.bf16.mxu0 %v5174
        %5362 = vmatpush1.bf16.msra.mxu0 %v5173
        %5363 = vmatprep.subr.bf16.mxu0 %v5170
        %5364 = vmatpush1.bf16.msra.mxu0 %v5169
        %5365 = vmatprep.subr.bf16.mxu0 %v5166
        %5366 = vmatpush1.bf16.msra.mxu0 %v5165
        %5367 = vmatprep.subr.bf16.mxu0 %v5162
        %5368 = vmatpush1.bf16.msra.mxu0 %v5161
        %5369 = vmatprep.subr.bf16.mxu0 %v5222
        %5370 = vmatpush2.bf16.msra.mxu0 %v5221
        %5371 = vmatprep.subr.bf16.mxu0 %v5218
        %5372 = vmatpush2.bf16.msra.mxu0 %v5217
        %5373 = vmatprep.subr.bf16.mxu0 %v5214
        %5374 = vmatpush2.bf16.msra.mxu0 %v5213
        %5375 = vmatprep.subr.bf16.mxu0 %v5210
        %5376 = vmatpush2.bf16.msra.mxu0 %v5209
        %5377 = vmatprep.subr.bf16.mxu0 %v5206
        %5378 = vmatpush2.bf16.msra.mxu0 %v5205
        %5379 = vmatprep.subr.bf16.mxu0 %v5202
        %5380 = vmatpush2.bf16.msra.mxu0 %v5201
        %5381 = vmatprep.subr.bf16.mxu0 %v5198
        %5382 = vmatpush2.bf16.msra.mxu0 %v5197
        %5383 = vmatprep.subr.bf16.mxu0 %v5194
        %5384 = vmatpush2.bf16.msra.mxu0 %v5193
        %5385 = vmatprep.mubr.bf16.mxu0 %v4861
        %5386 = vmatmul.mubr.bf16.gmra.mxu0 %v4853
        %v5387 = vpop.f32.mrf.mxu0
        %v5388 = vadd.f32 0.0, %v5387
        %v5389 = vpop.f32.mrf.mxu0
        %v5390 = vadd.f32 0.0, %v5389
        %v5391 = vpop.f32.mrf.mxu0
        %v5392 = vpop.f32.mrf.mxu0
        %5393 = vdwg.mxu0
        %5394 = vmatprep.subr.bf16.mxu0 %v5254
        %5395 = vmatpush1.bf16.msra.mxu0 %v5253
        %5396 = vmatprep.subr.bf16.mxu0 %v5250
        %5397 = vmatpush1.bf16.msra.mxu0 %v5249
        %5398 = vmatprep.subr.bf16.mxu0 %v5246
        %5399 = vmatpush1.bf16.msra.mxu0 %v5245
        %5400 = vmatprep.subr.bf16.mxu0 %v5242
        %5401 = vmatpush1.bf16.msra.mxu0 %v5241
        %5402 = vmatprep.subr.bf16.mxu0 %v5238
        %5403 = vmatpush1.bf16.msra.mxu0 %v5237
        %5404 = vmatprep.subr.bf16.mxu0 %v5234
        %5405 = vmatpush1.bf16.msra.mxu0 %v5233
        %5406 = vmatprep.subr.bf16.mxu0 %v5230
        %5407 = vmatpush1.bf16.msra.mxu0 %v5229
        %5408 = vmatprep.subr.bf16.mxu0 %v5226
        %5409 = vmatpush1.bf16.msra.mxu0 %v5225
        %5410 = vmatprep.subr.bf16.mxu0 0
        %5411 = vmatpush2.bf16.msra.mxu0 0
        %5412 = vmatprep.subr.bf16.mxu0 0
        %5413 = vmatpush2.bf16.msra.mxu0 0
        %5414 = vmatprep.subr.bf16.mxu0 0
        %5415 = vmatpush2.bf16.msra.mxu0 0
        %5416 = vmatprep.subr.bf16.mxu0 0
        %5417 = vmatpush2.bf16.msra.mxu0 0
        %5418 = vmatprep.subr.bf16.mxu0 0
        %5419 = vmatpush2.bf16.msra.mxu0 0
        %5420 = vmatprep.subr.bf16.mxu0 0
        %5421 = vmatpush2.bf16.msra.mxu0 0
        %5422 = vmatprep.subr.bf16.mxu0 0
        %5423 = vmatpush2.bf16.msra.mxu0 0
        %5424 = vmatprep.subr.bf16.mxu0 0
        %5425 = vmatpush2.bf16.msra.mxu0 0
        %5426 = vmatprep.mubr.bf16.mxu0 0
        %5427 = vmatmul.mubr.bf16.gmra.mxu0 %v4869
        %v5428 = vpop.f32.mrf.mxu0
        %v5429 = vadd.f32 %v5388, %v5428
        %v5430 = vpop.f32.mrf.mxu0
        %v5431 = vadd.f32 %v5390, %v5430
        %v5432 = vpop.f32.mrf.mxu0
        %v5433 = vpop.f32.mrf.mxu0
        %5434 = vdwg.mxu0
        %5435 = vmatprep.subr.bf16.mxu0 %v5192
        %5436 = vmatpush1.bf16.msra.mxu0 %v5191
        %5437 = vmatprep.subr.bf16.mxu0 %v5188
        %5438 = vmatpush1.bf16.msra.mxu0 %v5187
        %5439 = vmatprep.subr.bf16.mxu0 %v5184
        %5440 = vmatpush1.bf16.msra.mxu0 %v5183
        %5441 = vmatprep.subr.bf16.mxu0 %v5180
        %5442 = vmatpush1.bf16.msra.mxu0 %v5179
        %5443 = vmatprep.subr.bf16.mxu0 %v5176
        %5444 = vmatpush1.bf16.msra.mxu0 %v5175
        %5445 = vmatprep.subr.bf16.mxu0 %v5172
        %5446 = vmatpush1.bf16.msra.mxu0 %v5171
        %5447 = vmatprep.subr.bf16.mxu0 %v5168
        %5448 = vmatpush1.bf16.msra.mxu0 %v5167
        %5449 = vmatprep.subr.bf16.mxu0 %v5164
        %5450 = vmatpush1.bf16.msra.mxu0 %v5163
        %5451 = vmatprep.subr.bf16.mxu0 %v5224
        %5452 = vmatpush2.bf16.msra.mxu0 %v5223
        %5453 = vmatprep.subr.bf16.mxu0 %v5220
        %5454 = vmatpush2.bf16.msra.mxu0 %v5219
        %5455 = vmatprep.subr.bf16.mxu0 %v5216
        %5456 = vmatpush2.bf16.msra.mxu0 %v5215
        %5457 = vmatprep.subr.bf16.mxu0 %v5212
        %5458 = vmatpush2.bf16.msra.mxu0 %v5211
        %5459 = vmatprep.subr.bf16.mxu0 %v5208
        %5460 = vmatpush2.bf16.msra.mxu0 %v5207
        %5461 = vmatprep.subr.bf16.mxu0 %v5204
        %5462 = vmatpush2.bf16.msra.mxu0 %v5203
        %5463 = vmatprep.subr.bf16.mxu0 %v5200
        %5464 = vmatpush2.bf16.msra.mxu0 %v5199
        %5465 = vmatprep.subr.bf16.mxu0 %v5196
        %5466 = vmatpush2.bf16.msra.mxu0 %v5195
        %5467 = vmatprep.mubr.bf16.mxu0 %v4861
        %5468 = vmatmul.mubr.bf16.gmra.mxu0 %v4853
        %v5469 = vpop.f32.mrf.mxu0
        %v5470 = vadd.f32 0.0, %v5469
        %v5471 = vpop.f32.mrf.mxu0
        %v5472 = vadd.f32 0.0, %v5471
        %v5473 = vpop.f32.mrf.mxu0
        %v5474 = vpop.f32.mrf.mxu0
        %5475 = vdwg.mxu0
        %5476 = vmatprep.subr.bf16.mxu0 %v5256
        %5477 = vmatpush1.bf16.msra.mxu0 %v5255
        %5478 = vmatprep.subr.bf16.mxu0 %v5252
        %5479 = vmatpush1.bf16.msra.mxu0 %v5251
        %5480 = vmatprep.subr.bf16.mxu0 %v5248
        %5481 = vmatpush1.bf16.msra.mxu0 %v5247
        %5482 = vmatprep.subr.bf16.mxu0 %v5244
        %5483 = vmatpush1.bf16.msra.mxu0 %v5243
        %5484 = vmatprep.subr.bf16.mxu0 %v5240
        %5485 = vmatpush1.bf16.msra.mxu0 %v5239
        %5486 = vmatprep.subr.bf16.mxu0 %v5236
        %5487 = vmatpush1.bf16.msra.mxu0 %v5235
        %5488 = vmatprep.subr.bf16.mxu0 %v5232
        %5489 = vmatpush1.bf16.msra.mxu0 %v5231
        %5490 = vmatprep.subr.bf16.mxu0 %v5228
        %5491 = vmatpush1.bf16.msra.mxu0 %v5227
        %5492 = vmatprep.subr.bf16.mxu0 0
        %5493 = vmatpush2.bf16.msra.mxu0 0
        %5494 = vmatprep.subr.bf16.mxu0 0
        %5495 = vmatpush2.bf16.msra.mxu0 0
        %5496 = vmatprep.subr.bf16.mxu0 0
        %5497 = vmatpush2.bf16.msra.mxu0 0
        %5498 = vmatprep.subr.bf16.mxu0 0
        %5499 = vmatpush2.bf16.msra.mxu0 0
        %5500 = vmatprep.subr.bf16.mxu0 0
        %5501 = vmatpush2.bf16.msra.mxu0 0
        %5502 = vmatprep.subr.bf16.mxu0 0
        %5503 = vmatpush2.bf16.msra.mxu0 0
        %5504 = vmatprep.subr.bf16.mxu0 0
        %5505 = vmatpush2.bf16.msra.mxu0 0
        %5506 = vmatprep.subr.bf16.mxu0 0
        %5507 = vmatpush2.bf16.msra.mxu0 0
        %5508 = vmatprep.mubr.bf16.mxu0 0
        %5509 = vmatmul.mubr.bf16.gmra.mxu0 %v4869
        %v5510 = vpop.f32.mrf.mxu0
        %v5511 = vadd.f32 %v5470, %v5510
        %v5512 = vpop.f32.mrf.mxu0
        %v5513 = vadd.f32 %v5472, %v5512
        %v5514 = vpop.f32.mrf.mxu0
        %v5515 = vpop.f32.mrf.mxu0
        %5516 = vdwg.mxu0
        %v5517 = vadd.f32 %v4736, %v5429
        %v5518 = vadd.f32 %v4737, %v5431
        %v5519 = vadd.f32 %v4738, %v5511
        %v5520 = vadd.f32 %v4739, %v5513
        %v5521 = vld [vmem:[#allocation2] sm:$0xf0]
        %v5522 = vld [vmem:[#allocation2 + $0x8] sm:$0xf0]
        %v5523 = vld [vmem:[#allocation2 + $0x10] sm:$0xf0]
        %v5524 = vld [vmem:[#allocation2 + $0x18] sm:$0xf]
        %v5525 = vld [vmem:[#allocation2 + $0x20] sm:$0xf]
        %v5526 = vld [vmem:[#allocation2 + $0x28] sm:$0xf]
        %v5527 = vpack.c.bf16 %v5524, %v5521
        %v5528 = vpack.c.bf16 %v5525, %v5522
        %v5529 = vpack.c.bf16 %v5526, %v5523
        %s5530 = scalar_lea.vmem [#allocation8], 3072
        %v5531 = vld [vmem:[%s5530] sm:$0xff]
        %v5532 = vld [vmem:[%s5530 + $0x8] sm:$0xff]
        %v5533 = vld [vmem:[%s5530 + $0x10] sm:$0xff]
        %v5534 = vld [vmem:[%s5530 + $0x18] sm:$0xff]
        %v5535 = vld [vmem:[%s5530 + $0x20] sm:$0xff]
        %v5536 = vld [vmem:[%s5530 + $0x28] sm:$0xff]
        %v5537 = vld [vmem:[%s5530 + $0x30] sm:$0xff]
        %v5538 = vld [vmem:[%s5530 + $0x38] sm:$0xff]
        %v5539 = vld [vmem:[%s5530 + $0x40] sm:$0xff]
        %v5540 = vld [vmem:[%s5530 + $0x48] sm:$0xff]
        %v5541 = vld [vmem:[%s5530 + $0x50] sm:$0xff]
        %v5542 = vld [vmem:[%s5530 + $0x58] sm:$0xff]
        %v5543 = vld [vmem:[%s5530 + $0x60] sm:$0xff]
        %v5544 = vld [vmem:[%s5530 + $0x68] sm:$0xff]
        %v5545 = vld [vmem:[%s5530 + $0x70] sm:$0xff]
        %v5546 = vld [vmem:[%s5530 + $0x78] sm:$0xff]
        %v5547 = vld [vmem:[%s5530 + $0x80] sm:$0xff]
        %v5548 = vld [vmem:[%s5530 + $0x88] sm:$0xff]
        %v5549 = vld [vmem:[%s5530 + $0x90] sm:$0xff]
        %v5550 = vld [vmem:[%s5530 + $0x98] sm:$0xff]
        %v5551 = vld [vmem:[%s5530 + $0xa0] sm:$0xff]
        %v5552 = vld [vmem:[%s5530 + $0xa8] sm:$0xff]
        %v5553 = vld [vmem:[%s5530 + $0xb0] sm:$0xff]
        %v5554 = vld [vmem:[%s5530 + $0xb8] sm:$0xff]
        %v5555 = vld [vmem:[%s5530 + $0xc0] sm:$0xff]
        %v5556 = vld [vmem:[%s5530 + $0xc8] sm:$0xff]
        %v5557 = vld [vmem:[%s5530 + $0xd0] sm:$0xff]
        %v5558 = vld [vmem:[%s5530 + $0xd8] sm:$0xff]
        %v5559 = vld [vmem:[%s5530 + $0xe0] sm:$0xff]
        %v5560 = vld [vmem:[%s5530 + $0xe8] sm:$0xff]
        %v5561 = vld [vmem:[%s5530 + $0xf0] sm:$0xff]
        %v5562 = vld [vmem:[%s5530 + $0xf8] sm:$0xff]
        %v5563 = vld [vmem:[%s5530 + $0x100] sm:$0xff]
        %v5564 = vld [vmem:[%s5530 + $0x108] sm:$0xff]
        %v5565 = vld [vmem:[%s5530 + $0x110] sm:$0xff]
        %v5566 = vld [vmem:[%s5530 + $0x118] sm:$0xff]
        %v5567 = vld [vmem:[%s5530 + $0x120] sm:$0xff]
        %v5568 = vld [vmem:[%s5530 + $0x128] sm:$0xff]
        %v5569 = vld [vmem:[%s5530 + $0x130] sm:$0xff]
        %v5570 = vld [vmem:[%s5530 + $0x138] sm:$0xff]
        %v5571 = vld [vmem:[%s5530 + $0x140] sm:$0xff]
        %v5572 = vld [vmem:[%s5530 + $0x148] sm:$0xff]
        %v5573 = vld [vmem:[%s5530 + $0x150] sm:$0xff]
        %v5574 = vld [vmem:[%s5530 + $0x158] sm:$0xff]
        %v5575 = vld [vmem:[%s5530 + $0x160] sm:$0xff]
        %v5576 = vld [vmem:[%s5530 + $0x168] sm:$0xff]
        %v5577 = vld [vmem:[%s5530 + $0x170] sm:$0xff]
        %v5578 = vld [vmem:[%s5530 + $0x178] sm:$0xff]
        %v5579 = vld [vmem:[%s5530 + $0x180] sm:$0xff]
        %v5580 = vld [vmem:[%s5530 + $0x188] sm:$0xff]
        %v5581 = vld [vmem:[%s5530 + $0x190] sm:$0xff]
        %v5582 = vld [vmem:[%s5530 + $0x198] sm:$0xff]
        %v5583 = vld [vmem:[%s5530 + $0x1a0] sm:$0xff]
        %v5584 = vld [vmem:[%s5530 + $0x1a8] sm:$0xff]
        %v5585 = vld [vmem:[%s5530 + $0x1b0] sm:$0xff]
        %v5586 = vld [vmem:[%s5530 + $0x1b8] sm:$0xff]
        %v5587 = vld [vmem:[%s5530 + $0x1c0] sm:$0xff]
        %v5588 = vld [vmem:[%s5530 + $0x1c8] sm:$0xff]
        %v5589 = vld [vmem:[%s5530 + $0x1d0] sm:$0xff]
        %v5590 = vld [vmem:[%s5530 + $0x1d8] sm:$0xff]
        %v5591 = vld [vmem:[%s5530 + $0x1e0] sm:$0xff]
        %v5592 = vld [vmem:[%s5530 + $0x1e8] sm:$0xff]
        %v5593 = vld [vmem:[%s5530 + $0x1f0] sm:$0xff]
        %v5594 = vld [vmem:[%s5530 + $0x1f8] sm:$0xff]
        %v5595 = vld [vmem:[%s5530 + $0x200] sm:$0xff]
        %v5596 = vld [vmem:[%s5530 + $0x208] sm:$0xff]
        %v5597 = vld [vmem:[%s5530 + $0x210] sm:$0xff]
        %v5598 = vld [vmem:[%s5530 + $0x218] sm:$0xff]
        %v5599 = vld [vmem:[%s5530 + $0x220] sm:$0xff]
        %v5600 = vld [vmem:[%s5530 + $0x228] sm:$0xff]
        %v5601 = vld [vmem:[%s5530 + $0x230] sm:$0xff]
        %v5602 = vld [vmem:[%s5530 + $0x238] sm:$0xff]
        %v5603 = vld [vmem:[%s5530 + $0x240] sm:$0xff]
        %v5604 = vld [vmem:[%s5530 + $0x248] sm:$0xff]
        %v5605 = vld [vmem:[%s5530 + $0x250] sm:$0xff]
        %v5606 = vld [vmem:[%s5530 + $0x258] sm:$0xff]
        %v5607 = vld [vmem:[%s5530 + $0x260] sm:$0xff]
        %v5608 = vld [vmem:[%s5530 + $0x268] sm:$0xff]
        %v5609 = vld [vmem:[%s5530 + $0x270] sm:$0xff]
        %v5610 = vld [vmem:[%s5530 + $0x278] sm:$0xff]
        %v5611 = vld [vmem:[%s5530 + $0x280] sm:$0xff]
        %v5612 = vld [vmem:[%s5530 + $0x288] sm:$0xff]
        %v5613 = vld [vmem:[%s5530 + $0x290] sm:$0xff]
        %v5614 = vld [vmem:[%s5530 + $0x298] sm:$0xff]
        %v5615 = vld [vmem:[%s5530 + $0x2a0] sm:$0xff]
        %v5616 = vld [vmem:[%s5530 + $0x2a8] sm:$0xff]
        %v5617 = vld [vmem:[%s5530 + $0x2b0] sm:$0xff]
        %v5618 = vld [vmem:[%s5530 + $0x2b8] sm:$0xff]
        %v5619 = vld [vmem:[%s5530 + $0x2c0] sm:$0xff]
        %v5620 = vld [vmem:[%s5530 + $0x2c8] sm:$0xff]
        %v5621 = vld [vmem:[%s5530 + $0x2d0] sm:$0xff]
        %v5622 = vld [vmem:[%s5530 + $0x2d8] sm:$0xff]
        %v5623 = vld [vmem:[%s5530 + $0x2e0] sm:$0xff]
        %v5624 = vld [vmem:[%s5530 + $0x2e8] sm:$0xff]
        %v5625 = vld [vmem:[%s5530 + $0x2f0] sm:$0xff]
        %v5626 = vld [vmem:[%s5530 + $0x2f8] sm:$0xff]
        %v5630 = vrot.slane %v5527, 2
        %v5631 = vrot.slane %v5528, 2
        %v5632 = vrot.slane %v5529, 2
        %v5732 = vunpack.c.l.b16 %v5531
        %v5733 = vunpack.c.h.b16 %v5531
        %v5734 = vunpack.c.l.b16 %v5532
        %v5735 = vunpack.c.h.b16 %v5532
        %v5736 = vunpack.c.l.b16 %v5533
        %v5737 = vunpack.c.h.b16 %v5533
        %v5738 = vunpack.c.l.b16 %v5534
        %v5739 = vunpack.c.h.b16 %v5534
        %v5740 = vunpack.c.l.b16 %v5535
        %v5741 = vunpack.c.h.b16 %v5535
        %v5742 = vunpack.c.l.b16 %v5536
        %v5743 = vunpack.c.h.b16 %v5536
        %v5744 = vunpack.c.l.b16 %v5537
        %v5745 = vunpack.c.h.b16 %v5537
        %v5746 = vunpack.c.l.b16 %v5538
        %v5747 = vunpack.c.h.b16 %v5538
        %v5748 = vunpack.c.l.b16 %v5539
        %v5749 = vunpack.c.h.b16 %v5539
        %v5750 = vunpack.c.l.b16 %v5540
        %v5751 = vunpack.c.h.b16 %v5540
        %v5752 = vunpack.c.l.b16 %v5541
        %v5753 = vunpack.c.h.b16 %v5541
        %v5754 = vunpack.c.l.b16 %v5542
        %v5755 = vunpack.c.h.b16 %v5542
        %v5756 = vunpack.c.l.b16 %v5543
        %v5757 = vunpack.c.h.b16 %v5543
        %v5758 = vunpack.c.l.b16 %v5544
        %v5759 = vunpack.c.h.b16 %v5544
        %v5760 = vunpack.c.l.b16 %v5545
        %v5761 = vunpack.c.h.b16 %v5545
        %v5762 = vunpack.c.l.b16 %v5546
        %v5763 = vunpack.c.h.b16 %v5546
        %v5764 = vunpack.c.l.b16 %v5547
        %v5765 = vunpack.c.h.b16 %v5547
        %v5766 = vunpack.c.l.b16 %v5548
        %v5767 = vunpack.c.h.b16 %v5548
        %v5768 = vunpack.c.l.b16 %v5549
        %v5769 = vunpack.c.h.b16 %v5549
        %v5770 = vunpack.c.l.b16 %v5550
        %v5771 = vunpack.c.h.b16 %v5550
        %v5772 = vunpack.c.l.b16 %v5551
        %v5773 = vunpack.c.h.b16 %v5551
        %v5774 = vunpack.c.l.b16 %v5552
        %v5775 = vunpack.c.h.b16 %v5552
        %v5776 = vunpack.c.l.b16 %v5553
        %v5777 = vunpack.c.h.b16 %v5553
        %v5778 = vunpack.c.l.b16 %v5554
        %v5779 = vunpack.c.h.b16 %v5554
        %v5780 = vunpack.c.l.b16 %v5555
        %v5781 = vunpack.c.h.b16 %v5555
        %v5782 = vunpack.c.l.b16 %v5556
        %v5783 = vunpack.c.h.b16 %v5556
        %v5784 = vunpack.c.l.b16 %v5557
        %v5785 = vunpack.c.h.b16 %v5557
        %v5786 = vunpack.c.l.b16 %v5558
        %v5787 = vunpack.c.h.b16 %v5558
        %v5788 = vunpack.c.l.b16 %v5559
        %v5789 = vunpack.c.h.b16 %v5559
        %v5790 = vunpack.c.l.b16 %v5560
        %v5791 = vunpack.c.h.b16 %v5560
        %v5792 = vunpack.c.l.b16 %v5561
        %v5793 = vunpack.c.h.b16 %v5561
        %v5794 = vunpack.c.l.b16 %v5562
        %v5795 = vunpack.c.h.b16 %v5562
        %v5796 = vunpack.c.l.b16 %v5563
        %v5797 = vunpack.c.h.b16 %v5563
        %v5798 = vunpack.c.l.b16 %v5564
        %v5799 = vunpack.c.h.b16 %v5564
        %v5800 = vunpack.c.l.b16 %v5565
        %v5801 = vunpack.c.h.b16 %v5565
        %v5802 = vunpack.c.l.b16 %v5566
        %v5803 = vunpack.c.h.b16 %v5566
        %v5804 = vunpack.c.l.b16 %v5567
        %v5805 = vunpack.c.h.b16 %v5567
        %v5806 = vunpack.c.l.b16 %v5568
        %v5807 = vunpack.c.h.b16 %v5568
        %v5808 = vunpack.c.l.b16 %v5569
        %v5809 = vunpack.c.h.b16 %v5569
        %v5810 = vunpack.c.l.b16 %v5570
        %v5811 = vunpack.c.h.b16 %v5570
        %v5812 = vunpack.c.l.b16 %v5571
        %v5813 = vunpack.c.h.b16 %v5571
        %v5814 = vunpack.c.l.b16 %v5572
        %v5815 = vunpack.c.h.b16 %v5572
        %v5816 = vunpack.c.l.b16 %v5573
        %v5817 = vunpack.c.h.b16 %v5573
        %v5818 = vunpack.c.l.b16 %v5574
        %v5819 = vunpack.c.h.b16 %v5574
        %v5820 = vunpack.c.l.b16 %v5575
        %v5821 = vunpack.c.h.b16 %v5575
        %v5822 = vunpack.c.l.b16 %v5576
        %v5823 = vunpack.c.h.b16 %v5576
        %v5824 = vunpack.c.l.b16 %v5577
        %v5825 = vunpack.c.h.b16 %v5577
        %v5826 = vunpack.c.l.b16 %v5578
        %v5827 = vunpack.c.h.b16 %v5578
        %v5828 = vunpack.c.l.b16 %v5579
        %v5829 = vunpack.c.h.b16 %v5579
        %v5830 = vunpack.c.l.b16 %v5580
        %v5831 = vunpack.c.h.b16 %v5580
        %v5832 = vunpack.c.l.b16 %v5581
        %v5833 = vunpack.c.h.b16 %v5581
        %v5834 = vunpack.c.l.b16 %v5582
        %v5835 = vunpack.c.h.b16 %v5582
        %v5836 = vunpack.c.l.b16 %v5583
        %v5837 = vunpack.c.h.b16 %v5583
        %v5838 = vunpack.c.l.b16 %v5584
        %v5839 = vunpack.c.h.b16 %v5584
        %v5840 = vunpack.c.l.b16 %v5585
        %v5841 = vunpack.c.h.b16 %v5585
        %v5842 = vunpack.c.l.b16 %v5586
        %v5843 = vunpack.c.h.b16 %v5586
        %v5844 = vunpack.c.l.b16 %v5587
        %v5845 = vunpack.c.h.b16 %v5587
        %v5846 = vunpack.c.l.b16 %v5588
        %v5847 = vunpack.c.h.b16 %v5588
        %v5848 = vunpack.c.l.b16 %v5589
        %v5849 = vunpack.c.h.b16 %v5589
        %v5850 = vunpack.c.l.b16 %v5590
        %v5851 = vunpack.c.h.b16 %v5590
        %v5852 = vunpack.c.l.b16 %v5591
        %v5853 = vunpack.c.h.b16 %v5591
        %v5854 = vunpack.c.l.b16 %v5592
        %v5855 = vunpack.c.h.b16 %v5592
        %v5856 = vunpack.c.l.b16 %v5593
        %v5857 = vunpack.c.h.b16 %v5593
        %v5858 = vunpack.c.l.b16 %v5594
        %v5859 = vunpack.c.h.b16 %v5594
        %v5860 = vunpack.c.l.b16 %v5595
        %v5861 = vunpack.c.h.b16 %v5595
        %v5862 = vunpack.c.l.b16 %v5596
        %v5863 = vunpack.c.h.b16 %v5596
        %v5864 = vunpack.c.l.b16 %v5597
        %v5865 = vunpack.c.h.b16 %v5597
        %v5866 = vunpack.c.l.b16 %v5598
        %v5867 = vunpack.c.h.b16 %v5598
        %v5868 = vunpack.c.l.b16 %v5599
        %v5869 = vunpack.c.h.b16 %v5599
        %v5870 = vunpack.c.l.b16 %v5600
        %v5871 = vunpack.c.h.b16 %v5600
        %v5872 = vunpack.c.l.b16 %v5601
        %v5873 = vunpack.c.h.b16 %v5601
        %v5874 = vunpack.c.l.b16 %v5602
        %v5875 = vunpack.c.h.b16 %v5602
        %v5876 = vunpack.c.l.b16 %v5603
        %v5877 = vunpack.c.h.b16 %v5603
        %v5878 = vunpack.c.l.b16 %v5604
        %v5879 = vunpack.c.h.b16 %v5604
        %v5880 = vunpack.c.l.b16 %v5605
        %v5881 = vunpack.c.h.b16 %v5605
        %v5882 = vunpack.c.l.b16 %v5606
        %v5883 = vunpack.c.h.b16 %v5606
        %v5884 = vunpack.c.l.b16 %v5607
        %v5885 = vunpack.c.h.b16 %v5607
        %v5886 = vunpack.c.l.b16 %v5608
        %v5887 = vunpack.c.h.b16 %v5608
        %v5888 = vunpack.c.l.b16 %v5609
        %v5889 = vunpack.c.h.b16 %v5609
        %v5890 = vunpack.c.l.b16 %v5610
        %v5891 = vunpack.c.h.b16 %v5610
        %v5892 = vunpack.c.l.b16 %v5611
        %v5893 = vunpack.c.h.b16 %v5611
        %v5894 = vunpack.c.l.b16 %v5612
        %v5895 = vunpack.c.h.b16 %v5612
        %v5896 = vunpack.c.l.b16 %v5613
        %v5897 = vunpack.c.h.b16 %v5613
        %v5898 = vunpack.c.l.b16 %v5614
        %v5899 = vunpack.c.h.b16 %v5614
        %v5900 = vunpack.c.l.b16 %v5615
        %v5901 = vunpack.c.h.b16 %v5615
        %v5902 = vunpack.c.l.b16 %v5616
        %v5903 = vunpack.c.h.b16 %v5616
        %v5904 = vunpack.c.l.b16 %v5617
        %v5905 = vunpack.c.h.b16 %v5617
        %v5906 = vunpack.c.l.b16 %v5618
        %v5907 = vunpack.c.h.b16 %v5618
        %v5908 = vunpack.c.l.b16 %v5619
        %v5909 = vunpack.c.h.b16 %v5619
        %v5910 = vunpack.c.l.b16 %v5620
        %v5911 = vunpack.c.h.b16 %v5620
        %v5912 = vunpack.c.l.b16 %v5621
        %v5913 = vunpack.c.h.b16 %v5621
        %v5914 = vunpack.c.l.b16 %v5622
        %v5915 = vunpack.c.h.b16 %v5622
        %v5916 = vunpack.c.l.b16 %v5623
        %v5917 = vunpack.c.h.b16 %v5623
        %v5918 = vunpack.c.l.b16 %v5624
        %v5919 = vunpack.c.h.b16 %v5624
        %v5920 = vunpack.c.l.b16 %v5625
        %v5921 = vunpack.c.h.b16 %v5625
        %v5922 = vunpack.c.l.b16 %v5626
        %v5923 = vunpack.c.h.b16 %v5626
        %v5924 = vpack.c.b16 %v5736, %v5732
        %v5925 = vpack.c.b16 %v5737, %v5733
        %v5926 = vpack.c.b16 %v5738, %v5734
        %v5927 = vpack.c.b16 %v5739, %v5735
        %v5928 = vpack.c.b16 %v5744, %v5740
        %v5929 = vpack.c.b16 %v5745, %v5741
        %v5930 = vpack.c.b16 %v5746, %v5742
        %v5931 = vpack.c.b16 %v5747, %v5743
        %v5932 = vpack.c.b16 %v5752, %v5748
        %v5933 = vpack.c.b16 %v5753, %v5749
        %v5934 = vpack.c.b16 %v5754, %v5750
        %v5935 = vpack.c.b16 %v5755, %v5751
        %v5936 = vpack.c.b16 %v5760, %v5756
        %v5937 = vpack.c.b16 %v5761, %v5757
        %v5938 = vpack.c.b16 %v5762, %v5758
        %v5939 = vpack.c.b16 %v5763, %v5759
        %v5940 = vpack.c.b16 %v5768, %v5764
        %v5941 = vpack.c.b16 %v5769, %v5765
        %v5942 = vpack.c.b16 %v5770, %v5766
        %v5943 = vpack.c.b16 %v5771, %v5767
        %v5944 = vpack.c.b16 %v5776, %v5772
        %v5945 = vpack.c.b16 %v5777, %v5773
        %v5946 = vpack.c.b16 %v5778, %v5774
        %v5947 = vpack.c.b16 %v5779, %v5775
        %v5948 = vpack.c.b16 %v5784, %v5780
        %v5949 = vpack.c.b16 %v5785, %v5781
        %v5950 = vpack.c.b16 %v5786, %v5782
        %v5951 = vpack.c.b16 %v5787, %v5783
        %v5952 = vpack.c.b16 %v5792, %v5788
        %v5953 = vpack.c.b16 %v5793, %v5789
        %v5954 = vpack.c.b16 %v5794, %v5790
        %v5955 = vpack.c.b16 %v5795, %v5791
        %v5956 = vpack.c.b16 %v5800, %v5796
        %v5957 = vpack.c.b16 %v5801, %v5797
        %v5958 = vpack.c.b16 %v5802, %v5798
        %v5959 = vpack.c.b16 %v5803, %v5799
        %v5960 = vpack.c.b16 %v5808, %v5804
        %v5961 = vpack.c.b16 %v5809, %v5805
        %v5962 = vpack.c.b16 %v5810, %v5806
        %v5963 = vpack.c.b16 %v5811, %v5807
        %v5964 = vpack.c.b16 %v5816, %v5812
        %v5965 = vpack.c.b16 %v5817, %v5813
        %v5966 = vpack.c.b16 %v5818, %v5814
        %v5967 = vpack.c.b16 %v5819, %v5815
        %v5968 = vpack.c.b16 %v5824, %v5820
        %v5969 = vpack.c.b16 %v5825, %v5821
        %v5970 = vpack.c.b16 %v5826, %v5822
        %v5971 = vpack.c.b16 %v5827, %v5823
        %v5972 = vpack.c.b16 %v5832, %v5828
        %v5973 = vpack.c.b16 %v5833, %v5829
        %v5974 = vpack.c.b16 %v5834, %v5830
        %v5975 = vpack.c.b16 %v5835, %v5831
        %v5976 = vpack.c.b16 %v5840, %v5836
        %v5977 = vpack.c.b16 %v5841, %v5837
        %v5978 = vpack.c.b16 %v5842, %v5838
        %v5979 = vpack.c.b16 %v5843, %v5839
        %v5980 = vpack.c.b16 %v5848, %v5844
        %v5981 = vpack.c.b16 %v5849, %v5845
        %v5982 = vpack.c.b16 %v5850, %v5846
        %v5983 = vpack.c.b16 %v5851, %v5847
        %v5984 = vpack.c.b16 %v5856, %v5852
        %v5985 = vpack.c.b16 %v5857, %v5853
        %v5986 = vpack.c.b16 %v5858, %v5854
        %v5987 = vpack.c.b16 %v5859, %v5855
        %v5988 = vpack.c.b16 %v5864, %v5860
        %v5989 = vpack.c.b16 %v5865, %v5861
        %v5990 = vpack.c.b16 %v5866, %v5862
        %v5991 = vpack.c.b16 %v5867, %v5863
        %v5992 = vpack.c.b16 %v5872, %v5868
        %v5993 = vpack.c.b16 %v5873, %v5869
        %v5994 = vpack.c.b16 %v5874, %v5870
        %v5995 = vpack.c.b16 %v5875, %v5871
        %v5996 = vpack.c.b16 %v5880, %v5876
        %v5997 = vpack.c.b16 %v5881, %v5877
        %v5998 = vpack.c.b16 %v5882, %v5878
        %v5999 = vpack.c.b16 %v5883, %v5879
        %v6000 = vpack.c.b16 %v5888, %v5884
        %v6001 = vpack.c.b16 %v5889, %v5885
        %v6002 = vpack.c.b16 %v5890, %v5886
        %v6003 = vpack.c.b16 %v5891, %v5887
        %v6004 = vpack.c.b16 %v5896, %v5892
        %v6005 = vpack.c.b16 %v5897, %v5893
        %v6006 = vpack.c.b16 %v5898, %v5894
        %v6007 = vpack.c.b16 %v5899, %v5895
        %v6008 = vpack.c.b16 %v5904, %v5900
        %v6009 = vpack.c.b16 %v5905, %v5901
        %v6010 = vpack.c.b16 %v5906, %v5902
        %v6011 = vpack.c.b16 %v5907, %v5903
        %v6012 = vpack.c.b16 %v5912, %v5908
        %v6013 = vpack.c.b16 %v5913, %v5909
        %v6014 = vpack.c.b16 %v5914, %v5910
        %v6015 = vpack.c.b16 %v5915, %v5911
        %v6016 = vpack.c.b16 %v5920, %v5916
        %v6017 = vpack.c.b16 %v5921, %v5917
        %v6018 = vpack.c.b16 %v5922, %v5918
        %v6019 = vpack.c.b16 %v5923, %v5919
        %6116 = vmatprep.subr.bf16.mxu0 %v5953
        %6117 = vmatpush1.bf16.msra.mxu0 %v5952
        %6118 = vmatprep.subr.bf16.mxu0 %v5949
        %6119 = vmatpush1.bf16.msra.mxu0 %v5948
        %6120 = vmatprep.subr.bf16.mxu0 %v5945
        %6121 = vmatpush1.bf16.msra.mxu0 %v5944
        %6122 = vmatprep.subr.bf16.mxu0 %v5941
        %6123 = vmatpush1.bf16.msra.mxu0 %v5940
        %6124 = vmatprep.subr.bf16.mxu0 %v5937
        %6125 = vmatpush1.bf16.msra.mxu0 %v5936
        %6126 = vmatprep.subr.bf16.mxu0 %v5933
        %6127 = vmatpush1.bf16.msra.mxu0 %v5932
        %6128 = vmatprep.subr.bf16.mxu0 %v5929
        %6129 = vmatpush1.bf16.msra.mxu0 %v5928
        %6130 = vmatprep.subr.bf16.mxu0 %v5925
        %6131 = vmatpush1.bf16.msra.mxu0 %v5924
        %6132 = vmatprep.subr.bf16.mxu0 %v5985
        %6133 = vmatpush2.bf16.msra.mxu0 %v5984
        %6134 = vmatprep.subr.bf16.mxu0 %v5981
        %6135 = vmatpush2.bf16.msra.mxu0 %v5980
        %6136 = vmatprep.subr.bf16.mxu0 %v5977
        %6137 = vmatpush2.bf16.msra.mxu0 %v5976
        %6138 = vmatprep.subr.bf16.mxu0 %v5973
        %6139 = vmatpush2.bf16.msra.mxu0 %v5972
        %6140 = vmatprep.subr.bf16.mxu0 %v5969
        %6141 = vmatpush2.bf16.msra.mxu0 %v5968
        %6142 = vmatprep.subr.bf16.mxu0 %v5965
        %6143 = vmatpush2.bf16.msra.mxu0 %v5964
        %6144 = vmatprep.subr.bf16.mxu0 %v5961
        %6145 = vmatpush2.bf16.msra.mxu0 %v5960
        %6146 = vmatprep.subr.bf16.mxu0 %v5957
        %6147 = vmatpush2.bf16.msra.mxu0 %v5956
        %6148 = vmatprep.mubr.bf16.mxu0 %v5631
        %6149 = vmatmul.mubr.bf16.gmra.mxu0 %v5630
        %v6150 = vpop.f32.mrf.mxu0
        %v6151 = vadd.f32 0.0, %v6150
        %v6152 = vpop.f32.mrf.mxu0
        %v6153 = vadd.f32 0.0, %v6152
        %v6154 = vpop.f32.mrf.mxu0
        %v6155 = vpop.f32.mrf.mxu0
        %6156 = vdwg.mxu0
        %6157 = vmatprep.subr.bf16.mxu0 %v6017
        %6158 = vmatpush1.bf16.msra.mxu0 %v6016
        %6159 = vmatprep.subr.bf16.mxu0 %v6013
        %6160 = vmatpush1.bf16.msra.mxu0 %v6012
        %6161 = vmatprep.subr.bf16.mxu0 %v6009
        %6162 = vmatpush1.bf16.msra.mxu0 %v6008
        %6163 = vmatprep.subr.bf16.mxu0 %v6005
        %6164 = vmatpush1.bf16.msra.mxu0 %v6004
        %6165 = vmatprep.subr.bf16.mxu0 %v6001
        %6166 = vmatpush1.bf16.msra.mxu0 %v6000
        %6167 = vmatprep.subr.bf16.mxu0 %v5997
        %6168 = vmatpush1.bf16.msra.mxu0 %v5996
        %6169 = vmatprep.subr.bf16.mxu0 %v5993
        %6170 = vmatpush1.bf16.msra.mxu0 %v5992
        %6171 = vmatprep.subr.bf16.mxu0 %v5989
        %6172 = vmatpush1.bf16.msra.mxu0 %v5988
        %6173 = vmatprep.subr.bf16.mxu0 0
        %6174 = vmatpush2.bf16.msra.mxu0 0
        %6175 = vmatprep.subr.bf16.mxu0 0
        %6176 = vmatpush2.bf16.msra.mxu0 0
        %6177 = vmatprep.subr.bf16.mxu0 0
        %6178 = vmatpush2.bf16.msra.mxu0 0
        %6179 = vmatprep.subr.bf16.mxu0 0
        %6180 = vmatpush2.bf16.msra.mxu0 0
        %6181 = vmatprep.subr.bf16.mxu0 0
        %6182 = vmatpush2.bf16.msra.mxu0 0
        %6183 = vmatprep.subr.bf16.mxu0 0
        %6184 = vmatpush2.bf16.msra.mxu0 0
        %6185 = vmatprep.subr.bf16.mxu0 0
        %6186 = vmatpush2.bf16.msra.mxu0 0
        %6187 = vmatprep.subr.bf16.mxu0 0
        %6188 = vmatpush2.bf16.msra.mxu0 0
        %6189 = vmatprep.mubr.bf16.mxu0 0
        %6190 = vmatmul.mubr.bf16.gmra.mxu0 %v5632
        %v6191 = vpop.f32.mrf.mxu0
        %v6192 = vadd.f32 %v6151, %v6191
        %v6193 = vpop.f32.mrf.mxu0
        %v6194 = vadd.f32 %v6153, %v6193
        %v6195 = vpop.f32.mrf.mxu0
        %v6196 = vpop.f32.mrf.mxu0
        %6197 = vdwg.mxu0
        %6198 = vmatprep.subr.bf16.mxu0 %v5955
        %6199 = vmatpush1.bf16.msra.mxu0 %v5954
        %6200 = vmatprep.subr.bf16.mxu0 %v5951
        %6201 = vmatpush1.bf16.msra.mxu0 %v5950
        %6202 = vmatprep.subr.bf16.mxu0 %v5947
        %6203 = vmatpush1.bf16.msra.mxu0 %v5946
        %6204 = vmatprep.subr.bf16.mxu0 %v5943
        %6205 = vmatpush1.bf16.msra.mxu0 %v5942
        %6206 = vmatprep.subr.bf16.mxu0 %v5939
        %6207 = vmatpush1.bf16.msra.mxu0 %v5938
        %6208 = vmatprep.subr.bf16.mxu0 %v5935
        %6209 = vmatpush1.bf16.msra.mxu0 %v5934
        %6210 = vmatprep.subr.bf16.mxu0 %v5931
        %6211 = vmatpush1.bf16.msra.mxu0 %v5930
        %6212 = vmatprep.subr.bf16.mxu0 %v5927
        %6213 = vmatpush1.bf16.msra.mxu0 %v5926
        %6214 = vmatprep.subr.bf16.mxu0 %v5987
        %6215 = vmatpush2.bf16.msra.mxu0 %v5986
        %6216 = vmatprep.subr.bf16.mxu0 %v5983
        %6217 = vmatpush2.bf16.msra.mxu0 %v5982
        %6218 = vmatprep.subr.bf16.mxu0 %v5979
        %6219 = vmatpush2.bf16.msra.mxu0 %v5978
        %6220 = vmatprep.subr.bf16.mxu0 %v5975
        %6221 = vmatpush2.bf16.msra.mxu0 %v5974
        %6222 = vmatprep.subr.bf16.mxu0 %v5971
        %6223 = vmatpush2.bf16.msra.mxu0 %v5970
        %6224 = vmatprep.subr.bf16.mxu0 %v5967
        %6225 = vmatpush2.bf16.msra.mxu0 %v5966
        %6226 = vmatprep.subr.bf16.mxu0 %v5963
        %6227 = vmatpush2.bf16.msra.mxu0 %v5962
        %6228 = vmatprep.subr.bf16.mxu0 %v5959
        %6229 = vmatpush2.bf16.msra.mxu0 %v5958
        %6230 = vmatprep.mubr.bf16.mxu0 %v5631
        %6231 = vmatmul.mubr.bf16.gmra.mxu0 %v5630
        %v6232 = vpop.f32.mrf.mxu0
        %v6233 = vadd.f32 0.0, %v6232
        %v6234 = vpop.f32.mrf.mxu0
        %v6235 = vadd.f32 0.0, %v6234
        %v6236 = vpop.f32.mrf.mxu0
        %v6237 = vpop.f32.mrf.mxu0
        %6238 = vdwg.mxu0
        %6239 = vmatprep.subr.bf16.mxu0 %v6019
        %6240 = vmatpush1.bf16.msra.mxu0 %v6018
        %6241 = vmatprep.subr.bf16.mxu0 %v6015
        %6242 = vmatpush1.bf16.msra.mxu0 %v6014
        %6243 = vmatprep.subr.bf16.mxu0 %v6011
        %6244 = vmatpush1.bf16.msra.mxu0 %v6010
        %6245 = vmatprep.subr.bf16.mxu0 %v6007
        %6246 = vmatpush1.bf16.msra.mxu0 %v6006
        %6247 = vmatprep.subr.bf16.mxu0 %v6003
        %6248 = vmatpush1.bf16.msra.mxu0 %v6002
        %6249 = vmatprep.subr.bf16.mxu0 %v5999
        %6250 = vmatpush1.bf16.msra.mxu0 %v5998
        %6251 = vmatprep.subr.bf16.mxu0 %v5995
        %6252 = vmatpush1.bf16.msra.mxu0 %v5994
        %6253 = vmatprep.subr.bf16.mxu0 %v5991
        %6254 = vmatpush1.bf16.msra.mxu0 %v5990
        %6255 = vmatprep.subr.bf16.mxu0 0
        %6256 = vmatpush2.bf16.msra.mxu0 0
        %6257 = vmatprep.subr.bf16.mxu0 0
        %6258 = vmatpush2.bf16.msra.mxu0 0
        %6259 = vmatprep.subr.bf16.mxu0 0
        %6260 = vmatpush2.bf16.msra.mxu0 0
        %6261 = vmatprep.subr.bf16.mxu0 0
        %6262 = vmatpush2.bf16.msra.mxu0 0
        %6263 = vmatprep.subr.bf16.mxu0 0
        %6264 = vmatpush2.bf16.msra.mxu0 0
        %6265 = vmatprep.subr.bf16.mxu0 0
        %6266 = vmatpush2.bf16.msra.mxu0 0
        %6267 = vmatprep.subr.bf16.mxu0 0
        %6268 = vmatpush2.bf16.msra.mxu0 0
        %6269 = vmatprep.subr.bf16.mxu0 0
        %6270 = vmatpush2.bf16.msra.mxu0 0
        %6271 = vmatprep.mubr.bf16.mxu0 0
        %6272 = vmatmul.mubr.bf16.gmra.mxu0 %v5632
        %v6273 = vpop.f32.mrf.mxu0
        %v6274 = vadd.f32 %v6233, %v6273
        %v6275 = vpop.f32.mrf.mxu0
        %v6276 = vadd.f32 %v6235, %v6275
        %v6277 = vpop.f32.mrf.mxu0
        %v6278 = vpop.f32.mrf.mxu0
        %6279 = vdwg.mxu0
        %v6280 = vadd.f32 %v5517, %v6192
        %v6281 = vadd.f32 %v5518, %v6194
        %v6282 = vadd.f32 %v5519, %v6274
        %v6283 = vadd.f32 %v5520, %v6276
        %v6284 = vmax.f32 %v6280, %v6282
        %v6285 = vmax.f32 %v6281, %v6283
        %v6286 = vld [vmem:[#allocation9] sm:$0x3]
        %v6288 = vlaneseq
        %v6289 = vshrl.u32 %v6288, 7
        %v6290 = vsub.s32 0, %v6289
        %v6291 = vrot.slane %v6286, %v6290
        %v6292 = vlaneseq
        %v6293 = vshrl.u32 %v6292, 7
        %v6294 = vsub.s32 1, %v6293
        %v6295 = vrot.slane %v6286, %v6294
        %v6298 = vadd.f32 %v6284, %v6291
        %v6299 = vadd.f32 %v6285, %v6295
        %v6300 = vmax.f32 %v6298, 0.0
        %v6301 = vmax.f32 %v6299, 0.0
        %v6302 = vld [vmem:[#allocation12] sm:$0xf]
        %v6305 = vrot.slane %v6300, 1
        %v6306 = vrot.slane %v6301, 1
        %v6309 = vmax.f32 %v6300, %v6305
        %v6310 = vmax.f32 %v6301, %v6306
        %v6311 = vpack.c.bf16 %v6309, %v6309
        %v6312 = vpack.c.bf16 %v6310, %v6310
        %v6313 = vld [vmem:[#allocation11] sm:$0xff]
        %v6314 = vld [vmem:[#allocation11 + $0x8] sm:$0xff]
        %v6315 = vld [vmem:[#allocation11 + $0x10] sm:$0xff]
        %v6316 = vld [vmem:[#allocation11 + $0x18] sm:$0xff]
        %v6317 = vld [vmem:[#allocation11 + $0x20] sm:$0xff]
        %v6318 = vld [vmem:[#allocation11 + $0x28] sm:$0xff]
        %v6319 = vld [vmem:[#allocation11 + $0x30] sm:$0xff]
        %v6320 = vld [vmem:[#allocation11 + $0x38] sm:$0xff]
        %v6321 = vld [vmem:[#allocation11 + $0x40] sm:$0xff]
        %v6322 = vld [vmem:[#allocation11 + $0x48] sm:$0xff]
        %v6323 = vld [vmem:[#allocation11 + $0x50] sm:$0xff]
        %v6324 = vld [vmem:[#allocation11 + $0x58] sm:$0xff]
        %v6325 = vld [vmem:[#allocation11 + $0x60] sm:$0xff]
        %v6326 = vld [vmem:[#allocation11 + $0x68] sm:$0xff]
        %v6327 = vld [vmem:[#allocation11 + $0x70] sm:$0xff]
        %v6328 = vld [vmem:[#allocation11 + $0x78] sm:$0xff]
        %v6329 = vld [vmem:[#allocation11 + $0x80] sm:$0xff]
        %v6330 = vld [vmem:[#allocation11 + $0x88] sm:$0xff]
        %v6331 = vld [vmem:[#allocation11 + $0x90] sm:$0xff]
        %v6332 = vld [vmem:[#allocation11 + $0x98] sm:$0xff]
        %v6333 = vld [vmem:[#allocation11 + $0xa0] sm:$0xff]
        %v6334 = vld [vmem:[#allocation11 + $0xa8] sm:$0xff]
        %v6335 = vld [vmem:[#allocation11 + $0xb0] sm:$0xff]
        %v6336 = vld [vmem:[#allocation11 + $0xb8] sm:$0xff]
        %v6337 = vld [vmem:[#allocation11 + $0xc0] sm:$0xff]
        %v6338 = vld [vmem:[#allocation11 + $0xc8] sm:$0xff]
        %v6339 = vld [vmem:[#allocation11 + $0xd0] sm:$0xff]
        %v6340 = vld [vmem:[#allocation11 + $0xd8] sm:$0xff]
        %v6341 = vld [vmem:[#allocation11 + $0xe0] sm:$0xff]
        %v6342 = vld [vmem:[#allocation11 + $0xe8] sm:$0xff]
        %v6343 = vld [vmem:[#allocation11 + $0xf0] sm:$0xff]
        %v6344 = vld [vmem:[#allocation11 + $0xf8] sm:$0xff]
        %v6345 = vld [vmem:[#allocation11 + $0x100] sm:$0xff]
        %v6346 = vld [vmem:[#allocation11 + $0x108] sm:$0xff]
        %v6347 = vld [vmem:[#allocation11 + $0x110] sm:$0xff]
        %v6348 = vld [vmem:[#allocation11 + $0x118] sm:$0xff]
        %v6349 = vld [vmem:[#allocation11 + $0x120] sm:$0xff]
        %v6350 = vld [vmem:[#allocation11 + $0x128] sm:$0xff]
        %v6351 = vld [vmem:[#allocation11 + $0x130] sm:$0xff]
        %v6352 = vld [vmem:[#allocation11 + $0x138] sm:$0xff]
        %v6353 = vld [vmem:[#allocation11 + $0x140] sm:$0xff]
        %v6354 = vld [vmem:[#allocation11 + $0x148] sm:$0xff]
        %v6355 = vld [vmem:[#allocation11 + $0x150] sm:$0xff]
        %v6356 = vld [vmem:[#allocation11 + $0x158] sm:$0xff]
        %v6357 = vld [vmem:[#allocation11 + $0x160] sm:$0xff]
        %v6358 = vld [vmem:[#allocation11 + $0x168] sm:$0xff]
        %v6359 = vld [vmem:[#allocation11 + $0x170] sm:$0xff]
        %v6360 = vld [vmem:[#allocation11 + $0x178] sm:$0xff]
        %v6361 = vld [vmem:[#allocation11 + $0x180] sm:$0xff]
        %v6362 = vld [vmem:[#allocation11 + $0x188] sm:$0xff]
        %v6363 = vld [vmem:[#allocation11 + $0x190] sm:$0xff]
        %v6364 = vld [vmem:[#allocation11 + $0x198] sm:$0xff]
        %v6365 = vld [vmem:[#allocation11 + $0x1a0] sm:$0xff]
        %v6366 = vld [vmem:[#allocation11 + $0x1a8] sm:$0xff]
        %v6367 = vld [vmem:[#allocation11 + $0x1b0] sm:$0xff]
        %v6368 = vld [vmem:[#allocation11 + $0x1b8] sm:$0xff]
        %v6369 = vld [vmem:[#allocation11 + $0x1c0] sm:$0xff]
        %v6370 = vld [vmem:[#allocation11 + $0x1c8] sm:$0xff]
        %v6371 = vld [vmem:[#allocation11 + $0x1d0] sm:$0xff]
        %v6372 = vld [vmem:[#allocation11 + $0x1d8] sm:$0xff]
        %v6373 = vld [vmem:[#allocation11 + $0x1e0] sm:$0xff]
        %v6374 = vld [vmem:[#allocation11 + $0x1e8] sm:$0xff]
        %v6375 = vld [vmem:[#allocation11 + $0x1f0] sm:$0xff]
        %v6376 = vld [vmem:[#allocation11 + $0x1f8] sm:$0xff]
        %v6441 = vunpack.c.l.b16 %v6313
        %v6442 = vunpack.c.h.b16 %v6313
        %v6443 = vunpack.c.l.b16 %v6314
        %v6444 = vunpack.c.h.b16 %v6314
        %v6445 = vunpack.c.l.b16 %v6315
        %v6446 = vunpack.c.h.b16 %v6315
        %v6447 = vunpack.c.l.b16 %v6316
        %v6448 = vunpack.c.h.b16 %v6316
        %v6449 = vunpack.c.l.b16 %v6317
        %v6450 = vunpack.c.h.b16 %v6317
        %v6451 = vunpack.c.l.b16 %v6318
        %v6452 = vunpack.c.h.b16 %v6318
        %v6453 = vunpack.c.l.b16 %v6319
        %v6454 = vunpack.c.h.b16 %v6319
        %v6455 = vunpack.c.l.b16 %v6320
        %v6456 = vunpack.c.h.b16 %v6320
        %v6457 = vunpack.c.l.b16 %v6321
        %v6458 = vunpack.c.h.b16 %v6321
        %v6459 = vunpack.c.l.b16 %v6322
        %v6460 = vunpack.c.h.b16 %v6322
        %v6461 = vunpack.c.l.b16 %v6323
        %v6462 = vunpack.c.h.b16 %v6323
        %v6463 = vunpack.c.l.b16 %v6324
        %v6464 = vunpack.c.h.b16 %v6324
        %v6465 = vunpack.c.l.b16 %v6325
        %v6466 = vunpack.c.h.b16 %v6325
        %v6467 = vunpack.c.l.b16 %v6326
        %v6468 = vunpack.c.h.b16 %v6326
        %v6469 = vunpack.c.l.b16 %v6327
        %v6470 = vunpack.c.h.b16 %v6327
        %v6471 = vunpack.c.l.b16 %v6328
        %v6472 = vunpack.c.h.b16 %v6328
        %v6473 = vunpack.c.l.b16 %v6329
        %v6474 = vunpack.c.h.b16 %v6329
        %v6475 = vunpack.c.l.b16 %v6330
        %v6476 = vunpack.c.h.b16 %v6330
        %v6477 = vunpack.c.l.b16 %v6331
        %v6478 = vunpack.c.h.b16 %v6331
        %v6479 = vunpack.c.l.b16 %v6332
        %v6480 = vunpack.c.h.b16 %v6332
        %v6481 = vunpack.c.l.b16 %v6333
        %v6482 = vunpack.c.h.b16 %v6333
        %v6483 = vunpack.c.l.b16 %v6334
        %v6484 = vunpack.c.h.b16 %v6334
        %v6485 = vunpack.c.l.b16 %v6335
        %v6486 = vunpack.c.h.b16 %v6335
        %v6487 = vunpack.c.l.b16 %v6336
        %v6488 = vunpack.c.h.b16 %v6336
        %v6489 = vunpack.c.l.b16 %v6337
        %v6490 = vunpack.c.h.b16 %v6337
        %v6491 = vunpack.c.l.b16 %v6338
        %v6492 = vunpack.c.h.b16 %v6338
        %v6493 = vunpack.c.l.b16 %v6339
        %v6494 = vunpack.c.h.b16 %v6339
        %v6495 = vunpack.c.l.b16 %v6340
        %v6496 = vunpack.c.h.b16 %v6340
        %v6497 = vunpack.c.l.b16 %v6341
        %v6498 = vunpack.c.h.b16 %v6341
        %v6499 = vunpack.c.l.b16 %v6342
        %v6500 = vunpack.c.h.b16 %v6342
        %v6501 = vunpack.c.l.b16 %v6343
        %v6502 = vunpack.c.h.b16 %v6343
        %v6503 = vunpack.c.l.b16 %v6344
        %v6504 = vunpack.c.h.b16 %v6344
        %v6505 = vunpack.c.l.b16 %v6345
        %v6506 = vunpack.c.h.b16 %v6345
        %v6507 = vunpack.c.l.b16 %v6346
        %v6508 = vunpack.c.h.b16 %v6346
        %v6509 = vunpack.c.l.b16 %v6347
        %v6510 = vunpack.c.h.b16 %v6347
        %v6511 = vunpack.c.l.b16 %v6348
        %v6512 = vunpack.c.h.b16 %v6348
        %v6513 = vunpack.c.l.b16 %v6349
        %v6514 = vunpack.c.h.b16 %v6349
        %v6515 = vunpack.c.l.b16 %v6350
        %v6516 = vunpack.c.h.b16 %v6350
        %v6517 = vunpack.c.l.b16 %v6351
        %v6518 = vunpack.c.h.b16 %v6351
        %v6519 = vunpack.c.l.b16 %v6352
        %v6520 = vunpack.c.h.b16 %v6352
        %v6521 = vunpack.c.l.b16 %v6353
        %v6522 = vunpack.c.h.b16 %v6353
        %v6523 = vunpack.c.l.b16 %v6354
        %v6524 = vunpack.c.h.b16 %v6354
        %v6525 = vunpack.c.l.b16 %v6355
        %v6526 = vunpack.c.h.b16 %v6355
        %v6527 = vunpack.c.l.b16 %v6356
        %v6528 = vunpack.c.h.b16 %v6356
        %v6529 = vunpack.c.l.b16 %v6357
        %v6530 = vunpack.c.h.b16 %v6357
        %v6531 = vunpack.c.l.b16 %v6358
        %v6532 = vunpack.c.h.b16 %v6358
        %v6533 = vunpack.c.l.b16 %v6359
        %v6534 = vunpack.c.h.b16 %v6359
        %v6535 = vunpack.c.l.b16 %v6360
        %v6536 = vunpack.c.h.b16 %v6360
        %v6537 = vunpack.c.l.b16 %v6361
        %v6538 = vunpack.c.h.b16 %v6361
        %v6539 = vunpack.c.l.b16 %v6362
        %v6540 = vunpack.c.h.b16 %v6362
        %v6541 = vunpack.c.l.b16 %v6363
        %v6542 = vunpack.c.h.b16 %v6363
        %v6543 = vunpack.c.l.b16 %v6364
        %v6544 = vunpack.c.h.b16 %v6364
        %v6545 = vunpack.c.l.b16 %v6365
        %v6546 = vunpack.c.h.b16 %v6365
        %v6547 = vunpack.c.l.b16 %v6366
        %v6548 = vunpack.c.h.b16 %v6366
        %v6549 = vunpack.c.l.b16 %v6367
        %v6550 = vunpack.c.h.b16 %v6367
        %v6551 = vunpack.c.l.b16 %v6368
        %v6552 = vunpack.c.h.b16 %v6368
        %v6553 = vunpack.c.l.b16 %v6369
        %v6554 = vunpack.c.h.b16 %v6369
        %v6555 = vunpack.c.l.b16 %v6370
        %v6556 = vunpack.c.h.b16 %v6370
        %v6557 = vunpack.c.l.b16 %v6371
        %v6558 = vunpack.c.h.b16 %v6371
        %v6559 = vunpack.c.l.b16 %v6372
        %v6560 = vunpack.c.h.b16 %v6372
        %v6561 = vunpack.c.l.b16 %v6373
        %v6562 = vunpack.c.h.b16 %v6373
        %v6563 = vunpack.c.l.b16 %v6374
        %v6564 = vunpack.c.h.b16 %v6374
        %v6565 = vunpack.c.l.b16 %v6375
        %v6566 = vunpack.c.h.b16 %v6375
        %v6567 = vunpack.c.l.b16 %v6376
        %v6568 = vunpack.c.h.b16 %v6376
        %v6569 = vpack.c.b16 %v6445, %v6441
        %v6570 = vpack.c.b16 %v6446, %v6442
        %v6571 = vpack.c.b16 %v6447, %v6443
        %v6572 = vpack.c.b16 %v6448, %v6444
        %v6573 = vpack.c.b16 %v6453, %v6449
        %v6574 = vpack.c.b16 %v6454, %v6450
        %v6575 = vpack.c.b16 %v6455, %v6451
        %v6576 = vpack.c.b16 %v6456, %v6452
        %v6577 = vpack.c.b16 %v6461, %v6457
        %v6578 = vpack.c.b16 %v6462, %v6458
        %v6579 = vpack.c.b16 %v6463, %v6459
        %v6580 = vpack.c.b16 %v6464, %v6460
        %v6581 = vpack.c.b16 %v6469, %v6465
        %v6582 = vpack.c.b16 %v6470, %v6466
        %v6583 = vpack.c.b16 %v6471, %v6467
        %v6584 = vpack.c.b16 %v6472, %v6468
        %v6585 = vpack.c.b16 %v6477, %v6473
        %v6586 = vpack.c.b16 %v6478, %v6474
        %v6587 = vpack.c.b16 %v6479, %v6475
        %v6588 = vpack.c.b16 %v6480, %v6476
        %v6589 = vpack.c.b16 %v6485, %v6481
        %v6590 = vpack.c.b16 %v6486, %v6482
        %v6591 = vpack.c.b16 %v6487, %v6483
        %v6592 = vpack.c.b16 %v6488, %v6484
        %v6593 = vpack.c.b16 %v6493, %v6489
        %v6594 = vpack.c.b16 %v6494, %v6490
        %v6595 = vpack.c.b16 %v6495, %v6491
        %v6596 = vpack.c.b16 %v6496, %v6492
        %v6597 = vpack.c.b16 %v6501, %v6497
        %v6598 = vpack.c.b16 %v6502, %v6498
        %v6599 = vpack.c.b16 %v6503, %v6499
        %v6600 = vpack.c.b16 %v6504, %v6500
        %v6601 = vpack.c.b16 %v6509, %v6505
        %v6602 = vpack.c.b16 %v6510, %v6506
        %v6603 = vpack.c.b16 %v6511, %v6507
        %v6604 = vpack.c.b16 %v6512, %v6508
        %v6605 = vpack.c.b16 %v6517, %v6513
        %v6606 = vpack.c.b16 %v6518, %v6514
        %v6607 = vpack.c.b16 %v6519, %v6515
        %v6608 = vpack.c.b16 %v6520, %v6516
        %v6609 = vpack.c.b16 %v6525, %v6521
        %v6610 = vpack.c.b16 %v6526, %v6522
        %v6611 = vpack.c.b16 %v6527, %v6523
        %v6612 = vpack.c.b16 %v6528, %v6524
        %v6613 = vpack.c.b16 %v6533, %v6529
        %v6614 = vpack.c.b16 %v6534, %v6530
        %v6615 = vpack.c.b16 %v6535, %v6531
        %v6616 = vpack.c.b16 %v6536, %v6532
        %v6617 = vpack.c.b16 %v6541, %v6537
        %v6618 = vpack.c.b16 %v6542, %v6538
        %v6619 = vpack.c.b16 %v6543, %v6539
        %v6620 = vpack.c.b16 %v6544, %v6540
        %v6621 = vpack.c.b16 %v6549, %v6545
        %v6622 = vpack.c.b16 %v6550, %v6546
        %v6623 = vpack.c.b16 %v6551, %v6547
        %v6624 = vpack.c.b16 %v6552, %v6548
        %v6625 = vpack.c.b16 %v6557, %v6553
        %v6626 = vpack.c.b16 %v6558, %v6554
        %v6627 = vpack.c.b16 %v6559, %v6555
        %v6628 = vpack.c.b16 %v6560, %v6556
        %v6629 = vpack.c.b16 %v6565, %v6561
        %v6630 = vpack.c.b16 %v6566, %v6562
        %v6631 = vpack.c.b16 %v6567, %v6563
        %v6632 = vpack.c.b16 %v6568, %v6564
        %6697 = vmatprep.subr.bf16.mxu0 %v6598
        %6698 = vmatpush1.bf16.msra.mxu0 %v6597
        %6699 = vmatprep.subr.bf16.mxu0 %v6594
        %6700 = vmatpush1.bf16.msra.mxu0 %v6593
        %6701 = vmatprep.subr.bf16.mxu0 %v6590
        %6702 = vmatpush1.bf16.msra.mxu0 %v6589
        %6703 = vmatprep.subr.bf16.mxu0 %v6586
        %6704 = vmatpush1.bf16.msra.mxu0 %v6585
        %6705 = vmatprep.subr.bf16.mxu0 %v6582
        %6706 = vmatpush1.bf16.msra.mxu0 %v6581
        %6707 = vmatprep.subr.bf16.mxu0 %v6578
        %6708 = vmatpush1.bf16.msra.mxu0 %v6577
        %6709 = vmatprep.subr.bf16.mxu0 %v6574
        %6710 = vmatpush1.bf16.msra.mxu0 %v6573
        %6711 = vmatprep.subr.bf16.mxu0 %v6570
        %6712 = vmatpush1.bf16.msra.mxu0 %v6569
        %6713 = vmatprep.subr.bf16.mxu0 %v6630
        %6714 = vmatpush2.bf16.msra.mxu0 %v6629
        %6715 = vmatprep.subr.bf16.mxu0 %v6626
        %6716 = vmatpush2.bf16.msra.mxu0 %v6625
        %6717 = vmatprep.subr.bf16.mxu0 %v6622
        %6718 = vmatpush2.bf16.msra.mxu0 %v6621
        %6719 = vmatprep.subr.bf16.mxu0 %v6618
        %6720 = vmatpush2.bf16.msra.mxu0 %v6617
        %6721 = vmatprep.subr.bf16.mxu0 %v6614
        %6722 = vmatpush2.bf16.msra.mxu0 %v6613
        %6723 = vmatprep.subr.bf16.mxu0 %v6610
        %6724 = vmatpush2.bf16.msra.mxu0 %v6609
        %6725 = vmatprep.subr.bf16.mxu0 %v6606
        %6726 = vmatpush2.bf16.msra.mxu0 %v6605
        %6727 = vmatprep.subr.bf16.mxu0 %v6602
        %6728 = vmatpush2.bf16.msra.mxu0 %v6601
        %6729 = vmatprep.mubr.bf16.mxu0 %v6312
        %6730 = vmatmul.mubr.bf16.gmra.mxu0 %v6311
        %v6731 = vpop.f32.mrf.mxu0
        %v6732 = vadd.f32 0.0, %v6731
        %v6733 = vpop.f32.mrf.mxu0
        %v6734 = vadd.f32 0.0, %v6733
        %v6735 = vpop.f32.mrf.mxu0
        %v6736 = vpop.f32.mrf.mxu0
        %6737 = vdwg.mxu0
        %6738 = vmatprep.subr.bf16.mxu0 %v6600
        %6739 = vmatpush1.bf16.msra.mxu0 %v6599
        %6740 = vmatprep.subr.bf16.mxu0 %v6596
        %6741 = vmatpush1.bf16.msra.mxu0 %v6595
        %6742 = vmatprep.subr.bf16.mxu0 %v6592
        %6743 = vmatpush1.bf16.msra.mxu0 %v6591
        %6744 = vmatprep.subr.bf16.mxu0 %v6588
        %6745 = vmatpush1.bf16.msra.mxu0 %v6587
        %6746 = vmatprep.subr.bf16.mxu0 %v6584
        %6747 = vmatpush1.bf16.msra.mxu0 %v6583
        %6748 = vmatprep.subr.bf16.mxu0 %v6580
        %6749 = vmatpush1.bf16.msra.mxu0 %v6579
        %6750 = vmatprep.subr.bf16.mxu0 %v6576
        %6751 = vmatpush1.bf16.msra.mxu0 %v6575
        %6752 = vmatprep.subr.bf16.mxu0 %v6572
        %6753 = vmatpush1.bf16.msra.mxu0 %v6571
        %6754 = vmatprep.subr.bf16.mxu0 %v6632
        %6755 = vmatpush2.bf16.msra.mxu0 %v6631
        %6756 = vmatprep.subr.bf16.mxu0 %v6628
        %6757 = vmatpush2.bf16.msra.mxu0 %v6627
        %6758 = vmatprep.subr.bf16.mxu0 %v6624
        %6759 = vmatpush2.bf16.msra.mxu0 %v6623
        %6760 = vmatprep.subr.bf16.mxu0 %v6620
        %6761 = vmatpush2.bf16.msra.mxu0 %v6619
        %6762 = vmatprep.subr.bf16.mxu0 %v6616
        %6763 = vmatpush2.bf16.msra.mxu0 %v6615
        %6764 = vmatprep.subr.bf16.mxu0 %v6612
        %6765 = vmatpush2.bf16.msra.mxu0 %v6611
        %6766 = vmatprep.subr.bf16.mxu0 %v6608
        %6767 = vmatpush2.bf16.msra.mxu0 %v6607
        %6768 = vmatprep.subr.bf16.mxu0 %v6604
        %6769 = vmatpush2.bf16.msra.mxu0 %v6603
        %6770 = vmatprep.mubr.bf16.mxu0 %v6312
        %6771 = vmatmul.mubr.bf16.gmra.mxu0 %v6311
        %v6772 = vpop.f32.mrf.mxu0
        %v6773 = vadd.f32 0.0, %v6772
        %v6774 = vpop.f32.mrf.mxu0
        %v6775 = vadd.f32 0.0, %v6774
        %v6776 = vpop.f32.mrf.mxu0
        %v6777 = vpop.f32.mrf.mxu0
        %6778 = vdwg.mxu0
        %v6783 = vcombine.low %v6732, %v6734
        %v6784 = vcombine.low %v6773, %v6775
        %v6786 = vunpack.c.l.s4 1966171168
        %v6787 = vunpack.c.0.s8 %v6786
        %v6788 = vlaneseq
        %v6789 = vshrl.u32 %v6788, 7
        %v6790 = vsub.s32 %v6787, %v6789
        %v6791 = vrot.slane %v6783, %v6790
        %v6793 = vunpack.c.l.s4 1966171168
        %v6794 = vunpack.c.0.s8 %v6793
        %v6795 = vlaneseq
        %v6796 = vshrl.u32 %v6795, 7
        %v6797 = vsub.s32 %v6794, %v6796
        %v6798 = vrot.slane %v6784, %v6797
        %v6799 = vcombine.low %v6791, %v6798
        %v6801 = vunpack.c.l.s4 1966171168
        %v6802 = vunpack.c.0.s8 %v6801
        %v6803 = vlaneseq
        %v6804 = vshrl.u32 %v6803, 7
        %v6805 = vsub.s32 %v6802, %v6804
        %v6806 = vrot.slane %v6799, %v6805
        %v6808 = vadd.f32 %v6302, %v6806
        %s6809 = scalar_lea.vmem [#allocation11], 512
        %v6810 = vld [vmem:[%s6809] sm:$0xff]
        %v6811 = vld [vmem:[%s6809 + $0x8] sm:$0xff]
        %v6812 = vld [vmem:[%s6809 + $0x10] sm:$0xff]
        %v6813 = vld [vmem:[%s6809 + $0x18] sm:$0xff]
        %v6814 = vld [vmem:[%s6809 + $0x20] sm:$0xff]
        %v6815 = vld [vmem:[%s6809 + $0x28] sm:$0xff]
        %v6816 = vld [vmem:[%s6809 + $0x30] sm:$0xff]
        %v6817 = vld [vmem:[%s6809 + $0x38] sm:$0xff]
        %v6818 = vld [vmem:[%s6809 + $0x40] sm:$0xff]
        %v6819 = vld [vmem:[%s6809 + $0x48] sm:$0xff]
        %v6820 = vld [vmem:[%s6809 + $0x50] sm:$0xff]
        %v6821 = vld [vmem:[%s6809 + $0x58] sm:$0xff]
        %v6822 = vld [vmem:[%s6809 + $0x60] sm:$0xff]
        %v6823 = vld [vmem:[%s6809 + $0x68] sm:$0xff]
        %v6824 = vld [vmem:[%s6809 + $0x70] sm:$0xff]
        %v6825 = vld [vmem:[%s6809 + $0x78] sm:$0xff]
        %v6826 = vld [vmem:[%s6809 + $0x80] sm:$0xff]
        %v6827 = vld [vmem:[%s6809 + $0x88] sm:$0xff]
        %v6828 = vld [vmem:[%s6809 + $0x90] sm:$0xff]
        %v6829 = vld [vmem:[%s6809 + $0x98] sm:$0xff]
        %v6830 = vld [vmem:[%s6809 + $0xa0] sm:$0xff]
        %v6831 = vld [vmem:[%s6809 + $0xa8] sm:$0xff]
        %v6832 = vld [vmem:[%s6809 + $0xb0] sm:$0xff]
        %v6833 = vld [vmem:[%s6809 + $0xb8] sm:$0xff]
        %v6834 = vld [vmem:[%s6809 + $0xc0] sm:$0xff]
        %v6835 = vld [vmem:[%s6809 + $0xc8] sm:$0xff]
        %v6836 = vld [vmem:[%s6809 + $0xd0] sm:$0xff]
        %v6837 = vld [vmem:[%s6809 + $0xd8] sm:$0xff]
        %v6838 = vld [vmem:[%s6809 + $0xe0] sm:$0xff]
        %v6839 = vld [vmem:[%s6809 + $0xe8] sm:$0xff]
        %v6840 = vld [vmem:[%s6809 + $0xf0] sm:$0xff]
        %v6841 = vld [vmem:[%s6809 + $0xf8] sm:$0xff]
        %v6842 = vld [vmem:[%s6809 + $0x100] sm:$0xff]
        %v6843 = vld [vmem:[%s6809 + $0x108] sm:$0xff]
        %v6844 = vld [vmem:[%s6809 + $0x110] sm:$0xff]
        %v6845 = vld [vmem:[%s6809 + $0x118] sm:$0xff]
        %v6846 = vld [vmem:[%s6809 + $0x120] sm:$0xff]
        %v6847 = vld [vmem:[%s6809 + $0x128] sm:$0xff]
        %v6848 = vld [vmem:[%s6809 + $0x130] sm:$0xff]
        %v6849 = vld [vmem:[%s6809 + $0x138] sm:$0xff]
        %v6850 = vld [vmem:[%s6809 + $0x140] sm:$0xff]
        %v6851 = vld [vmem:[%s6809 + $0x148] sm:$0xff]
        %v6852 = vld [vmem:[%s6809 + $0x150] sm:$0xff]
        %v6853 = vld [vmem:[%s6809 + $0x158] sm:$0xff]
        %v6854 = vld [vmem:[%s6809 + $0x160] sm:$0xff]
        %v6855 = vld [vmem:[%s6809 + $0x168] sm:$0xff]
        %v6856 = vld [vmem:[%s6809 + $0x170] sm:$0xff]
        %v6857 = vld [vmem:[%s6809 + $0x178] sm:$0xff]
        %v6858 = vld [vmem:[%s6809 + $0x180] sm:$0xff]
        %v6859 = vld [vmem:[%s6809 + $0x188] sm:$0xff]
        %v6860 = vld [vmem:[%s6809 + $0x190] sm:$0xff]
        %v6861 = vld [vmem:[%s6809 + $0x198] sm:$0xff]
        %v6862 = vld [vmem:[%s6809 + $0x1a0] sm:$0xff]
        %v6863 = vld [vmem:[%s6809 + $0x1a8] sm:$0xff]
        %v6864 = vld [vmem:[%s6809 + $0x1b0] sm:$0xff]
        %v6865 = vld [vmem:[%s6809 + $0x1b8] sm:$0xff]
        %v6866 = vld [vmem:[%s6809 + $0x1c0] sm:$0xff]
        %v6867 = vld [vmem:[%s6809 + $0x1c8] sm:$0xff]
        %v6868 = vld [vmem:[%s6809 + $0x1d0] sm:$0xff]
        %v6869 = vld [vmem:[%s6809 + $0x1d8] sm:$0xff]
        %v6870 = vld [vmem:[%s6809 + $0x1e0] sm:$0xff]
        %v6871 = vld [vmem:[%s6809 + $0x1e8] sm:$0xff]
        %v6872 = vld [vmem:[%s6809 + $0x1f0] sm:$0xff]
        %v6873 = vld [vmem:[%s6809 + $0x1f8] sm:$0xff]
        %v6876 = vrot.slane %v6311, 1
        %v6877 = vrot.slane %v6312, 1
        %v6944 = vunpack.c.l.b16 %v6810
        %v6945 = vunpack.c.h.b16 %v6810
        %v6946 = vunpack.c.l.b16 %v6811
        %v6947 = vunpack.c.h.b16 %v6811
        %v6948 = vunpack.c.l.b16 %v6812
        %v6949 = vunpack.c.h.b16 %v6812
        %v6950 = vunpack.c.l.b16 %v6813
        %v6951 = vunpack.c.h.b16 %v6813
        %v6952 = vunpack.c.l.b16 %v6814
        %v6953 = vunpack.c.h.b16 %v6814
        %v6954 = vunpack.c.l.b16 %v6815
        %v6955 = vunpack.c.h.b16 %v6815
        %v6956 = vunpack.c.l.b16 %v6816
        %v6957 = vunpack.c.h.b16 %v6816
        %v6958 = vunpack.c.l.b16 %v6817
        %v6959 = vunpack.c.h.b16 %v6817
        %v6960 = vunpack.c.l.b16 %v6818
        %v6961 = vunpack.c.h.b16 %v6818
        %v6962 = vunpack.c.l.b16 %v6819
        %v6963 = vunpack.c.h.b16 %v6819
        %v6964 = vunpack.c.l.b16 %v6820
        %v6965 = vunpack.c.h.b16 %v6820
        %v6966 = vunpack.c.l.b16 %v6821
        %v6967 = vunpack.c.h.b16 %v6821
        %v6968 = vunpack.c.l.b16 %v6822
        %v6969 = vunpack.c.h.b16 %v6822
        %v6970 = vunpack.c.l.b16 %v6823
        %v6971 = vunpack.c.h.b16 %v6823
        %v6972 = vunpack.c.l.b16 %v6824
        %v6973 = vunpack.c.h.b16 %v6824
        %v6974 = vunpack.c.l.b16 %v6825
        %v6975 = vunpack.c.h.b16 %v6825
        %v6976 = vunpack.c.l.b16 %v6826
        %v6977 = vunpack.c.h.b16 %v6826
        %v6978 = vunpack.c.l.b16 %v6827
        %v6979 = vunpack.c.h.b16 %v6827
        %v6980 = vunpack.c.l.b16 %v6828
        %v6981 = vunpack.c.h.b16 %v6828
        %v6982 = vunpack.c.l.b16 %v6829
        %v6983 = vunpack.c.h.b16 %v6829
        %v6984 = vunpack.c.l.b16 %v6830
        %v6985 = vunpack.c.h.b16 %v6830
        %v6986 = vunpack.c.l.b16 %v6831
        %v6987 = vunpack.c.h.b16 %v6831
        %v6988 = vunpack.c.l.b16 %v6832
        %v6989 = vunpack.c.h.b16 %v6832
        %v6990 = vunpack.c.l.b16 %v6833
        %v6991 = vunpack.c.h.b16 %v6833
        %v6992 = vunpack.c.l.b16 %v6834
        %v6993 = vunpack.c.h.b16 %v6834
        %v6994 = vunpack.c.l.b16 %v6835
        %v6995 = vunpack.c.h.b16 %v6835
        %v6996 = vunpack.c.l.b16 %v6836
        %v6997 = vunpack.c.h.b16 %v6836
        %v6998 = vunpack.c.l.b16 %v6837
        %v6999 = vunpack.c.h.b16 %v6837
        %v7000 = vunpack.c.l.b16 %v6838
        %v7001 = vunpack.c.h.b16 %v6838
        %v7002 = vunpack.c.l.b16 %v6839
        %v7003 = vunpack.c.h.b16 %v6839
        %v7004 = vunpack.c.l.b16 %v6840
        %v7005 = vunpack.c.h.b16 %v6840
        %v7006 = vunpack.c.l.b16 %v6841
        %v7007 = vunpack.c.h.b16 %v6841
        %v7008 = vunpack.c.l.b16 %v6842
        %v7009 = vunpack.c.h.b16 %v6842
        %v7010 = vunpack.c.l.b16 %v6843
        %v7011 = vunpack.c.h.b16 %v6843
        %v7012 = vunpack.c.l.b16 %v6844
        %v7013 = vunpack.c.h.b16 %v6844
        %v7014 = vunpack.c.l.b16 %v6845
        %v7015 = vunpack.c.h.b16 %v6845
        %v7016 = vunpack.c.l.b16 %v6846
        %v7017 = vunpack.c.h.b16 %v6846
        %v7018 = vunpack.c.l.b16 %v6847
        %v7019 = vunpack.c.h.b16 %v6847
        %v7020 = vunpack.c.l.b16 %v6848
        %v7021 = vunpack.c.h.b16 %v6848
        %v7022 = vunpack.c.l.b16 %v6849
        %v7023 = vunpack.c.h.b16 %v6849
        %v7024 = vunpack.c.l.b16 %v6850
        %v7025 = vunpack.c.h.b16 %v6850
        %v7026 = vunpack.c.l.b16 %v6851
        %v7027 = vunpack.c.h.b16 %v6851
        %v7028 = vunpack.c.l.b16 %v6852
        %v7029 = vunpack.c.h.b16 %v6852
        %v7030 = vunpack.c.l.b16 %v6853
        %v7031 = vunpack.c.h.b16 %v6853
        %v7032 = vunpack.c.l.b16 %v6854
        %v7033 = vunpack.c.h.b16 %v6854
        %v7034 = vunpack.c.l.b16 %v6855
        %v7035 = vunpack.c.h.b16 %v6855
        %v7036 = vunpack.c.l.b16 %v6856
        %v7037 = vunpack.c.h.b16 %v6856
        %v7038 = vunpack.c.l.b16 %v6857
        %v7039 = vunpack.c.h.b16 %v6857
        %v7040 = vunpack.c.l.b16 %v6858
        %v7041 = vunpack.c.h.b16 %v6858
        %v7042 = vunpack.c.l.b16 %v6859
        %v7043 = vunpack.c.h.b16 %v6859
        %v7044 = vunpack.c.l.b16 %v6860
        %v7045 = vunpack.c.h.b16 %v6860
        %v7046 = vunpack.c.l.b16 %v6861
        %v7047 = vunpack.c.h.b16 %v6861
        %v7048 = vunpack.c.l.b16 %v6862
        %v7049 = vunpack.c.h.b16 %v6862
        %v7050 = vunpack.c.l.b16 %v6863
        %v7051 = vunpack.c.h.b16 %v6863
        %v7052 = vunpack.c.l.b16 %v6864
        %v7053 = vunpack.c.h.b16 %v6864
        %v7054 = vunpack.c.l.b16 %v6865
        %v7055 = vunpack.c.h.b16 %v6865
        %v7056 = vunpack.c.l.b16 %v6866
        %v7057 = vunpack.c.h.b16 %v6866
        %v7058 = vunpack.c.l.b16 %v6867
        %v7059 = vunpack.c.h.b16 %v6867
        %v7060 = vunpack.c.l.b16 %v6868
        %v7061 = vunpack.c.h.b16 %v6868
        %v7062 = vunpack.c.l.b16 %v6869
        %v7063 = vunpack.c.h.b16 %v6869
        %v7064 = vunpack.c.l.b16 %v6870
        %v7065 = vunpack.c.h.b16 %v6870
        %v7066 = vunpack.c.l.b16 %v6871
        %v7067 = vunpack.c.h.b16 %v6871
        %v7068 = vunpack.c.l.b16 %v6872
        %v7069 = vunpack.c.h.b16 %v6872
        %v7070 = vunpack.c.l.b16 %v6873
        %v7071 = vunpack.c.h.b16 %v6873
        %v7072 = vpack.c.b16 %v6948, %v6944
        %v7073 = vpack.c.b16 %v6949, %v6945
        %v7074 = vpack.c.b16 %v6950, %v6946
        %v7075 = vpack.c.b16 %v6951, %v6947
        %v7076 = vpack.c.b16 %v6956, %v6952
        %v7077 = vpack.c.b16 %v6957, %v6953
        %v7078 = vpack.c.b16 %v6958, %v6954
        %v7079 = vpack.c.b16 %v6959, %v6955
        %v7080 = vpack.c.b16 %v6964, %v6960
        %v7081 = vpack.c.b16 %v6965, %v6961
        %v7082 = vpack.c.b16 %v6966, %v6962
        %v7083 = vpack.c.b16 %v6967, %v6963
        %v7084 = vpack.c.b16 %v6972, %v6968
        %v7085 = vpack.c.b16 %v6973, %v6969
        %v7086 = vpack.c.b16 %v6974, %v6970
        %v7087 = vpack.c.b16 %v6975, %v6971
        %v7088 = vpack.c.b16 %v6980, %v6976
        %v7089 = vpack.c.b16 %v6981, %v6977
        %v7090 = vpack.c.b16 %v6982, %v6978
        %v7091 = vpack.c.b16 %v6983, %v6979
        %v7092 = vpack.c.b16 %v6988, %v6984
        %v7093 = vpack.c.b16 %v6989, %v6985
        %v7094 = vpack.c.b16 %v6990, %v6986
        %v7095 = vpack.c.b16 %v6991, %v6987
        %v7096 = vpack.c.b16 %v6996, %v6992
        %v7097 = vpack.c.b16 %v6997, %v6993
        %v7098 = vpack.c.b16 %v6998, %v6994
        %v7099 = vpack.c.b16 %v6999, %v6995
        %v7100 = vpack.c.b16 %v7004, %v7000
        %v7101 = vpack.c.b16 %v7005, %v7001
        %v7102 = vpack.c.b16 %v7006, %v7002
        %v7103 = vpack.c.b16 %v7007, %v7003
        %v7104 = vpack.c.b16 %v7012, %v7008
        %v7105 = vpack.c.b16 %v7013, %v7009
        %v7106 = vpack.c.b16 %v7014, %v7010
        %v7107 = vpack.c.b16 %v7015, %v7011
        %v7108 = vpack.c.b16 %v7020, %v7016
        %v7109 = vpack.c.b16 %v7021, %v7017
        %v7110 = vpack.c.b16 %v7022, %v7018
        %v7111 = vpack.c.b16 %v7023, %v7019
        %v7112 = vpack.c.b16 %v7028, %v7024
        %v7113 = vpack.c.b16 %v7029, %v7025
        %v7114 = vpack.c.b16 %v7030, %v7026
        %v7115 = vpack.c.b16 %v7031, %v7027
        %v7116 = vpack.c.b16 %v7036, %v7032
        %v7117 = vpack.c.b16 %v7037, %v7033
        %v7118 = vpack.c.b16 %v7038, %v7034
        %v7119 = vpack.c.b16 %v7039, %v7035
        %v7120 = vpack.c.b16 %v7044, %v7040
        %v7121 = vpack.c.b16 %v7045, %v7041
        %v7122 = vpack.c.b16 %v7046, %v7042
        %v7123 = vpack.c.b16 %v7047, %v7043
        %v7124 = vpack.c.b16 %v7052, %v7048
        %v7125 = vpack.c.b16 %v7053, %v7049
        %v7126 = vpack.c.b16 %v7054, %v7050
        %v7127 = vpack.c.b16 %v7055, %v7051
        %v7128 = vpack.c.b16 %v7060, %v7056
        %v7129 = vpack.c.b16 %v7061, %v7057
        %v7130 = vpack.c.b16 %v7062, %v7058
        %v7131 = vpack.c.b16 %v7063, %v7059
        %v7132 = vpack.c.b16 %v7068, %v7064
        %v7133 = vpack.c.b16 %v7069, %v7065
        %v7134 = vpack.c.b16 %v7070, %v7066
        %v7135 = vpack.c.b16 %v7071, %v7067
        %7200 = vmatprep.subr.bf16.mxu0 %v7101
        %7201 = vmatpush1.bf16.msra.mxu0 %v7100
        %7202 = vmatprep.subr.bf16.mxu0 %v7097
        %7203 = vmatpush1.bf16.msra.mxu0 %v7096
        %7204 = vmatprep.subr.bf16.mxu0 %v7093
        %7205 = vmatpush1.bf16.msra.mxu0 %v7092
        %7206 = vmatprep.subr.bf16.mxu0 %v7089
        %7207 = vmatpush1.bf16.msra.mxu0 %v7088
        %7208 = vmatprep.subr.bf16.mxu0 %v7085
        %7209 = vmatpush1.bf16.msra.mxu0 %v7084
        %7210 = vmatprep.subr.bf16.mxu0 %v7081
        %7211 = vmatpush1.bf16.msra.mxu0 %v7080
        %7212 = vmatprep.subr.bf16.mxu0 %v7077
        %7213 = vmatpush1.bf16.msra.mxu0 %v7076
        %7214 = vmatprep.subr.bf16.mxu0 %v7073
        %7215 = vmatpush1.bf16.msra.mxu0 %v7072
        %7216 = vmatprep.subr.bf16.mxu0 %v7133
        %7217 = vmatpush2.bf16.msra.mxu0 %v7132
        %7218 = vmatprep.subr.bf16.mxu0 %v7129
        %7219 = vmatpush2.bf16.msra.mxu0 %v7128
        %7220 = vmatprep.subr.bf16.mxu0 %v7125
        %7221 = vmatpush2.bf16.msra.mxu0 %v7124
        %7222 = vmatprep.subr.bf16.mxu0 %v7121
        %7223 = vmatpush2.bf16.msra.mxu0 %v7120
        %7224 = vmatprep.subr.bf16.mxu0 %v7117
        %7225 = vmatpush2.bf16.msra.mxu0 %v7116
        %7226 = vmatprep.subr.bf16.mxu0 %v7113
        %7227 = vmatpush2.bf16.msra.mxu0 %v7112
        %7228 = vmatprep.subr.bf16.mxu0 %v7109
        %7229 = vmatpush2.bf16.msra.mxu0 %v7108
        %7230 = vmatprep.subr.bf16.mxu0 %v7105
        %7231 = vmatpush2.bf16.msra.mxu0 %v7104
        %7232 = vmatprep.mubr.bf16.mxu0 %v6877
        %7233 = vmatmul.mubr.bf16.gmra.mxu0 %v6876
        %v7234 = vpop.f32.mrf.mxu0
        %v7235 = vadd.f32 0.0, %v7234
        %v7236 = vpop.f32.mrf.mxu0
        %v7237 = vadd.f32 0.0, %v7236
        %v7238 = vpop.f32.mrf.mxu0
        %v7239 = vpop.f32.mrf.mxu0
        %7240 = vdwg.mxu0
        %7241 = vmatprep.subr.bf16.mxu0 %v7103
        %7242 = vmatpush1.bf16.msra.mxu0 %v7102
        %7243 = vmatprep.subr.bf16.mxu0 %v7099
        %7244 = vmatpush1.bf16.msra.mxu0 %v7098
        %7245 = vmatprep.subr.bf16.mxu0 %v7095
        %7246 = vmatpush1.bf16.msra.mxu0 %v7094
        %7247 = vmatprep.subr.bf16.mxu0 %v7091
        %7248 = vmatpush1.bf16.msra.mxu0 %v7090
        %7249 = vmatprep.subr.bf16.mxu0 %v7087
        %7250 = vmatpush1.bf16.msra.mxu0 %v7086
        %7251 = vmatprep.subr.bf16.mxu0 %v7083
        %7252 = vmatpush1.bf16.msra.mxu0 %v7082
        %7253 = vmatprep.subr.bf16.mxu0 %v7079
        %7254 = vmatpush1.bf16.msra.mxu0 %v7078
        %7255 = vmatprep.subr.bf16.mxu0 %v7075
        %7256 = vmatpush1.bf16.msra.mxu0 %v7074
        %7257 = vmatprep.subr.bf16.mxu0 %v7135
        %7258 = vmatpush2.bf16.msra.mxu0 %v7134
        %7259 = vmatprep.subr.bf16.mxu0 %v7131
        %7260 = vmatpush2.bf16.msra.mxu0 %v7130
        %7261 = vmatprep.subr.bf16.mxu0 %v7127
        %7262 = vmatpush2.bf16.msra.mxu0 %v7126
        %7263 = vmatprep.subr.bf16.mxu0 %v7123
        %7264 = vmatpush2.bf16.msra.mxu0 %v7122
        %7265 = vmatprep.subr.bf16.mxu0 %v7119
        %7266 = vmatpush2.bf16.msra.mxu0 %v7118
        %7267 = vmatprep.subr.bf16.mxu0 %v7115
        %7268 = vmatpush2.bf16.msra.mxu0 %v7114
        %7269 = vmatprep.subr.bf16.mxu0 %v7111
        %7270 = vmatpush2.bf16.msra.mxu0 %v7110
        %7271 = vmatprep.subr.bf16.mxu0 %v7107
        %7272 = vmatpush2.bf16.msra.mxu0 %v7106
        %7273 = vmatprep.mubr.bf16.mxu0 %v6877
        %7274 = vmatmul.mubr.bf16.gmra.mxu0 %v6876
        %v7275 = vpop.f32.mrf.mxu0
        %v7276 = vadd.f32 0.0, %v7275
        %v7277 = vpop.f32.mrf.mxu0
        %v7278 = vadd.f32 0.0, %v7277
        %v7279 = vpop.f32.mrf.mxu0
        %v7280 = vpop.f32.mrf.mxu0
        %7281 = vdwg.mxu0
        %v7286 = vcombine.low %v7235, %v7237
        %v7287 = vcombine.low %v7276, %v7278
        %v7289 = vunpack.c.l.s4 1966171168
        %v7290 = vunpack.c.0.s8 %v7289
        %v7291 = vlaneseq
        %v7292 = vshrl.u32 %v7291, 7
        %v7293 = vsub.s32 %v7290, %v7292
        %v7294 = vrot.slane %v7286, %v7293
        %v7296 = vunpack.c.l.s4 1966171168
        %v7297 = vunpack.c.0.s8 %v7296
        %v7298 = vlaneseq
        %v7299 = vshrl.u32 %v7298, 7
        %v7300 = vsub.s32 %v7297, %v7299
        %v7301 = vrot.slane %v7287, %v7300
        %v7302 = vcombine.low %v7294, %v7301
        %v7304 = vunpack.c.l.s4 1966171168
        %v7305 = vunpack.c.0.s8 %v7304
        %v7306 = vlaneseq
        %v7307 = vshrl.u32 %v7306, 7
        %v7308 = vsub.s32 %v7305, %v7307
        %v7309 = vrot.slane %v7302, %v7308
        %v7311 = vadd.f32 %v6808, %v7309
        %s7312 = scalar_lea.vmem [#allocation11], 1024
        %v7313 = vld [vmem:[%s7312] sm:$0xff]
        %v7314 = vld [vmem:[%s7312 + $0x8] sm:$0xff]
        %v7315 = vld [vmem:[%s7312 + $0x10] sm:$0xff]
        %v7316 = vld [vmem:[%s7312 + $0x18] sm:$0xff]
        %v7317 = vld [vmem:[%s7312 + $0x20] sm:$0xff]
        %v7318 = vld [vmem:[%s7312 + $0x28] sm:$0xff]
        %v7319 = vld [vmem:[%s7312 + $0x30] sm:$0xff]
        %v7320 = vld [vmem:[%s7312 + $0x38] sm:$0xff]
        %v7321 = vld [vmem:[%s7312 + $0x40] sm:$0xff]
        %v7322 = vld [vmem:[%s7312 + $0x48] sm:$0xff]
        %v7323 = vld [vmem:[%s7312 + $0x50] sm:$0xff]
        %v7324 = vld [vmem:[%s7312 + $0x58] sm:$0xff]
        %v7325 = vld [vmem:[%s7312 + $0x60] sm:$0xff]
        %v7326 = vld [vmem:[%s7312 + $0x68] sm:$0xff]
        %v7327 = vld [vmem:[%s7312 + $0x70] sm:$0xff]
        %v7328 = vld [vmem:[%s7312 + $0x78] sm:$0xff]
        %v7329 = vld [vmem:[%s7312 + $0x80] sm:$0xff]
        %v7330 = vld [vmem:[%s7312 + $0x88] sm:$0xff]
        %v7331 = vld [vmem:[%s7312 + $0x90] sm:$0xff]
        %v7332 = vld [vmem:[%s7312 + $0x98] sm:$0xff]
        %v7333 = vld [vmem:[%s7312 + $0xa0] sm:$0xff]
        %v7334 = vld [vmem:[%s7312 + $0xa8] sm:$0xff]
        %v7335 = vld [vmem:[%s7312 + $0xb0] sm:$0xff]
        %v7336 = vld [vmem:[%s7312 + $0xb8] sm:$0xff]
        %v7337 = vld [vmem:[%s7312 + $0xc0] sm:$0xff]
        %v7338 = vld [vmem:[%s7312 + $0xc8] sm:$0xff]
        %v7339 = vld [vmem:[%s7312 + $0xd0] sm:$0xff]
        %v7340 = vld [vmem:[%s7312 + $0xd8] sm:$0xff]
        %v7341 = vld [vmem:[%s7312 + $0xe0] sm:$0xff]
        %v7342 = vld [vmem:[%s7312 + $0xe8] sm:$0xff]
        %v7343 = vld [vmem:[%s7312 + $0xf0] sm:$0xff]
        %v7344 = vld [vmem:[%s7312 + $0xf8] sm:$0xff]
        %v7345 = vld [vmem:[%s7312 + $0x100] sm:$0xff]
        %v7346 = vld [vmem:[%s7312 + $0x108] sm:$0xff]
        %v7347 = vld [vmem:[%s7312 + $0x110] sm:$0xff]
        %v7348 = vld [vmem:[%s7312 + $0x118] sm:$0xff]
        %v7349 = vld [vmem:[%s7312 + $0x120] sm:$0xff]
        %v7350 = vld [vmem:[%s7312 + $0x128] sm:$0xff]
        %v7351 = vld [vmem:[%s7312 + $0x130] sm:$0xff]
        %v7352 = vld [vmem:[%s7312 + $0x138] sm:$0xff]
        %v7353 = vld [vmem:[%s7312 + $0x140] sm:$0xff]
        %v7354 = vld [vmem:[%s7312 + $0x148] sm:$0xff]
        %v7355 = vld [vmem:[%s7312 + $0x150] sm:$0xff]
        %v7356 = vld [vmem:[%s7312 + $0x158] sm:$0xff]
        %v7357 = vld [vmem:[%s7312 + $0x160] sm:$0xff]
        %v7358 = vld [vmem:[%s7312 + $0x168] sm:$0xff]
        %v7359 = vld [vmem:[%s7312 + $0x170] sm:$0xff]
        %v7360 = vld [vmem:[%s7312 + $0x178] sm:$0xff]
        %v7361 = vld [vmem:[%s7312 + $0x180] sm:$0xff]
        %v7362 = vld [vmem:[%s7312 + $0x188] sm:$0xff]
        %v7363 = vld [vmem:[%s7312 + $0x190] sm:$0xff]
        %v7364 = vld [vmem:[%s7312 + $0x198] sm:$0xff]
        %v7365 = vld [vmem:[%s7312 + $0x1a0] sm:$0xff]
        %v7366 = vld [vmem:[%s7312 + $0x1a8] sm:$0xff]
        %v7367 = vld [vmem:[%s7312 + $0x1b0] sm:$0xff]
        %v7368 = vld [vmem:[%s7312 + $0x1b8] sm:$0xff]
        %v7369 = vld [vmem:[%s7312 + $0x1c0] sm:$0xff]
        %v7370 = vld [vmem:[%s7312 + $0x1c8] sm:$0xff]
        %v7371 = vld [vmem:[%s7312 + $0x1d0] sm:$0xff]
        %v7372 = vld [vmem:[%s7312 + $0x1d8] sm:$0xff]
        %v7373 = vld [vmem:[%s7312 + $0x1e0] sm:$0xff]
        %v7374 = vld [vmem:[%s7312 + $0x1e8] sm:$0xff]
        %v7375 = vld [vmem:[%s7312 + $0x1f0] sm:$0xff]
        %v7376 = vld [vmem:[%s7312 + $0x1f8] sm:$0xff]
        %v7377 = vrot.slane %v6311, 2
        %v7378 = vrot.slane %v6312, 2
        %v7445 = vunpack.c.l.b16 %v7313
        %v7446 = vunpack.c.h.b16 %v7313
        %v7447 = vunpack.c.l.b16 %v7314
        %v7448 = vunpack.c.h.b16 %v7314
        %v7449 = vunpack.c.l.b16 %v7315
        %v7450 = vunpack.c.h.b16 %v7315
        %v7451 = vunpack.c.l.b16 %v7316
        %v7452 = vunpack.c.h.b16 %v7316
        %v7453 = vunpack.c.l.b16 %v7317
        %v7454 = vunpack.c.h.b16 %v7317
        %v7455 = vunpack.c.l.b16 %v7318
        %v7456 = vunpack.c.h.b16 %v7318
        %v7457 = vunpack.c.l.b16 %v7319
        %v7458 = vunpack.c.h.b16 %v7319
        %v7459 = vunpack.c.l.b16 %v7320
        %v7460 = vunpack.c.h.b16 %v7320
        %v7461 = vunpack.c.l.b16 %v7321
        %v7462 = vunpack.c.h.b16 %v7321
        %v7463 = vunpack.c.l.b16 %v7322
        %v7464 = vunpack.c.h.b16 %v7322
        %v7465 = vunpack.c.l.b16 %v7323
        %v7466 = vunpack.c.h.b16 %v7323
        %v7467 = vunpack.c.l.b16 %v7324
        %v7468 = vunpack.c.h.b16 %v7324
        %v7469 = vunpack.c.l.b16 %v7325
        %v7470 = vunpack.c.h.b16 %v7325
        %v7471 = vunpack.c.l.b16 %v7326
        %v7472 = vunpack.c.h.b16 %v7326
        %v7473 = vunpack.c.l.b16 %v7327
        %v7474 = vunpack.c.h.b16 %v7327
        %v7475 = vunpack.c.l.b16 %v7328
        %v7476 = vunpack.c.h.b16 %v7328
        %v7477 = vunpack.c.l.b16 %v7329
        %v7478 = vunpack.c.h.b16 %v7329
        %v7479 = vunpack.c.l.b16 %v7330
        %v7480 = vunpack.c.h.b16 %v7330
        %v7481 = vunpack.c.l.b16 %v7331
        %v7482 = vunpack.c.h.b16 %v7331
        %v7483 = vunpack.c.l.b16 %v7332
        %v7484 = vunpack.c.h.b16 %v7332
        %v7485 = vunpack.c.l.b16 %v7333
        %v7486 = vunpack.c.h.b16 %v7333
        %v7487 = vunpack.c.l.b16 %v7334
        %v7488 = vunpack.c.h.b16 %v7334
        %v7489 = vunpack.c.l.b16 %v7335
        %v7490 = vunpack.c.h.b16 %v7335
        %v7491 = vunpack.c.l.b16 %v7336
        %v7492 = vunpack.c.h.b16 %v7336
        %v7493 = vunpack.c.l.b16 %v7337
        %v7494 = vunpack.c.h.b16 %v7337
        %v7495 = vunpack.c.l.b16 %v7338
        %v7496 = vunpack.c.h.b16 %v7338
        %v7497 = vunpack.c.l.b16 %v7339
        %v7498 = vunpack.c.h.b16 %v7339
        %v7499 = vunpack.c.l.b16 %v7340
        %v7500 = vunpack.c.h.b16 %v7340
        %v7501 = vunpack.c.l.b16 %v7341
        %v7502 = vunpack.c.h.b16 %v7341
        %v7503 = vunpack.c.l.b16 %v7342
        %v7504 = vunpack.c.h.b16 %v7342
        %v7505 = vunpack.c.l.b16 %v7343
        %v7506 = vunpack.c.h.b16 %v7343
        %v7507 = vunpack.c.l.b16 %v7344
        %v7508 = vunpack.c.h.b16 %v7344
        %v7509 = vunpack.c.l.b16 %v7345
        %v7510 = vunpack.c.h.b16 %v7345
        %v7511 = vunpack.c.l.b16 %v7346
        %v7512 = vunpack.c.h.b16 %v7346
        %v7513 = vunpack.c.l.b16 %v7347
        %v7514 = vunpack.c.h.b16 %v7347
        %v7515 = vunpack.c.l.b16 %v7348
        %v7516 = vunpack.c.h.b16 %v7348
        %v7517 = vunpack.c.l.b16 %v7349
        %v7518 = vunpack.c.h.b16 %v7349
        %v7519 = vunpack.c.l.b16 %v7350
        %v7520 = vunpack.c.h.b16 %v7350
        %v7521 = vunpack.c.l.b16 %v7351
        %v7522 = vunpack.c.h.b16 %v7351
        %v7523 = vunpack.c.l.b16 %v7352
        %v7524 = vunpack.c.h.b16 %v7352
        %v7525 = vunpack.c.l.b16 %v7353
        %v7526 = vunpack.c.h.b16 %v7353
        %v7527 = vunpack.c.l.b16 %v7354
        %v7528 = vunpack.c.h.b16 %v7354
        %v7529 = vunpack.c.l.b16 %v7355
        %v7530 = vunpack.c.h.b16 %v7355
        %v7531 = vunpack.c.l.b16 %v7356
        %v7532 = vunpack.c.h.b16 %v7356
        %v7533 = vunpack.c.l.b16 %v7357
        %v7534 = vunpack.c.h.b16 %v7357
        %v7535 = vunpack.c.l.b16 %v7358
        %v7536 = vunpack.c.h.b16 %v7358
        %v7537 = vunpack.c.l.b16 %v7359
        %v7538 = vunpack.c.h.b16 %v7359
        %v7539 = vunpack.c.l.b16 %v7360
        %v7540 = vunpack.c.h.b16 %v7360
        %v7541 = vunpack.c.l.b16 %v7361
        %v7542 = vunpack.c.h.b16 %v7361
        %v7543 = vunpack.c.l.b16 %v7362
        %v7544 = vunpack.c.h.b16 %v7362
        %v7545 = vunpack.c.l.b16 %v7363
        %v7546 = vunpack.c.h.b16 %v7363
        %v7547 = vunpack.c.l.b16 %v7364
        %v7548 = vunpack.c.h.b16 %v7364
        %v7549 = vunpack.c.l.b16 %v7365
        %v7550 = vunpack.c.h.b16 %v7365
        %v7551 = vunpack.c.l.b16 %v7366
        %v7552 = vunpack.c.h.b16 %v7366
        %v7553 = vunpack.c.l.b16 %v7367
        %v7554 = vunpack.c.h.b16 %v7367
        %v7555 = vunpack.c.l.b16 %v7368
        %v7556 = vunpack.c.h.b16 %v7368
        %v7557 = vunpack.c.l.b16 %v7369
        %v7558 = vunpack.c.h.b16 %v7369
        %v7559 = vunpack.c.l.b16 %v7370
        %v7560 = vunpack.c.h.b16 %v7370
        %v7561 = vunpack.c.l.b16 %v7371
        %v7562 = vunpack.c.h.b16 %v7371
        %v7563 = vunpack.c.l.b16 %v7372
        %v7564 = vunpack.c.h.b16 %v7372
        %v7565 = vunpack.c.l.b16 %v7373
        %v7566 = vunpack.c.h.b16 %v7373
        %v7567 = vunpack.c.l.b16 %v7374
        %v7568 = vunpack.c.h.b16 %v7374
        %v7569 = vunpack.c.l.b16 %v7375
        %v7570 = vunpack.c.h.b16 %v7375
        %v7571 = vunpack.c.l.b16 %v7376
        %v7572 = vunpack.c.h.b16 %v7376
        %v7573 = vpack.c.b16 %v7449, %v7445
        %v7574 = vpack.c.b16 %v7450, %v7446
        %v7575 = vpack.c.b16 %v7451, %v7447
        %v7576 = vpack.c.b16 %v7452, %v7448
        %v7577 = vpack.c.b16 %v7457, %v7453
        %v7578 = vpack.c.b16 %v7458, %v7454
        %v7579 = vpack.c.b16 %v7459, %v7455
        %v7580 = vpack.c.b16 %v7460, %v7456
        %v7581 = vpack.c.b16 %v7465, %v7461
        %v7582 = vpack.c.b16 %v7466, %v7462
        %v7583 = vpack.c.b16 %v7467, %v7463
        %v7584 = vpack.c.b16 %v7468, %v7464
        %v7585 = vpack.c.b16 %v7473, %v7469
        %v7586 = vpack.c.b16 %v7474, %v7470
        %v7587 = vpack.c.b16 %v7475, %v7471
        %v7588 = vpack.c.b16 %v7476, %v7472
        %v7589 = vpack.c.b16 %v7481, %v7477
        %v7590 = vpack.c.b16 %v7482, %v7478
        %v7591 = vpack.c.b16 %v7483, %v7479
        %v7592 = vpack.c.b16 %v7484, %v7480
        %v7593 = vpack.c.b16 %v7489, %v7485
        %v7594 = vpack.c.b16 %v7490, %v7486
        %v7595 = vpack.c.b16 %v7491, %v7487
        %v7596 = vpack.c.b16 %v7492, %v7488
        %v7597 = vpack.c.b16 %v7497, %v7493
        %v7598 = vpack.c.b16 %v7498, %v7494
        %v7599 = vpack.c.b16 %v7499, %v7495
        %v7600 = vpack.c.b16 %v7500, %v7496
        %v7601 = vpack.c.b16 %v7505, %v7501
        %v7602 = vpack.c.b16 %v7506, %v7502
        %v7603 = vpack.c.b16 %v7507, %v7503
        %v7604 = vpack.c.b16 %v7508, %v7504
        %v7605 = vpack.c.b16 %v7513, %v7509
        %v7606 = vpack.c.b16 %v7514, %v7510
        %v7607 = vpack.c.b16 %v7515, %v7511
        %v7608 = vpack.c.b16 %v7516, %v7512
        %v7609 = vpack.c.b16 %v7521, %v7517
        %v7610 = vpack.c.b16 %v7522, %v7518
        %v7611 = vpack.c.b16 %v7523, %v7519
        %v7612 = vpack.c.b16 %v7524, %v7520
        %v7613 = vpack.c.b16 %v7529, %v7525
        %v7614 = vpack.c.b16 %v7530, %v7526
        %v7615 = vpack.c.b16 %v7531, %v7527
        %v7616 = vpack.c.b16 %v7532, %v7528
        %v7617 = vpack.c.b16 %v7537, %v7533
        %v7618 = vpack.c.b16 %v7538, %v7534
        %v7619 = vpack.c.b16 %v7539, %v7535
        %v7620 = vpack.c.b16 %v7540, %v7536
        %v7621 = vpack.c.b16 %v7545, %v7541
        %v7622 = vpack.c.b16 %v7546, %v7542
        %v7623 = vpack.c.b16 %v7547, %v7543
        %v7624 = vpack.c.b16 %v7548, %v7544
        %v7625 = vpack.c.b16 %v7553, %v7549
        %v7626 = vpack.c.b16 %v7554, %v7550
        %v7627 = vpack.c.b16 %v7555, %v7551
        %v7628 = vpack.c.b16 %v7556, %v7552
        %v7629 = vpack.c.b16 %v7561, %v7557
        %v7630 = vpack.c.b16 %v7562, %v7558
        %v7631 = vpack.c.b16 %v7563, %v7559
        %v7632 = vpack.c.b16 %v7564, %v7560
        %v7633 = vpack.c.b16 %v7569, %v7565
        %v7634 = vpack.c.b16 %v7570, %v7566
        %v7635 = vpack.c.b16 %v7571, %v7567
        %v7636 = vpack.c.b16 %v7572, %v7568
        %7701 = vmatprep.subr.bf16.mxu0 %v7602
        %7702 = vmatpush1.bf16.msra.mxu0 %v7601
        %7703 = vmatprep.subr.bf16.mxu0 %v7598
        %7704 = vmatpush1.bf16.msra.mxu0 %v7597
        %7705 = vmatprep.subr.bf16.mxu0 %v7594
        %7706 = vmatpush1.bf16.msra.mxu0 %v7593
        %7707 = vmatprep.subr.bf16.mxu0 %v7590
        %7708 = vmatpush1.bf16.msra.mxu0 %v7589
        %7709 = vmatprep.subr.bf16.mxu0 %v7586
        %7710 = vmatpush1.bf16.msra.mxu0 %v7585
        %7711 = vmatprep.subr.bf16.mxu0 %v7582
        %7712 = vmatpush1.bf16.msra.mxu0 %v7581
        %7713 = vmatprep.subr.bf16.mxu0 %v7578
        %7714 = vmatpush1.bf16.msra.mxu0 %v7577
        %7715 = vmatprep.subr.bf16.mxu0 %v7574
        %7716 = vmatpush1.bf16.msra.mxu0 %v7573
        %7717 = vmatprep.subr.bf16.mxu0 %v7634
        %7718 = vmatpush2.bf16.msra.mxu0 %v7633
        %7719 = vmatprep.subr.bf16.mxu0 %v7630
        %7720 = vmatpush2.bf16.msra.mxu0 %v7629
        %7721 = vmatprep.subr.bf16.mxu0 %v7626
        %7722 = vmatpush2.bf16.msra.mxu0 %v7625
        %7723 = vmatprep.subr.bf16.mxu0 %v7622
        %7724 = vmatpush2.bf16.msra.mxu0 %v7621
        %7725 = vmatprep.subr.bf16.mxu0 %v7618
        %7726 = vmatpush2.bf16.msra.mxu0 %v7617
        %7727 = vmatprep.subr.bf16.mxu0 %v7614
        %7728 = vmatpush2.bf16.msra.mxu0 %v7613
        %7729 = vmatprep.subr.bf16.mxu0 %v7610
        %7730 = vmatpush2.bf16.msra.mxu0 %v7609
        %7731 = vmatprep.subr.bf16.mxu0 %v7606
        %7732 = vmatpush2.bf16.msra.mxu0 %v7605
        %7733 = vmatprep.mubr.bf16.mxu0 %v7378
        %7734 = vmatmul.mubr.bf16.gmra.mxu0 %v7377
        %v7735 = vpop.f32.mrf.mxu0
        %v7736 = vadd.f32 0.0, %v7735
        %v7737 = vpop.f32.mrf.mxu0
        %v7738 = vadd.f32 0.0, %v7737
        %v7739 = vpop.f32.mrf.mxu0
        %v7740 = vpop.f32.mrf.mxu0
        %7741 = vdwg.mxu0
        %7742 = vmatprep.subr.bf16.mxu0 %v7604
        %7743 = vmatpush1.bf16.msra.mxu0 %v7603
        %7744 = vmatprep.subr.bf16.mxu0 %v7600
        %7745 = vmatpush1.bf16.msra.mxu0 %v7599
        %7746 = vmatprep.subr.bf16.mxu0 %v7596
        %7747 = vmatpush1.bf16.msra.mxu0 %v7595
        %7748 = vmatprep.subr.bf16.mxu0 %v7592
        %7749 = vmatpush1.bf16.msra.mxu0 %v7591
        %7750 = vmatprep.subr.bf16.mxu0 %v7588
        %7751 = vmatpush1.bf16.msra.mxu0 %v7587
        %7752 = vmatprep.subr.bf16.mxu0 %v7584
        %7753 = vmatpush1.bf16.msra.mxu0 %v7583
        %7754 = vmatprep.subr.bf16.mxu0 %v7580
        %7755 = vmatpush1.bf16.msra.mxu0 %v7579
        %7756 = vmatprep.subr.bf16.mxu0 %v7576
        %7757 = vmatpush1.bf16.msra.mxu0 %v7575
        %7758 = vmatprep.subr.bf16.mxu0 %v7636
        %7759 = vmatpush2.bf16.msra.mxu0 %v7635
        %7760 = vmatprep.subr.bf16.mxu0 %v7632
        %7761 = vmatpush2.bf16.msra.mxu0 %v7631
        %7762 = vmatprep.subr.bf16.mxu0 %v7628
        %7763 = vmatpush2.bf16.msra.mxu0 %v7627
        %7764 = vmatprep.subr.bf16.mxu0 %v7624
        %7765 = vmatpush2.bf16.msra.mxu0 %v7623
        %7766 = vmatprep.subr.bf16.mxu0 %v7620
        %7767 = vmatpush2.bf16.msra.mxu0 %v7619
        %7768 = vmatprep.subr.bf16.mxu0 %v7616
        %7769 = vmatpush2.bf16.msra.mxu0 %v7615
        %7770 = vmatprep.subr.bf16.mxu0 %v7612
        %7771 = vmatpush2.bf16.msra.mxu0 %v7611
        %7772 = vmatprep.subr.bf16.mxu0 %v7608
        %7773 = vmatpush2.bf16.msra.mxu0 %v7607
        %7774 = vmatprep.mubr.bf16.mxu0 %v7378
        %7775 = vmatmul.mubr.bf16.gmra.mxu0 %v7377
        %v7776 = vpop.f32.mrf.mxu0
        %v7777 = vadd.f32 0.0, %v7776
        %v7778 = vpop.f32.mrf.mxu0
        %v7779 = vadd.f32 0.0, %v7778
        %v7780 = vpop.f32.mrf.mxu0
        %v7781 = vpop.f32.mrf.mxu0
        %7782 = vdwg.mxu0
        %v7787 = vcombine.low %v7736, %v7738
        %v7788 = vcombine.low %v7777, %v7779
        %v7790 = vunpack.c.l.s4 1966171168
        %v7791 = vunpack.c.0.s8 %v7790
        %v7792 = vlaneseq
        %v7793 = vshrl.u32 %v7792, 7
        %v7794 = vsub.s32 %v7791, %v7793
        %v7795 = vrot.slane %v7787, %v7794
        %v7797 = vunpack.c.l.s4 1966171168
        %v7798 = vunpack.c.0.s8 %v7797
        %v7799 = vlaneseq
        %v7800 = vshrl.u32 %v7799, 7
        %v7801 = vsub.s32 %v7798, %v7800
        %v7802 = vrot.slane %v7788, %v7801
        %v7803 = vcombine.low %v7795, %v7802
        %v7805 = vunpack.c.l.s4 1966171168
        %v7806 = vunpack.c.0.s8 %v7805
        %v7807 = vlaneseq
        %v7808 = vshrl.u32 %v7807, 7
        %v7809 = vsub.s32 %v7806, %v7808
        %v7810 = vrot.slane %v7803, %v7809
        %v7812 = vadd.f32 %v7311, %v7810
        %s7813 = scalar_lea.vmem [#allocation11], 1536
        %v7814 = vld [vmem:[%s7813] sm:$0xff]
        %v7815 = vld [vmem:[%s7813 + $0x8] sm:$0xff]
        %v7816 = vld [vmem:[%s7813 + $0x10] sm:$0xff]
        %v7817 = vld [vmem:[%s7813 + $0x18] sm:$0xff]
        %v7818 = vld [vmem:[%s7813 + $0x20] sm:$0xff]
        %v7819 = vld [vmem:[%s7813 + $0x28] sm:$0xff]
        %v7820 = vld [vmem:[%s7813 + $0x30] sm:$0xff]
        %v7821 = vld [vmem:[%s7813 + $0x38] sm:$0xff]
        %v7822 = vld [vmem:[%s7813 + $0x40] sm:$0xff]
        %v7823 = vld [vmem:[%s7813 + $0x48] sm:$0xff]
        %v7824 = vld [vmem:[%s7813 + $0x50] sm:$0xff]
        %v7825 = vld [vmem:[%s7813 + $0x58] sm:$0xff]
        %v7826 = vld [vmem:[%s7813 + $0x60] sm:$0xff]
        %v7827 = vld [vmem:[%s7813 + $0x68] sm:$0xff]
        %v7828 = vld [vmem:[%s7813 + $0x70] sm:$0xff]
        %v7829 = vld [vmem:[%s7813 + $0x78] sm:$0xff]
        %v7830 = vld [vmem:[%s7813 + $0x80] sm:$0xff]
        %v7831 = vld [vmem:[%s7813 + $0x88] sm:$0xff]
        %v7832 = vld [vmem:[%s7813 + $0x90] sm:$0xff]
        %v7833 = vld [vmem:[%s7813 + $0x98] sm:$0xff]
        %v7834 = vld [vmem:[%s7813 + $0xa0] sm:$0xff]
        %v7835 = vld [vmem:[%s7813 + $0xa8] sm:$0xff]
        %v7836 = vld [vmem:[%s7813 + $0xb0] sm:$0xff]
        %v7837 = vld [vmem:[%s7813 + $0xb8] sm:$0xff]
        %v7838 = vld [vmem:[%s7813 + $0xc0] sm:$0xff]
        %v7839 = vld [vmem:[%s7813 + $0xc8] sm:$0xff]
        %v7840 = vld [vmem:[%s7813 + $0xd0] sm:$0xff]
        %v7841 = vld [vmem:[%s7813 + $0xd8] sm:$0xff]
        %v7842 = vld [vmem:[%s7813 + $0xe0] sm:$0xff]
        %v7843 = vld [vmem:[%s7813 + $0xe8] sm:$0xff]
        %v7844 = vld [vmem:[%s7813 + $0xf0] sm:$0xff]
        %v7845 = vld [vmem:[%s7813 + $0xf8] sm:$0xff]
        %v7846 = vld [vmem:[%s7813 + $0x100] sm:$0xff]
        %v7847 = vld [vmem:[%s7813 + $0x108] sm:$0xff]
        %v7848 = vld [vmem:[%s7813 + $0x110] sm:$0xff]
        %v7849 = vld [vmem:[%s7813 + $0x118] sm:$0xff]
        %v7850 = vld [vmem:[%s7813 + $0x120] sm:$0xff]
        %v7851 = vld [vmem:[%s7813 + $0x128] sm:$0xff]
        %v7852 = vld [vmem:[%s7813 + $0x130] sm:$0xff]
        %v7853 = vld [vmem:[%s7813 + $0x138] sm:$0xff]
        %v7854 = vld [vmem:[%s7813 + $0x140] sm:$0xff]
        %v7855 = vld [vmem:[%s7813 + $0x148] sm:$0xff]
        %v7856 = vld [vmem:[%s7813 + $0x150] sm:$0xff]
        %v7857 = vld [vmem:[%s7813 + $0x158] sm:$0xff]
        %v7858 = vld [vmem:[%s7813 + $0x160] sm:$0xff]
        %v7859 = vld [vmem:[%s7813 + $0x168] sm:$0xff]
        %v7860 = vld [vmem:[%s7813 + $0x170] sm:$0xff]
        %v7861 = vld [vmem:[%s7813 + $0x178] sm:$0xff]
        %v7862 = vld [vmem:[%s7813 + $0x180] sm:$0xff]
        %v7863 = vld [vmem:[%s7813 + $0x188] sm:$0xff]
        %v7864 = vld [vmem:[%s7813 + $0x190] sm:$0xff]
        %v7865 = vld [vmem:[%s7813 + $0x198] sm:$0xff]
        %v7866 = vld [vmem:[%s7813 + $0x1a0] sm:$0xff]
        %v7867 = vld [vmem:[%s7813 + $0x1a8] sm:$0xff]
        %v7868 = vld [vmem:[%s7813 + $0x1b0] sm:$0xff]
        %v7869 = vld [vmem:[%s7813 + $0x1b8] sm:$0xff]
        %v7870 = vld [vmem:[%s7813 + $0x1c0] sm:$0xff]
        %v7871 = vld [vmem:[%s7813 + $0x1c8] sm:$0xff]
        %v7872 = vld [vmem:[%s7813 + $0x1d0] sm:$0xff]
        %v7873 = vld [vmem:[%s7813 + $0x1d8] sm:$0xff]
        %v7874 = vld [vmem:[%s7813 + $0x1e0] sm:$0xff]
        %v7875 = vld [vmem:[%s7813 + $0x1e8] sm:$0xff]
        %v7876 = vld [vmem:[%s7813 + $0x1f0] sm:$0xff]
        %v7877 = vld [vmem:[%s7813 + $0x1f8] sm:$0xff]
        %v7878 = vrot.slane %v6311, 3
        %v7879 = vrot.slane %v6312, 3
        %v7946 = vunpack.c.l.b16 %v7814
        %v7947 = vunpack.c.h.b16 %v7814
        %v7948 = vunpack.c.l.b16 %v7815
        %v7949 = vunpack.c.h.b16 %v7815
        %v7950 = vunpack.c.l.b16 %v7816
        %v7951 = vunpack.c.h.b16 %v7816
        %v7952 = vunpack.c.l.b16 %v7817
        %v7953 = vunpack.c.h.b16 %v7817
        %v7954 = vunpack.c.l.b16 %v7818
        %v7955 = vunpack.c.h.b16 %v7818
        %v7956 = vunpack.c.l.b16 %v7819
        %v7957 = vunpack.c.h.b16 %v7819
        %v7958 = vunpack.c.l.b16 %v7820
        %v7959 = vunpack.c.h.b16 %v7820
        %v7960 = vunpack.c.l.b16 %v7821
        %v7961 = vunpack.c.h.b16 %v7821
        %v7962 = vunpack.c.l.b16 %v7822
        %v7963 = vunpack.c.h.b16 %v7822
        %v7964 = vunpack.c.l.b16 %v7823
        %v7965 = vunpack.c.h.b16 %v7823
        %v7966 = vunpack.c.l.b16 %v7824
        %v7967 = vunpack.c.h.b16 %v7824
        %v7968 = vunpack.c.l.b16 %v7825
        %v7969 = vunpack.c.h.b16 %v7825
        %v7970 = vunpack.c.l.b16 %v7826
        %v7971 = vunpack.c.h.b16 %v7826
        %v7972 = vunpack.c.l.b16 %v7827
        %v7973 = vunpack.c.h.b16 %v7827
        %v7974 = vunpack.c.l.b16 %v7828
        %v7975 = vunpack.c.h.b16 %v7828
        %v7976 = vunpack.c.l.b16 %v7829
        %v7977 = vunpack.c.h.b16 %v7829
        %v7978 = vunpack.c.l.b16 %v7830
        %v7979 = vunpack.c.h.b16 %v7830
        %v7980 = vunpack.c.l.b16 %v7831
        %v7981 = vunpack.c.h.b16 %v7831
        %v7982 = vunpack.c.l.b16 %v7832
        %v7983 = vunpack.c.h.b16 %v7832
        %v7984 = vunpack.c.l.b16 %v7833
        %v7985 = vunpack.c.h.b16 %v7833
        %v7986 = vunpack.c.l.b16 %v7834
        %v7987 = vunpack.c.h.b16 %v7834
        %v7988 = vunpack.c.l.b16 %v7835
        %v7989 = vunpack.c.h.b16 %v7835
        %v7990 = vunpack.c.l.b16 %v7836
        %v7991 = vunpack.c.h.b16 %v7836
        %v7992 = vunpack.c.l.b16 %v7837
        %v7993 = vunpack.c.h.b16 %v7837
        %v7994 = vunpack.c.l.b16 %v7838
        %v7995 = vunpack.c.h.b16 %v7838
        %v7996 = vunpack.c.l.b16 %v7839
        %v7997 = vunpack.c.h.b16 %v7839
        %v7998 = vunpack.c.l.b16 %v7840
        %v7999 = vunpack.c.h.b16 %v7840
        %v8000 = vunpack.c.l.b16 %v7841
        %v8001 = vunpack.c.h.b16 %v7841
        %v8002 = vunpack.c.l.b16 %v7842
        %v8003 = vunpack.c.h.b16 %v7842
        %v8004 = vunpack.c.l.b16 %v7843
        %v8005 = vunpack.c.h.b16 %v7843
        %v8006 = vunpack.c.l.b16 %v7844
        %v8007 = vunpack.c.h.b16 %v7844
        %v8008 = vunpack.c.l.b16 %v7845
        %v8009 = vunpack.c.h.b16 %v7845
        %v8010 = vunpack.c.l.b16 %v7846
        %v8011 = vunpack.c.h.b16 %v7846
        %v8012 = vunpack.c.l.b16 %v7847
        %v8013 = vunpack.c.h.b16 %v7847
        %v8014 = vunpack.c.l.b16 %v7848
        %v8015 = vunpack.c.h.b16 %v7848
        %v8016 = vunpack.c.l.b16 %v7849
        %v8017 = vunpack.c.h.b16 %v7849
        %v8018 = vunpack.c.l.b16 %v7850
        %v8019 = vunpack.c.h.b16 %v7850
        %v8020 = vunpack.c.l.b16 %v7851
        %v8021 = vunpack.c.h.b16 %v7851
        %v8022 = vunpack.c.l.b16 %v7852
        %v8023 = vunpack.c.h.b16 %v7852
        %v8024 = vunpack.c.l.b16 %v7853
        %v8025 = vunpack.c.h.b16 %v7853
        %v8026 = vunpack.c.l.b16 %v7854
        %v8027 = vunpack.c.h.b16 %v7854
        %v8028 = vunpack.c.l.b16 %v7855
        %v8029 = vunpack.c.h.b16 %v7855
        %v8030 = vunpack.c.l.b16 %v7856
        %v8031 = vunpack.c.h.b16 %v7856
        %v8032 = vunpack.c.l.b16 %v7857
        %v8033 = vunpack.c.h.b16 %v7857
        %v8034 = vunpack.c.l.b16 %v7858
        %v8035 = vunpack.c.h.b16 %v7858
        %v8036 = vunpack.c.l.b16 %v7859
        %v8037 = vunpack.c.h.b16 %v7859
        %v8038 = vunpack.c.l.b16 %v7860
        %v8039 = vunpack.c.h.b16 %v7860
        %v8040 = vunpack.c.l.b16 %v7861
        %v8041 = vunpack.c.h.b16 %v7861
        %v8042 = vunpack.c.l.b16 %v7862
        %v8043 = vunpack.c.h.b16 %v7862
        %v8044 = vunpack.c.l.b16 %v7863
        %v8045 = vunpack.c.h.b16 %v7863
        %v8046 = vunpack.c.l.b16 %v7864
        %v8047 = vunpack.c.h.b16 %v7864
        %v8048 = vunpack.c.l.b16 %v7865
        %v8049 = vunpack.c.h.b16 %v7865
        %v8050 = vunpack.c.l.b16 %v7866
        %v8051 = vunpack.c.h.b16 %v7866
        %v8052 = vunpack.c.l.b16 %v7867
        %v8053 = vunpack.c.h.b16 %v7867
        %v8054 = vunpack.c.l.b16 %v7868
        %v8055 = vunpack.c.h.b16 %v7868
        %v8056 = vunpack.c.l.b16 %v7869
        %v8057 = vunpack.c.h.b16 %v7869
        %v8058 = vunpack.c.l.b16 %v7870
        %v8059 = vunpack.c.h.b16 %v7870
        %v8060 = vunpack.c.l.b16 %v7871
        %v8061 = vunpack.c.h.b16 %v7871
        %v8062 = vunpack.c.l.b16 %v7872
        %v8063 = vunpack.c.h.b16 %v7872
        %v8064 = vunpack.c.l.b16 %v7873
        %v8065 = vunpack.c.h.b16 %v7873
        %v8066 = vunpack.c.l.b16 %v7874
        %v8067 = vunpack.c.h.b16 %v7874
        %v8068 = vunpack.c.l.b16 %v7875
        %v8069 = vunpack.c.h.b16 %v7875
        %v8070 = vunpack.c.l.b16 %v7876
        %v8071 = vunpack.c.h.b16 %v7876
        %v8072 = vunpack.c.l.b16 %v7877
        %v8073 = vunpack.c.h.b16 %v7877
        %v8074 = vpack.c.b16 %v7950, %v7946
        %v8075 = vpack.c.b16 %v7951, %v7947
        %v8076 = vpack.c.b16 %v7952, %v7948
        %v8077 = vpack.c.b16 %v7953, %v7949
        %v8078 = vpack.c.b16 %v7958, %v7954
        %v8079 = vpack.c.b16 %v7959, %v7955
        %v8080 = vpack.c.b16 %v7960, %v7956
        %v8081 = vpack.c.b16 %v7961, %v7957
        %v8082 = vpack.c.b16 %v7966, %v7962
        %v8083 = vpack.c.b16 %v7967, %v7963
        %v8084 = vpack.c.b16 %v7968, %v7964
        %v8085 = vpack.c.b16 %v7969, %v7965
        %v8086 = vpack.c.b16 %v7974, %v7970
        %v8087 = vpack.c.b16 %v7975, %v7971
        %v8088 = vpack.c.b16 %v7976, %v7972
        %v8089 = vpack.c.b16 %v7977, %v7973
        %v8090 = vpack.c.b16 %v7982, %v7978
        %v8091 = vpack.c.b16 %v7983, %v7979
        %v8092 = vpack.c.b16 %v7984, %v7980
        %v8093 = vpack.c.b16 %v7985, %v7981
        %v8094 = vpack.c.b16 %v7990, %v7986
        %v8095 = vpack.c.b16 %v7991, %v7987
        %v8096 = vpack.c.b16 %v7992, %v7988
        %v8097 = vpack.c.b16 %v7993, %v7989
        %v8098 = vpack.c.b16 %v7998, %v7994
        %v8099 = vpack.c.b16 %v7999, %v7995
        %v8100 = vpack.c.b16 %v8000, %v7996
        %v8101 = vpack.c.b16 %v8001, %v7997
        %v8102 = vpack.c.b16 %v8006, %v8002
        %v8103 = vpack.c.b16 %v8007, %v8003
        %v8104 = vpack.c.b16 %v8008, %v8004
        %v8105 = vpack.c.b16 %v8009, %v8005
        %v8106 = vpack.c.b16 %v8014, %v8010
        %v8107 = vpack.c.b16 %v8015, %v8011
        %v8108 = vpack.c.b16 %v8016, %v8012
        %v8109 = vpack.c.b16 %v8017, %v8013
        %v8110 = vpack.c.b16 %v8022, %v8018
        %v8111 = vpack.c.b16 %v8023, %v8019
        %v8112 = vpack.c.b16 %v8024, %v8020
        %v8113 = vpack.c.b16 %v8025, %v8021
        %v8114 = vpack.c.b16 %v8030, %v8026
        %v8115 = vpack.c.b16 %v8031, %v8027
        %v8116 = vpack.c.b16 %v8032, %v8028
        %v8117 = vpack.c.b16 %v8033, %v8029
        %v8118 = vpack.c.b16 %v8038, %v8034
        %v8119 = vpack.c.b16 %v8039, %v8035
        %v8120 = vpack.c.b16 %v8040, %v8036
        %v8121 = vpack.c.b16 %v8041, %v8037
        %v8122 = vpack.c.b16 %v8046, %v8042
        %v8123 = vpack.c.b16 %v8047, %v8043
        %v8124 = vpack.c.b16 %v8048, %v8044
        %v8125 = vpack.c.b16 %v8049, %v8045
        %v8126 = vpack.c.b16 %v8054, %v8050
        %v8127 = vpack.c.b16 %v8055, %v8051
        %v8128 = vpack.c.b16 %v8056, %v8052
        %v8129 = vpack.c.b16 %v8057, %v8053
        %v8130 = vpack.c.b16 %v8062, %v8058
        %v8131 = vpack.c.b16 %v8063, %v8059
        %v8132 = vpack.c.b16 %v8064, %v8060
        %v8133 = vpack.c.b16 %v8065, %v8061
        %v8134 = vpack.c.b16 %v8070, %v8066
        %v8135 = vpack.c.b16 %v8071, %v8067
        %v8136 = vpack.c.b16 %v8072, %v8068
        %v8137 = vpack.c.b16 %v8073, %v8069
        %8202 = vmatprep.subr.bf16.mxu0 %v8103
        %8203 = vmatpush1.bf16.msra.mxu0 %v8102
        %8204 = vmatprep.subr.bf16.mxu0 %v8099
        %8205 = vmatpush1.bf16.msra.mxu0 %v8098
        %8206 = vmatprep.subr.bf16.mxu0 %v8095
        %8207 = vmatpush1.bf16.msra.mxu0 %v8094
        %8208 = vmatprep.subr.bf16.mxu0 %v8091
        %8209 = vmatpush1.bf16.msra.mxu0 %v8090
        %8210 = vmatprep.subr.bf16.mxu0 %v8087
        %8211 = vmatpush1.bf16.msra.mxu0 %v8086
        %8212 = vmatprep.subr.bf16.mxu0 %v8083
        %8213 = vmatpush1.bf16.msra.mxu0 %v8082
        %8214 = vmatprep.subr.bf16.mxu0 %v8079
        %8215 = vmatpush1.bf16.msra.mxu0 %v8078
        %8216 = vmatprep.subr.bf16.mxu0 %v8075
        %8217 = vmatpush1.bf16.msra.mxu0 %v8074
        %8218 = vmatprep.subr.bf16.mxu0 %v8135
        %8219 = vmatpush2.bf16.msra.mxu0 %v8134
        %8220 = vmatprep.subr.bf16.mxu0 %v8131
        %8221 = vmatpush2.bf16.msra.mxu0 %v8130
        %8222 = vmatprep.subr.bf16.mxu0 %v8127
        %8223 = vmatpush2.bf16.msra.mxu0 %v8126
        %8224 = vmatprep.subr.bf16.mxu0 %v8123
        %8225 = vmatpush2.bf16.msra.mxu0 %v8122
        %8226 = vmatprep.subr.bf16.mxu0 %v8119
        %8227 = vmatpush2.bf16.msra.mxu0 %v8118
        %8228 = vmatprep.subr.bf16.mxu0 %v8115
        %8229 = vmatpush2.bf16.msra.mxu0 %v8114
        %8230 = vmatprep.subr.bf16.mxu0 %v8111
        %8231 = vmatpush2.bf16.msra.mxu0 %v8110
        %8232 = vmatprep.subr.bf16.mxu0 %v8107
        %8233 = vmatpush2.bf16.msra.mxu0 %v8106
        %8234 = vmatprep.mubr.bf16.mxu0 %v7879
        %8235 = vmatmul.mubr.bf16.gmra.mxu0 %v7878
        %v8236 = vpop.f32.mrf.mxu0
        %v8237 = vadd.f32 0.0, %v8236
        %v8238 = vpop.f32.mrf.mxu0
        %v8239 = vadd.f32 0.0, %v8238
        %v8240 = vpop.f32.mrf.mxu0
        %v8241 = vpop.f32.mrf.mxu0
        %8242 = vdwg.mxu0
        %8243 = vmatprep.subr.bf16.mxu0 %v8105
        %8244 = vmatpush1.bf16.msra.mxu0 %v8104
        %8245 = vmatprep.subr.bf16.mxu0 %v8101
        %8246 = vmatpush1.bf16.msra.mxu0 %v8100
        %8247 = vmatprep.subr.bf16.mxu0 %v8097
        %8248 = vmatpush1.bf16.msra.mxu0 %v8096
        %8249 = vmatprep.subr.bf16.mxu0 %v8093
        %8250 = vmatpush1.bf16.msra.mxu0 %v8092
        %8251 = vmatprep.subr.bf16.mxu0 %v8089
        %8252 = vmatpush1.bf16.msra.mxu0 %v8088
        %8253 = vmatprep.subr.bf16.mxu0 %v8085
        %8254 = vmatpush1.bf16.msra.mxu0 %v8084
        %8255 = vmatprep.subr.bf16.mxu0 %v8081
        %8256 = vmatpush1.bf16.msra.mxu0 %v8080
        %8257 = vmatprep.subr.bf16.mxu0 %v8077
        %8258 = vmatpush1.bf16.msra.mxu0 %v8076
        %8259 = vmatprep.subr.bf16.mxu0 %v8137
        %8260 = vmatpush2.bf16.msra.mxu0 %v8136
        %8261 = vmatprep.subr.bf16.mxu0 %v8133
        %8262 = vmatpush2.bf16.msra.mxu0 %v8132
        %8263 = vmatprep.subr.bf16.mxu0 %v8129
        %8264 = vmatpush2.bf16.msra.mxu0 %v8128
        %8265 = vmatprep.subr.bf16.mxu0 %v8125
        %8266 = vmatpush2.bf16.msra.mxu0 %v8124
        %8267 = vmatprep.subr.bf16.mxu0 %v8121
        %8268 = vmatpush2.bf16.msra.mxu0 %v8120
        %8269 = vmatprep.subr.bf16.mxu0 %v8117
        %8270 = vmatpush2.bf16.msra.mxu0 %v8116
        %8271 = vmatprep.subr.bf16.mxu0 %v8113
        %8272 = vmatpush2.bf16.msra.mxu0 %v8112
        %8273 = vmatprep.subr.bf16.mxu0 %v8109
        %8274 = vmatpush2.bf16.msra.mxu0 %v8108
        %8275 = vmatprep.mubr.bf16.mxu0 %v7879
        %8276 = vmatmul.mubr.bf16.gmra.mxu0 %v7878
        %v8277 = vpop.f32.mrf.mxu0
        %v8278 = vadd.f32 0.0, %v8277
        %v8279 = vpop.f32.mrf.mxu0
        %v8280 = vadd.f32 0.0, %v8279
        %v8281 = vpop.f32.mrf.mxu0
        %v8282 = vpop.f32.mrf.mxu0
        %8283 = vdwg.mxu0
        %v8288 = vcombine.low %v8237, %v8239
        %v8289 = vcombine.low %v8278, %v8280
        %v8291 = vunpack.c.l.s4 1966171168
        %v8292 = vunpack.c.0.s8 %v8291
        %v8293 = vlaneseq
        %v8294 = vshrl.u32 %v8293, 7
        %v8295 = vsub.s32 %v8292, %v8294
        %v8296 = vrot.slane %v8288, %v8295
        %v8298 = vunpack.c.l.s4 1966171168
        %v8299 = vunpack.c.0.s8 %v8298
        %v8300 = vlaneseq
        %v8301 = vshrl.u32 %v8300, 7
        %v8302 = vsub.s32 %v8299, %v8301
        %v8303 = vrot.slane %v8289, %v8302
        %v8304 = vcombine.low %v8296, %v8303
        %v8306 = vunpack.c.l.s4 1966171168
        %v8307 = vunpack.c.0.s8 %v8306
        %v8308 = vlaneseq
        %v8309 = vshrl.u32 %v8308, 7
        %v8310 = vsub.s32 %v8307, %v8309
        %v8311 = vrot.slane %v8304, %v8310
        %v8313 = vadd.f32 %v7812, %v8311
        %v8314 = vmax.f32 %v8313, 0.0
        %v8316 = vlaneseq
        %v8317 = vshrl.u32 %v8316, 7
        %v8318 = vsub.s32 0, %v8317
        %v8319 = vrot.slane %v8314, %v8318
        %v8320 = vlaneseq
        %v8321 = vshrl.u32 %v8320, 7
        %v8322 = vsub.s32 1, %v8321
        %v8323 = vrot.slane %v8314, %v8322
        %v8324 = vlaneseq
        %v8325 = vshrl.u32 %v8324, 7
        %v8326 = vsub.s32 2, %v8325
        %v8327 = vrot.slane %v8314, %v8326
        %v8328 = vlaneseq
        %v8329 = vshrl.u32 %v8328, 7
        %v8330 = vsub.s32 3, %v8329
        %v8331 = vrot.slane %v8314, %v8330
        %vm8336 = vcmask 1040384
        %v8337 = vsel %vm8336, %v8319, -inf
        %v8338 = vsel %vm8336, %v8323, -inf
        %v8339 = vsel %vm8336, %v8327, -inf
        %v8340 = vsel %vm8336, %v8331, -inf
        %v8341 = vmax.f32 %v8337, %v8338
        %v8342 = vmax.f32 %v8339, %v8340
        %v8343 = vmax.f32 %v8341, %v8342
        %8344 = vmax.xlane.f32.xlu0 %v8343
        %v8345 = vpop.xlane.xlu0 %8344
        %v8347 = vlaneseq
        %v8348 = vshrl.u32 %v8347, 7
        %v8349 = vsub.s32 0, %v8348
        %v8350 = vrot.slane %v8345, %v8349
        %v8352 = vsub.f32 %v8314, %v8350
        %v8353 = vmul.f32 %v8352, 1.442695
        %v8354 = vpow.pop %v8353
        %v8356 = vlaneseq
        %v8357 = vshrl.u32 %v8356, 7
        %v8358 = vsub.s32 0, %v8357
        %v8359 = vrot.slane %v8354, %v8358
        %v8360 = vlaneseq
        %v8361 = vshrl.u32 %v8360, 7
        %v8362 = vsub.s32 1, %v8361
        %v8363 = vrot.slane %v8354, %v8362
        %v8364 = vlaneseq
        %v8365 = vshrl.u32 %v8364, 7
        %v8366 = vsub.s32 2, %v8365
        %v8367 = vrot.slane %v8354, %v8366
        %v8368 = vlaneseq
        %v8369 = vshrl.u32 %v8368, 7
        %v8370 = vsub.s32 3, %v8369
        %v8371 = vrot.slane %v8354, %v8370
        %v8376 = vsel %vm8336, %v8359, 0.0
        %v8377 = vsel %vm8336, %v8363, 0.0
        %v8378 = vadd.f32 %v8376, %v8377
        %v8379 = vsel %vm8336, %v8367, 0.0
        %v8380 = vadd.f32 %v8378, %v8379
        %v8381 = vsel %vm8336, %v8371, 0.0
        %v8382 = vadd.f32 %v8380, %v8381
        %8383 = vadd.xlane.f32.xlu0 %v8382
        %v8384 = vpop.xlane.xlu0 %8383
        %v8386 = vlaneseq
        %v8387 = vshrl.u32 %v8386, 7
        %v8388 = vsub.s32 0, %v8387
        %v8389 = vrot.slane %v8384, %v8388
        %v8391 = vrcp.pop %v8389
        %v8392 = vmul.f32 %v8354, %v8391
        %v8394 = vlaneseq
        %v8395 = vshrl.u32 %v8394, 7
        %v8396 = vsub.s32 0, %v8395
        %v8397 = vrot.slane %v8392, %v8396
        %v8398 = vlaneseq
        %v8399 = vshrl.u32 %v8398, 7
        %v8400 = vsub.s32 1, %v8399
        %v8401 = vrot.slane %v8392, %v8400
        %v8402 = vlaneseq
        %v8403 = vshrl.u32 %v8402, 7
        %v8404 = vsub.s32 2, %v8403
        %v8405 = vrot.slane %v8392, %v8404
        %v8406 = vlaneseq
        %v8407 = vshrl.u32 %v8406, 7
        %v8408 = vsub.s32 3, %v8407
        %v8409 = vrot.slane %v8392, %v8408
        %v8414 = vpack.c.bf16 %v8397, %v8397
        %v8415 = vpack.c.bf16 %v8401, %v8401
        %v8416 = vpack.c.bf16 %v8405, %v8405
        %v8417 = vpack.c.bf16 %v8409, %v8409
        %v8418 = vld [vmem:[#allocation14] sm:$0xf]
        %v8419 = vld [vmem:[#allocation14 + $0x4] sm:$0xf]
        %v8420 = vld [vmem:[#allocation14 + $0x8] sm:$0xf]
        %v8421 = vld [vmem:[#allocation14 + $0xc] sm:$0xf]
        %v8422 = vld [vmem:[#allocation14 + $0x10] sm:$0xf]
        %v8423 = vld [vmem:[#allocation14 + $0x14] sm:$0xf]
        %v8424 = vld [vmem:[#allocation14 + $0x18] sm:$0xf]
        %v8425 = vld [vmem:[#allocation14 + $0x1c] sm:$0xf]
        %v8426 = vld [vmem:[#allocation14 + $0x20] sm:$0xf]
        %v8427 = vld [vmem:[#allocation14 + $0x24] sm:$0xf]
        %v8428 = vld [vmem:[#allocation14 + $0x28] sm:$0xf]
        %v8429 = vld [vmem:[#allocation14 + $0x2c] sm:$0xf]
        %v8430 = vld [vmem:[#allocation14 + $0x30] sm:$0xf]
        %v8431 = vld [vmem:[#allocation14 + $0x34] sm:$0xf]
        %v8432 = vld [vmem:[#allocation14 + $0x38] sm:$0xf]
        %v8433 = vld [vmem:[#allocation14 + $0x3c] sm:$0xf]
        %v8434 = vld [vmem:[#allocation14 + $0x40] sm:$0xf]
        %v8435 = vld [vmem:[#allocation14 + $0x44] sm:$0xf]
        %v8436 = vld [vmem:[#allocation14 + $0x48] sm:$0xf]
        %v8437 = vld [vmem:[#allocation14 + $0x4c] sm:$0xf]
        %v8438 = vld [vmem:[#allocation14 + $0x50] sm:$0xf]
        %v8439 = vld [vmem:[#allocation14 + $0x54] sm:$0xf]
        %v8440 = vld [vmem:[#allocation14 + $0x58] sm:$0xf]
        %v8441 = vld [vmem:[#allocation14 + $0x5c] sm:$0xf]
        %v8442 = vld [vmem:[#allocation14 + $0x60] sm:$0xf]
        %v8443 = vld [vmem:[#allocation14 + $0x64] sm:$0xf]
        %v8444 = vld [vmem:[#allocation14 + $0x68] sm:$0xf]
        %v8445 = vld [vmem:[#allocation14 + $0x6c] sm:$0xf]
        %v8446 = vld [vmem:[#allocation14 + $0x70] sm:$0xf]
        %v8447 = vld [vmem:[#allocation14 + $0x74] sm:$0xf]
        %v8448 = vld [vmem:[#allocation14 + $0x78] sm:$0xf]
        %v8449 = vld [vmem:[#allocation14 + $0x7c] sm:$0xf]
        %v8450 = vld [vmem:[#allocation14 + $0x80] sm:$0xf]
        %v8451 = vld [vmem:[#allocation14 + $0x84] sm:$0xf]
        %v8452 = vld [vmem:[#allocation14 + $0x88] sm:$0xf]
        %v8453 = vld [vmem:[#allocation14 + $0x8c] sm:$0xf]
        %v8454 = vld [vmem:[#allocation14 + $0x90] sm:$0xf]
        %v8455 = vld [vmem:[#allocation14 + $0x94] sm:$0xf]
        %v8456 = vld [vmem:[#allocation14 + $0x98] sm:$0xf]
        %v8457 = vld [vmem:[#allocation14 + $0x9c] sm:$0xf]
        %v8458 = vld [vmem:[#allocation14 + $0xa0] sm:$0xf]
        %v8459 = vld [vmem:[#allocation14 + $0xa4] sm:$0xf]
        %v8460 = vld [vmem:[#allocation14 + $0xa8] sm:$0xf]
        %v8461 = vld [vmem:[#allocation14 + $0xac] sm:$0xf]
        %v8462 = vld [vmem:[#allocation14 + $0xb0] sm:$0xf]
        %v8463 = vld [vmem:[#allocation14 + $0xb4] sm:$0xf]
        %v8464 = vld [vmem:[#allocation14 + $0xb8] sm:$0xf]
        %v8465 = vld [vmem:[#allocation14 + $0xbc] sm:$0xf]
        %v8466 = vld [vmem:[#allocation14 + $0xc0] sm:$0xf]
        %v8467 = vld [vmem:[#allocation14 + $0xc4] sm:$0xf]
        %v8468 = vld [vmem:[#allocation14 + $0xc8] sm:$0xf]
        %v8469 = vld [vmem:[#allocation14 + $0xcc] sm:$0xf]
        %v8470 = vld [vmem:[#allocation14 + $0xd0] sm:$0xf]
        %v8471 = vld [vmem:[#allocation14 + $0xd4] sm:$0xf]
        %v8472 = vld [vmem:[#allocation14 + $0xd8] sm:$0xf]
        %v8473 = vld [vmem:[#allocation14 + $0xdc] sm:$0xf]
        %v8474 = vld [vmem:[#allocation14 + $0xe0] sm:$0xf]
        %v8475 = vld [vmem:[#allocation14 + $0xe4] sm:$0xf]
        %v8476 = vld [vmem:[#allocation14 + $0xe8] sm:$0xf]
        %v8477 = vld [vmem:[#allocation14 + $0xec] sm:$0xf]
        %v8478 = vld [vmem:[#allocation14 + $0xf0] sm:$0xf]
        %v8479 = vld [vmem:[#allocation14 + $0xf4] sm:$0xf]
        %v8480 = vld [vmem:[#allocation14 + $0xf8] sm:$0xf]
        %v8481 = vld [vmem:[#allocation14 + $0xfc] sm:$0xf]
        %v8482 = vld [vmem:[#allocation15] sm:$0x1]
        %v8547 = vunpack.c.l.b16 %v8418
        %v8548 = vunpack.c.l.b16 %v8419
        %v8549 = vunpack.c.l.b16 %v8420
        %v8550 = vunpack.c.l.b16 %v8421
        %v8551 = vunpack.c.l.b16 %v8422
        %v8552 = vunpack.c.l.b16 %v8423
        %v8553 = vunpack.c.l.b16 %v8424
        %v8554 = vunpack.c.l.b16 %v8425
        %v8555 = vunpack.c.l.b16 %v8426
        %v8556 = vunpack.c.l.b16 %v8427
        %v8557 = vunpack.c.l.b16 %v8428
        %v8558 = vunpack.c.l.b16 %v8429
        %v8559 = vunpack.c.l.b16 %v8430
        %v8560 = vunpack.c.l.b16 %v8431
        %v8561 = vunpack.c.l.b16 %v8432
        %v8562 = vunpack.c.l.b16 %v8433
        %v8563 = vunpack.c.l.b16 %v8434
        %v8564 = vunpack.c.l.b16 %v8435
        %v8565 = vunpack.c.l.b16 %v8436
        %v8566 = vunpack.c.l.b16 %v8437
        %v8567 = vunpack.c.l.b16 %v8438
        %v8568 = vunpack.c.l.b16 %v8439
        %v8569 = vunpack.c.l.b16 %v8440
        %v8570 = vunpack.c.l.b16 %v8441
        %v8571 = vunpack.c.l.b16 %v8442
        %v8572 = vunpack.c.l.b16 %v8443
        %v8573 = vunpack.c.l.b16 %v8444
        %v8574 = vunpack.c.l.b16 %v8445
        %v8575 = vunpack.c.l.b16 %v8446
        %v8576 = vunpack.c.l.b16 %v8447
        %v8577 = vunpack.c.l.b16 %v8448
        %v8578 = vunpack.c.l.b16 %v8449
        %v8579 = vunpack.c.l.b16 %v8450
        %v8580 = vunpack.c.l.b16 %v8451
        %v8581 = vunpack.c.l.b16 %v8452
        %v8582 = vunpack.c.l.b16 %v8453
        %v8583 = vunpack.c.l.b16 %v8454
        %v8584 = vunpack.c.l.b16 %v8455
        %v8585 = vunpack.c.l.b16 %v8456
        %v8586 = vunpack.c.l.b16 %v8457
        %v8587 = vunpack.c.l.b16 %v8458
        %v8588 = vunpack.c.l.b16 %v8459
        %v8589 = vunpack.c.l.b16 %v8460
        %v8590 = vunpack.c.l.b16 %v8461
        %v8591 = vunpack.c.l.b16 %v8462
        %v8592 = vunpack.c.l.b16 %v8463
        %v8593 = vunpack.c.l.b16 %v8464
        %v8594 = vunpack.c.l.b16 %v8465
        %v8595 = vunpack.c.l.b16 %v8466
        %v8596 = vunpack.c.l.b16 %v8467
        %v8597 = vunpack.c.l.b16 %v8468
        %v8598 = vunpack.c.l.b16 %v8469
        %v8599 = vunpack.c.l.b16 %v8470
        %v8600 = vunpack.c.l.b16 %v8471
        %v8601 = vunpack.c.l.b16 %v8472
        %v8602 = vunpack.c.l.b16 %v8473
        %v8603 = vunpack.c.l.b16 %v8474
        %v8604 = vunpack.c.l.b16 %v8475
        %v8605 = vunpack.c.l.b16 %v8476
        %v8606 = vunpack.c.l.b16 %v8477
        %v8607 = vunpack.c.l.b16 %v8478
        %v8608 = vunpack.c.l.b16 %v8479
        %v8609 = vunpack.c.l.b16 %v8480
        %v8610 = vunpack.c.l.b16 %v8481
        %v8611 = vpack.c.b16 %v8548, %v8547
        %v8612 = vpack.c.b16 %v8550, %v8549
        %v8613 = vpack.c.b16 %v8552, %v8551
        %v8614 = vpack.c.b16 %v8554, %v8553
        %v8615 = vpack.c.b16 %v8556, %v8555
        %v8616 = vpack.c.b16 %v8558, %v8557
        %v8617 = vpack.c.b16 %v8560, %v8559
        %v8618 = vpack.c.b16 %v8562, %v8561
        %v8619 = vpack.c.b16 %v8564, %v8563
        %v8620 = vpack.c.b16 %v8566, %v8565
        %v8621 = vpack.c.b16 %v8568, %v8567
        %v8622 = vpack.c.b16 %v8570, %v8569
        %v8623 = vpack.c.b16 %v8572, %v8571
        %v8624 = vpack.c.b16 %v8574, %v8573
        %v8625 = vpack.c.b16 %v8576, %v8575
        %v8626 = vpack.c.b16 %v8578, %v8577
        %v8627 = vpack.c.b16 %v8580, %v8579
        %v8628 = vpack.c.b16 %v8582, %v8581
        %v8629 = vpack.c.b16 %v8584, %v8583
        %v8630 = vpack.c.b16 %v8586, %v8585
        %v8631 = vpack.c.b16 %v8588, %v8587
        %v8632 = vpack.c.b16 %v8590, %v8589
        %v8633 = vpack.c.b16 %v8592, %v8591
        %v8634 = vpack.c.b16 %v8594, %v8593
        %v8635 = vpack.c.b16 %v8596, %v8595
        %v8636 = vpack.c.b16 %v8598, %v8597
        %v8637 = vpack.c.b16 %v8600, %v8599
        %v8638 = vpack.c.b16 %v8602, %v8601
        %v8639 = vpack.c.b16 %v8604, %v8603
        %v8640 = vpack.c.b16 %v8606, %v8605
        %v8641 = vpack.c.b16 %v8608, %v8607
        %v8642 = vpack.c.b16 %v8610, %v8609
        %8675 = vmatprep.subr.bf16.mxu0 0
        %8676 = vmatpush1.bf16.msra.mxu0 %v8618
        %8677 = vmatprep.subr.bf16.mxu0 0
        %8678 = vmatpush1.bf16.msra.mxu0 %v8617
        %8679 = vmatprep.subr.bf16.mxu0 0
        %8680 = vmatpush1.bf16.msra.mxu0 %v8616
        %8681 = vmatprep.subr.bf16.mxu0 0
        %8682 = vmatpush1.bf16.msra.mxu0 %v8615
        %8683 = vmatprep.subr.bf16.mxu0 0
        %8684 = vmatpush1.bf16.msra.mxu0 %v8614
        %8685 = vmatprep.subr.bf16.mxu0 0
        %8686 = vmatpush1.bf16.msra.mxu0 %v8613
        %8687 = vmatprep.subr.bf16.mxu0 0
        %8688 = vmatpush1.bf16.msra.mxu0 %v8612
        %8689 = vmatprep.subr.bf16.mxu0 0
        %8690 = vmatpush1.bf16.msra.mxu0 %v8611
        %8691 = vmatprep.subr.bf16.mxu0 0
        %8692 = vmatpush2.bf16.msra.mxu0 %v8626
        %8693 = vmatprep.subr.bf16.mxu0 0
        %8694 = vmatpush2.bf16.msra.mxu0 %v8625
        %8695 = vmatprep.subr.bf16.mxu0 0
        %8696 = vmatpush2.bf16.msra.mxu0 %v8624
        %8697 = vmatprep.subr.bf16.mxu0 0
        %8698 = vmatpush2.bf16.msra.mxu0 %v8623
        %8699 = vmatprep.subr.bf16.mxu0 0
        %8700 = vmatpush2.bf16.msra.mxu0 %v8622
        %8701 = vmatprep.subr.bf16.mxu0 0
        %8702 = vmatpush2.bf16.msra.mxu0 %v8621
        %8703 = vmatprep.subr.bf16.mxu0 0
        %8704 = vmatpush2.bf16.msra.mxu0 %v8620
        %8705 = vmatprep.subr.bf16.mxu0 0
        %8706 = vmatpush2.bf16.msra.mxu0 %v8619
        %8707 = vmatprep.mubr.bf16.mxu0 %v8415
        %8708 = vmatmul.mubr.bf16.gmra.mxu0 %v8414
        %v8709 = vpop.f32.mrf.mxu0
        %v8710 = vadd.f32 %v8482, %v8709
        %v8711 = vpop.f32.mrf.mxu0
        %v8712 = vpop.f32.mrf.mxu0
        %v8713 = vpop.f32.mrf.mxu0
        %8714 = vdwg.mxu0
        %8715 = vmatprep.subr.bf16.mxu0 0
        %8716 = vmatpush1.bf16.msra.mxu0 %v8634
        %8717 = vmatprep.subr.bf16.mxu0 0
        %8718 = vmatpush1.bf16.msra.mxu0 %v8633
        %8719 = vmatprep.subr.bf16.mxu0 0
        %8720 = vmatpush1.bf16.msra.mxu0 %v8632
        %8721 = vmatprep.subr.bf16.mxu0 0
        %8722 = vmatpush1.bf16.msra.mxu0 %v8631
        %8723 = vmatprep.subr.bf16.mxu0 0
        %8724 = vmatpush1.bf16.msra.mxu0 %v8630
        %8725 = vmatprep.subr.bf16.mxu0 0
        %8726 = vmatpush1.bf16.msra.mxu0 %v8629
        %8727 = vmatprep.subr.bf16.mxu0 0
        %8728 = vmatpush1.bf16.msra.mxu0 %v8628
        %8729 = vmatprep.subr.bf16.mxu0 0
        %8730 = vmatpush1.bf16.msra.mxu0 %v8627
        %8731 = vmatprep.subr.bf16.mxu0 0
        %8732 = vmatpush2.bf16.msra.mxu0 %v8642
        %8733 = vmatprep.subr.bf16.mxu0 0
        %8734 = vmatpush2.bf16.msra.mxu0 %v8641
        %8735 = vmatprep.subr.bf16.mxu0 0
        %8736 = vmatpush2.bf16.msra.mxu0 %v8640
        %8737 = vmatprep.subr.bf16.mxu0 0
        %8738 = vmatpush2.bf16.msra.mxu0 %v8639
        %8739 = vmatprep.subr.bf16.mxu0 0
        %8740 = vmatpush2.bf16.msra.mxu0 %v8638
        %8741 = vmatprep.subr.bf16.mxu0 0
        %8742 = vmatpush2.bf16.msra.mxu0 %v8637
        %8743 = vmatprep.subr.bf16.mxu0 0
        %8744 = vmatpush2.bf16.msra.mxu0 %v8636
        %8745 = vmatprep.subr.bf16.mxu0 0
        %8746 = vmatpush2.bf16.msra.mxu0 %v8635
        %8747 = vmatprep.mubr.bf16.mxu0 %v8417
        %8748 = vmatmul.mubr.bf16.gmra.mxu0 %v8416
        %v8749 = vpop.f32.mrf.mxu0
        %v8750 = vadd.f32 %v8710, %v8749
        %v8751 = vpop.f32.mrf.mxu0
        %v8752 = vpop.f32.mrf.mxu0
        %v8753 = vpop.f32.mrf.mxu0
        %8754 = vdwg.mxu0
        %8755 = vst [vmem:[%s433] sm:$0x1] %v8750
        %s8756 = sand.u32 %s230, 1
        %s8757 = scalar_lea.sflag [#allocation5], %s8756
        %s8758 = sand.u32 %s230, 1
        %s8759 = scalar_lea.vmem [#allocation17], %s8758
        // Predicated region
        $region89: #{fedavg_cnn_forward.1} parent=55 // pred_check
          %p8760 = pneg %p240
        $region90: #{fedavg_cnn_forward.1} parent=55 // pred_check_branch
          %8762 = sbr.rel (%p8760) target = $region92
        $region91: #{fedavg_cnn_forward.1} parent=55 // pred_region
          %s8764 = ssub.s32 16, 16
          %8765 = vsyncadd %s8757, %s8764
          %s8766 = smul.addr %s28, 16
          %s8767 = scalar_lea.hbm %s9, %s8766
          %s8769 = sshll.u32 %s8759, 4
          %s8770 = int_to_ptr.vmem [resolvable:$true] %s8769
          %8772 = dma.vmem_to_hbm [thread:$0]  %s8770, 16, %s8767, %s8757
        $region92: #{fedavg_cnn_forward.1} parent=55 // pred_fallthru
          _
      $region56: #{fedavg_cnn_forward.1} parent=5 // pred_fallthru
        _
      %p8773 = scmp.le.s32.totalorder 2, %s23
      // Predicated region
      $region93: #{fedavg_cnn_forward.1} parent=5 // pred_check
        %p8774 = pneg %p8773
      $region94: #{fedavg_cnn_forward.1} parent=5 // pred_check_branch
        %8776 = sbr.rel (%p8774) target = $region96
      $region95: #{fedavg_cnn_forward.1} parent=5 // pred_region
        %s8777 = ssub.s32 %s23, 2
        // Predicated region
        $region97: #{fedavg_cnn_forward.1} parent=95 // pred_check
          %p8778 = pneg %p246
        $region98: #{fedavg_cnn_forward.1} parent=95 // pred_check_branch
          %8780 = sbr.rel (%p8778) target = $region100
        $region99: #{fedavg_cnn_forward.1} parent=95 // pred_region
          %s8781 = sand.u32 %s231, 1
          %s8782 = scalar_lea.sflag [#allocation5], %s8781
          %s8783 = sand.u32 %s231, 1
          %s8784 = scalar_lea.vmem [#allocation17], %s8783
          %8785 = dma.done %s8782, 16
        $region100: #{fedavg_cnn_forward.1} parent=95 // pred_fallthru
          _
      $region96: #{fedavg_cnn_forward.1} parent=5 // pred_fallthru
        _
    $region6: #{fedavg_cnn_forward.1} parent=1 // loop_footer
      %s27 = sadd.s32 1, %s23
    $region7: #{fedavg_cnn_forward.1} parent=1 // loop_footer_branch
      %22 = sbr.rel target = $region3
    $region8: #{fedavg_cnn_forward.1} parent=1 // loop_exit
      _
    %8786 = vsyncpa [#allocation4], 1
    %s8787 = scalar_lea.sflag [#allocation4], 1
    %8788 = vsyncpa %s8787, 1
    %8789 = vsyncpa [#allocation7], 1
    %8790 = vsyncpa [#allocation10], 1
    %8791 = vsyncpa [#allocation13], 1
    %8792 = vsyncpa [#allocation16], 1
    %8793 = vsyncpa [#allocation5], 1
    %s8794 = scalar_lea.sflag [#allocation5], 1
    %8795 = vsyncpa %s8794, 1

</llo_original>
